<compile_context>
chip_gen: v5e
topology: v5e:2x2
jax: 0.10.0
libtpu: 0.0.40
codegen_flags: <defaults>
</compile_context>

<pallas_src>
import functools

import jax
import jax.numpy as jnp
from jax.experimental import pallas as pl
from jax.experimental.pallas import tpu as pltpu


def _round_up(x, m):
    return (x + m - 1) // m * m


# ----------------------------------------------------------------------------
# Fused head kernel.  One grid step == one image.
#   x_ref            : (H*W, Cin)        bf16 activations in matmul layout
#   w1f, b1f         : fused layer-1 weights (9*Cin, 2F) bf16 / (1, 2F) f32
#   r*/c* weights    : (9*F, Cout_l)     im2col-reshaped HWIO weights, bf16
#   r*/c* biases     : (1, Cout_l)       f32
#   reg_ref          : (H*W, reg_pad)    f32 (lane-dense, Cout padded to 128k)
#   cls_ref          : (H*W, cls_pad)    f32
# ----------------------------------------------------------------------------
def head_kernel(x_ref,
                w1f, b1f,
                rw2, rb2, rw3, rb3, rw4, rb4, rwo, rbo,
                cw2, cb2, cw3, cb3, cw4, cb4, cwo, cbo,
                reg_ref, cls_ref,
                *, H, W, F):
    HW = H * W

    # Column-boundary masks, built once and shared by every conv of both
    # branches.  Shape (H*W, 1): broadcast along lanes at use sites.
    col = jax.lax.broadcasted_iota(jnp.int32, (HW, 1), 0) % W
    m_lft = col >= 1            # w - 1 is in bounds
    m_rgt = col < (W - 1)       # w + 1 is in bounds

    def col_shift(a, dx):
        # out[i] = a[i + dx] with out-of-row columns zeroed.  dx = +/-1 is the
        # only unaligned (offset-1) sublane move per conv.
        if dx == 0:
            return a
        z = jnp.zeros((1, a.shape[1]), a.dtype)
        if dx > 0:
            s = jnp.concatenate([a[1:], z], axis=0)
            m = m_rgt
        else:
            s = jnp.concatenate([z, a[:-1]], axis=0)
            m = m_lft
        return jnp.where(m, s, jnp.zeros_like(s))

    def row_shift(a, dy):
        # out[i] = a[i + dy*W]; the zero fill IS the top/bottom SAME padding,
        # and the slices are at sublane offset W (tile-aligned for W % 16 == 0).
        if dy == 0:
            return a
        z = jnp.zeros((W, a.shape[1]), a.dtype)
        if dy > 0:
            return jnp.concatenate([a[W:], z], axis=0)
        return jnp.concatenate([z, a[:-W]], axis=0)

    def im2col(a):
        # (H*W, C) -> (H*W, 9*C); tap order (dy, dx) row-major matches the
        # (ky*3 + kx)*Cin + ci row order of the im2col'd weights.
        by_dx = [col_shift(a, dx) for dx in (-1, 0, 1)]   # 2 unaligned shifts
        cols = [row_shift(by_dx[dx + 1], dy)
                for dy in (-1, 0, 1) for dx in (-1, 0, 1)]
        return jnp.concatenate(cols, axis=-1)

    def conv(a_bf16, w_ref, b_ref, relu):
        # One MXU matmul: bf16 operands, f32 accumulation / bias / ReLU.
        y = jnp.dot(im2col(a_bf16), w_ref[...],
                    preferred_element_type=jnp.float32)
        y = y + b_ref[...]
        return jnp.maximum(y, 0.0) if relu else y

    # Layer 1: one shared im2col(x); reg & cls branches fused along Cout.
    y1 = conv(x_ref[...], w1f, b1f, relu=True)            # (H*W, 2F) f32
    reg_a = y1[:, :F].astype(jnp.bfloat16)
    cls_a = y1[:, F:].astype(jnp.bfloat16)

    def tower(a, layers, out_ref):
        for w, b in layers[:-1]:
            a = conv(a, w, b, relu=True).astype(jnp.bfloat16)
        w, b = layers[-1]
        out_ref[...] = conv(a, w, b, relu=False).astype(out_ref.dtype)

    tower(reg_a, ((rw2, rb2), (rw3, rb3), (rw4, rb4), (rwo, rbo)), reg_ref)
    tower(cls_a, ((cw2, cb2), (cw3, cb3), (cw4, cb4), (cwo, cbo)), cls_ref)


# ----------------------------------------------------------------------------
# Parameter init (PyTorch-style OIHW) and conversion to kernel layout.
# ----------------------------------------------------------------------------
def _init_conv(key, cin, cout, scale=0.05):
    kw, kb = jax.random.split(key)
    w = scale * jax.random.normal(kw, (cout, cin, 3, 3), jnp.float32)  # OIHW
    b = scale * jax.random.normal(kb, (cout,), jnp.float32)
    return w, b


def init_head_params(key, num_features_in, feature_size, num_anchors, num_classes):
    keys = jax.random.split(key, 11)
    p = {}
    p["reg_conv1"] = _init_conv(keys[0], num_features_in, feature_size)
    p["reg_conv2"] = _init_conv(keys[1], feature_size, feature_size)
    p["reg_conv3"] = _init_conv(keys[2], feature_size, feature_size)
    p["reg_conv4"] = _init_conv(keys[3], feature_size, feature_size)
    p["reg_out"] = _init_conv(keys[4], feature_size, num_anchors * 4)
    p["reg_ctr"] = _init_conv(keys[5], feature_size, num_anchors * 1)
    p["cls_conv1"] = _init_conv(keys[6], num_features_in, feature_size)
    p["cls_conv2"] = _init_conv(keys[7], feature_size, feature_size)
    p["cls_conv3"] = _init_conv(keys[8], feature_size, feature_size)
    p["cls_conv4"] = _init_conv(keys[9], feature_size, feature_size)
    p["cls_out"] = _init_conv(keys[10], feature_size, num_anchors * num_classes)
    return p


def _conv_matrix(w_oihw):
    # OIHW -> HWIO -> (9*Cin, Cout); row index = (ky*3 + kx)*Cin + ci, matching
    # the kernel's im2col tap order.
    cin, cout = w_oihw.shape[1], w_oihw.shape[0]
    return jnp.transpose(w_oihw, (2, 3, 1, 0)).reshape(9 * cin, cout)


def _prep_kernel_params(params, num_anchors, num_classes):
    A = num_anchors
    reg_c = A * 5                       # A*4 box regression + A centerness
    cls_c = A * num_classes
    reg_pad = _round_up(reg_c, 128)
    cls_pad = _round_up(cls_c, 128)

    def wm(name):
        return _conv_matrix(params[name][0])

    def bm(name):
        return params[name][1].reshape(1, -1)

    layers = []
    # Layer 1 of both branches fused along Cout (shared im2col(x) in-kernel).
    w1 = jnp.concatenate([wm("reg_conv1"), wm("cls_conv1")], axis=1)
    b1 = jnp.concatenate([bm("reg_conv1"), bm("cls_conv1")], axis=1)
    layers.append((w1.astype(jnp.bfloat16), b1.astype(jnp.float32)))

    for name in ("reg_conv2", "reg_conv3", "reg_conv4"):
        layers.append((wm(name).astype(jnp.bfloat16),
                       bm(name).astype(jnp.float32)))
    # reg_out + reg_ctr fused into one output conv, Cout padded to 128 lanes.
    w_ro = jnp.concatenate([wm("reg_out"), wm("reg_ctr")], axis=1)
    b_ro = jnp.concatenate([bm("reg_out"), bm("reg_ctr")], axis=1)
    layers.append(
        (jnp.pad(w_ro, ((0, 0), (0, reg_pad - reg_c))).astype(jnp.bfloat16),
         jnp.pad(b_ro, ((0, 0), (0, reg_pad - reg_c))).astype(jnp.float32)))

    for name in ("cls_conv2", "cls_conv3", "cls_conv4"):
        layers.append((wm(name).astype(jnp.bfloat16),
                       bm(name).astype(jnp.float32)))
    layers.append(
        (jnp.pad(wm("cls_out"), ((0, 0), (0, cls_pad - cls_c))).astype(jnp.bfloat16),
         jnp.pad(bm("cls_out"), ((0, 0), (0, cls_pad - cls_c))).astype(jnp.float32)))
    return layers, reg_pad, cls_pad


# ----------------------------------------------------------------------------
# HeadModel forward (NCHW input like the PyTorch module).
# ----------------------------------------------------------------------------
def head_model_forward(params, x_nchw, *, num_anchors, num_classes):
    N, Cin, H, W = x_nchw.shape
    A = num_anchors
    F = params["reg_conv2"][0].shape[1]
    layers, reg_pad, cls_pad = _prep_kernel_params(params, num_anchors, num_classes)

    # NCHW -> (N, H*W, Cin) bf16: the matmul-native activation layout.
    x = jnp.transpose(x_nchw, (0, 2, 3, 1)).reshape(N, H * W, Cin)
    x = x.astype(jnp.bfloat16)

    inputs = [x]
    in_specs = [pl.BlockSpec((None, H * W, Cin), lambda i: (i, 0, 0))]
    # TODO(synk): at production feature_size=256 single-buffer these
    # per-grid-constant weights (pipeline_mode=pl.Buffered(1)) to free VMEM.
    for w, b in layers:                                          # weights stay
        inputs += [w, b]                                         # VMEM-resident
        in_specs += [pl.BlockSpec(w.shape, lambda i: (0, 0)),
                     pl.BlockSpec(b.shape, lambda i: (0, 0))]

    kern = functools.partial(head_kernel, H=H, W=W, F=F)
    reg_slab, cls_slab = pl.pallas_call(
        kern,
        grid=(N,),
        out_shape=(jax.ShapeDtypeStruct((N, H * W, reg_pad), jnp.float32),
                   jax.ShapeDtypeStruct((N, H * W, cls_pad), jnp.float32)),
        in_specs=in_specs,
        out_specs=(pl.BlockSpec((None, H * W, reg_pad), lambda i: (i, 0, 0)),
                   pl.BlockSpec((None, H * W, cls_pad), lambda i: (i, 0, 0))),
        compiler_params=pltpu.CompilerParams(
            dimension_semantics=("parallel",),
            # Fits comfortably on v7x's 64 MiB/TC while leaving v5e/v6e room
            # for bigger tiles once row-band tiling lands.
            vmem_limit_bytes=48 * 1024 * 1024),
    )(*inputs)

    reg = reg_slab[:, :, :A * 4].reshape(N, H * W * A, 4)
    ctr = reg_slab[:, :, A * 4:A * 5].reshape(N, H * W * A, 1)
    obj_cls = cls_slab[:, :, :A * num_classes].reshape(N, H * W * A, num_classes)
    return obj_cls, reg, ctr


# ----------------------------------------------------------------------------
# Pure-JAX reference (lax conv).  emulate_bf16=True mirrors the kernel's
# numerics (bf16 matmul inputs, f32 accumulation / bias / ReLU).
# ----------------------------------------------------------------------------
def _conv3x3_ref(x_nhwc, w_oihw, b, *, relu, emulate_bf16):
    w_hwio = jnp.transpose(w_oihw, (2, 3, 1, 0))
    if emulate_bf16:
        xi, wi, prec = x_nhwc.astype(jnp.bfloat16), w_hwio.astype(jnp.bfloat16), None
    else:
        xi, wi, prec = x_nhwc, w_hwio, jax.lax.Precision.HIGHEST
    y = jax.lax.conv_general_dilated(
        xi, wi, window_strides=(1, 1), padding="SAME",
        dimension_numbers=("NHWC", "HWIO", "NHWC"),
        preferred_element_type=jnp.float32, precision=prec) + b
    return jnp.maximum(y, 0.0) if relu else y


def head_model_ref(params, x_nchw, *, num_anchors, num_classes, emulate_bf16):
    N = x_nchw.shape[0]
    x = jnp.transpose(x_nchw, (0, 2, 3, 1))
    h = x
    for name in ("reg_conv1", "reg_conv2", "reg_conv3", "reg_conv4"):
        h = _conv3x3_ref(h, *params[name], relu=True, emulate_bf16=emulate_bf16)
    reg = _conv3x3_ref(h, *params["reg_out"], relu=False,
                       emulate_bf16=emulate_bf16).reshape(N, -1, 4)
    ctr = _conv3x3_ref(h, *params["reg_ctr"], relu=False,
                       emulate_bf16=emulate_bf16).reshape(N, -1, 1)
    c = x
    for name in ("cls_conv1", "cls_conv2", "cls_conv3", "cls_conv4"):
        c = _conv3x3_ref(c, *params[name], relu=True, emulate_bf16=emulate_bf16)
    obj_cls = _conv3x3_ref(c, *params["cls_out"], relu=False,
                           emulate_bf16=emulate_bf16).reshape(N, -1, num_classes)
    return obj_cls, reg, ctr


if __name__ == "__main__":
    # Small deterministic config consistent with the module's forward.
    N, C_in, H, W = 2, 4, 16, 16
    feature_size = 32
    num_anchors = 4
    num_classes = 8

    key = jax.random.PRNGKey(0)
    k_params, k_x = jax.random.split(key)
    params = init_head_params(k_params, C_in, feature_size, num_anchors, num_classes)
    x = jax.random.normal(k_x, (N, C_in, H, W), jnp.float32)     # NCHW input

    fwd = jax.jit(functools.partial(head_model_forward,
                                    num_anchors=num_anchors,
                                    num_classes=num_classes))
    obj_cls, reg, ctr = fwd(params, x)
    jax.block_until_ready((obj_cls, reg, ctr))

    # Shape checks (same outputs as the PyTorch HeadModel).
    assert obj_cls.shape == (N, H * W * num_anchors, num_classes)
    assert reg.shape == (N, H * W * num_anchors, 4)
    assert ctr.shape == (N, H * W * num_anchors, 1)

    # Tight check vs a reference with identical bf16-matmul / f32-accumulate numerics.
    r_cls, r_reg, r_ctr = head_model_ref(params, x, num_anchors=num_anchors,
                                         num_classes=num_classes, emulate_bf16=True)
    for got, ref in ((obj_cls, r_cls), (reg, r_reg), (ctr, r_ctr)):
        assert jnp.max(jnp.abs(got - ref)) < 2e-3

    # Loose semantic sanity check vs a full-f32 reference (bf16 quantization slack).
    f_cls, f_reg, f_ctr = head_model_ref(params, x, num_anchors=num_anchors,
                                         num_classes=num_classes, emulate_bf16=False)
    for got, ref in ((obj_cls, f_cls), (reg, f_reg), (ctr, f_ctr)):
        assert jnp.max(jnp.abs(got - ref)) < 1e-1

    print("KERNEL_OK")
</pallas_src>

<mosaic_0001>
module attributes {stable_mosaic.version = 11 : i64} {
  func.func @head_kernel(%arg0: i32, %arg1: memref<1x256x4xbf16, #tpu.memory_space<vmem>>, %arg2: memref<36x64xbf16, #tpu.memory_space<vmem>>, %arg3: memref<1x64xf32, #tpu.memory_space<vmem>>, %arg4: memref<288x32xbf16, #tpu.memory_space<vmem>>, %arg5: memref<1x32xf32, #tpu.memory_space<vmem>>, %arg6: memref<288x32xbf16, #tpu.memory_space<vmem>>, %arg7: memref<1x32xf32, #tpu.memory_space<vmem>>, %arg8: memref<288x32xbf16, #tpu.memory_space<vmem>>, %arg9: memref<1x32xf32, #tpu.memory_space<vmem>>, %arg10: memref<288x128xbf16, #tpu.memory_space<vmem>>, %arg11: memref<1x128xf32, #tpu.memory_space<vmem>>, %arg12: memref<288x32xbf16, #tpu.memory_space<vmem>>, %arg13: memref<1x32xf32, #tpu.memory_space<vmem>>, %arg14: memref<288x32xbf16, #tpu.memory_space<vmem>>, %arg15: memref<1x32xf32, #tpu.memory_space<vmem>>, %arg16: memref<288x32xbf16, #tpu.memory_space<vmem>>, %arg17: memref<1x32xf32, #tpu.memory_space<vmem>>, %arg18: memref<288x128xbf16, #tpu.memory_space<vmem>>, %arg19: memref<1x128xf32, #tpu.memory_space<vmem>>, %arg20: memref<1x256x128xf32, #tpu.memory_space<vmem>>, %arg21: memref<1x256x128xf32, #tpu.memory_space<vmem>>) attributes {dimension_semantics = [#tpu.dimension_semantics<parallel>], iteration_bounds = array<i64: 2>, scalar_prefetch = 0 : i64, scratch_operands = 0 : i64, tpu.core_type = #tpu.core_type<tc>, window_params = [{transform_indices = @transform_0, window_bounds = array<i64: 1, 256, 4>}, {pipeline_mode = #tpu.pipeline_mode<synchronous>, transform_indices = @transform_1, window_bounds = array<i64: 36, 64>}, {pipeline_mode = #tpu.pipeline_mode<synchronous>, transform_indices = @transform_2, window_bounds = array<i64: 1, 64>}, {pipeline_mode = #tpu.pipeline_mode<synchronous>, transform_indices = @transform_3, window_bounds = array<i64: 288, 32>}, {pipeline_mode = #tpu.pipeline_mode<synchronous>, transform_indices = @transform_4, window_bounds = array<i64: 1, 32>}, {pipeline_mode = #tpu.pipeline_mode<synchronous>, transform_indices = @transform_5, window_bounds = array<i64: 288, 32>}, {pipeline_mode = #tpu.pipeline_mode<synchronous>, transform_indices = @transform_6, window_bounds = array<i64: 1, 32>}, {pipeline_mode = #tpu.pipeline_mode<synchronous>, transform_indices = @transform_7, window_bounds = array<i64: 288, 32>}, {pipeline_mode = #tpu.pipeline_mode<synchronous>, transform_indices = @transform_8, window_bounds = array<i64: 1, 32>}, {pipeline_mode = #tpu.pipeline_mode<synchronous>, transform_indices = @transform_9, window_bounds = array<i64: 288, 128>}, {pipeline_mode = #tpu.pipeline_mode<synchronous>, transform_indices = @transform_10, window_bounds = array<i64: 1, 128>}, {pipeline_mode = #tpu.pipeline_mode<synchronous>, transform_indices = @transform_11, window_bounds = array<i64: 288, 32>}, {pipeline_mode = #tpu.pipeline_mode<synchronous>, transform_indices = @transform_12, window_bounds = array<i64: 1, 32>}, {pipeline_mode = #tpu.pipeline_mode<synchronous>, transform_indices = @transform_13, window_bounds = array<i64: 288, 32>}, {pipeline_mode = #tpu.pipeline_mode<synchronous>, transform_indices = @transform_14, window_bounds = array<i64: 1, 32>}, {pipeline_mode = #tpu.pipeline_mode<synchronous>, transform_indices = @transform_15, window_bounds = array<i64: 288, 32>}, {pipeline_mode = #tpu.pipeline_mode<synchronous>, transform_indices = @transform_16, window_bounds = array<i64: 1, 32>}, {pipeline_mode = #tpu.pipeline_mode<synchronous>, transform_indices = @transform_17, window_bounds = array<i64: 288, 128>}, {pipeline_mode = #tpu.pipeline_mode<synchronous>, transform_indices = @transform_18, window_bounds = array<i64: 1, 128>}, {transform_indices = @transform_19, window_bounds = array<i64: 1, 256, 128>}, {transform_indices = @transform_20, window_bounds = array<i64: 1, 256, 128>}]} {
    %0 = tpu.iota {dimensions = array<i32: 0>} : vector<256x1xi32>
    %c16_i32 = arith.constant 16 : i32
    %c0_i32 = arith.constant 0 : i32
    %1 = arith.cmpi eq, %c16_i32, %c0_i32 : i32
    %c1_i32 = arith.constant 1 : i32
    %2 = arith.select %1, %c1_i32, %c16_i32 : i32
    %3 = vector.broadcast %2 : i32 to vector<256x1xi32>
    %4 = arith.remsi %0, %3 : vector<256x1xi32>
    %c0_i32_0 = arith.constant 0 : i32
    %5 = vector.broadcast %c0_i32_0 : i32 to vector<256x1xi32>
    %6 = arith.cmpi ne, %4, %5 : vector<256x1xi32>
    %c0_i32_1 = arith.constant 0 : i32
    %7 = vector.broadcast %c0_i32_1 : i32 to vector<256x1xi32>
    %8 = arith.cmpi slt, %4, %7 : vector<256x1xi32>
    %c0_i32_2 = arith.constant 0 : i32
    %9 = arith.cmpi slt, %2, %c0_i32_2 : i32
    %10 = vector.broadcast %9 : i1 to vector<256x1xi1>
    %11 = vector.broadcast %10 : vector<256x1xi1> to vector<256x1xi1>
    %12 = arith.xori %8, %11 : vector<256x1xi1>
    %13 = arith.andi %12, %6 : vector<256x1xi1>
    %14 = vector.broadcast %2 : i32 to vector<256x1xi32>
    %15 = arith.addi %4, %14 : vector<256x1xi32>
    %16 = arith.select %13, %15, %4 : vector<256x1xi1>, vector<256x1xi32>
    %c1_i32_3 = arith.constant 1 : i32
    %17 = vector.broadcast %c1_i32_3 : i32 to vector<256x1xi32>
    %18 = arith.cmpi sge, %16, %17 : vector<256x1xi32>
    %c15_i32 = arith.constant 15 : i32
    %19 = vector.broadcast %c15_i32 : i32 to vector<256x1xi32>
    %20 = arith.cmpi slt, %16, %19 : vector<256x1xi32>
    %c0 = arith.constant 0 : index
    %c0_4 = arith.constant 0 : index
    %c0_5 = arith.constant 0 : index
    %21 = vector.load %arg1[%c0, %c0_4, %c0_5] : memref<1x256x4xbf16, #tpu.memory_space<vmem>>, vector<1x256x4xbf16>
    %22 = vector.shape_cast %21 : vector<1x256x4xbf16> to vector<256x4xbf16>
    %cst = arith.constant 0.000000e+00 : bf16
    %23 = vector.broadcast %cst : bf16 to vector<1x4xbf16>
    %24 = vector.extract_strided_slice %22 {offsets = [0, 0], sizes = [255, 4], strides = [1, 1]} : vector<256x4xbf16> to vector<255x4xbf16>
    %25 = tpu.concatenate %23, %24 in 0 : vector<1x4xbf16>, vector<255x4xbf16> -> vector<256x4xbf16>
    %cst_6 = arith.constant 0.000000e+00 : bf16
    %26 = vector.broadcast %cst_6 : bf16 to vector<256x4xbf16>
    %27 = vector.shape_cast %18 : vector<256x1xi1> to vector<256x1xi1>
    %28 = vector.broadcast %27 : vector<256x1xi1> to vector<256x4xi1>
    %29 = arith.select %28, %25, %26 : vector<256x4xi1>, vector<256x4xbf16>
    %cst_7 = arith.constant 0.000000e+00 : bf16
    %30 = vector.broadcast %cst_7 : bf16 to vector<1x4xbf16>
    %31 = vector.extract_strided_slice %22 {offsets = [1, 0], sizes = [255, 4], strides = [1, 1]} : vector<256x4xbf16> to vector<255x4xbf16>
    %32 = tpu.concatenate %31, %30 in 0 : vector<255x4xbf16>, vector<1x4xbf16> -> vector<256x4xbf16>
    %cst_8 = arith.constant 0.000000e+00 : bf16
    %33 = vector.broadcast %cst_8 : bf16 to vector<256x4xbf16>
    %34 = vector.shape_cast %20 : vector<256x1xi1> to vector<256x1xi1>
    %35 = vector.broadcast %34 : vector<256x1xi1> to vector<256x4xi1>
    %36 = arith.select %35, %32, %33 : vector<256x4xi1>, vector<256x4xbf16>
    %cst_9 = arith.constant 0.000000e+00 : bf16
    %37 = vector.broadcast %cst_9 : bf16 to vector<16x4xbf16>
    %38 = vector.extract_strided_slice %29 {offsets = [0, 0], sizes = [240, 4], strides = [1, 1]} : vector<256x4xbf16> to vector<240x4xbf16>
    %39 = tpu.concatenate %37, %38 in 0 : vector<16x4xbf16>, vector<240x4xbf16> -> vector<256x4xbf16>
    %cst_10 = arith.constant 0.000000e+00 : bf16
    %40 = vector.broadcast %cst_10 : bf16 to vector<16x4xbf16>
    %41 = vector.extract_strided_slice %22 {offsets = [0, 0], sizes = [240, 4], strides = [1, 1]} : vector<256x4xbf16> to vector<240x4xbf16>
    %42 = tpu.concatenate %40, %41 in 0 : vector<16x4xbf16>, vector<240x4xbf16> -> vector<256x4xbf16>
    %cst_11 = arith.constant 0.000000e+00 : bf16
    %43 = vector.broadcast %cst_11 : bf16 to vector<16x4xbf16>
    %44 = vector.extract_strided_slice %36 {offsets = [0, 0], sizes = [240, 4], strides = [1, 1]} : vector<256x4xbf16> to vector<240x4xbf16>
    %45 = tpu.concatenate %43, %44 in 0 : vector<16x4xbf16>, vector<240x4xbf16> -> vector<256x4xbf16>
    %cst_12 = arith.constant 0.000000e+00 : bf16
    %46 = vector.broadcast %cst_12 : bf16 to vector<16x4xbf16>
    %47 = vector.extract_strided_slice %29 {offsets = [16, 0], sizes = [240, 4], strides = [1, 1]} : vector<256x4xbf16> to vector<240x4xbf16>
    %48 = tpu.concatenate %47, %46 in 0 : vector<240x4xbf16>, vector<16x4xbf16> -> vector<256x4xbf16>
    %cst_13 = arith.constant 0.000000e+00 : bf16
    %49 = vector.broadcast %cst_13 : bf16 to vector<16x4xbf16>
    %50 = vector.extract_strided_slice %22 {offsets = [16, 0], sizes = [240, 4], strides = [1, 1]} : vector<256x4xbf16> to vector<240x4xbf16>
    %51 = tpu.concatenate %50, %49 in 0 : vector<240x4xbf16>, vector<16x4xbf16> -> vector<256x4xbf16>
    %cst_14 = arith.constant 0.000000e+00 : bf16
    %52 = vector.broadcast %cst_14 : bf16 to vector<16x4xbf16>
    %53 = vector.extract_strided_slice %36 {offsets = [16, 0], sizes = [240, 4], strides = [1, 1]} : vector<256x4xbf16> to vector<240x4xbf16>
    %54 = tpu.concatenate %53, %52 in 0 : vector<240x4xbf16>, vector<16x4xbf16> -> vector<256x4xbf16>
    %55 = tpu.concatenate %39, %42, %45, %29, %22, %36, %48, %51, %54 in 1 : vector<256x4xbf16>, vector<256x4xbf16>, vector<256x4xbf16>, vector<256x4xbf16>, vector<256x4xbf16>, vector<256x4xbf16>, vector<256x4xbf16>, vector<256x4xbf16>, vector<256x4xbf16> -> vector<256x36xbf16>
    %c0_15 = arith.constant 0 : index
    %c0_16 = arith.constant 0 : index
    %56 = vector.load %arg2[%c0_15, %c0_16] : memref<36x64xbf16, #tpu.memory_space<vmem>>, vector<36x64xbf16>
    %cst_17 = arith.constant dense<0.000000e+00> : vector<256x64xf32>
    %57 = tpu.matmul %55, %56, %cst_17 {dimension_numbers = #tpu.dot_dimension_numbers<[1], [0], [0], [1], [0, 0, 1, 1], [], []>} : vector<256x36xbf16>, vector<36x64xbf16>, vector<256x64xf32> -> vector<256x64xf32>
    %c0_18 = arith.constant 0 : index
    %c0_19 = arith.constant 0 : index
    %58 = vector.load %arg3[%c0_18, %c0_19] : memref<1x64xf32, #tpu.memory_space<vmem>>, vector<1x64xf32>
    %59 = vector.broadcast %58 : vector<1x64xf32> to vector<256x64xf32>
    %60 = arith.addf %57, %59 : vector<256x64xf32>
    %cst_20 = arith.constant 0.000000e+00 : f32
    %61 = vector.broadcast %cst_20 : f32 to vector<256x64xf32>
    %62 = arith.maximumf %60, %61 : vector<256x64xf32>
    %63 = vector.extract_strided_slice %62 {offsets = [0, 0], sizes = [256, 32], strides = [1, 1]} : vector<256x64xf32> to vector<256x32xf32>
    %64 = arith.truncf %63 : vector<256x32xf32> to vector<256x32xbf16>
    %65 = vector.extract_strided_slice %62 {offsets = [0, 32], sizes = [256, 32], strides = [1, 1]} : vector<256x64xf32> to vector<256x32xf32>
    %66 = arith.truncf %65 : vector<256x32xf32> to vector<256x32xbf16>
    %cst_21 = arith.constant 0.000000e+00 : bf16
    %67 = vector.broadcast %cst_21 : bf16 to vector<1x32xbf16>
    %68 = vector.extract_strided_slice %64 {offsets = [0, 0], sizes = [255, 32], strides = [1, 1]} : vector<256x32xbf16> to vector<255x32xbf16>
    %69 = tpu.concatenate %67, %68 in 0 : vector<1x32xbf16>, vector<255x32xbf16> -> vector<256x32xbf16>
    %cst_22 = arith.constant 0.000000e+00 : bf16
    %70 = vector.broadcast %cst_22 : bf16 to vector<256x32xbf16>
    %71 = vector.shape_cast %18 : vector<256x1xi1> to vector<256x1xi1>
    %72 = vector.broadcast %71 : vector<256x1xi1> to vector<256x32xi1>
    %73 = arith.select %72, %69, %70 : vector<256x32xi1>, vector<256x32xbf16>
    %cst_23 = arith.constant 0.000000e+00 : bf16
    %74 = vector.broadcast %cst_23 : bf16 to vector<1x32xbf16>
    %75 = vector.extract_strided_slice %64 {offsets = [1, 0], sizes = [255, 32], strides = [1, 1]} : vector<256x32xbf16> to vector<255x32xbf16>
    %76 = tpu.concatenate %75, %74 in 0 : vector<255x32xbf16>, vector<1x32xbf16> -> vector<256x32xbf16>
    %cst_24 = arith.constant 0.000000e+00 : bf16
    %77 = vector.broadcast %cst_24 : bf16 to vector<256x32xbf16>
    %78 = vector.shape_cast %20 : vector<256x1xi1> to vector<256x1xi1>
    %79 = vector.broadcast %78 : vector<256x1xi1> to vector<256x32xi1>
    %80 = arith.select %79, %76, %77 : vector<256x32xi1>, vector<256x32xbf16>
    %cst_25 = arith.constant 0.000000e+00 : bf16
    %81 = vector.broadcast %cst_25 : bf16 to vector<16x32xbf16>
    %82 = vector.extract_strided_slice %73 {offsets = [0, 0], sizes = [240, 32], strides = [1, 1]} : vector<256x32xbf16> to vector<240x32xbf16>
    %83 = tpu.concatenate %81, %82 in 0 : vector<16x32xbf16>, vector<240x32xbf16> -> vector<256x32xbf16>
    %cst_26 = arith.constant 0.000000e+00 : bf16
    %84 = vector.broadcast %cst_26 : bf16 to vector<16x32xbf16>
    %85 = vector.extract_strided_slice %64 {offsets = [0, 0], sizes = [240, 32], strides = [1, 1]} : vector<256x32xbf16> to vector<240x32xbf16>
    %86 = tpu.concatenate %84, %85 in 0 : vector<16x32xbf16>, vector<240x32xbf16> -> vector<256x32xbf16>
    %cst_27 = arith.constant 0.000000e+00 : bf16
    %87 = vector.broadcast %cst_27 : bf16 to vector<16x32xbf16>
    %88 = vector.extract_strided_slice %80 {offsets = [0, 0], sizes = [240, 32], strides = [1, 1]} : vector<256x32xbf16> to vector<240x32xbf16>
    %89 = tpu.concatenate %87, %88 in 0 : vector<16x32xbf16>, vector<240x32xbf16> -> vector<256x32xbf16>
    %cst_28 = arith.constant 0.000000e+00 : bf16
    %90 = vector.broadcast %cst_28 : bf16 to vector<16x32xbf16>
    %91 = vector.extract_strided_slice %73 {offsets = [16, 0], sizes = [240, 32], strides = [1, 1]} : vector<256x32xbf16> to vector<240x32xbf16>
    %92 = tpu.concatenate %91, %90 in 0 : vector<240x32xbf16>, vector<16x32xbf16> -> vector<256x32xbf16>
    %cst_29 = arith.constant 0.000000e+00 : bf16
    %93 = vector.broadcast %cst_29 : bf16 to vector<16x32xbf16>
    %94 = vector.extract_strided_slice %64 {offsets = [16, 0], sizes = [240, 32], strides = [1, 1]} : vector<256x32xbf16> to vector<240x32xbf16>
    %95 = tpu.concatenate %94, %93 in 0 : vector<240x32xbf16>, vector<16x32xbf16> -> vector<256x32xbf16>
    %cst_30 = arith.constant 0.000000e+00 : bf16
    %96 = vector.broadcast %cst_30 : bf16 to vector<16x32xbf16>
    %97 = vector.extract_strided_slice %80 {offsets = [16, 0], sizes = [240, 32], strides = [1, 1]} : vector<256x32xbf16> to vector<240x32xbf16>
    %98 = tpu.concatenate %97, %96 in 0 : vector<240x32xbf16>, vector<16x32xbf16> -> vector<256x32xbf16>
    %99 = tpu.concatenate %83, %86, %89, %73, %64, %80, %92, %95, %98 in 1 : vector<256x32xbf16>, vector<256x32xbf16>, vector<256x32xbf16>, vector<256x32xbf16>, vector<256x32xbf16>, vector<256x32xbf16>, vector<256x32xbf16>, vector<256x32xbf16>, vector<256x32xbf16> -> vector<256x288xbf16>
    %c0_31 = arith.constant 0 : index
    %c0_32 = arith.constant 0 : index
    %100 = vector.load %arg4[%c0_31, %c0_32] : memref<288x32xbf16, #tpu.memory_space<vmem>>, vector<288x32xbf16>
    %cst_33 = arith.constant dense<0.000000e+00> : vector<256x32xf32>
    %101 = tpu.matmul %99, %100, %cst_33 {dimension_numbers = #tpu.dot_dimension_numbers<[1], [0], [0], [1], [0, 0, 1, 1], [], []>} : vector<256x288xbf16>, vector<288x32xbf16>, vector<256x32xf32> -> vector<256x32xf32>
    %c0_34 = arith.constant 0 : index
    %c0_35 = arith.constant 0 : index
    %102 = vector.load %arg5[%c0_34, %c0_35] : memref<1x32xf32, #tpu.memory_space<vmem>>, vector<1x32xf32>
    %103 = vector.broadcast %102 : vector<1x32xf32> to vector<256x32xf32>
    %104 = arith.addf %101, %103 : vector<256x32xf32>
    %cst_36 = arith.constant 0.000000e+00 : f32
    %105 = vector.broadcast %cst_36 : f32 to vector<256x32xf32>
    %106 = arith.maximumf %104, %105 : vector<256x32xf32>
    %107 = arith.truncf %106 : vector<256x32xf32> to vector<256x32xbf16>
    %cst_37 = arith.constant 0.000000e+00 : bf16
    %108 = vector.broadcast %cst_37 : bf16 to vector<1x32xbf16>
    %109 = vector.extract_strided_slice %107 {offsets = [0, 0], sizes = [255, 32], strides = [1, 1]} : vector<256x32xbf16> to vector<255x32xbf16>
    %110 = tpu.concatenate %108, %109 in 0 : vector<1x32xbf16>, vector<255x32xbf16> -> vector<256x32xbf16>
    %cst_38 = arith.constant 0.000000e+00 : bf16
    %111 = vector.broadcast %cst_38 : bf16 to vector<256x32xbf16>
    %112 = vector.shape_cast %18 : vector<256x1xi1> to vector<256x1xi1>
    %113 = vector.broadcast %112 : vector<256x1xi1> to vector<256x32xi1>
    %114 = arith.select %113, %110, %111 : vector<256x32xi1>, vector<256x32xbf16>
    %cst_39 = arith.constant 0.000000e+00 : bf16
    %115 = vector.broadcast %cst_39 : bf16 to vector<1x32xbf16>
    %116 = vector.extract_strided_slice %107 {offsets = [1, 0], sizes = [255, 32], strides = [1, 1]} : vector<256x32xbf16> to vector<255x32xbf16>
    %117 = tpu.concatenate %116, %115 in 0 : vector<255x32xbf16>, vector<1x32xbf16> -> vector<256x32xbf16>
    %cst_40 = arith.constant 0.000000e+00 : bf16
    %118 = vector.broadcast %cst_40 : bf16 to vector<256x32xbf16>
    %119 = vector.shape_cast %20 : vector<256x1xi1> to vector<256x1xi1>
    %120 = vector.broadcast %119 : vector<256x1xi1> to vector<256x32xi1>
    %121 = arith.select %120, %117, %118 : vector<256x32xi1>, vector<256x32xbf16>
    %cst_41 = arith.constant 0.000000e+00 : bf16
    %122 = vector.broadcast %cst_41 : bf16 to vector<16x32xbf16>
    %123 = vector.extract_strided_slice %114 {offsets = [0, 0], sizes = [240, 32], strides = [1, 1]} : vector<256x32xbf16> to vector<240x32xbf16>
    %124 = tpu.concatenate %122, %123 in 0 : vector<16x32xbf16>, vector<240x32xbf16> -> vector<256x32xbf16>
    %cst_42 = arith.constant 0.000000e+00 : bf16
    %125 = vector.broadcast %cst_42 : bf16 to vector<16x32xbf16>
    %126 = vector.extract_strided_slice %107 {offsets = [0, 0], sizes = [240, 32], strides = [1, 1]} : vector<256x32xbf16> to vector<240x32xbf16>
    %127 = tpu.concatenate %125, %126 in 0 : vector<16x32xbf16>, vector<240x32xbf16> -> vector<256x32xbf16>
    %cst_43 = arith.constant 0.000000e+00 : bf16
    %128 = vector.broadcast %cst_43 : bf16 to vector<16x32xbf16>
    %129 = vector.extract_strided_slice %121 {offsets = [0, 0], sizes = [240, 32], strides = [1, 1]} : vector<256x32xbf16> to vector<240x32xbf16>
    %130 = tpu.concatenate %128, %129 in 0 : vector<16x32xbf16>, vector<240x32xbf16> -> vector<256x32xbf16>
    %cst_44 = arith.constant 0.000000e+00 : bf16
    %131 = vector.broadcast %cst_44 : bf16 to vector<16x32xbf16>
    %132 = vector.extract_strided_slice %114 {offsets = [16, 0], sizes = [240, 32], strides = [1, 1]} : vector<256x32xbf16> to vector<240x32xbf16>
    %133 = tpu.concatenate %132, %131 in 0 : vector<240x32xbf16>, vector<16x32xbf16> -> vector<256x32xbf16>
    %cst_45 = arith.constant 0.000000e+00 : bf16
    %134 = vector.broadcast %cst_45 : bf16 to vector<16x32xbf16>
    %135 = vector.extract_strided_slice %107 {offsets = [16, 0], sizes = [240, 32], strides = [1, 1]} : vector<256x32xbf16> to vector<240x32xbf16>
    %136 = tpu.concatenate %135, %134 in 0 : vector<240x32xbf16>, vector<16x32xbf16> -> vector<256x32xbf16>
    %cst_46 = arith.constant 0.000000e+00 : bf16
    %137 = vector.broadcast %cst_46 : bf16 to vector<16x32xbf16>
    %138 = vector.extract_strided_slice %121 {offsets = [16, 0], sizes = [240, 32], strides = [1, 1]} : vector<256x32xbf16> to vector<240x32xbf16>
    %139 = tpu.concatenate %138, %137 in 0 : vector<240x32xbf16>, vector<16x32xbf16> -> vector<256x32xbf16>
    %140 = tpu.concatenate %124, %127, %130, %114, %107, %121, %133, %136, %139 in 1 : vector<256x32xbf16>, vector<256x32xbf16>, vector<256x32xbf16>, vector<256x32xbf16>, vector<256x32xbf16>, vector<256x32xbf16>, vector<256x32xbf16>, vector<256x32xbf16>, vector<256x32xbf16> -> vector<256x288xbf16>
    %c0_47 = arith.constant 0 : index
    %c0_48 = arith.constant 0 : index
    %141 = vector.load %arg6[%c0_47, %c0_48] : memref<288x32xbf16, #tpu.memory_space<vmem>>, vector<288x32xbf16>
    %cst_49 = arith.constant dense<0.000000e+00> : vector<256x32xf32>
    %142 = tpu.matmul %140, %141, %cst_49 {dimension_numbers = #tpu.dot_dimension_numbers<[1], [0], [0], [1], [0, 0, 1, 1], [], []>} : vector<256x288xbf16>, vector<288x32xbf16>, vector<256x32xf32> -> vector<256x32xf32>
    %c0_50 = arith.constant 0 : index
    %c0_51 = arith.constant 0 : index
    %143 = vector.load %arg7[%c0_50, %c0_51] : memref<1x32xf32, #tpu.memory_space<vmem>>, vector<1x32xf32>
    %144 = vector.broadcast %143 : vector<1x32xf32> to vector<256x32xf32>
    %145 = arith.addf %142, %144 : vector<256x32xf32>
    %cst_52 = arith.constant 0.000000e+00 : f32
    %146 = vector.broadcast %cst_52 : f32 to vector<256x32xf32>
    %147 = arith.maximumf %145, %146 : vector<256x32xf32>
    %148 = arith.truncf %147 : vector<256x32xf32> to vector<256x32xbf16>
    %cst_53 = arith.constant 0.000000e+00 : bf16
    %149 = vector.broadcast %cst_53 : bf16 to vector<1x32xbf16>
    %150 = vector.extract_strided_slice %148 {offsets = [0, 0], sizes = [255, 32], strides = [1, 1]} : vector<256x32xbf16> to vector<255x32xbf16>
    %151 = tpu.concatenate %149, %150 in 0 : vector<1x32xbf16>, vector<255x32xbf16> -> vector<256x32xbf16>
    %cst_54 = arith.constant 0.000000e+00 : bf16
    %152 = vector.broadcast %cst_54 : bf16 to vector<256x32xbf16>
    %153 = vector.shape_cast %18 : vector<256x1xi1> to vector<256x1xi1>
    %154 = vector.broadcast %153 : vector<256x1xi1> to vector<256x32xi1>
    %155 = arith.select %154, %151, %152 : vector<256x32xi1>, vector<256x32xbf16>
    %cst_55 = arith.constant 0.000000e+00 : bf16
    %156 = vector.broadcast %cst_55 : bf16 to vector<1x32xbf16>
    %157 = vector.extract_strided_slice %148 {offsets = [1, 0], sizes = [255, 32], strides = [1, 1]} : vector<256x32xbf16> to vector<255x32xbf16>
    %158 = tpu.concatenate %157, %156 in 0 : vector<255x32xbf16>, vector<1x32xbf16> -> vector<256x32xbf16>
    %cst_56 = arith.constant 0.000000e+00 : bf16
    %159 = vector.broadcast %cst_56 : bf16 to vector<256x32xbf16>
    %160 = vector.shape_cast %20 : vector<256x1xi1> to vector<256x1xi1>
    %161 = vector.broadcast %160 : vector<256x1xi1> to vector<256x32xi1>
    %162 = arith.select %161, %158, %159 : vector<256x32xi1>, vector<256x32xbf16>
    %cst_57 = arith.constant 0.000000e+00 : bf16
    %163 = vector.broadcast %cst_57 : bf16 to vector<16x32xbf16>
    %164 = vector.extract_strided_slice %155 {offsets = [0, 0], sizes = [240, 32], strides = [1, 1]} : vector<256x32xbf16> to vector<240x32xbf16>
    %165 = tpu.concatenate %163, %164 in 0 : vector<16x32xbf16>, vector<240x32xbf16> -> vector<256x32xbf16>
    %cst_58 = arith.constant 0.000000e+00 : bf16
    %166 = vector.broadcast %cst_58 : bf16 to vector<16x32xbf16>
    %167 = vector.extract_strided_slice %148 {offsets = [0, 0], sizes = [240, 32], strides = [1, 1]} : vector<256x32xbf16> to vector<240x32xbf16>
    %168 = tpu.concatenate %166, %167 in 0 : vector<16x32xbf16>, vector<240x32xbf16> -> vector<256x32xbf16>
    %cst_59 = arith.constant 0.000000e+00 : bf16
    %169 = vector.broadcast %cst_59 : bf16 to vector<16x32xbf16>
    %170 = vector.extract_strided_slice %162 {offsets = [0, 0], sizes = [240, 32], strides = [1, 1]} : vector<256x32xbf16> to vector<240x32xbf16>
    %171 = tpu.concatenate %169, %170 in 0 : vector<16x32xbf16>, vector<240x32xbf16> -> vector<256x32xbf16>
    %cst_60 = arith.constant 0.000000e+00 : bf16
    %172 = vector.broadcast %cst_60 : bf16 to vector<16x32xbf16>
    %173 = vector.extract_strided_slice %155 {offsets = [16, 0], sizes = [240, 32], strides = [1, 1]} : vector<256x32xbf16> to vector<240x32xbf16>
    %174 = tpu.concatenate %173, %172 in 0 : vector<240x32xbf16>, vector<16x32xbf16> -> vector<256x32xbf16>
    %cst_61 = arith.constant 0.000000e+00 : bf16
    %175 = vector.broadcast %cst_61 : bf16 to vector<16x32xbf16>
    %176 = vector.extract_strided_slice %148 {offsets = [16, 0], sizes = [240, 32], strides = [1, 1]} : vector<256x32xbf16> to vector<240x32xbf16>
    %177 = tpu.concatenate %176, %175 in 0 : vector<240x32xbf16>, vector<16x32xbf16> -> vector<256x32xbf16>
    %cst_62 = arith.constant 0.000000e+00 : bf16
    %178 = vector.broadcast %cst_62 : bf16 to vector<16x32xbf16>
    %179 = vector.extract_strided_slice %162 {offsets = [16, 0], sizes = [240, 32], strides = [1, 1]} : vector<256x32xbf16> to vector<240x32xbf16>
    %180 = tpu.concatenate %179, %178 in 0 : vector<240x32xbf16>, vector<16x32xbf16> -> vector<256x32xbf16>
    %181 = tpu.concatenate %165, %168, %171, %155, %148, %162, %174, %177, %180 in 1 : vector<256x32xbf16>, vector<256x32xbf16>, vector<256x32xbf16>, vector<256x32xbf16>, vector<256x32xbf16>, vector<256x32xbf16>, vector<256x32xbf16>, vector<256x32xbf16>, vector<256x32xbf16> -> vector<256x288xbf16>
    %c0_63 = arith.constant 0 : index
    %c0_64 = arith.constant 0 : index
    %182 = vector.load %arg8[%c0_63, %c0_64] : memref<288x32xbf16, #tpu.memory_space<vmem>>, vector<288x32xbf16>
    %cst_65 = arith.constant dense<0.000000e+00> : vector<256x32xf32>
    %183 = tpu.matmul %181, %182, %cst_65 {dimension_numbers = #tpu.dot_dimension_numbers<[1], [0], [0], [1], [0, 0, 1, 1], [], []>} : vector<256x288xbf16>, vector<288x32xbf16>, vector<256x32xf32> -> vector<256x32xf32>
    %c0_66 = arith.constant 0 : index
    %c0_67 = arith.constant 0 : index
    %184 = vector.load %arg9[%c0_66, %c0_67] : memref<1x32xf32, #tpu.memory_space<vmem>>, vector<1x32xf32>
    %185 = vector.broadcast %184 : vector<1x32xf32> to vector<256x32xf32>
    %186 = arith.addf %183, %185 : vector<256x32xf32>
    %cst_68 = arith.constant 0.000000e+00 : f32
    %187 = vector.broadcast %cst_68 : f32 to vector<256x32xf32>
    %188 = arith.maximumf %186, %187 : vector<256x32xf32>
    %189 = arith.truncf %188 : vector<256x32xf32> to vector<256x32xbf16>
    %cst_69 = arith.constant 0.000000e+00 : bf16
    %190 = vector.broadcast %cst_69 : bf16 to vector<1x32xbf16>
    %191 = vector.extract_strided_slice %189 {offsets = [0, 0], sizes = [255, 32], strides = [1, 1]} : vector<256x32xbf16> to vector<255x32xbf16>
    %192 = tpu.concatenate %190, %191 in 0 : vector<1x32xbf16>, vector<255x32xbf16> -> vector<256x32xbf16>
    %cst_70 = arith.constant 0.000000e+00 : bf16
    %193 = vector.broadcast %cst_70 : bf16 to vector<256x32xbf16>
    %194 = vector.shape_cast %18 : vector<256x1xi1> to vector<256x1xi1>
    %195 = vector.broadcast %194 : vector<256x1xi1> to vector<256x32xi1>
    %196 = arith.select %195, %192, %193 : vector<256x32xi1>, vector<256x32xbf16>
    %cst_71 = arith.constant 0.000000e+00 : bf16
    %197 = vector.broadcast %cst_71 : bf16 to vector<1x32xbf16>
    %198 = vector.extract_strided_slice %189 {offsets = [1, 0], sizes = [255, 32], strides = [1, 1]} : vector<256x32xbf16> to vector<255x32xbf16>
    %199 = tpu.concatenate %198, %197 in 0 : vector<255x32xbf16>, vector<1x32xbf16> -> vector<256x32xbf16>
    %cst_72 = arith.constant 0.000000e+00 : bf16
    %200 = vector.broadcast %cst_72 : bf16 to vector<256x32xbf16>
    %201 = vector.shape_cast %20 : vector<256x1xi1> to vector<256x1xi1>
    %202 = vector.broadcast %201 : vector<256x1xi1> to vector<256x32xi1>
    %203 = arith.select %202, %199, %200 : vector<256x32xi1>, vector<256x32xbf16>
    %cst_73 = arith.constant 0.000000e+00 : bf16
    %204 = vector.broadcast %cst_73 : bf16 to vector<16x32xbf16>
    %205 = vector.extract_strided_slice %196 {offsets = [0, 0], sizes = [240, 32], strides = [1, 1]} : vector<256x32xbf16> to vector<240x32xbf16>
    %206 = tpu.concatenate %204, %205 in 0 : vector<16x32xbf16>, vector<240x32xbf16> -> vector<256x32xbf16>
    %cst_74 = arith.constant 0.000000e+00 : bf16
    %207 = vector.broadcast %cst_74 : bf16 to vector<16x32xbf16>
    %208 = vector.extract_strided_slice %189 {offsets = [0, 0], sizes = [240, 32], strides = [1, 1]} : vector<256x32xbf16> to vector<240x32xbf16>
    %209 = tpu.concatenate %207, %208 in 0 : vector<16x32xbf16>, vector<240x32xbf16> -> vector<256x32xbf16>
    %cst_75 = arith.constant 0.000000e+00 : bf16
    %210 = vector.broadcast %cst_75 : bf16 to vector<16x32xbf16>
    %211 = vector.extract_strided_slice %203 {offsets = [0, 0], sizes = [240, 32], strides = [1, 1]} : vector<256x32xbf16> to vector<240x32xbf16>
    %212 = tpu.concatenate %210, %211 in 0 : vector<16x32xbf16>, vector<240x32xbf16> -> vector<256x32xbf16>
    %cst_76 = arith.constant 0.000000e+00 : bf16
    %213 = vector.broadcast %cst_76 : bf16 to vector<16x32xbf16>
    %214 = vector.extract_strided_slice %196 {offsets = [16, 0], sizes = [240, 32], strides = [1, 1]} : vector<256x32xbf16> to vector<240x32xbf16>
    %215 = tpu.concatenate %214, %213 in 0 : vector<240x32xbf16>, vector<16x32xbf16> -> vector<256x32xbf16>
    %cst_77 = arith.constant 0.000000e+00 : bf16
    %216 = vector.broadcast %cst_77 : bf16 to vector<16x32xbf16>
    %217 = vector.extract_strided_slice %189 {offsets = [16, 0], sizes = [240, 32], strides = [1, 1]} : vector<256x32xbf16> to vector<240x32xbf16>
    %218 = tpu.concatenate %217, %216 in 0 : vector<240x32xbf16>, vector<16x32xbf16> -> vector<256x32xbf16>
    %cst_78 = arith.constant 0.000000e+00 : bf16
    %219 = vector.broadcast %cst_78 : bf16 to vector<16x32xbf16>
    %220 = vector.extract_strided_slice %203 {offsets = [16, 0], sizes = [240, 32], strides = [1, 1]} : vector<256x32xbf16> to vector<240x32xbf16>
    %221 = tpu.concatenate %220, %219 in 0 : vector<240x32xbf16>, vector<16x32xbf16> -> vector<256x32xbf16>
    %222 = tpu.concatenate %206, %209, %212, %196, %189, %203, %215, %218, %221 in 1 : vector<256x32xbf16>, vector<256x32xbf16>, vector<256x32xbf16>, vector<256x32xbf16>, vector<256x32xbf16>, vector<256x32xbf16>, vector<256x32xbf16>, vector<256x32xbf16>, vector<256x32xbf16> -> vector<256x288xbf16>
    %c0_79 = arith.constant 0 : index
    %c0_80 = arith.constant 0 : index
    %223 = vector.load %arg10[%c0_79, %c0_80] : memref<288x128xbf16, #tpu.memory_space<vmem>>, vector<288x128xbf16>
    %cst_81 = arith.constant dense<0.000000e+00> : vector<256x128xf32>
    %224 = tpu.matmul %222, %223, %cst_81 {dimension_numbers = #tpu.dot_dimension_numbers<[1], [0], [0], [1], [0, 0, 1, 1], [], []>} : vector<256x288xbf16>, vector<288x128xbf16>, vector<256x128xf32> -> vector<256x128xf32>
    %c0_82 = arith.constant 0 : index
    %c0_83 = arith.constant 0 : index
    %225 = vector.load %arg11[%c0_82, %c0_83] : memref<1x128xf32, #tpu.memory_space<vmem>>, vector<1x128xf32>
    %226 = vector.broadcast %225 : vector<1x128xf32> to vector<256x128xf32>
    %227 = arith.addf %224, %226 : vector<256x128xf32>
    %c0_84 = arith.constant 0 : index
    %c0_85 = arith.constant 0 : index
    %c0_86 = arith.constant 0 : index
    %228 = vector.load %arg20[%c0_84, %c0_85, %c0_86] : memref<1x256x128xf32, #tpu.memory_space<vmem>>, vector<1x256x128xf32>
    %229 = vector.shape_cast %228 : vector<1x256x128xf32> to vector<256x128xf32>
    %230 = vector.shape_cast %227 : vector<256x128xf32> to vector<1x256x128xf32>
    tpu.vector_store %arg20[%c0_84, %c0_85, %c0_86], %230 {strides = array<i32>} : memref<1x256x128xf32, #tpu.memory_space<vmem>>, vector<1x256x128xf32>,
    %cst_87 = arith.constant 0.000000e+00 : bf16
    %231 = vector.broadcast %cst_87 : bf16 to vector<1x32xbf16>
    %232 = vector.extract_strided_slice %66 {offsets = [0, 0], sizes = [255, 32], strides = [1, 1]} : vector<256x32xbf16> to vector<255x32xbf16>
    %233 = tpu.concatenate %231, %232 in 0 : vector<1x32xbf16>, vector<255x32xbf16> -> vector<256x32xbf16>
    %cst_88 = arith.constant 0.000000e+00 : bf16
    %234 = vector.broadcast %cst_88 : bf16 to vector<256x32xbf16>
    %235 = vector.shape_cast %18 : vector<256x1xi1> to vector<256x1xi1>
    %236 = vector.broadcast %235 : vector<256x1xi1> to vector<256x32xi1>
    %237 = arith.select %236, %233, %234 : vector<256x32xi1>, vector<256x32xbf16>
    %cst_89 = arith.constant 0.000000e+00 : bf16
    %238 = vector.broadcast %cst_89 : bf16 to vector<1x32xbf16>
    %239 = vector.extract_strided_slice %66 {offsets = [1, 0], sizes = [255, 32], strides = [1, 1]} : vector<256x32xbf16> to vector<255x32xbf16>
    %240 = tpu.concatenate %239, %238 in 0 : vector<255x32xbf16>, vector<1x32xbf16> -> vector<256x32xbf16>
    %cst_90 = arith.constant 0.000000e+00 : bf16
    %241 = vector.broadcast %cst_90 : bf16 to vector<256x32xbf16>
    %242 = vector.shape_cast %20 : vector<256x1xi1> to vector<256x1xi1>
    %243 = vector.broadcast %242 : vector<256x1xi1> to vector<256x32xi1>
    %244 = arith.select %243, %240, %241 : vector<256x32xi1>, vector<256x32xbf16>
    %cst_91 = arith.constant 0.000000e+00 : bf16
    %245 = vector.broadcast %cst_91 : bf16 to vector<16x32xbf16>
    %246 = vector.extract_strided_slice %237 {offsets = [0, 0], sizes = [240, 32], strides = [1, 1]} : vector<256x32xbf16> to vector<240x32xbf16>
    %247 = tpu.concatenate %245, %246 in 0 : vector<16x32xbf16>, vector<240x32xbf16> -> vector<256x32xbf16>
    %cst_92 = arith.constant 0.000000e+00 : bf16
    %248 = vector.broadcast %cst_92 : bf16 to vector<16x32xbf16>
    %249 = vector.extract_strided_slice %66 {offsets = [0, 0], sizes = [240, 32], strides = [1, 1]} : vector<256x32xbf16> to vector<240x32xbf16>
    %250 = tpu.concatenate %248, %249 in 0 : vector<16x32xbf16>, vector<240x32xbf16> -> vector<256x32xbf16>
    %cst_93 = arith.constant 0.000000e+00 : bf16
    %251 = vector.broadcast %cst_93 : bf16 to vector<16x32xbf16>
    %252 = vector.extract_strided_slice %244 {offsets = [0, 0], sizes = [240, 32], strides = [1, 1]} : vector<256x32xbf16> to vector<240x32xbf16>
    %253 = tpu.concatenate %251, %252 in 0 : vector<16x32xbf16>, vector<240x32xbf16> -> vector<256x32xbf16>
    %cst_94 = arith.constant 0.000000e+00 : bf16
    %254 = vector.broadcast %cst_94 : bf16 to vector<16x32xbf16>
    %255 = vector.extract_strided_slice %237 {offsets = [16, 0], sizes = [240, 32], strides = [1, 1]} : vector<256x32xbf16> to vector<240x32xbf16>
    %256 = tpu.concatenate %255, %254 in 0 : vector<240x32xbf16>, vector<16x32xbf16> -> vector<256x32xbf16>
    %cst_95 = arith.constant 0.000000e+00 : bf16
    %257 = vector.broadcast %cst_95 : bf16 to vector<16x32xbf16>
    %258 = vector.extract_strided_slice %66 {offsets = [16, 0], sizes = [240, 32], strides = [1, 1]} : vector<256x32xbf16> to vector<240x32xbf16>
    %259 = tpu.concatenate %258, %257 in 0 : vector<240x32xbf16>, vector<16x32xbf16> -> vector<256x32xbf16>
    %cst_96 = arith.constant 0.000000e+00 : bf16
    %260 = vector.broadcast %cst_96 : bf16 to vector<16x32xbf16>
    %261 = vector.extract_strided_slice %244 {offsets = [16, 0], sizes = [240, 32], strides = [1, 1]} : vector<256x32xbf16> to vector<240x32xbf16>
    %262 = tpu.concatenate %261, %260 in 0 : vector<240x32xbf16>, vector<16x32xbf16> -> vector<256x32xbf16>
    %263 = tpu.concatenate %247, %250, %253, %237, %66, %244, %256, %259, %262 in 1 : vector<256x32xbf16>, vector<256x32xbf16>, vector<256x32xbf16>, vector<256x32xbf16>, vector<256x32xbf16>, vector<256x32xbf16>, vector<256x32xbf16>, vector<256x32xbf16>, vector<256x32xbf16> -> vector<256x288xbf16>
    %c0_97 = arith.constant 0 : index
    %c0_98 = arith.constant 0 : index
    %264 = vector.load %arg12[%c0_97, %c0_98] : memref<288x32xbf16, #tpu.memory_space<vmem>>, vector<288x32xbf16>
    %cst_99 = arith.constant dense<0.000000e+00> : vector<256x32xf32>
    %265 = tpu.matmul %263, %264, %cst_99 {dimension_numbers = #tpu.dot_dimension_numbers<[1], [0], [0], [1], [0, 0, 1, 1], [], []>} : vector<256x288xbf16>, vector<288x32xbf16>, vector<256x32xf32> -> vector<256x32xf32>
    %c0_100 = arith.constant 0 : index
    %c0_101 = arith.constant 0 : index
    %266 = vector.load %arg13[%c0_100, %c0_101] : memref<1x32xf32, #tpu.memory_space<vmem>>, vector<1x32xf32>
    %267 = vector.broadcast %266 : vector<1x32xf32> to vector<256x32xf32>
    %268 = arith.addf %265, %267 : vector<256x32xf32>
    %cst_102 = arith.constant 0.000000e+00 : f32
    %269 = vector.broadcast %cst_102 : f32 to vector<256x32xf32>
    %270 = arith.maximumf %268, %269 : vector<256x32xf32>
    %271 = arith.truncf %270 : vector<256x32xf32> to vector<256x32xbf16>
    %cst_103 = arith.constant 0.000000e+00 : bf16
    %272 = vector.broadcast %cst_103 : bf16 to vector<1x32xbf16>
    %273 = vector.extract_strided_slice %271 {offsets = [0, 0], sizes = [255, 32], strides = [1, 1]} : vector<256x32xbf16> to vector<255x32xbf16>
    %274 = tpu.concatenate %272, %273 in 0 : vector<1x32xbf16>, vector<255x32xbf16> -> vector<256x32xbf16>
    %cst_104 = arith.constant 0.000000e+00 : bf16
    %275 = vector.broadcast %cst_104 : bf16 to vector<256x32xbf16>
    %276 = vector.shape_cast %18 : vector<256x1xi1> to vector<256x1xi1>
    %277 = vector.broadcast %276 : vector<256x1xi1> to vector<256x32xi1>
    %278 = arith.select %277, %274, %275 : vector<256x32xi1>, vector<256x32xbf16>
    %cst_105 = arith.constant 0.000000e+00 : bf16
    %279 = vector.broadcast %cst_105 : bf16 to vector<1x32xbf16>
    %280 = vector.extract_strided_slice %271 {offsets = [1, 0], sizes = [255, 32], strides = [1, 1]} : vector<256x32xbf16> to vector<255x32xbf16>
    %281 = tpu.concatenate %280, %279 in 0 : vector<255x32xbf16>, vector<1x32xbf16> -> vector<256x32xbf16>
    %cst_106 = arith.constant 0.000000e+00 : bf16
    %282 = vector.broadcast %cst_106 : bf16 to vector<256x32xbf16>
    %283 = vector.shape_cast %20 : vector<256x1xi1> to vector<256x1xi1>
    %284 = vector.broadcast %283 : vector<256x1xi1> to vector<256x32xi1>
    %285 = arith.select %284, %281, %282 : vector<256x32xi1>, vector<256x32xbf16>
    %cst_107 = arith.constant 0.000000e+00 : bf16
    %286 = vector.broadcast %cst_107 : bf16 to vector<16x32xbf16>
    %287 = vector.extract_strided_slice %278 {offsets = [0, 0], sizes = [240, 32], strides = [1, 1]} : vector<256x32xbf16> to vector<240x32xbf16>
    %288 = tpu.concatenate %286, %287 in 0 : vector<16x32xbf16>, vector<240x32xbf16> -> vector<256x32xbf16>
    %cst_108 = arith.constant 0.000000e+00 : bf16
    %289 = vector.broadcast %cst_108 : bf16 to vector<16x32xbf16>
    %290 = vector.extract_strided_slice %271 {offsets = [0, 0], sizes = [240, 32], strides = [1, 1]} : vector<256x32xbf16> to vector<240x32xbf16>
    %291 = tpu.concatenate %289, %290 in 0 : vector<16x32xbf16>, vector<240x32xbf16> -> vector<256x32xbf16>
    %cst_109 = arith.constant 0.000000e+00 : bf16
    %292 = vector.broadcast %cst_109 : bf16 to vector<16x32xbf16>
    %293 = vector.extract_strided_slice %285 {offsets = [0, 0], sizes = [240, 32], strides = [1, 1]} : vector<256x32xbf16> to vector<240x32xbf16>
    %294 = tpu.concatenate %292, %293 in 0 : vector<16x32xbf16>, vector<240x32xbf16> -> vector<256x32xbf16>
    %cst_110 = arith.constant 0.000000e+00 : bf16
    %295 = vector.broadcast %cst_110 : bf16 to vector<16x32xbf16>
    %296 = vector.extract_strided_slice %278 {offsets = [16, 0], sizes = [240, 32], strides = [1, 1]} : vector<256x32xbf16> to vector<240x32xbf16>
    %297 = tpu.concatenate %296, %295 in 0 : vector<240x32xbf16>, vector<16x32xbf16> -> vector<256x32xbf16>
    %cst_111 = arith.constant 0.000000e+00 : bf16
    %298 = vector.broadcast %cst_111 : bf16 to vector<16x32xbf16>
    %299 = vector.extract_strided_slice %271 {offsets = [16, 0], sizes = [240, 32], strides = [1, 1]} : vector<256x32xbf16> to vector<240x32xbf16>
    %300 = tpu.concatenate %299, %298 in 0 : vector<240x32xbf16>, vector<16x32xbf16> -> vector<256x32xbf16>
    %cst_112 = arith.constant 0.000000e+00 : bf16
    %301 = vector.broadcast %cst_112 : bf16 to vector<16x32xbf16>
    %302 = vector.extract_strided_slice %285 {offsets = [16, 0], sizes = [240, 32], strides = [1, 1]} : vector<256x32xbf16> to vector<240x32xbf16>
    %303 = tpu.concatenate %302, %301 in 0 : vector<240x32xbf16>, vector<16x32xbf16> -> vector<256x32xbf16>
    %304 = tpu.concatenate %288, %291, %294, %278, %271, %285, %297, %300, %303 in 1 : vector<256x32xbf16>, vector<256x32xbf16>, vector<256x32xbf16>, vector<256x32xbf16>, vector<256x32xbf16>, vector<256x32xbf16>, vector<256x32xbf16>, vector<256x32xbf16>, vector<256x32xbf16> -> vector<256x288xbf16>
    %c0_113 = arith.constant 0 : index
    %c0_114 = arith.constant 0 : index
    %305 = vector.load %arg14[%c0_113, %c0_114] : memref<288x32xbf16, #tpu.memory_space<vmem>>, vector<288x32xbf16>
    %cst_115 = arith.constant dense<0.000000e+00> : vector<256x32xf32>
    %306 = tpu.matmul %304, %305, %cst_115 {dimension_numbers = #tpu.dot_dimension_numbers<[1], [0], [0], [1], [0, 0, 1, 1], [], []>} : vector<256x288xbf16>, vector<288x32xbf16>, vector<256x32xf32> -> vector<256x32xf32>
    %c0_116 = arith.constant 0 : index
    %c0_117 = arith.constant 0 : index
    %307 = vector.load %arg15[%c0_116, %c0_117] : memref<1x32xf32, #tpu.memory_space<vmem>>, vector<1x32xf32>
    %308 = vector.broadcast %307 : vector<1x32xf32> to vector<256x32xf32>
    %309 = arith.addf %306, %308 : vector<256x32xf32>
    %cst_118 = arith.constant 0.000000e+00 : f32
    %310 = vector.broadcast %cst_118 : f32 to vector<256x32xf32>
    %311 = arith.maximumf %309, %310 : vector<256x32xf32>
    %312 = arith.truncf %311 : vector<256x32xf32> to vector<256x32xbf16>
    %cst_119 = arith.constant 0.000000e+00 : bf16
    %313 = vector.broadcast %cst_119 : bf16 to vector<1x32xbf16>
    %314 = vector.extract_strided_slice %312 {offsets = [0, 0], sizes = [255, 32], strides = [1, 1]} : vector<256x32xbf16> to vector<255x32xbf16>
    %315 = tpu.concatenate %313, %314 in 0 : vector<1x32xbf16>, vector<255x32xbf16> -> vector<256x32xbf16>
    %cst_120 = arith.constant 0.000000e+00 : bf16
    %316 = vector.broadcast %cst_120 : bf16 to vector<256x32xbf16>
    %317 = vector.shape_cast %18 : vector<256x1xi1> to vector<256x1xi1>
    %318 = vector.broadcast %317 : vector<256x1xi1> to vector<256x32xi1>
    %319 = arith.select %318, %315, %316 : vector<256x32xi1>, vector<256x32xbf16>
    %cst_121 = arith.constant 0.000000e+00 : bf16
    %320 = vector.broadcast %cst_121 : bf16 to vector<1x32xbf16>
    %321 = vector.extract_strided_slice %312 {offsets = [1, 0], sizes = [255, 32], strides = [1, 1]} : vector<256x32xbf16> to vector<255x32xbf16>
    %322 = tpu.concatenate %321, %320 in 0 : vector<255x32xbf16>, vector<1x32xbf16> -> vector<256x32xbf16>
    %cst_122 = arith.constant 0.000000e+00 : bf16
    %323 = vector.broadcast %cst_122 : bf16 to vector<256x32xbf16>
    %324 = vector.shape_cast %20 : vector<256x1xi1> to vector<256x1xi1>
    %325 = vector.broadcast %324 : vector<256x1xi1> to vector<256x32xi1>
    %326 = arith.select %325, %322, %323 : vector<256x32xi1>, vector<256x32xbf16>
    %cst_123 = arith.constant 0.000000e+00 : bf16
    %327 = vector.broadcast %cst_123 : bf16 to vector<16x32xbf16>
    %328 = vector.extract_strided_slice %319 {offsets = [0, 0], sizes = [240, 32], strides = [1, 1]} : vector<256x32xbf16> to vector<240x32xbf16>
    %329 = tpu.concatenate %327, %328 in 0 : vector<16x32xbf16>, vector<240x32xbf16> -> vector<256x32xbf16>
    %cst_124 = arith.constant 0.000000e+00 : bf16
    %330 = vector.broadcast %cst_124 : bf16 to vector<16x32xbf16>
    %331 = vector.extract_strided_slice %312 {offsets = [0, 0], sizes = [240, 32], strides = [1, 1]} : vector<256x32xbf16> to vector<240x32xbf16>
    %332 = tpu.concatenate %330, %331 in 0 : vector<16x32xbf16>, vector<240x32xbf16> -> vector<256x32xbf16>
    %cst_125 = arith.constant 0.000000e+00 : bf16
    %333 = vector.broadcast %cst_125 : bf16 to vector<16x32xbf16>
    %334 = vector.extract_strided_slice %326 {offsets = [0, 0], sizes = [240, 32], strides = [1, 1]} : vector<256x32xbf16> to vector<240x32xbf16>
    %335 = tpu.concatenate %333, %334 in 0 : vector<16x32xbf16>, vector<240x32xbf16> -> vector<256x32xbf16>
    %cst_126 = arith.constant 0.000000e+00 : bf16
    %336 = vector.broadcast %cst_126 : bf16 to vector<16x32xbf16>
    %337 = vector.extract_strided_slice %319 {offsets = [16, 0], sizes = [240, 32], strides = [1, 1]} : vector<256x32xbf16> to vector<240x32xbf16>
    %338 = tpu.concatenate %337, %336 in 0 : vector<240x32xbf16>, vector<16x32xbf16> -> vector<256x32xbf16>
    %cst_127 = arith.constant 0.000000e+00 : bf16
    %339 = vector.broadcast %cst_127 : bf16 to vector<16x32xbf16>
    %340 = vector.extract_strided_slice %312 {offsets = [16, 0], sizes = [240, 32], strides = [1, 1]} : vector<256x32xbf16> to vector<240x32xbf16>
    %341 = tpu.concatenate %340, %339 in 0 : vector<240x32xbf16>, vector<16x32xbf16> -> vector<256x32xbf16>
    %cst_128 = arith.constant 0.000000e+00 : bf16
    %342 = vector.broadcast %cst_128 : bf16 to vector<16x32xbf16>
    %343 = vector.extract_strided_slice %326 {offsets = [16, 0], sizes = [240, 32], strides = [1, 1]} : vector<256x32xbf16> to vector<240x32xbf16>
    %344 = tpu.concatenate %343, %342 in 0 : vector<240x32xbf16>, vector<16x32xbf16> -> vector<256x32xbf16>
    %345 = tpu.concatenate %329, %332, %335, %319, %312, %326, %338, %341, %344 in 1 : vector<256x32xbf16>, vector<256x32xbf16>, vector<256x32xbf16>, vector<256x32xbf16>, vector<256x32xbf16>, vector<256x32xbf16>, vector<256x32xbf16>, vector<256x32xbf16>, vector<256x32xbf16> -> vector<256x288xbf16>
    %c0_129 = arith.constant 0 : index
    %c0_130 = arith.constant 0 : index
    %346 = vector.load %arg16[%c0_129, %c0_130] : memref<288x32xbf16, #tpu.memory_space<vmem>>, vector<288x32xbf16>
    %cst_131 = arith.constant dense<0.000000e+00> : vector<256x32xf32>
    %347 = tpu.matmul %345, %346, %cst_131 {dimension_numbers = #tpu.dot_dimension_numbers<[1], [0], [0], [1], [0, 0, 1, 1], [], []>} : vector<256x288xbf16>, vector<288x32xbf16>, vector<256x32xf32> -> vector<256x32xf32>
    %c0_132 = arith.constant 0 : index
    %c0_133 = arith.constant 0 : index
    %348 = vector.load %arg17[%c0_132, %c0_133] : memref<1x32xf32, #tpu.memory_space<vmem>>, vector<1x32xf32>
    %349 = vector.broadcast %348 : vector<1x32xf32> to vector<256x32xf32>
    %350 = arith.addf %347, %349 : vector<256x32xf32>
    %cst_134 = arith.constant 0.000000e+00 : f32
    %351 = vector.broadcast %cst_134 : f32 to vector<256x32xf32>
    %352 = arith.maximumf %350, %351 : vector<256x32xf32>
    %353 = arith.truncf %352 : vector<256x32xf32> to vector<256x32xbf16>
    %cst_135 = arith.constant 0.000000e+00 : bf16
    %354 = vector.broadcast %cst_135 : bf16 to vector<1x32xbf16>
    %355 = vector.extract_strided_slice %353 {offsets = [0, 0], sizes = [255, 32], strides = [1, 1]} : vector<256x32xbf16> to vector<255x32xbf16>
    %356 = tpu.concatenate %354, %355 in 0 : vector<1x32xbf16>, vector<255x32xbf16> -> vector<256x32xbf16>
    %cst_136 = arith.constant 0.000000e+00 : bf16
    %357 = vector.broadcast %cst_136 : bf16 to vector<256x32xbf16>
    %358 = vector.shape_cast %18 : vector<256x1xi1> to vector<256x1xi1>
    %359 = vector.broadcast %358 : vector<256x1xi1> to vector<256x32xi1>
    %360 = arith.select %359, %356, %357 : vector<256x32xi1>, vector<256x32xbf16>
    %cst_137 = arith.constant 0.000000e+00 : bf16
    %361 = vector.broadcast %cst_137 : bf16 to vector<1x32xbf16>
    %362 = vector.extract_strided_slice %353 {offsets = [1, 0], sizes = [255, 32], strides = [1, 1]} : vector<256x32xbf16> to vector<255x32xbf16>
    %363 = tpu.concatenate %362, %361 in 0 : vector<255x32xbf16>, vector<1x32xbf16> -> vector<256x32xbf16>
    %cst_138 = arith.constant 0.000000e+00 : bf16
    %364 = vector.broadcast %cst_138 : bf16 to vector<256x32xbf16>
    %365 = vector.shape_cast %20 : vector<256x1xi1> to vector<256x1xi1>
    %366 = vector.broadcast %365 : vector<256x1xi1> to vector<256x32xi1>
    %367 = arith.select %366, %363, %364 : vector<256x32xi1>, vector<256x32xbf16>
    %cst_139 = arith.constant 0.000000e+00 : bf16
    %368 = vector.broadcast %cst_139 : bf16 to vector<16x32xbf16>
    %369 = vector.extract_strided_slice %360 {offsets = [0, 0], sizes = [240, 32], strides = [1, 1]} : vector<256x32xbf16> to vector<240x32xbf16>
    %370 = tpu.concatenate %368, %369 in 0 : vector<16x32xbf16>, vector<240x32xbf16> -> vector<256x32xbf16>
    %cst_140 = arith.constant 0.000000e+00 : bf16
    %371 = vector.broadcast %cst_140 : bf16 to vector<16x32xbf16>
    %372 = vector.extract_strided_slice %353 {offsets = [0, 0], sizes = [240, 32], strides = [1, 1]} : vector<256x32xbf16> to vector<240x32xbf16>
    %373 = tpu.concatenate %371, %372 in 0 : vector<16x32xbf16>, vector<240x32xbf16> -> vector<256x32xbf16>
    %cst_141 = arith.constant 0.000000e+00 : bf16
    %374 = vector.broadcast %cst_141 : bf16 to vector<16x32xbf16>
    %375 = vector.extract_strided_slice %367 {offsets = [0, 0], sizes = [240, 32], strides = [1, 1]} : vector<256x32xbf16> to vector<240x32xbf16>
    %376 = tpu.concatenate %374, %375 in 0 : vector<16x32xbf16>, vector<240x32xbf16> -> vector<256x32xbf16>
    %cst_142 = arith.constant 0.000000e+00 : bf16
    %377 = vector.broadcast %cst_142 : bf16 to vector<16x32xbf16>
    %378 = vector.extract_strided_slice %360 {offsets = [16, 0], sizes = [240, 32], strides = [1, 1]} : vector<256x32xbf16> to vector<240x32xbf16>
    %379 = tpu.concatenate %378, %377 in 0 : vector<240x32xbf16>, vector<16x32xbf16> -> vector<256x32xbf16>
    %cst_143 = arith.constant 0.000000e+00 : bf16
    %380 = vector.broadcast %cst_143 : bf16 to vector<16x32xbf16>
    %381 = vector.extract_strided_slice %353 {offsets = [16, 0], sizes = [240, 32], strides = [1, 1]} : vector<256x32xbf16> to vector<240x32xbf16>
    %382 = tpu.concatenate %381, %380 in 0 : vector<240x32xbf16>, vector<16x32xbf16> -> vector<256x32xbf16>
    %cst_144 = arith.constant 0.000000e+00 : bf16
    %383 = vector.broadcast %cst_144 : bf16 to vector<16x32xbf16>
    %384 = vector.extract_strided_slice %367 {offsets = [16, 0], sizes = [240, 32], strides = [1, 1]} : vector<256x32xbf16> to vector<240x32xbf16>
    %385 = tpu.concatenate %384, %383 in 0 : vector<240x32xbf16>, vector<16x32xbf16> -> vector<256x32xbf16>
    %386 = tpu.concatenate %370, %373, %376, %360, %353, %367, %379, %382, %385 in 1 : vector<256x32xbf16>, vector<256x32xbf16>, vector<256x32xbf16>, vector<256x32xbf16>, vector<256x32xbf16>, vector<256x32xbf16>, vector<256x32xbf16>, vector<256x32xbf16>, vector<256x32xbf16> -> vector<256x288xbf16>
    %c0_145 = arith.constant 0 : index
    %c0_146 = arith.constant 0 : index
    %387 = vector.load %arg18[%c0_145, %c0_146] : memref<288x128xbf16, #tpu.memory_space<vmem>>, vector<288x128xbf16>
    %cst_147 = arith.constant dense<0.000000e+00> : vector<256x128xf32>
    %388 = tpu.matmul %386, %387, %cst_147 {dimension_numbers = #tpu.dot_dimension_numbers<[1], [0], [0], [1], [0, 0, 1, 1], [], []>} : vector<256x288xbf16>, vector<288x128xbf16>, vector<256x128xf32> -> vector<256x128xf32>
    %c0_148 = arith.constant 0 : index
    %c0_149 = arith.constant 0 : index
    %389 = vector.load %arg19[%c0_148, %c0_149] : memref<1x128xf32, #tpu.memory_space<vmem>>, vector<1x128xf32>
    %390 = vector.broadcast %389 : vector<1x128xf32> to vector<256x128xf32>
    %391 = arith.addf %388, %390 : vector<256x128xf32>
    %c0_150 = arith.constant 0 : index
    %c0_151 = arith.constant 0 : index
    %c0_152 = arith.constant 0 : index
    %392 = vector.load %arg21[%c0_150, %c0_151, %c0_152] : memref<1x256x128xf32, #tpu.memory_space<vmem>>, vector<1x256x128xf32>
    %393 = vector.shape_cast %392 : vector<1x256x128xf32> to vector<256x128xf32>
    %394 = vector.shape_cast %391 : vector<256x128xf32> to vector<1x256x128xf32>
    tpu.vector_store %arg21[%c0_150, %c0_151, %c0_152], %394 {strides = array<i32>} : memref<1x256x128xf32, #tpu.memory_space<vmem>>, vector<1x256x128xf32>,
    return
  }
  func.func @transform_0(%arg0: i32) -> (i32, i32, i32) {
    %c0_i32 = arith.constant 0 : i32
    %c0_i32_0 = arith.constant 0 : i32
    %c0_i32_1 = arith.constant 0 : i32
    return %arg0, %c0_i32, %c0_i32_0 : i32, i32, i32
  }
  func.func @transform_1(%arg0: i32) -> (i32, i32) {
    %c0_i32 = arith.constant 0 : i32
    %c0_i32_0 = arith.constant 0 : i32
    %c0_i32_1 = arith.constant 0 : i32
    return %c0_i32, %c0_i32_0 : i32, i32
  }
  func.func @transform_2(%arg0: i32) -> (i32, i32) {
    %c0_i32 = arith.constant 0 : i32
    %c0_i32_0 = arith.constant 0 : i32
    %c0_i32_1 = arith.constant 0 : i32
    return %c0_i32, %c0_i32_0 : i32, i32
  }
  func.func @transform_3(%arg0: i32) -> (i32, i32) {
    %c0_i32 = arith.constant 0 : i32
    %c0_i32_0 = arith.constant 0 : i32
    %c0_i32_1 = arith.constant 0 : i32
    return %c0_i32, %c0_i32_0 : i32, i32
  }
  func.func @transform_4(%arg0: i32) -> (i32, i32) {
    %c0_i32 = arith.constant 0 : i32
    %c0_i32_0 = arith.constant 0 : i32
    %c0_i32_1 = arith.constant 0 : i32
    return %c0_i32, %c0_i32_0 : i32, i32
  }
  func.func @transform_5(%arg0: i32) -> (i32, i32) {
    %c0_i32 = arith.constant 0 : i32
    %c0_i32_0 = arith.constant 0 : i32
    %c0_i32_1 = arith.constant 0 : i32
    return %c0_i32, %c0_i32_0 : i32, i32
  }
  func.func @transform_6(%arg0: i32) -> (i32, i32) {
    %c0_i32 = arith.constant 0 : i32
    %c0_i32_0 = arith.constant 0 : i32
    %c0_i32_1 = arith.constant 0 : i32
    return %c0_i32, %c0_i32_0 : i32, i32
  }
  func.func @transform_7(%arg0: i32) -> (i32, i32) {
    %c0_i32 = arith.constant 0 : i32
    %c0_i32_0 = arith.constant 0 : i32
    %c0_i32_1 = arith.constant 0 : i32
    return %c0_i32, %c0_i32_0 : i32, i32
  }
  func.func @transform_8(%arg0: i32) -> (i32, i32) {
    %c0_i32 = arith.constant 0 : i32
    %c0_i32_0 = arith.constant 0 : i32
    %c0_i32_1 = arith.constant 0 : i32
    return %c0_i32, %c0_i32_0 : i32, i32
  }
  func.func @transform_9(%arg0: i32) -> (i32, i32) {
    %c0_i32 = arith.constant 0 : i32
    %c0_i32_0 = arith.constant 0 : i32
    %c0_i32_1 = arith.constant 0 : i32
    return %c0_i32, %c0_i32_0 : i32, i32
  }
  func.func @transform_10(%arg0: i32) -> (i32, i32) {
    %c0_i32 = arith.constant 0 : i32
    %c0_i32_0 = arith.constant 0 : i32
    %c0_i32_1 = arith.constant 0 : i32
    return %c0_i32, %c0_i32_0 : i32, i32
  }
  func.func @transform_11(%arg0: i32) -> (i32, i32) {
    %c0_i32 = arith.constant 0 : i32
    %c0_i32_0 = arith.constant 0 : i32
    %c0_i32_1 = arith.constant 0 : i32
    return %c0_i32, %c0_i32_0 : i32, i32
  }
  func.func @transform_12(%arg0: i32) -> (i32, i32) {
    %c0_i32 = arith.constant 0 : i32
    %c0_i32_0 = arith.constant 0 : i32
    %c0_i32_1 = arith.constant 0 : i32
    return %c0_i32, %c0_i32_0 : i32, i32
  }
  func.func @transform_13(%arg0: i32) -> (i32, i32) {
    %c0_i32 = arith.constant 0 : i32
    %c0_i32_0 = arith.constant 0 : i32
    %c0_i32_1 = arith.constant 0 : i32
    return %c0_i32, %c0_i32_0 : i32, i32
  }
  func.func @transform_14(%arg0: i32) -> (i32, i32) {
    %c0_i32 = arith.constant 0 : i32
    %c0_i32_0 = arith.constant 0 : i32
    %c0_i32_1 = arith.constant 0 : i32
    return %c0_i32, %c0_i32_0 : i32, i32
  }
  func.func @transform_15(%arg0: i32) -> (i32, i32) {
    %c0_i32 = arith.constant 0 : i32
    %c0_i32_0 = arith.constant 0 : i32
    %c0_i32_1 = arith.constant 0 : i32
    return %c0_i32, %c0_i32_0 : i32, i32
  }
  func.func @transform_16(%arg0: i32) -> (i32, i32) {
    %c0_i32 = arith.constant 0 : i32
    %c0_i32_0 = arith.constant 0 : i32
    %c0_i32_1 = arith.constant 0 : i32
    return %c0_i32, %c0_i32_0 : i32, i32
  }
  func.func @transform_17(%arg0: i32) -> (i32, i32) {
    %c0_i32 = arith.constant 0 : i32
    %c0_i32_0 = arith.constant 0 : i32
    %c0_i32_1 = arith.constant 0 : i32
    return %c0_i32, %c0_i32_0 : i32, i32
  }
  func.func @transform_18(%arg0: i32) -> (i32, i32) {
    %c0_i32 = arith.constant 0 : i32
    %c0_i32_0 = arith.constant 0 : i32
    %c0_i32_1 = arith.constant 0 : i32
    return %c0_i32, %c0_i32_0 : i32, i32
  }
  func.func @transform_19(%arg0: i32) -> (i32, i32, i32) {
    %c0_i32 = arith.constant 0 : i32
    %c0_i32_0 = arith.constant 0 : i32
    %c0_i32_1 = arith.constant 0 : i32
    return %arg0, %c0_i32, %c0_i32_0 : i32, i32, i32
  }
  func.func @transform_20(%arg0: i32) -> (i32, i32, i32) {
    %c0_i32 = arith.constant 0 : i32
    %c0_i32_0 = arith.constant 0 : i32
    %c0_i32_1 = arith.constant 0 : i32
    return %arg0, %c0_i32, %c0_i32_0 : i32, i32, i32
  }
}

</mosaic_0001>

<llo_original>
// kernel: head_model_forward.1
$region0: #{head_model_forward.1}
  #allocation0 [shape = 'u32[]', space=smem, size = 0x4, offset = 0x4, fixed_abs, tag = 'smem constant byte address 0x4 - core index']
  #allocation1 [shape = 'u32[72,128]{1,0:T(1,128)}', space=vmem, size = 0x9000, scoped, tag = 'internal scratch']
  %s0 = inlined_call_operand.vmem [shape: bf16[2,256,4], index: 0, kind: input, shape index: {}]
  %s1 = inlined_call_operand.vmem [shape: bf16[36,64], index: 1, kind: input, shape index: {}]
  %s2 = inlined_call_operand.vmem [shape: f32[1,64], index: 2, kind: input, shape index: {}]
  %s3 = inlined_call_operand.vmem [shape: bf16[288,32], index: 3, kind: input, shape index: {}]
  %s4 = inlined_call_operand.vmem [shape: f32[1,32], index: 4, kind: input, shape index: {}]
  %s5 = inlined_call_operand.vmem [shape: bf16[288,32], index: 5, kind: input, shape index: {}]
  %s6 = inlined_call_operand.vmem [shape: f32[1,32], index: 6, kind: input, shape index: {}]
  %s7 = inlined_call_operand.vmem [shape: bf16[288,32], index: 7, kind: input, shape index: {}]
  %s8 = inlined_call_operand.vmem [shape: f32[1,32], index: 8, kind: input, shape index: {}]
  %s9 = inlined_call_operand.vmem [shape: bf16[288,128], index: 9, kind: input, shape index: {}]
  %s10 = inlined_call_operand.vmem [shape: f32[1,128], index: 10, kind: input, shape index: {}]
  %s11 = inlined_call_operand.vmem [shape: bf16[288,32], index: 11, kind: input, shape index: {}]
  %s12 = inlined_call_operand.vmem [shape: f32[1,32], index: 12, kind: input, shape index: {}]
  %s13 = inlined_call_operand.vmem [shape: bf16[288,32], index: 13, kind: input, shape index: {}]
  %s14 = inlined_call_operand.vmem [shape: f32[1,32], index: 14, kind: input, shape index: {}]
  %s15 = inlined_call_operand.vmem [shape: bf16[288,32], index: 15, kind: input, shape index: {}]
  %s16 = inlined_call_operand.vmem [shape: f32[1,32], index: 16, kind: input, shape index: {}]
  %s17 = inlined_call_operand.vmem [shape: bf16[288,128], index: 17, kind: input, shape index: {}]
  %s18 = inlined_call_operand.vmem [shape: f32[1,128], index: 18, kind: input, shape index: {}]
  %s19 = inlined_call_operand.vmem [shape: f32[2,256,128], index: 19, kind: output, shape index: {0}]
  %s20 = inlined_call_operand.vmem [shape: f32[2,256,128], index: 20, kind: output, shape index: {1}]
  %21 = xla_tuple %s19, %s20
  %s22 = sld [smem:[#allocation0]]
  $region117: #{head_model_forward.1} parent=0
    _
  %s24 = ssub.s32 1, %s22
  %s25 = scalar_select 0, %s24, %s22
  loop: start=0, step=1, limit=4
  $region2: #{head_model_forward.1} parent=0 // loop_pre_header
    _
  $region3: #{head_model_forward.1} parent=0 // loop_header
    %s27 = sphi 0, %s31
    %p28 = scmp.ge.s32.totalorder %s27, 4
    %s37 = sphi 0, %s39
    %s40 = sphi 0, %s37
    %s41 = sphi 0, %s40
    %s57 = sphi 0, %s41
    %s61 = sphi 0, %s61
    %s63 = sphi 0, %s61
    %s64 = sphi 0, %s63
    %s78 = sphi 0, %s64
    %s82 = sphi 0, %s82
    %s84 = sphi 0, %s82
    %s85 = sphi 0, %s84
    %s99 = sphi 0, %s85
    %s103 = sphi 0, %s103
    %s105 = sphi 0, %s103
    %s106 = sphi 0, %s105
    %s120 = sphi 0, %s106
    %s124 = sphi 0, %s124
    %s126 = sphi 0, %s124
    %s127 = sphi 0, %s126
    %s141 = sphi 0, %s127
    %s145 = sphi 0, %s145
    %s147 = sphi 0, %s145
    %s148 = sphi 0, %s147
    %s162 = sphi 0, %s148
    %s166 = sphi 0, %s166
    %s168 = sphi 0, %s166
    %s169 = sphi 0, %s168
    %s183 = sphi 0, %s169
    %s187 = sphi 0, %s187
    %s189 = sphi 0, %s187
    %s190 = sphi 0, %s189
    %s204 = sphi 0, %s190
    %s208 = sphi 0, %s208
    %s210 = sphi 0, %s208
    %s211 = sphi 0, %s210
    %s225 = sphi 0, %s211
    %s229 = sphi 0, %s229
    %s231 = sphi 0, %s229
    %s232 = sphi 0, %s231
    %s246 = sphi 0, %s232
    %s250 = sphi 0, %s250
    %s252 = sphi 0, %s250
    %s253 = sphi 0, %s252
    %s267 = sphi 0, %s253
    %s271 = sphi 0, %s271
    %s273 = sphi 0, %s271
    %s274 = sphi 0, %s273
    %s288 = sphi 0, %s274
    %s292 = sphi 0, %s292
    %s294 = sphi 0, %s292
    %s295 = sphi 0, %s294
    %s309 = sphi 0, %s295
    %s313 = sphi 0, %s313
    %s315 = sphi 0, %s313
    %s316 = sphi 0, %s315
    %s330 = sphi 0, %s316
    %s334 = sphi 0, %s334
    %s336 = sphi 0, %s334
    %s337 = sphi 0, %s336
    %s351 = sphi 0, %s337
    %s355 = sphi 0, %s355
    %s357 = sphi 0, %s355
    %s358 = sphi 0, %s357
    %s372 = sphi 0, %s358
    %s376 = sphi 0, %s376
    %s378 = sphi 0, %s376
    %s379 = sphi 0, %s378
    %s393 = sphi 0, %s379
    %s397 = sphi 0, %s397
    %s399 = sphi 0, %s397
    %s400 = sphi 0, %s399
    %s414 = sphi 0, %s400
    %s418 = sphi 0, %s418
    %s420 = sphi 0, %s418
    %s421 = sphi 0, %s420
    %s435 = sphi 0, %s421
    %s441 = sphi 0, %s443
    %s444 = sphi 0, %s441
    %s445 = sphi 0, %s444
    %s461 = sphi 0, %s445
    %s467 = sphi 0, %s469
    %s470 = sphi 0, %s467
    %s471 = sphi 0, %s470
    %s487 = sphi 0, %s471
  $region4: #{head_model_forward.1} parent=0 // loop_header_branch
    %30 = sbr.rel (%p28) target = $region8
  $region5: #{head_model_forward.1} parent=0 // loop_body
    %s32 = ssub.s32 %s27, 1
    %s33 = ssub.s32 %s27, 2
    %s34 = sadd.s32 %s27, 1
    %s35 = ssub.s32 %s27, %s34
    %p36 = scmp.eq.s32.totalorder %s35, 0
    %s38 = sadd.s32 %s37, 1
    %s39 = scalar_select %p36, %s37, %s38
    %p42 = pneg %p36
    %p43 = scmp.eq.s32.totalorder %s27, 1
    %p44 = por %p42, %p43
    %p45 = scmp.ne.s32.totalorder %s37, %s40
    %p46 = scmp.eq.s32.totalorder %s27, 0
    %p47 = por %p45, %p46
    %p48 = scmp.ne.s32.totalorder %s37, %s40
    %p49 = scmp.eq.s32.totalorder %s32, 1
    %p50 = por %p48, %p49
    %p51 = scmp.ne.s32.totalorder %s40, %s41
    %p52 = scmp.eq.s32.totalorder %s32, 0
    %p53 = por %p51, %p52
    %p54 = scmp.ne.s32.totalorder %s40, %s41
    %p55 = scmp.eq.s32.totalorder %s33, 1
    %p56 = por %p54, %p55
    %p58 = scmp.ne.s32.totalorder %s41, %s57
    %p59 = scmp.eq.s32.totalorder %s33, 0
    %p60 = por %p58, %p59
    %s62 = sadd.s32 %s61, 1
    %p65 = scmp.eq.s32.totalorder %s27, 1
    %p66 = scmp.ne.s32.totalorder %s61, %s63
    %p67 = scmp.eq.s32.totalorder %s27, 0
    %p68 = por %p66, %p67
    %p69 = scmp.ne.s32.totalorder %s61, %s63
    %p70 = scmp.eq.s32.totalorder %s32, 1
    %p71 = por %p69, %p70
    %p72 = scmp.ne.s32.totalorder %s63, %s64
    %p73 = scmp.eq.s32.totalorder %s32, 0
    %p74 = por %p72, %p73
    %p75 = scmp.ne.s32.totalorder %s63, %s64
    %p76 = scmp.eq.s32.totalorder %s33, 1
    %p77 = por %p75, %p76
    %p79 = scmp.ne.s32.totalorder %s64, %s78
    %p80 = scmp.eq.s32.totalorder %s33, 0
    %p81 = por %p79, %p80
    %s83 = sadd.s32 %s82, 1
    %p86 = scmp.eq.s32.totalorder %s27, 1
    %p87 = scmp.ne.s32.totalorder %s82, %s84
    %p88 = scmp.eq.s32.totalorder %s27, 0
    %p89 = por %p87, %p88
    %p90 = scmp.ne.s32.totalorder %s82, %s84
    %p91 = scmp.eq.s32.totalorder %s32, 1
    %p92 = por %p90, %p91
    %p93 = scmp.ne.s32.totalorder %s84, %s85
    %p94 = scmp.eq.s32.totalorder %s32, 0
    %p95 = por %p93, %p94
    %p96 = scmp.ne.s32.totalorder %s84, %s85
    %p97 = scmp.eq.s32.totalorder %s33, 1
    %p98 = por %p96, %p97
    %p100 = scmp.ne.s32.totalorder %s85, %s99
    %p101 = scmp.eq.s32.totalorder %s33, 0
    %p102 = por %p100, %p101
    %s104 = sadd.s32 %s103, 1
    %p107 = scmp.eq.s32.totalorder %s27, 1
    %p108 = scmp.ne.s32.totalorder %s103, %s105
    %p109 = scmp.eq.s32.totalorder %s27, 0
    %p110 = por %p108, %p109
    %p111 = scmp.ne.s32.totalorder %s103, %s105
    %p112 = scmp.eq.s32.totalorder %s32, 1
    %p113 = por %p111, %p112
    %p114 = scmp.ne.s32.totalorder %s105, %s106
    %p115 = scmp.eq.s32.totalorder %s32, 0
    %p116 = por %p114, %p115
    %p117 = scmp.ne.s32.totalorder %s105, %s106
    %p118 = scmp.eq.s32.totalorder %s33, 1
    %p119 = por %p117, %p118
    %p121 = scmp.ne.s32.totalorder %s106, %s120
    %p122 = scmp.eq.s32.totalorder %s33, 0
    %p123 = por %p121, %p122
    %s125 = sadd.s32 %s124, 1
    %p128 = scmp.eq.s32.totalorder %s27, 1
    %p129 = scmp.ne.s32.totalorder %s124, %s126
    %p130 = scmp.eq.s32.totalorder %s27, 0
    %p131 = por %p129, %p130
    %p132 = scmp.ne.s32.totalorder %s124, %s126
    %p133 = scmp.eq.s32.totalorder %s32, 1
    %p134 = por %p132, %p133
    %p135 = scmp.ne.s32.totalorder %s126, %s127
    %p136 = scmp.eq.s32.totalorder %s32, 0
    %p137 = por %p135, %p136
    %p138 = scmp.ne.s32.totalorder %s126, %s127
    %p139 = scmp.eq.s32.totalorder %s33, 1
    %p140 = por %p138, %p139
    %p142 = scmp.ne.s32.totalorder %s127, %s141
    %p143 = scmp.eq.s32.totalorder %s33, 0
    %p144 = por %p142, %p143
    %s146 = sadd.s32 %s145, 1
    %p149 = scmp.eq.s32.totalorder %s27, 1
    %p150 = scmp.ne.s32.totalorder %s145, %s147
    %p151 = scmp.eq.s32.totalorder %s27, 0
    %p152 = por %p150, %p151
    %p153 = scmp.ne.s32.totalorder %s145, %s147
    %p154 = scmp.eq.s32.totalorder %s32, 1
    %p155 = por %p153, %p154
    %p156 = scmp.ne.s32.totalorder %s147, %s148
    %p157 = scmp.eq.s32.totalorder %s32, 0
    %p158 = por %p156, %p157
    %p159 = scmp.ne.s32.totalorder %s147, %s148
    %p160 = scmp.eq.s32.totalorder %s33, 1
    %p161 = por %p159, %p160
    %p163 = scmp.ne.s32.totalorder %s148, %s162
    %p164 = scmp.eq.s32.totalorder %s33, 0
    %p165 = por %p163, %p164
    %s167 = sadd.s32 %s166, 1
    %p170 = scmp.eq.s32.totalorder %s27, 1
    %p171 = scmp.ne.s32.totalorder %s166, %s168
    %p172 = scmp.eq.s32.totalorder %s27, 0
    %p173 = por %p171, %p172
    %p174 = scmp.ne.s32.totalorder %s166, %s168
    %p175 = scmp.eq.s32.totalorder %s32, 1
    %p176 = por %p174, %p175
    %p177 = scmp.ne.s32.totalorder %s168, %s169
    %p178 = scmp.eq.s32.totalorder %s32, 0
    %p179 = por %p177, %p178
    %p180 = scmp.ne.s32.totalorder %s168, %s169
    %p181 = scmp.eq.s32.totalorder %s33, 1
    %p182 = por %p180, %p181
    %p184 = scmp.ne.s32.totalorder %s169, %s183
    %p185 = scmp.eq.s32.totalorder %s33, 0
    %p186 = por %p184, %p185
    %s188 = sadd.s32 %s187, 1
    %p191 = scmp.eq.s32.totalorder %s27, 1
    %p192 = scmp.ne.s32.totalorder %s187, %s189
    %p193 = scmp.eq.s32.totalorder %s27, 0
    %p194 = por %p192, %p193
    %p195 = scmp.ne.s32.totalorder %s187, %s189
    %p196 = scmp.eq.s32.totalorder %s32, 1
    %p197 = por %p195, %p196
    %p198 = scmp.ne.s32.totalorder %s189, %s190
    %p199 = scmp.eq.s32.totalorder %s32, 0
    %p200 = por %p198, %p199
    %p201 = scmp.ne.s32.totalorder %s189, %s190
    %p202 = scmp.eq.s32.totalorder %s33, 1
    %p203 = por %p201, %p202
    %p205 = scmp.ne.s32.totalorder %s190, %s204
    %p206 = scmp.eq.s32.totalorder %s33, 0
    %p207 = por %p205, %p206
    %s209 = sadd.s32 %s208, 1
    %p212 = scmp.eq.s32.totalorder %s27, 1
    %p213 = scmp.ne.s32.totalorder %s208, %s210
    %p214 = scmp.eq.s32.totalorder %s27, 0
    %p215 = por %p213, %p214
    %p216 = scmp.ne.s32.totalorder %s208, %s210
    %p217 = scmp.eq.s32.totalorder %s32, 1
    %p218 = por %p216, %p217
    %p219 = scmp.ne.s32.totalorder %s210, %s211
    %p220 = scmp.eq.s32.totalorder %s32, 0
    %p221 = por %p219, %p220
    %p222 = scmp.ne.s32.totalorder %s210, %s211
    %p223 = scmp.eq.s32.totalorder %s33, 1
    %p224 = por %p222, %p223
    %p226 = scmp.ne.s32.totalorder %s211, %s225
    %p227 = scmp.eq.s32.totalorder %s33, 0
    %p228 = por %p226, %p227
    %s230 = sadd.s32 %s229, 1
    %p233 = scmp.eq.s32.totalorder %s27, 1
    %p234 = scmp.ne.s32.totalorder %s229, %s231
    %p235 = scmp.eq.s32.totalorder %s27, 0
    %p236 = por %p234, %p235
    %p237 = scmp.ne.s32.totalorder %s229, %s231
    %p238 = scmp.eq.s32.totalorder %s32, 1
    %p239 = por %p237, %p238
    %p240 = scmp.ne.s32.totalorder %s231, %s232
    %p241 = scmp.eq.s32.totalorder %s32, 0
    %p242 = por %p240, %p241
    %p243 = scmp.ne.s32.totalorder %s231, %s232
    %p244 = scmp.eq.s32.totalorder %s33, 1
    %p245 = por %p243, %p244
    %p247 = scmp.ne.s32.totalorder %s232, %s246
    %p248 = scmp.eq.s32.totalorder %s33, 0
    %p249 = por %p247, %p248
    %s251 = sadd.s32 %s250, 1
    %p254 = scmp.eq.s32.totalorder %s27, 1
    %p255 = scmp.ne.s32.totalorder %s250, %s252
    %p256 = scmp.eq.s32.totalorder %s27, 0
    %p257 = por %p255, %p256
    %p258 = scmp.ne.s32.totalorder %s250, %s252
    %p259 = scmp.eq.s32.totalorder %s32, 1
    %p260 = por %p258, %p259
    %p261 = scmp.ne.s32.totalorder %s252, %s253
    %p262 = scmp.eq.s32.totalorder %s32, 0
    %p263 = por %p261, %p262
    %p264 = scmp.ne.s32.totalorder %s252, %s253
    %p265 = scmp.eq.s32.totalorder %s33, 1
    %p266 = por %p264, %p265
    %p268 = scmp.ne.s32.totalorder %s253, %s267
    %p269 = scmp.eq.s32.totalorder %s33, 0
    %p270 = por %p268, %p269
    %s272 = sadd.s32 %s271, 1
    %p275 = scmp.eq.s32.totalorder %s27, 1
    %p276 = scmp.ne.s32.totalorder %s271, %s273
    %p277 = scmp.eq.s32.totalorder %s27, 0
    %p278 = por %p276, %p277
    %p279 = scmp.ne.s32.totalorder %s271, %s273
    %p280 = scmp.eq.s32.totalorder %s32, 1
    %p281 = por %p279, %p280
    %p282 = scmp.ne.s32.totalorder %s273, %s274
    %p283 = scmp.eq.s32.totalorder %s32, 0
    %p284 = por %p282, %p283
    %p285 = scmp.ne.s32.totalorder %s273, %s274
    %p286 = scmp.eq.s32.totalorder %s33, 1
    %p287 = por %p285, %p286
    %p289 = scmp.ne.s32.totalorder %s274, %s288
    %p290 = scmp.eq.s32.totalorder %s33, 0
    %p291 = por %p289, %p290
    %s293 = sadd.s32 %s292, 1
    %p296 = scmp.eq.s32.totalorder %s27, 1
    %p297 = scmp.ne.s32.totalorder %s292, %s294
    %p298 = scmp.eq.s32.totalorder %s27, 0
    %p299 = por %p297, %p298
    %p300 = scmp.ne.s32.totalorder %s292, %s294
    %p301 = scmp.eq.s32.totalorder %s32, 1
    %p302 = por %p300, %p301
    %p303 = scmp.ne.s32.totalorder %s294, %s295
    %p304 = scmp.eq.s32.totalorder %s32, 0
    %p305 = por %p303, %p304
    %p306 = scmp.ne.s32.totalorder %s294, %s295
    %p307 = scmp.eq.s32.totalorder %s33, 1
    %p308 = por %p306, %p307
    %p310 = scmp.ne.s32.totalorder %s295, %s309
    %p311 = scmp.eq.s32.totalorder %s33, 0
    %p312 = por %p310, %p311
    %s314 = sadd.s32 %s313, 1
    %p317 = scmp.eq.s32.totalorder %s27, 1
    %p318 = scmp.ne.s32.totalorder %s313, %s315
    %p319 = scmp.eq.s32.totalorder %s27, 0
    %p320 = por %p318, %p319
    %p321 = scmp.ne.s32.totalorder %s313, %s315
    %p322 = scmp.eq.s32.totalorder %s32, 1
    %p323 = por %p321, %p322
    %p324 = scmp.ne.s32.totalorder %s315, %s316
    %p325 = scmp.eq.s32.totalorder %s32, 0
    %p326 = por %p324, %p325
    %p327 = scmp.ne.s32.totalorder %s315, %s316
    %p328 = scmp.eq.s32.totalorder %s33, 1
    %p329 = por %p327, %p328
    %p331 = scmp.ne.s32.totalorder %s316, %s330
    %p332 = scmp.eq.s32.totalorder %s33, 0
    %p333 = por %p331, %p332
    %s335 = sadd.s32 %s334, 1
    %p338 = scmp.eq.s32.totalorder %s27, 1
    %p339 = scmp.ne.s32.totalorder %s334, %s336
    %p340 = scmp.eq.s32.totalorder %s27, 0
    %p341 = por %p339, %p340
    %p342 = scmp.ne.s32.totalorder %s334, %s336
    %p343 = scmp.eq.s32.totalorder %s32, 1
    %p344 = por %p342, %p343
    %p345 = scmp.ne.s32.totalorder %s336, %s337
    %p346 = scmp.eq.s32.totalorder %s32, 0
    %p347 = por %p345, %p346
    %p348 = scmp.ne.s32.totalorder %s336, %s337
    %p349 = scmp.eq.s32.totalorder %s33, 1
    %p350 = por %p348, %p349
    %p352 = scmp.ne.s32.totalorder %s337, %s351
    %p353 = scmp.eq.s32.totalorder %s33, 0
    %p354 = por %p352, %p353
    %s356 = sadd.s32 %s355, 1
    %p359 = scmp.eq.s32.totalorder %s27, 1
    %p360 = scmp.ne.s32.totalorder %s355, %s357
    %p361 = scmp.eq.s32.totalorder %s27, 0
    %p362 = por %p360, %p361
    %p363 = scmp.ne.s32.totalorder %s355, %s357
    %p364 = scmp.eq.s32.totalorder %s32, 1
    %p365 = por %p363, %p364
    %p366 = scmp.ne.s32.totalorder %s357, %s358
    %p367 = scmp.eq.s32.totalorder %s32, 0
    %p368 = por %p366, %p367
    %p369 = scmp.ne.s32.totalorder %s357, %s358
    %p370 = scmp.eq.s32.totalorder %s33, 1
    %p371 = por %p369, %p370
    %p373 = scmp.ne.s32.totalorder %s358, %s372
    %p374 = scmp.eq.s32.totalorder %s33, 0
    %p375 = por %p373, %p374
    %s377 = sadd.s32 %s376, 1
    %p380 = scmp.eq.s32.totalorder %s27, 1
    %p381 = scmp.ne.s32.totalorder %s376, %s378
    %p382 = scmp.eq.s32.totalorder %s27, 0
    %p383 = por %p381, %p382
    %p384 = scmp.ne.s32.totalorder %s376, %s378
    %p385 = scmp.eq.s32.totalorder %s32, 1
    %p386 = por %p384, %p385
    %p387 = scmp.ne.s32.totalorder %s378, %s379
    %p388 = scmp.eq.s32.totalorder %s32, 0
    %p389 = por %p387, %p388
    %p390 = scmp.ne.s32.totalorder %s378, %s379
    %p391 = scmp.eq.s32.totalorder %s33, 1
    %p392 = por %p390, %p391
    %p394 = scmp.ne.s32.totalorder %s379, %s393
    %p395 = scmp.eq.s32.totalorder %s33, 0
    %p396 = por %p394, %p395
    %s398 = sadd.s32 %s397, 1
    %p401 = scmp.eq.s32.totalorder %s27, 1
    %p402 = scmp.ne.s32.totalorder %s397, %s399
    %p403 = scmp.eq.s32.totalorder %s27, 0
    %p404 = por %p402, %p403
    %p405 = scmp.ne.s32.totalorder %s397, %s399
    %p406 = scmp.eq.s32.totalorder %s32, 1
    %p407 = por %p405, %p406
    %p408 = scmp.ne.s32.totalorder %s399, %s400
    %p409 = scmp.eq.s32.totalorder %s32, 0
    %p410 = por %p408, %p409
    %p411 = scmp.ne.s32.totalorder %s399, %s400
    %p412 = scmp.eq.s32.totalorder %s33, 1
    %p413 = por %p411, %p412
    %p415 = scmp.ne.s32.totalorder %s400, %s414
    %p416 = scmp.eq.s32.totalorder %s33, 0
    %p417 = por %p415, %p416
    %s419 = sadd.s32 %s418, 1
    %p422 = scmp.eq.s32.totalorder %s27, 1
    %p423 = scmp.ne.s32.totalorder %s418, %s420
    %p424 = scmp.eq.s32.totalorder %s27, 0
    %p425 = por %p423, %p424
    %p426 = scmp.ne.s32.totalorder %s418, %s420
    %p427 = scmp.eq.s32.totalorder %s32, 1
    %p428 = por %p426, %p427
    %p429 = scmp.ne.s32.totalorder %s420, %s421
    %p430 = scmp.eq.s32.totalorder %s32, 0
    %p431 = por %p429, %p430
    %p432 = scmp.ne.s32.totalorder %s420, %s421
    %p433 = scmp.eq.s32.totalorder %s33, 1
    %p434 = por %p432, %p433
    %p436 = scmp.ne.s32.totalorder %s421, %s435
    %p437 = scmp.eq.s32.totalorder %s33, 0
    %p438 = por %p436, %p437
    %s439 = ssub.s32 %s27, %s34
    %p440 = scmp.eq.s32.totalorder %s439, 0
    %s442 = sadd.s32 %s441, 1
    %s443 = scalar_select %p440, %s441, %s442
    %p446 = pneg %p440
    %p447 = scmp.eq.s32.totalorder %s27, 1
    %p448 = por %p446, %p447
    %p449 = scmp.ne.s32.totalorder %s441, %s444
    %p450 = scmp.eq.s32.totalorder %s27, 0
    %p451 = por %p449, %p450
    %p452 = scmp.ne.s32.totalorder %s441, %s444
    %p453 = scmp.eq.s32.totalorder %s32, 1
    %p454 = por %p452, %p453
    %p455 = scmp.ne.s32.totalorder %s444, %s445
    %p456 = scmp.eq.s32.totalorder %s32, 0
    %p457 = por %p455, %p456
    %p458 = scmp.ne.s32.totalorder %s444, %s445
    %p459 = scmp.eq.s32.totalorder %s33, 1
    %p460 = por %p458, %p459
    %p462 = scmp.ne.s32.totalorder %s445, %s461
    %p463 = scmp.eq.s32.totalorder %s33, 0
    %p464 = por %p462, %p463
    %s465 = ssub.s32 %s27, %s34
    %p466 = scmp.eq.s32.totalorder %s465, 0
    %s468 = sadd.s32 %s467, 1
    %s469 = scalar_select %p466, %s467, %s468
    %p472 = pneg %p466
    %p473 = scmp.eq.s32.totalorder %s27, 1
    %p474 = por %p472, %p473
    %p475 = scmp.ne.s32.totalorder %s467, %s470
    %p476 = scmp.eq.s32.totalorder %s27, 0
    %p477 = por %p475, %p476
    %p478 = scmp.ne.s32.totalorder %s467, %s470
    %p479 = scmp.eq.s32.totalorder %s32, 1
    %p480 = por %p478, %p479
    %p481 = scmp.ne.s32.totalorder %s470, %s471
    %p482 = scmp.eq.s32.totalorder %s32, 0
    %p483 = por %p481, %p482
    %p484 = scmp.ne.s32.totalorder %s470, %s471
    %p485 = scmp.eq.s32.totalorder %s33, 1
    %p486 = por %p484, %p485
    %p488 = scmp.ne.s32.totalorder %s471, %s487
    %p489 = scmp.eq.s32.totalorder %s33, 0
    %p490 = por %p488, %p489
    %p491 = scmp.le.s32.totalorder 1, %s27
    %p492 = scmp.lt.s32.totalorder %s27, 3
    %p493 = pnand %p491, %p492
    %p494 = pneg %p493
    // Predicated region
    $region9: #{head_model_forward.1} parent=5 // pred_check
      _
    $region10: #{head_model_forward.1} parent=5 // pred_check_branch
      %496 = sbr.rel (%p493) target = $region12
    $region11: #{head_model_forward.1} parent=5 // pred_region
      %s497 = ssub.s32 %s27, 1
      // Predicated region
      $region13: #{head_model_forward.1} parent=11 // pred_check
        %p498 = pneg %p74
      $region14: #{head_model_forward.1} parent=11 // pred_check_branch
        %500 = sbr.rel (%p498) target = $region16
      $region15: #{head_model_forward.1} parent=11 // pred_region
        _
      $region16: #{head_model_forward.1} parent=11 // pred_fallthru
        _
      // Predicated region
      $region17: #{head_model_forward.1} parent=11 // pred_check
        %p501 = pneg %p95
      $region18: #{head_model_forward.1} parent=11 // pred_check_branch
        %503 = sbr.rel (%p501) target = $region20
      $region19: #{head_model_forward.1} parent=11 // pred_region
        _
      $region20: #{head_model_forward.1} parent=11 // pred_fallthru
        _
      // Predicated region
      $region21: #{head_model_forward.1} parent=11 // pred_check
        %p504 = pneg %p116
      $region22: #{head_model_forward.1} parent=11 // pred_check_branch
        %506 = sbr.rel (%p504) target = $region24
      $region23: #{head_model_forward.1} parent=11 // pred_region
        _
      $region24: #{head_model_forward.1} parent=11 // pred_fallthru
        _
      // Predicated region
      $region25: #{head_model_forward.1} parent=11 // pred_check
        %p507 = pneg %p137
      $region26: #{head_model_forward.1} parent=11 // pred_check_branch
        %509 = sbr.rel (%p507) target = $region28
      $region27: #{head_model_forward.1} parent=11 // pred_region
        _
      $region28: #{head_model_forward.1} parent=11 // pred_fallthru
        _
      // Predicated region
      $region29: #{head_model_forward.1} parent=11 // pred_check
        %p510 = pneg %p158
      $region30: #{head_model_forward.1} parent=11 // pred_check_branch
        %512 = sbr.rel (%p510) target = $region32
      $region31: #{head_model_forward.1} parent=11 // pred_region
        _
      $region32: #{head_model_forward.1} parent=11 // pred_fallthru
        _
      // Predicated region
      $region33: #{head_model_forward.1} parent=11 // pred_check
        %p513 = pneg %p179
      $region34: #{head_model_forward.1} parent=11 // pred_check_branch
        %515 = sbr.rel (%p513) target = $region36
      $region35: #{head_model_forward.1} parent=11 // pred_region
        _
      $region36: #{head_model_forward.1} parent=11 // pred_fallthru
        _
      // Predicated region
      $region37: #{head_model_forward.1} parent=11 // pred_check
        %p516 = pneg %p200
      $region38: #{head_model_forward.1} parent=11 // pred_check_branch
        %518 = sbr.rel (%p516) target = $region40
      $region39: #{head_model_forward.1} parent=11 // pred_region
        _
      $region40: #{head_model_forward.1} parent=11 // pred_fallthru
        _
      // Predicated region
      $region41: #{head_model_forward.1} parent=11 // pred_check
        %p519 = pneg %p221
      $region42: #{head_model_forward.1} parent=11 // pred_check_branch
        %521 = sbr.rel (%p519) target = $region44
      $region43: #{head_model_forward.1} parent=11 // pred_region
        _
      $region44: #{head_model_forward.1} parent=11 // pred_fallthru
        _
      // Predicated region
      $region45: #{head_model_forward.1} parent=11 // pred_check
        %p522 = pneg %p242
      $region46: #{head_model_forward.1} parent=11 // pred_check_branch
        %524 = sbr.rel (%p522) target = $region48
      $region47: #{head_model_forward.1} parent=11 // pred_region
        _
      $region48: #{head_model_forward.1} parent=11 // pred_fallthru
        _
      // Predicated region
      $region49: #{head_model_forward.1} parent=11 // pred_check
        %p525 = pneg %p263
      $region50: #{head_model_forward.1} parent=11 // pred_check_branch
        %527 = sbr.rel (%p525) target = $region52
      $region51: #{head_model_forward.1} parent=11 // pred_region
        _
      $region52: #{head_model_forward.1} parent=11 // pred_fallthru
        _
      // Predicated region
      $region53: #{head_model_forward.1} parent=11 // pred_check
        %p528 = pneg %p284
      $region54: #{head_model_forward.1} parent=11 // pred_check_branch
        %530 = sbr.rel (%p528) target = $region56
      $region55: #{head_model_forward.1} parent=11 // pred_region
        _
      $region56: #{head_model_forward.1} parent=11 // pred_fallthru
        _
      // Predicated region
      $region57: #{head_model_forward.1} parent=11 // pred_check
        %p531 = pneg %p305
      $region58: #{head_model_forward.1} parent=11 // pred_check_branch
        %533 = sbr.rel (%p531) target = $region60
      $region59: #{head_model_forward.1} parent=11 // pred_region
        _
      $region60: #{head_model_forward.1} parent=11 // pred_fallthru
        _
      // Predicated region
      $region61: #{head_model_forward.1} parent=11 // pred_check
        %p534 = pneg %p326
      $region62: #{head_model_forward.1} parent=11 // pred_check_branch
        %536 = sbr.rel (%p534) target = $region64
      $region63: #{head_model_forward.1} parent=11 // pred_region
        _
      $region64: #{head_model_forward.1} parent=11 // pred_fallthru
        _
      // Predicated region
      $region65: #{head_model_forward.1} parent=11 // pred_check
        %p537 = pneg %p347
      $region66: #{head_model_forward.1} parent=11 // pred_check_branch
        %539 = sbr.rel (%p537) target = $region68
      $region67: #{head_model_forward.1} parent=11 // pred_region
        _
      $region68: #{head_model_forward.1} parent=11 // pred_fallthru
        _
      // Predicated region
      $region69: #{head_model_forward.1} parent=11 // pred_check
        %p540 = pneg %p368
      $region70: #{head_model_forward.1} parent=11 // pred_check_branch
        %542 = sbr.rel (%p540) target = $region72
      $region71: #{head_model_forward.1} parent=11 // pred_region
        _
      $region72: #{head_model_forward.1} parent=11 // pred_fallthru
        _
      // Predicated region
      $region73: #{head_model_forward.1} parent=11 // pred_check
        %p543 = pneg %p389
      $region74: #{head_model_forward.1} parent=11 // pred_check_branch
        %545 = sbr.rel (%p543) target = $region76
      $region75: #{head_model_forward.1} parent=11 // pred_region
        _
      $region76: #{head_model_forward.1} parent=11 // pred_fallthru
        _
      // Predicated region
      $region77: #{head_model_forward.1} parent=11 // pred_check
        %p546 = pneg %p410
      $region78: #{head_model_forward.1} parent=11 // pred_check_branch
        %548 = sbr.rel (%p546) target = $region80
      $region79: #{head_model_forward.1} parent=11 // pred_region
        _
      $region80: #{head_model_forward.1} parent=11 // pred_fallthru
        _
      // Predicated region
      $region81: #{head_model_forward.1} parent=11 // pred_check
        %p549 = pneg %p431
      $region82: #{head_model_forward.1} parent=11 // pred_check_branch
        %551 = sbr.rel (%p549) target = $region84
      $region83: #{head_model_forward.1} parent=11 // pred_region
        _
      $region84: #{head_model_forward.1} parent=11 // pred_fallthru
        _
    $region12: #{head_model_forward.1} parent=5 // pred_fallthru
      _
    %p552 = scmp.lt.s32.totalorder %s27, 2
    // Predicated region
    $region85: #{head_model_forward.1} parent=5 // pred_check
      %p553 = pneg %p552
    $region86: #{head_model_forward.1} parent=5 // pred_check_branch
      %555 = sbr.rel (%p553) target = $region88
    $region87: #{head_model_forward.1} parent=5 // pred_region
      // Predicated region
      $region89: #{head_model_forward.1} parent=87 // pred_check
        %p556 = pneg %p47
      $region90: #{head_model_forward.1} parent=87 // pred_check_branch
        %558 = sbr.rel (%p556) target = $region92
      $region91: #{head_model_forward.1} parent=87 // pred_region
        %p559 = scmp.lt.s32.totalorder %s27, 1
        %s560 = scalar_select %p559, %s27, 1
        %s561 = smul.addr %s560, 32
        %s562 = smul.addr %s561, 4
        %s563 = scalar_lea.vmem %s0, %s562
      $region92: #{head_model_forward.1} parent=87 // pred_fallthru
        _
    $region88: #{head_model_forward.1} parent=5 // pred_fallthru
      _
    %p564 = scmp.le.s32.totalorder 1, %s27
    %p565 = scmp.lt.s32.totalorder %s27, 3
    %p566 = pnand %p564, %p565
    %p567 = pneg %p566
    // Predicated region
    $region93: #{head_model_forward.1} parent=5 // pred_check
      _
    $region94: #{head_model_forward.1} parent=5 // pred_check_branch
      %569 = sbr.rel (%p566) target = $region96
    $region95: #{head_model_forward.1} parent=5 // pred_region
      %s570 = ssub.s32 %s27, 1
      %p571 = scmp.lt.s32.totalorder %s32, 1
      %s572 = scalar_select %p571, %s32, 1
      %s573 = smul.addr %s572, 32
      %s574 = smul.addr %s573, 4
      %s575 = scalar_lea.vmem %s0, %s574
      %p576 = pneg %p53
      %p577 = pneg %p50
      %p578 = pneg %p74
      %p579 = pneg %p71
      %p580 = pneg %p95
      %p581 = pneg %p92
      %p582 = pneg %p116
      %p583 = pneg %p113
      %p584 = pneg %p137
      %p585 = pneg %p134
      %p586 = pneg %p158
      %p587 = pneg %p155
      %p588 = pneg %p179
      %p589 = pneg %p176
      %p590 = pneg %p200
      %p591 = pneg %p197
      %p592 = pneg %p221
      %p593 = pneg %p218
      %p594 = pneg %p242
      %p595 = pneg %p239
      %p596 = pneg %p263
      %p597 = pneg %p260
      %p598 = pneg %p284
      %p599 = pneg %p281
      %p600 = pneg %p305
      %p601 = pneg %p302
      %p602 = pneg %p326
      %p603 = pneg %p323
      %p604 = pneg %p347
      %p605 = pneg %p344
      %p606 = pneg %p368
      %p607 = pneg %p365
      %p608 = pneg %p389
      %p609 = pneg %p386
      %p610 = pneg %p410
      %p611 = pneg %p407
      %p612 = pneg %p431
      %p613 = pneg %p428
      %p614 = pneg %p457
      %p615 = pneg %p454
      %p616 = scmp.lt.s32.totalorder %s32, 1
      %s617 = scalar_select %p616, %s32, 1
      %s618 = smul.addr %s617, 32
      %s619 = smul.addr %s618, 8
      %s620 = scalar_lea.vmem %s19, %s619
      %p621 = pneg %p483
      %p622 = pneg %p480
      %p623 = scmp.lt.s32.totalorder %s32, 1
      %s624 = scalar_select %p623, %s32, 1
      %s625 = smul.addr %s624, 32
      %s626 = smul.addr %s625, 8
      %s627 = scalar_lea.vmem %s20, %s626
      %p628 = scmp.lt.s32.totalorder %s32, 1
      %s629 = scalar_select %p628, %s32, 1
      %s630 = smul.addr %s629, 32
      %s631 = smul.addr %s630, 4
      %s632 = scalar_lea.vmem %s0, %s631
      %p633 = scmp.lt.s32.totalorder %s32, 1
      %s634 = scalar_select %p633, %s32, 1
      %s635 = smul.addr %s634, 32
      %s636 = smul.addr %s635, 8
      %s637 = scalar_lea.vmem %s19, %s636
      %p638 = scmp.lt.s32.totalorder %s32, 1
      %s639 = scalar_select %p638, %s32, 1
      %s640 = smul.addr %s639, 32
      %s641 = smul.addr %s640, 8
      %s642 = scalar_lea.vmem %s20, %s641
      %v646 = vlaneseq
      %v647 = vshrl.u32 %v646, 7
      %v648 = vadd.s32 %v647, 8
      %v649 = vadd.s32 %v647, 16
      %v650 = vadd.s32 %v647, 24
      %v651 = vadd.s32 %v647, 32
      %v652 = vadd.s32 %v647, 40
      %v653 = vadd.s32 %v647, 48
      %v654 = vadd.s32 %v647, 56
      %v655 = vadd.s32 %v647, 64
      %v656 = vadd.s32 %v647, 72
      %v657 = vadd.s32 %v647, 80
      %v658 = vadd.s32 %v647, 88
      %v659 = vadd.s32 %v647, 96
      %v660 = vadd.s32 %v647, 104
      %v661 = vadd.s32 %v647, 112
      %v662 = vadd.s32 %v647, 120
      %v663 = vadd.s32 %v647, 128
      %v664 = vadd.s32 %v647, 136
      %v665 = vadd.s32 %v647, 144
      %v666 = vadd.s32 %v647, 152
      %v667 = vadd.s32 %v647, 160
      %v668 = vadd.s32 %v647, 168
      %v669 = vadd.s32 %v647, 176
      %v670 = vadd.s32 %v647, 184
      %v671 = vadd.s32 %v647, 192
      %v672 = vadd.s32 %v647, 200
      %v673 = vadd.s32 %v647, 208
      %v674 = vadd.s32 %v647, 216
      %v675 = vadd.s32 %v647, 224
      %v676 = vadd.s32 %v647, 232
      %v677 = vadd.s32 %v647, 240
      %v678 = vadd.s32 %v647, 248
      %vm679 = vcmp.lt.s32.totalorder %v647, 0
      %v680 = vsub.s32 0, %v647
      %v681 = vsel %vm679, %v680, %v647
      %v682 = vshrl.u32 %v681, 4
      %v683 = vand.u32 %v681, 15
      %v684 = vsub.s32 0, %v683
      %v685 = vsel %vm679, %v684, %v683
      %vm686 = vcmp.lt.s32.totalorder %v648, 0
      %v687 = vsub.s32 0, %v648
      %v688 = vsel %vm686, %v687, %v648
      %v689 = vshrl.u32 %v688, 4
      %v690 = vand.u32 %v688, 15
      %v691 = vsub.s32 0, %v690
      %v692 = vsel %vm686, %v691, %v690
      %vm693 = vcmp.lt.s32.totalorder %v649, 0
      %v694 = vsub.s32 0, %v649
      %v695 = vsel %vm693, %v694, %v649
      %v696 = vshrl.u32 %v695, 4
      %v697 = vand.u32 %v695, 15
      %v698 = vsub.s32 0, %v697
      %v699 = vsel %vm693, %v698, %v697
      %vm700 = vcmp.lt.s32.totalorder %v650, 0
      %v701 = vsub.s32 0, %v650
      %v702 = vsel %vm700, %v701, %v650
      %v703 = vshrl.u32 %v702, 4
      %v704 = vand.u32 %v702, 15
      %v705 = vsub.s32 0, %v704
      %v706 = vsel %vm700, %v705, %v704
      %vm707 = vcmp.lt.s32.totalorder %v651, 0
      %v708 = vsub.s32 0, %v651
      %v709 = vsel %vm707, %v708, %v651
      %v710 = vshrl.u32 %v709, 4
      %v711 = vand.u32 %v709, 15
      %v712 = vsub.s32 0, %v711
      %v713 = vsel %vm707, %v712, %v711
      %vm714 = vcmp.lt.s32.totalorder %v652, 0
      %v715 = vsub.s32 0, %v652
      %v716 = vsel %vm714, %v715, %v652
      %v717 = vshrl.u32 %v716, 4
      %v718 = vand.u32 %v716, 15
      %v719 = vsub.s32 0, %v718
      %v720 = vsel %vm714, %v719, %v718
      %vm721 = vcmp.lt.s32.totalorder %v653, 0
      %v722 = vsub.s32 0, %v653
      %v723 = vsel %vm721, %v722, %v653
      %v724 = vshrl.u32 %v723, 4
      %v725 = vand.u32 %v723, 15
      %v726 = vsub.s32 0, %v725
      %v727 = vsel %vm721, %v726, %v725
      %vm728 = vcmp.lt.s32.totalorder %v654, 0
      %v729 = vsub.s32 0, %v654
      %v730 = vsel %vm728, %v729, %v654
      %v731 = vshrl.u32 %v730, 4
      %v732 = vand.u32 %v730, 15
      %v733 = vsub.s32 0, %v732
      %v734 = vsel %vm728, %v733, %v732
      %vm735 = vcmp.lt.s32.totalorder %v655, 0
      %v736 = vsub.s32 0, %v655
      %v737 = vsel %vm735, %v736, %v655
      %v738 = vshrl.u32 %v737, 4
      %v739 = vand.u32 %v737, 15
      %v740 = vsub.s32 0, %v739
      %v741 = vsel %vm735, %v740, %v739
      %vm742 = vcmp.lt.s32.totalorder %v656, 0
      %v743 = vsub.s32 0, %v656
      %v744 = vsel %vm742, %v743, %v656
      %v745 = vshrl.u32 %v744, 4
      %v746 = vand.u32 %v744, 15
      %v747 = vsub.s32 0, %v746
      %v748 = vsel %vm742, %v747, %v746
      %vm749 = vcmp.lt.s32.totalorder %v657, 0
      %v750 = vsub.s32 0, %v657
      %v751 = vsel %vm749, %v750, %v657
      %v752 = vshrl.u32 %v751, 4
      %v753 = vand.u32 %v751, 15
      %v754 = vsub.s32 0, %v753
      %v755 = vsel %vm749, %v754, %v753
      %vm756 = vcmp.lt.s32.totalorder %v658, 0
      %v757 = vsub.s32 0, %v658
      %v758 = vsel %vm756, %v757, %v658
      %v759 = vshrl.u32 %v758, 4
      %v760 = vand.u32 %v758, 15
      %v761 = vsub.s32 0, %v760
      %v762 = vsel %vm756, %v761, %v760
      %vm763 = vcmp.lt.s32.totalorder %v659, 0
      %v764 = vsub.s32 0, %v659
      %v765 = vsel %vm763, %v764, %v659
      %v766 = vshrl.u32 %v765, 4
      %v767 = vand.u32 %v765, 15
      %v768 = vsub.s32 0, %v767
      %v769 = vsel %vm763, %v768, %v767
      %vm770 = vcmp.lt.s32.totalorder %v660, 0
      %v771 = vsub.s32 0, %v660
      %v772 = vsel %vm770, %v771, %v660
      %v773 = vshrl.u32 %v772, 4
      %v774 = vand.u32 %v772, 15
      %v775 = vsub.s32 0, %v774
      %v776 = vsel %vm770, %v775, %v774
      %vm777 = vcmp.lt.s32.totalorder %v661, 0
      %v778 = vsub.s32 0, %v661
      %v779 = vsel %vm777, %v778, %v661
      %v780 = vshrl.u32 %v779, 4
      %v781 = vand.u32 %v779, 15
      %v782 = vsub.s32 0, %v781
      %v783 = vsel %vm777, %v782, %v781
      %vm784 = vcmp.lt.s32.totalorder %v662, 0
      %v785 = vsub.s32 0, %v662
      %v786 = vsel %vm784, %v785, %v662
      %v787 = vshrl.u32 %v786, 4
      %v788 = vand.u32 %v786, 15
      %v789 = vsub.s32 0, %v788
      %v790 = vsel %vm784, %v789, %v788
      %vm791 = vcmp.lt.s32.totalorder %v663, 0
      %v792 = vsub.s32 0, %v663
      %v793 = vsel %vm791, %v792, %v663
      %v794 = vshrl.u32 %v793, 4
      %v795 = vand.u32 %v793, 15
      %v796 = vsub.s32 0, %v795
      %v797 = vsel %vm791, %v796, %v795
      %vm798 = vcmp.lt.s32.totalorder %v664, 0
      %v799 = vsub.s32 0, %v664
      %v800 = vsel %vm798, %v799, %v664
      %v801 = vshrl.u32 %v800, 4
      %v802 = vand.u32 %v800, 15
      %v803 = vsub.s32 0, %v802
      %v804 = vsel %vm798, %v803, %v802
      %vm805 = vcmp.lt.s32.totalorder %v665, 0
      %v806 = vsub.s32 0, %v665
      %v807 = vsel %vm805, %v806, %v665
      %v808 = vshrl.u32 %v807, 4
      %v809 = vand.u32 %v807, 15
      %v810 = vsub.s32 0, %v809
      %v811 = vsel %vm805, %v810, %v809
      %vm812 = vcmp.lt.s32.totalorder %v666, 0
      %v813 = vsub.s32 0, %v666
      %v814 = vsel %vm812, %v813, %v666
      %v815 = vshrl.u32 %v814, 4
      %v816 = vand.u32 %v814, 15
      %v817 = vsub.s32 0, %v816
      %v818 = vsel %vm812, %v817, %v816
      %vm819 = vcmp.lt.s32.totalorder %v667, 0
      %v820 = vsub.s32 0, %v667
      %v821 = vsel %vm819, %v820, %v667
      %v822 = vshrl.u32 %v821, 4
      %v823 = vand.u32 %v821, 15
      %v824 = vsub.s32 0, %v823
      %v825 = vsel %vm819, %v824, %v823
      %vm826 = vcmp.lt.s32.totalorder %v668, 0
      %v827 = vsub.s32 0, %v668
      %v828 = vsel %vm826, %v827, %v668
      %v829 = vshrl.u32 %v828, 4
      %v830 = vand.u32 %v828, 15
      %v831 = vsub.s32 0, %v830
      %v832 = vsel %vm826, %v831, %v830
      %vm833 = vcmp.lt.s32.totalorder %v669, 0
      %v834 = vsub.s32 0, %v669
      %v835 = vsel %vm833, %v834, %v669
      %v836 = vshrl.u32 %v835, 4
      %v837 = vand.u32 %v835, 15
      %v838 = vsub.s32 0, %v837
      %v839 = vsel %vm833, %v838, %v837
      %vm840 = vcmp.lt.s32.totalorder %v670, 0
      %v841 = vsub.s32 0, %v670
      %v842 = vsel %vm840, %v841, %v670
      %v843 = vshrl.u32 %v842, 4
      %v844 = vand.u32 %v842, 15
      %v845 = vsub.s32 0, %v844
      %v846 = vsel %vm840, %v845, %v844
      %vm847 = vcmp.lt.s32.totalorder %v671, 0
      %v848 = vsub.s32 0, %v671
      %v849 = vsel %vm847, %v848, %v671
      %v850 = vshrl.u32 %v849, 4
      %v851 = vand.u32 %v849, 15
      %v852 = vsub.s32 0, %v851
      %v853 = vsel %vm847, %v852, %v851
      %vm854 = vcmp.lt.s32.totalorder %v672, 0
      %v855 = vsub.s32 0, %v672
      %v856 = vsel %vm854, %v855, %v672
      %v857 = vshrl.u32 %v856, 4
      %v858 = vand.u32 %v856, 15
      %v859 = vsub.s32 0, %v858
      %v860 = vsel %vm854, %v859, %v858
      %vm861 = vcmp.lt.s32.totalorder %v673, 0
      %v862 = vsub.s32 0, %v673
      %v863 = vsel %vm861, %v862, %v673
      %v864 = vshrl.u32 %v863, 4
      %v865 = vand.u32 %v863, 15
      %v866 = vsub.s32 0, %v865
      %v867 = vsel %vm861, %v866, %v865
      %vm868 = vcmp.lt.s32.totalorder %v674, 0
      %v869 = vsub.s32 0, %v674
      %v870 = vsel %vm868, %v869, %v674
      %v871 = vshrl.u32 %v870, 4
      %v872 = vand.u32 %v870, 15
      %v873 = vsub.s32 0, %v872
      %v874 = vsel %vm868, %v873, %v872
      %vm875 = vcmp.lt.s32.totalorder %v675, 0
      %v876 = vsub.s32 0, %v675
      %v877 = vsel %vm875, %v876, %v675
      %v878 = vshrl.u32 %v877, 4
      %v879 = vand.u32 %v877, 15
      %v880 = vsub.s32 0, %v879
      %v881 = vsel %vm875, %v880, %v879
      %vm882 = vcmp.lt.s32.totalorder %v676, 0
      %v883 = vsub.s32 0, %v676
      %v884 = vsel %vm882, %v883, %v676
      %v885 = vshrl.u32 %v884, 4
      %v886 = vand.u32 %v884, 15
      %v887 = vsub.s32 0, %v886
      %v888 = vsel %vm882, %v887, %v886
      %vm889 = vcmp.lt.s32.totalorder %v677, 0
      %v890 = vsub.s32 0, %v677
      %v891 = vsel %vm889, %v890, %v677
      %v892 = vshrl.u32 %v891, 4
      %v893 = vand.u32 %v891, 15
      %v894 = vsub.s32 0, %v893
      %v895 = vsel %vm889, %v894, %v893
      %vm896 = vcmp.lt.s32.totalorder %v678, 0
      %v897 = vsub.s32 0, %v678
      %v898 = vsel %vm896, %v897, %v678
      %v899 = vshrl.u32 %v898, 4
      %v900 = vand.u32 %v898, 15
      %v901 = vsub.s32 0, %v900
      %v902 = vsel %vm896, %v901, %v900
      %vm903 = vcmp.ne.s32.totalorder %v685, 0
      %vm904 = vcmp.ne.s32.totalorder %v692, 0
      %vm905 = vcmp.ne.s32.totalorder %v699, 0
      %vm906 = vcmp.ne.s32.totalorder %v706, 0
      %vm907 = vcmp.ne.s32.totalorder %v713, 0
      %vm908 = vcmp.ne.s32.totalorder %v720, 0
      %vm909 = vcmp.ne.s32.totalorder %v727, 0
      %vm910 = vcmp.ne.s32.totalorder %v734, 0
      %vm911 = vcmp.ne.s32.totalorder %v741, 0
      %vm912 = vcmp.ne.s32.totalorder %v748, 0
      %vm913 = vcmp.ne.s32.totalorder %v755, 0
      %vm914 = vcmp.ne.s32.totalorder %v762, 0
      %vm915 = vcmp.ne.s32.totalorder %v769, 0
      %vm916 = vcmp.ne.s32.totalorder %v776, 0
      %vm917 = vcmp.ne.s32.totalorder %v783, 0
      %vm918 = vcmp.ne.s32.totalorder %v790, 0
      %vm919 = vcmp.ne.s32.totalorder %v797, 0
      %vm920 = vcmp.ne.s32.totalorder %v804, 0
      %vm921 = vcmp.ne.s32.totalorder %v811, 0
      %vm922 = vcmp.ne.s32.totalorder %v818, 0
      %vm923 = vcmp.ne.s32.totalorder %v825, 0
      %vm924 = vcmp.ne.s32.totalorder %v832, 0
      %vm925 = vcmp.ne.s32.totalorder %v839, 0
      %vm926 = vcmp.ne.s32.totalorder %v846, 0
      %vm927 = vcmp.ne.s32.totalorder %v853, 0
      %vm928 = vcmp.ne.s32.totalorder %v860, 0
      %vm929 = vcmp.ne.s32.totalorder %v867, 0
      %vm930 = vcmp.ne.s32.totalorder %v874, 0
      %vm931 = vcmp.ne.s32.totalorder %v881, 0
      %vm932 = vcmp.ne.s32.totalorder %v888, 0
      %vm933 = vcmp.ne.s32.totalorder %v895, 0
      %vm934 = vcmp.ne.s32.totalorder %v902, 0
      %vm935 = vcmp.lt.s32.totalorder %v685, 0
      %vm936 = vcmp.lt.s32.totalorder %v692, 0
      %vm937 = vcmp.lt.s32.totalorder %v699, 0
      %vm938 = vcmp.lt.s32.totalorder %v706, 0
      %vm939 = vcmp.lt.s32.totalorder %v713, 0
      %vm940 = vcmp.lt.s32.totalorder %v720, 0
      %vm941 = vcmp.lt.s32.totalorder %v727, 0
      %vm942 = vcmp.lt.s32.totalorder %v734, 0
      %vm943 = vcmp.lt.s32.totalorder %v741, 0
      %vm944 = vcmp.lt.s32.totalorder %v748, 0
      %vm945 = vcmp.lt.s32.totalorder %v755, 0
      %vm946 = vcmp.lt.s32.totalorder %v762, 0
      %vm947 = vcmp.lt.s32.totalorder %v769, 0
      %vm948 = vcmp.lt.s32.totalorder %v776, 0
      %vm949 = vcmp.lt.s32.totalorder %v783, 0
      %vm950 = vcmp.lt.s32.totalorder %v790, 0
      %vm951 = vcmp.lt.s32.totalorder %v797, 0
      %vm952 = vcmp.lt.s32.totalorder %v804, 0
      %vm953 = vcmp.lt.s32.totalorder %v811, 0
      %vm954 = vcmp.lt.s32.totalorder %v818, 0
      %vm955 = vcmp.lt.s32.totalorder %v825, 0
      %vm956 = vcmp.lt.s32.totalorder %v832, 0
      %vm957 = vcmp.lt.s32.totalorder %v839, 0
      %vm958 = vcmp.lt.s32.totalorder %v846, 0
      %vm959 = vcmp.lt.s32.totalorder %v853, 0
      %vm960 = vcmp.lt.s32.totalorder %v860, 0
      %vm961 = vcmp.lt.s32.totalorder %v867, 0
      %vm962 = vcmp.lt.s32.totalorder %v874, 0
      %vm963 = vcmp.lt.s32.totalorder %v881, 0
      %vm964 = vcmp.lt.s32.totalorder %v888, 0
      %vm965 = vcmp.lt.s32.totalorder %v895, 0
      %vm966 = vcmp.lt.s32.totalorder %v902, 0
      %vm967 = vmand %vm935, %vm903
      %vm968 = vmand %vm936, %vm904
      %vm969 = vmand %vm937, %vm905
      %vm970 = vmand %vm938, %vm906
      %vm971 = vmand %vm939, %vm907
      %vm972 = vmand %vm940, %vm908
      %vm973 = vmand %vm941, %vm909
      %vm974 = vmand %vm942, %vm910
      %vm975 = vmand %vm943, %vm911
      %vm976 = vmand %vm944, %vm912
      %vm977 = vmand %vm945, %vm913
      %vm978 = vmand %vm946, %vm914
      %vm979 = vmand %vm947, %vm915
      %vm980 = vmand %vm948, %vm916
      %vm981 = vmand %vm949, %vm917
      %vm982 = vmand %vm950, %vm918
      %vm983 = vmand %vm951, %vm919
      %vm984 = vmand %vm952, %vm920
      %vm985 = vmand %vm953, %vm921
      %vm986 = vmand %vm954, %vm922
      %vm987 = vmand %vm955, %vm923
      %vm988 = vmand %vm956, %vm924
      %vm989 = vmand %vm957, %vm925
      %vm990 = vmand %vm958, %vm926
      %vm991 = vmand %vm959, %vm927
      %vm992 = vmand %vm960, %vm928
      %vm993 = vmand %vm961, %vm929
      %vm994 = vmand %vm962, %vm930
      %vm995 = vmand %vm963, %vm931
      %vm996 = vmand %vm964, %vm932
      %vm997 = vmand %vm965, %vm933
      %vm998 = vmand %vm966, %vm934
      %v999 = vadd.s32 %v685, 16
      %v1000 = vadd.s32 %v692, 16
      %v1001 = vadd.s32 %v699, 16
      %v1002 = vadd.s32 %v706, 16
      %v1003 = vadd.s32 %v713, 16
      %v1004 = vadd.s32 %v720, 16
      %v1005 = vadd.s32 %v727, 16
      %v1006 = vadd.s32 %v734, 16
      %v1007 = vadd.s32 %v741, 16
      %v1008 = vadd.s32 %v748, 16
      %v1009 = vadd.s32 %v755, 16
      %v1010 = vadd.s32 %v762, 16
      %v1011 = vadd.s32 %v769, 16
      %v1012 = vadd.s32 %v776, 16
      %v1013 = vadd.s32 %v783, 16
      %v1014 = vadd.s32 %v790, 16
      %v1015 = vadd.s32 %v797, 16
      %v1016 = vadd.s32 %v804, 16
      %v1017 = vadd.s32 %v811, 16
      %v1018 = vadd.s32 %v818, 16
      %v1019 = vadd.s32 %v825, 16
      %v1020 = vadd.s32 %v832, 16
      %v1021 = vadd.s32 %v839, 16
      %v1022 = vadd.s32 %v846, 16
      %v1023 = vadd.s32 %v853, 16
      %v1024 = vadd.s32 %v860, 16
      %v1025 = vadd.s32 %v867, 16
      %v1026 = vadd.s32 %v874, 16
      %v1027 = vadd.s32 %v881, 16
      %v1028 = vadd.s32 %v888, 16
      %v1029 = vadd.s32 %v895, 16
      %v1030 = vadd.s32 %v902, 16
      %v1031 = vsel %vm967, %v999, %v685
      %v1032 = vsel %vm968, %v1000, %v692
      %v1033 = vsel %vm969, %v1001, %v699
      %v1034 = vsel %vm970, %v1002, %v706
      %v1035 = vsel %vm971, %v1003, %v713
      %v1036 = vsel %vm972, %v1004, %v720
      %v1037 = vsel %vm973, %v1005, %v727
      %v1038 = vsel %vm974, %v1006, %v734
      %v1039 = vsel %vm975, %v1007, %v741
      %v1040 = vsel %vm976, %v1008, %v748
      %v1041 = vsel %vm977, %v1009, %v755
      %v1042 = vsel %vm978, %v1010, %v762
      %v1043 = vsel %vm979, %v1011, %v769
      %v1044 = vsel %vm980, %v1012, %v776
      %v1045 = vsel %vm981, %v1013, %v783
      %v1046 = vsel %vm982, %v1014, %v790
      %v1047 = vsel %vm983, %v1015, %v797
      %v1048 = vsel %vm984, %v1016, %v804
      %v1049 = vsel %vm985, %v1017, %v811
      %v1050 = vsel %vm986, %v1018, %v818
      %v1051 = vsel %vm987, %v1019, %v825
      %v1052 = vsel %vm988, %v1020, %v832
      %v1053 = vsel %vm989, %v1021, %v839
      %v1054 = vsel %vm990, %v1022, %v846
      %v1055 = vsel %vm991, %v1023, %v853
      %v1056 = vsel %vm992, %v1024, %v860
      %v1057 = vsel %vm993, %v1025, %v867
      %v1058 = vsel %vm994, %v1026, %v874
      %v1059 = vsel %vm995, %v1027, %v881
      %v1060 = vsel %vm996, %v1028, %v888
      %v1061 = vsel %vm997, %v1029, %v895
      %v1062 = vsel %vm998, %v1030, %v902
      %vm1063 = vcmp.ge.s32.totalorder %v1031, 1
      %vm1064 = vcmp.ge.s32.totalorder %v1032, 1
      %vm1065 = vcmp.ge.s32.totalorder %v1033, 1
      %vm1066 = vcmp.ge.s32.totalorder %v1034, 1
      %vm1067 = vcmp.ge.s32.totalorder %v1035, 1
      %vm1068 = vcmp.ge.s32.totalorder %v1036, 1
      %vm1069 = vcmp.ge.s32.totalorder %v1037, 1
      %vm1070 = vcmp.ge.s32.totalorder %v1038, 1
      %vm1071 = vcmp.ge.s32.totalorder %v1039, 1
      %vm1072 = vcmp.ge.s32.totalorder %v1040, 1
      %vm1073 = vcmp.ge.s32.totalorder %v1041, 1
      %vm1074 = vcmp.ge.s32.totalorder %v1042, 1
      %vm1075 = vcmp.ge.s32.totalorder %v1043, 1
      %vm1076 = vcmp.ge.s32.totalorder %v1044, 1
      %vm1077 = vcmp.ge.s32.totalorder %v1045, 1
      %vm1078 = vcmp.ge.s32.totalorder %v1046, 1
      %vm1079 = vcmp.ge.s32.totalorder %v1047, 1
      %vm1080 = vcmp.ge.s32.totalorder %v1048, 1
      %vm1081 = vcmp.ge.s32.totalorder %v1049, 1
      %vm1082 = vcmp.ge.s32.totalorder %v1050, 1
      %vm1083 = vcmp.ge.s32.totalorder %v1051, 1
      %vm1084 = vcmp.ge.s32.totalorder %v1052, 1
      %vm1085 = vcmp.ge.s32.totalorder %v1053, 1
      %vm1086 = vcmp.ge.s32.totalorder %v1054, 1
      %vm1087 = vcmp.ge.s32.totalorder %v1055, 1
      %vm1088 = vcmp.ge.s32.totalorder %v1056, 1
      %vm1089 = vcmp.ge.s32.totalorder %v1057, 1
      %vm1090 = vcmp.ge.s32.totalorder %v1058, 1
      %vm1091 = vcmp.ge.s32.totalorder %v1059, 1
      %vm1092 = vcmp.ge.s32.totalorder %v1060, 1
      %vm1093 = vcmp.ge.s32.totalorder %v1061, 1
      %vm1094 = vcmp.ge.s32.totalorder %v1062, 1
      %vm1095 = vcmp.lt.s32.totalorder %v1031, 15
      %vm1096 = vcmp.lt.s32.totalorder %v1032, 15
      %vm1097 = vcmp.lt.s32.totalorder %v1033, 15
      %vm1098 = vcmp.lt.s32.totalorder %v1034, 15
      %vm1099 = vcmp.lt.s32.totalorder %v1035, 15
      %vm1100 = vcmp.lt.s32.totalorder %v1036, 15
      %vm1101 = vcmp.lt.s32.totalorder %v1037, 15
      %vm1102 = vcmp.lt.s32.totalorder %v1038, 15
      %vm1103 = vcmp.lt.s32.totalorder %v1039, 15
      %vm1104 = vcmp.lt.s32.totalorder %v1040, 15
      %vm1105 = vcmp.lt.s32.totalorder %v1041, 15
      %vm1106 = vcmp.lt.s32.totalorder %v1042, 15
      %vm1107 = vcmp.lt.s32.totalorder %v1043, 15
      %vm1108 = vcmp.lt.s32.totalorder %v1044, 15
      %vm1109 = vcmp.lt.s32.totalorder %v1045, 15
      %vm1110 = vcmp.lt.s32.totalorder %v1046, 15
      %vm1111 = vcmp.lt.s32.totalorder %v1047, 15
      %vm1112 = vcmp.lt.s32.totalorder %v1048, 15
      %vm1113 = vcmp.lt.s32.totalorder %v1049, 15
      %vm1114 = vcmp.lt.s32.totalorder %v1050, 15
      %vm1115 = vcmp.lt.s32.totalorder %v1051, 15
      %vm1116 = vcmp.lt.s32.totalorder %v1052, 15
      %vm1117 = vcmp.lt.s32.totalorder %v1053, 15
      %vm1118 = vcmp.lt.s32.totalorder %v1054, 15
      %vm1119 = vcmp.lt.s32.totalorder %v1055, 15
      %vm1120 = vcmp.lt.s32.totalorder %v1056, 15
      %vm1121 = vcmp.lt.s32.totalorder %v1057, 15
      %vm1122 = vcmp.lt.s32.totalorder %v1058, 15
      %vm1123 = vcmp.lt.s32.totalorder %v1059, 15
      %vm1124 = vcmp.lt.s32.totalorder %v1060, 15
      %vm1125 = vcmp.lt.s32.totalorder %v1061, 15
      %vm1126 = vcmp.lt.s32.totalorder %v1062, 15
      %v1127 = vld [vmem:[%s632] sm:$0xf]
      %v1128 = vld [vmem:[%s632 + $0x4] sm:$0xf]
      %v1129 = vld [vmem:[%s632 + $0x8] sm:$0xf]
      %v1130 = vld [vmem:[%s632 + $0xc] sm:$0xf]
      %v1131 = vld [vmem:[%s632 + $0x10] sm:$0xf]
      %v1132 = vld [vmem:[%s632 + $0x14] sm:$0xf]
      %v1133 = vld [vmem:[%s632 + $0x18] sm:$0xf]
      %v1134 = vld [vmem:[%s632 + $0x1c] sm:$0xf]
      %v1135 = vld [vmem:[%s632 + $0x20] sm:$0xf]
      %v1136 = vld [vmem:[%s632 + $0x24] sm:$0xf]
      %v1137 = vld [vmem:[%s632 + $0x28] sm:$0xf]
      %v1138 = vld [vmem:[%s632 + $0x2c] sm:$0xf]
      %v1139 = vld [vmem:[%s632 + $0x30] sm:$0xf]
      %v1140 = vld [vmem:[%s632 + $0x34] sm:$0xf]
      %v1141 = vld [vmem:[%s632 + $0x38] sm:$0xf]
      %v1142 = vld [vmem:[%s632 + $0x3c] sm:$0xf]
      %v1143 = vld [vmem:[%s632 + $0x40] sm:$0xf]
      %v1144 = vld [vmem:[%s632 + $0x44] sm:$0xf]
      %v1145 = vld [vmem:[%s632 + $0x48] sm:$0xf]
      %v1146 = vld [vmem:[%s632 + $0x4c] sm:$0xf]
      %v1147 = vld [vmem:[%s632 + $0x50] sm:$0xf]
      %v1148 = vld [vmem:[%s632 + $0x54] sm:$0xf]
      %v1149 = vld [vmem:[%s632 + $0x58] sm:$0xf]
      %v1150 = vld [vmem:[%s632 + $0x5c] sm:$0xf]
      %v1151 = vld [vmem:[%s632 + $0x60] sm:$0xf]
      %v1152 = vld [vmem:[%s632 + $0x64] sm:$0xf]
      %v1153 = vld [vmem:[%s632 + $0x68] sm:$0xf]
      %v1154 = vld [vmem:[%s632 + $0x6c] sm:$0xf]
      %v1155 = vld [vmem:[%s632 + $0x70] sm:$0xf]
      %v1156 = vld [vmem:[%s632 + $0x74] sm:$0xf]
      %v1157 = vld [vmem:[%s632 + $0x78] sm:$0xf]
      %v1158 = vld [vmem:[%s632 + $0x7c] sm:$0xf]
      %v1191 = vunpack.c.l.b16 %v1127
      %v1192 = vunpack.c.l.b16 %v1128
      %v1193 = vunpack.c.l.b16 %v1129
      %v1194 = vunpack.c.l.b16 %v1130
      %v1195 = vunpack.c.l.b16 %v1131
      %v1196 = vunpack.c.l.b16 %v1132
      %v1197 = vunpack.c.l.b16 %v1133
      %v1198 = vunpack.c.l.b16 %v1134
      %v1199 = vunpack.c.l.b16 %v1135
      %v1200 = vunpack.c.l.b16 %v1136
      %v1201 = vunpack.c.l.b16 %v1137
      %v1202 = vunpack.c.l.b16 %v1138
      %v1203 = vunpack.c.l.b16 %v1139
      %v1204 = vunpack.c.l.b16 %v1140
      %v1205 = vunpack.c.l.b16 %v1141
      %v1206 = vunpack.c.l.b16 %v1142
      %v1207 = vunpack.c.l.b16 %v1143
      %v1208 = vunpack.c.l.b16 %v1144
      %v1209 = vunpack.c.l.b16 %v1145
      %v1210 = vunpack.c.l.b16 %v1146
      %v1211 = vunpack.c.l.b16 %v1147
      %v1212 = vunpack.c.l.b16 %v1148
      %v1213 = vunpack.c.l.b16 %v1149
      %v1214 = vunpack.c.l.b16 %v1150
      %v1215 = vunpack.c.l.b16 %v1151
      %v1216 = vunpack.c.l.b16 %v1152
      %v1217 = vunpack.c.l.b16 %v1153
      %v1218 = vunpack.c.l.b16 %v1154
      %v1219 = vunpack.c.l.b16 %v1155
      %v1220 = vunpack.c.l.b16 %v1156
      %v1221 = vunpack.c.l.b16 %v1157
      %v1222 = vunpack.c.l.b16 %v1158
      %v1223 = vpack.c.b16 %v1192, %v1191
      %v1224 = vpack.c.b16 %v1194, %v1193
      %v1225 = vpack.c.b16 %v1196, %v1195
      %v1226 = vpack.c.b16 %v1198, %v1197
      %v1227 = vpack.c.b16 %v1200, %v1199
      %v1228 = vpack.c.b16 %v1202, %v1201
      %v1229 = vpack.c.b16 %v1204, %v1203
      %v1230 = vpack.c.b16 %v1206, %v1205
      %v1231 = vpack.c.b16 %v1208, %v1207
      %v1232 = vpack.c.b16 %v1210, %v1209
      %v1233 = vpack.c.b16 %v1212, %v1211
      %v1234 = vpack.c.b16 %v1214, %v1213
      %v1235 = vpack.c.b16 %v1216, %v1215
      %v1236 = vpack.c.b16 %v1218, %v1217
      %v1237 = vpack.c.b16 %v1220, %v1219
      %v1238 = vpack.c.b16 %v1222, %v1221
      %vm1239 = vsmask.f32 256
      %v1241 = vshrl.u32 %v1223, 16
      %v1243 = vrot.slane %v1241, 7
      %v1244 = vshll.u32 %v1223, 16
      %v1246 = vor.u32 %v1243, %v1244
      %v1248 = vshrl.u32 %v1224, 16
      %v1250 = vrot.slane %v1248, 7
      %v1251 = vshll.u32 %v1224, 16
      %v1253 = vor.u32 %v1250, %v1251
      %v1254 = vsel %vm1239, %v1243, %v1253
      %v1256 = vshrl.u32 %v1225, 16
      %v1258 = vrot.slane %v1256, 7
      %v1259 = vshll.u32 %v1225, 16
      %v1261 = vor.u32 %v1258, %v1259
      %v1262 = vsel %vm1239, %v1250, %v1261
      %v1264 = vshrl.u32 %v1226, 16
      %v1266 = vrot.slane %v1264, 7
      %v1267 = vshll.u32 %v1226, 16
      %v1269 = vor.u32 %v1266, %v1267
      %v1270 = vsel %vm1239, %v1258, %v1269
      %v1272 = vshrl.u32 %v1227, 16
      %v1274 = vrot.slane %v1272, 7
      %v1275 = vshll.u32 %v1227, 16
      %v1277 = vor.u32 %v1274, %v1275
      %v1278 = vsel %vm1239, %v1266, %v1277
      %v1280 = vshrl.u32 %v1228, 16
      %v1282 = vrot.slane %v1280, 7
      %v1283 = vshll.u32 %v1228, 16
      %v1285 = vor.u32 %v1282, %v1283
      %v1286 = vsel %vm1239, %v1274, %v1285
      %v1288 = vshrl.u32 %v1229, 16
      %v1290 = vrot.slane %v1288, 7
      %v1291 = vshll.u32 %v1229, 16
      %v1293 = vor.u32 %v1290, %v1291
      %v1294 = vsel %vm1239, %v1282, %v1293
      %v1296 = vshrl.u32 %v1230, 16
      %v1298 = vrot.slane %v1296, 7
      %v1299 = vshll.u32 %v1230, 16
      %v1301 = vor.u32 %v1298, %v1299
      %v1302 = vsel %vm1239, %v1290, %v1301
      %v1304 = vshrl.u32 %v1231, 16
      %v1306 = vrot.slane %v1304, 7
      %v1307 = vshll.u32 %v1231, 16
      %v1309 = vor.u32 %v1306, %v1307
      %v1310 = vsel %vm1239, %v1298, %v1309
      %v1312 = vshrl.u32 %v1232, 16
      %v1314 = vrot.slane %v1312, 7
      %v1315 = vshll.u32 %v1232, 16
      %v1317 = vor.u32 %v1314, %v1315
      %v1318 = vsel %vm1239, %v1306, %v1317
      %v1320 = vshrl.u32 %v1233, 16
      %v1322 = vrot.slane %v1320, 7
      %v1323 = vshll.u32 %v1233, 16
      %v1325 = vor.u32 %v1322, %v1323
      %v1326 = vsel %vm1239, %v1314, %v1325
      %v1328 = vshrl.u32 %v1234, 16
      %v1330 = vrot.slane %v1328, 7
      %v1331 = vshll.u32 %v1234, 16
      %v1333 = vor.u32 %v1330, %v1331
      %v1334 = vsel %vm1239, %v1322, %v1333
      %v1336 = vshrl.u32 %v1235, 16
      %v1338 = vrot.slane %v1336, 7
      %v1339 = vshll.u32 %v1235, 16
      %v1341 = vor.u32 %v1338, %v1339
      %v1342 = vsel %vm1239, %v1330, %v1341
      %v1344 = vshrl.u32 %v1236, 16
      %v1346 = vrot.slane %v1344, 7
      %v1347 = vshll.u32 %v1236, 16
      %v1349 = vor.u32 %v1346, %v1347
      %v1350 = vsel %vm1239, %v1338, %v1349
      %v1352 = vshrl.u32 %v1237, 16
      %v1354 = vrot.slane %v1352, 7
      %v1355 = vshll.u32 %v1237, 16
      %v1357 = vor.u32 %v1354, %v1355
      %v1358 = vsel %vm1239, %v1346, %v1357
      %v1360 = vshrl.u32 %v1238, 16
      %v1362 = vrot.slane %v1360, 7
      %v1363 = vshll.u32 %v1238, 16
      %v1365 = vor.u32 %v1362, %v1363
      %v1366 = vsel %vm1239, %v1354, %v1365
      %vm1383 = vcmask 1040384
      %vm1384 = vmand %vm1383, %vm1239
      %v1385 = vsel %vm1384, 0, %v1246
      %v1386 = vsel %vm1063, 1, 0
      %v1387 = vsel %vm1064, 1, 0
      %v1388 = vsel %vm1065, 1, 0
      %v1389 = vsel %vm1066, 1, 0
      %v1390 = vsel %vm1067, 1, 0
      %v1391 = vsel %vm1068, 1, 0
      %v1392 = vsel %vm1069, 1, 0
      %v1393 = vsel %vm1070, 1, 0
      %v1394 = vsel %vm1071, 1, 0
      %v1395 = vsel %vm1072, 1, 0
      %v1396 = vsel %vm1073, 1, 0
      %v1397 = vsel %vm1074, 1, 0
      %v1398 = vsel %vm1075, 1, 0
      %v1399 = vsel %vm1076, 1, 0
      %v1400 = vsel %vm1077, 1, 0
      %v1401 = vsel %vm1078, 1, 0
      %v1402 = vsel %vm1079, 1, 0
      %v1403 = vsel %vm1080, 1, 0
      %v1404 = vsel %vm1081, 1, 0
      %v1405 = vsel %vm1082, 1, 0
      %v1406 = vsel %vm1083, 1, 0
      %v1407 = vsel %vm1084, 1, 0
      %v1408 = vsel %vm1085, 1, 0
      %v1409 = vsel %vm1086, 1, 0
      %v1410 = vsel %vm1087, 1, 0
      %v1411 = vsel %vm1088, 1, 0
      %v1412 = vsel %vm1089, 1, 0
      %v1413 = vsel %vm1090, 1, 0
      %v1414 = vsel %vm1091, 1, 0
      %v1415 = vsel %vm1092, 1, 0
      %v1416 = vsel %vm1093, 1, 0
      %v1417 = vsel %vm1094, 1, 0
      %vm1418 = vcmp.eq.s32.totalorder %v1386, 1
      %vm1419 = vcmp.eq.s32.totalorder %v1387, 1
      %vm1420 = vcmp.eq.s32.totalorder %v1388, 1
      %vm1421 = vcmp.eq.s32.totalorder %v1389, 1
      %vm1422 = vcmp.eq.s32.totalorder %v1390, 1
      %vm1423 = vcmp.eq.s32.totalorder %v1391, 1
      %vm1424 = vcmp.eq.s32.totalorder %v1392, 1
      %vm1425 = vcmp.eq.s32.totalorder %v1393, 1
      %vm1426 = vcmp.eq.s32.totalorder %v1394, 1
      %vm1427 = vcmp.eq.s32.totalorder %v1395, 1
      %vm1428 = vcmp.eq.s32.totalorder %v1396, 1
      %vm1429 = vcmp.eq.s32.totalorder %v1397, 1
      %vm1430 = vcmp.eq.s32.totalorder %v1398, 1
      %vm1431 = vcmp.eq.s32.totalorder %v1399, 1
      %vm1432 = vcmp.eq.s32.totalorder %v1400, 1
      %vm1433 = vcmp.eq.s32.totalorder %v1401, 1
      %vm1434 = vcmp.eq.s32.totalorder %v1402, 1
      %vm1435 = vcmp.eq.s32.totalorder %v1403, 1
      %vm1436 = vcmp.eq.s32.totalorder %v1404, 1
      %vm1437 = vcmp.eq.s32.totalorder %v1405, 1
      %vm1438 = vcmp.eq.s32.totalorder %v1406, 1
      %vm1439 = vcmp.eq.s32.totalorder %v1407, 1
      %vm1440 = vcmp.eq.s32.totalorder %v1408, 1
      %vm1441 = vcmp.eq.s32.totalorder %v1409, 1
      %vm1442 = vcmp.eq.s32.totalorder %v1410, 1
      %vm1443 = vcmp.eq.s32.totalorder %v1411, 1
      %vm1444 = vcmp.eq.s32.totalorder %v1412, 1
      %vm1445 = vcmp.eq.s32.totalorder %v1413, 1
      %vm1446 = vcmp.eq.s32.totalorder %v1414, 1
      %vm1447 = vcmp.eq.s32.totalorder %v1415, 1
      %vm1448 = vcmp.eq.s32.totalorder %v1416, 1
      %vm1449 = vcmp.eq.s32.totalorder %v1417, 1
      %vm1450 = vmpackc.low %vm1418, %vm1418
      %vm1451 = vmpackc.low %vm1419, %vm1419
      %vm1452 = vmpackc.low %vm1420, %vm1420
      %vm1453 = vmpackc.low %vm1421, %vm1421
      %vm1454 = vmpackc.low %vm1422, %vm1422
      %vm1455 = vmpackc.low %vm1423, %vm1423
      %vm1456 = vmpackc.low %vm1424, %vm1424
      %vm1457 = vmpackc.low %vm1425, %vm1425
      %vm1458 = vmpackc.low %vm1426, %vm1426
      %vm1459 = vmpackc.low %vm1427, %vm1427
      %vm1460 = vmpackc.low %vm1428, %vm1428
      %vm1461 = vmpackc.low %vm1429, %vm1429
      %vm1462 = vmpackc.low %vm1430, %vm1430
      %vm1463 = vmpackc.low %vm1431, %vm1431
      %vm1464 = vmpackc.low %vm1432, %vm1432
      %vm1465 = vmpackc.low %vm1433, %vm1433
      %vm1466 = vmpackc.low %vm1434, %vm1434
      %vm1467 = vmpackc.low %vm1435, %vm1435
      %vm1468 = vmpackc.low %vm1436, %vm1436
      %vm1469 = vmpackc.low %vm1437, %vm1437
      %vm1470 = vmpackc.low %vm1438, %vm1438
      %vm1471 = vmpackc.low %vm1439, %vm1439
      %vm1472 = vmpackc.low %vm1440, %vm1440
      %vm1473 = vmpackc.low %vm1441, %vm1441
      %vm1474 = vmpackc.low %vm1442, %vm1442
      %vm1475 = vmpackc.low %vm1443, %vm1443
      %vm1476 = vmpackc.low %vm1444, %vm1444
      %vm1477 = vmpackc.low %vm1445, %vm1445
      %vm1478 = vmpackc.low %vm1446, %vm1446
      %vm1479 = vmpackc.low %vm1447, %vm1447
      %vm1480 = vmpackc.low %vm1448, %vm1448
      %vm1481 = vmpackc.low %vm1449, %vm1449
      %v1482 = vsel %vm1450, 65537, 0
      %v1483 = vsel %vm1451, 65537, 0
      %v1484 = vsel %vm1452, 65537, 0
      %v1485 = vsel %vm1453, 65537, 0
      %v1486 = vsel %vm1454, 65537, 0
      %v1487 = vsel %vm1455, 65537, 0
      %v1488 = vsel %vm1456, 65537, 0
      %v1489 = vsel %vm1457, 65537, 0
      %v1490 = vsel %vm1458, 65537, 0
      %v1491 = vsel %vm1459, 65537, 0
      %v1492 = vsel %vm1460, 65537, 0
      %v1493 = vsel %vm1461, 65537, 0
      %v1494 = vsel %vm1462, 65537, 0
      %v1495 = vsel %vm1463, 65537, 0
      %v1496 = vsel %vm1464, 65537, 0
      %v1497 = vsel %vm1465, 65537, 0
      %v1498 = vsel %vm1466, 65537, 0
      %v1499 = vsel %vm1467, 65537, 0
      %v1500 = vsel %vm1468, 65537, 0
      %v1501 = vsel %vm1469, 65537, 0
      %v1502 = vsel %vm1470, 65537, 0
      %v1503 = vsel %vm1471, 65537, 0
      %v1504 = vsel %vm1472, 65537, 0
      %v1505 = vsel %vm1473, 65537, 0
      %v1506 = vsel %vm1474, 65537, 0
      %v1507 = vsel %vm1475, 65537, 0
      %v1508 = vsel %vm1476, 65537, 0
      %v1509 = vsel %vm1477, 65537, 0
      %v1510 = vsel %vm1478, 65537, 0
      %v1511 = vsel %vm1479, 65537, 0
      %v1512 = vsel %vm1480, 65537, 0
      %v1513 = vsel %vm1481, 65537, 0
      %v1514 = vunpack.c.l.b16 %v1482
      %v1515 = vunpack.c.l.b16 %v1483
      %v1516 = vunpack.c.l.b16 %v1484
      %v1517 = vunpack.c.l.b16 %v1485
      %v1518 = vunpack.c.l.b16 %v1486
      %v1519 = vunpack.c.l.b16 %v1487
      %v1520 = vunpack.c.l.b16 %v1488
      %v1521 = vunpack.c.l.b16 %v1489
      %v1522 = vunpack.c.l.b16 %v1490
      %v1523 = vunpack.c.l.b16 %v1491
      %v1524 = vunpack.c.l.b16 %v1492
      %v1525 = vunpack.c.l.b16 %v1493
      %v1526 = vunpack.c.l.b16 %v1494
      %v1527 = vunpack.c.l.b16 %v1495
      %v1528 = vunpack.c.l.b16 %v1496
      %v1529 = vunpack.c.l.b16 %v1497
      %v1530 = vunpack.c.l.b16 %v1498
      %v1531 = vunpack.c.l.b16 %v1499
      %v1532 = vunpack.c.l.b16 %v1500
      %v1533 = vunpack.c.l.b16 %v1501
      %v1534 = vunpack.c.l.b16 %v1502
      %v1535 = vunpack.c.l.b16 %v1503
      %v1536 = vunpack.c.l.b16 %v1504
      %v1537 = vunpack.c.l.b16 %v1505
      %v1538 = vunpack.c.l.b16 %v1506
      %v1539 = vunpack.c.l.b16 %v1507
      %v1540 = vunpack.c.l.b16 %v1508
      %v1541 = vunpack.c.l.b16 %v1509
      %v1542 = vunpack.c.l.b16 %v1510
      %v1543 = vunpack.c.l.b16 %v1511
      %v1544 = vunpack.c.l.b16 %v1512
      %v1545 = vunpack.c.l.b16 %v1513
      %v1546 = vpack.c.b16 %v1515, %v1514
      %v1547 = vpack.c.b16 %v1517, %v1516
      %v1548 = vpack.c.b16 %v1519, %v1518
      %v1549 = vpack.c.b16 %v1521, %v1520
      %v1550 = vpack.c.b16 %v1523, %v1522
      %v1551 = vpack.c.b16 %v1525, %v1524
      %v1552 = vpack.c.b16 %v1527, %v1526
      %v1553 = vpack.c.b16 %v1529, %v1528
      %v1554 = vpack.c.b16 %v1531, %v1530
      %v1555 = vpack.c.b16 %v1533, %v1532
      %v1556 = vpack.c.b16 %v1535, %v1534
      %v1557 = vpack.c.b16 %v1537, %v1536
      %v1558 = vpack.c.b16 %v1539, %v1538
      %v1559 = vpack.c.b16 %v1541, %v1540
      %v1560 = vpack.c.b16 %v1543, %v1542
      %v1561 = vpack.c.b16 %v1545, %v1544
      %v1562 = vunpack.c.l.b16 %v1546
      %v1563 = vunpack.c.h.b16 %v1546
      %v1564 = vunpack.c.l.b16 0
      %v1565 = vunpack.c.h.b16 0
      %vm1566 = vcmp.ne.s32.totalorder %v1562, %v1564
      %vm1567 = vcmp.ne.s32.totalorder %v1563, %v1565
      %vm1568 = vmpackc.low %vm1567, %vm1566
      %v1569 = vunpack.c.l.b16 %v1547
      %v1570 = vunpack.c.h.b16 %v1547
      %v1571 = vunpack.c.l.b16 0
      %v1572 = vunpack.c.h.b16 0
      %vm1573 = vcmp.ne.s32.totalorder %v1569, %v1571
      %vm1574 = vcmp.ne.s32.totalorder %v1570, %v1572
      %vm1575 = vmpackc.low %vm1574, %vm1573
      %v1576 = vunpack.c.l.b16 %v1548
      %v1577 = vunpack.c.h.b16 %v1548
      %v1578 = vunpack.c.l.b16 0
      %v1579 = vunpack.c.h.b16 0
      %vm1580 = vcmp.ne.s32.totalorder %v1576, %v1578
      %vm1581 = vcmp.ne.s32.totalorder %v1577, %v1579
      %vm1582 = vmpackc.low %vm1581, %vm1580
      %v1583 = vunpack.c.l.b16 %v1549
      %v1584 = vunpack.c.h.b16 %v1549
      %v1585 = vunpack.c.l.b16 0
      %v1586 = vunpack.c.h.b16 0
      %vm1587 = vcmp.ne.s32.totalorder %v1583, %v1585
      %vm1588 = vcmp.ne.s32.totalorder %v1584, %v1586
      %vm1589 = vmpackc.low %vm1588, %vm1587
      %v1590 = vunpack.c.l.b16 %v1550
      %v1591 = vunpack.c.h.b16 %v1550
      %v1592 = vunpack.c.l.b16 0
      %v1593 = vunpack.c.h.b16 0
      %vm1594 = vcmp.ne.s32.totalorder %v1590, %v1592
      %vm1595 = vcmp.ne.s32.totalorder %v1591, %v1593
      %vm1596 = vmpackc.low %vm1595, %vm1594
      %v1597 = vunpack.c.l.b16 %v1551
      %v1598 = vunpack.c.h.b16 %v1551
      %v1599 = vunpack.c.l.b16 0
      %v1600 = vunpack.c.h.b16 0
      %vm1601 = vcmp.ne.s32.totalorder %v1597, %v1599
      %vm1602 = vcmp.ne.s32.totalorder %v1598, %v1600
      %vm1603 = vmpackc.low %vm1602, %vm1601
      %v1604 = vunpack.c.l.b16 %v1552
      %v1605 = vunpack.c.h.b16 %v1552
      %v1606 = vunpack.c.l.b16 0
      %v1607 = vunpack.c.h.b16 0
      %vm1608 = vcmp.ne.s32.totalorder %v1604, %v1606
      %vm1609 = vcmp.ne.s32.totalorder %v1605, %v1607
      %vm1610 = vmpackc.low %vm1609, %vm1608
      %v1611 = vunpack.c.l.b16 %v1553
      %v1612 = vunpack.c.h.b16 %v1553
      %v1613 = vunpack.c.l.b16 0
      %v1614 = vunpack.c.h.b16 0
      %vm1615 = vcmp.ne.s32.totalorder %v1611, %v1613
      %vm1616 = vcmp.ne.s32.totalorder %v1612, %v1614
      %vm1617 = vmpackc.low %vm1616, %vm1615
      %v1618 = vunpack.c.l.b16 %v1554
      %v1619 = vunpack.c.h.b16 %v1554
      %v1620 = vunpack.c.l.b16 0
      %v1621 = vunpack.c.h.b16 0
      %vm1622 = vcmp.ne.s32.totalorder %v1618, %v1620
      %vm1623 = vcmp.ne.s32.totalorder %v1619, %v1621
      %vm1624 = vmpackc.low %vm1623, %vm1622
      %v1625 = vunpack.c.l.b16 %v1555
      %v1626 = vunpack.c.h.b16 %v1555
      %v1627 = vunpack.c.l.b16 0
      %v1628 = vunpack.c.h.b16 0
      %vm1629 = vcmp.ne.s32.totalorder %v1625, %v1627
      %vm1630 = vcmp.ne.s32.totalorder %v1626, %v1628
      %vm1631 = vmpackc.low %vm1630, %vm1629
      %v1632 = vunpack.c.l.b16 %v1556
      %v1633 = vunpack.c.h.b16 %v1556
      %v1634 = vunpack.c.l.b16 0
      %v1635 = vunpack.c.h.b16 0
      %vm1636 = vcmp.ne.s32.totalorder %v1632, %v1634
      %vm1637 = vcmp.ne.s32.totalorder %v1633, %v1635
      %vm1638 = vmpackc.low %vm1637, %vm1636
      %v1639 = vunpack.c.l.b16 %v1557
      %v1640 = vunpack.c.h.b16 %v1557
      %v1641 = vunpack.c.l.b16 0
      %v1642 = vunpack.c.h.b16 0
      %vm1643 = vcmp.ne.s32.totalorder %v1639, %v1641
      %vm1644 = vcmp.ne.s32.totalorder %v1640, %v1642
      %vm1645 = vmpackc.low %vm1644, %vm1643
      %v1646 = vunpack.c.l.b16 %v1558
      %v1647 = vunpack.c.h.b16 %v1558
      %v1648 = vunpack.c.l.b16 0
      %v1649 = vunpack.c.h.b16 0
      %vm1650 = vcmp.ne.s32.totalorder %v1646, %v1648
      %vm1651 = vcmp.ne.s32.totalorder %v1647, %v1649
      %vm1652 = vmpackc.low %vm1651, %vm1650
      %v1653 = vunpack.c.l.b16 %v1559
      %v1654 = vunpack.c.h.b16 %v1559
      %v1655 = vunpack.c.l.b16 0
      %v1656 = vunpack.c.h.b16 0
      %vm1657 = vcmp.ne.s32.totalorder %v1653, %v1655
      %vm1658 = vcmp.ne.s32.totalorder %v1654, %v1656
      %vm1659 = vmpackc.low %vm1658, %vm1657
      %v1660 = vunpack.c.l.b16 %v1560
      %v1661 = vunpack.c.h.b16 %v1560
      %v1662 = vunpack.c.l.b16 0
      %v1663 = vunpack.c.h.b16 0
      %vm1664 = vcmp.ne.s32.totalorder %v1660, %v1662
      %vm1665 = vcmp.ne.s32.totalorder %v1661, %v1663
      %vm1666 = vmpackc.low %vm1665, %vm1664
      %v1667 = vunpack.c.l.b16 %v1561
      %v1668 = vunpack.c.h.b16 %v1561
      %v1669 = vunpack.c.l.b16 0
      %v1670 = vunpack.c.h.b16 0
      %vm1671 = vcmp.ne.s32.totalorder %v1667, %v1669
      %vm1672 = vcmp.ne.s32.totalorder %v1668, %v1670
      %vm1673 = vmpackc.low %vm1672, %vm1671
      %v1674 = vsel %vm1568, %v1385, 0
      %v1675 = vsel %vm1575, %v1254, 0
      %v1676 = vsel %vm1582, %v1262, 0
      %v1677 = vsel %vm1589, %v1270, 0
      %v1678 = vsel %vm1596, %v1278, 0
      %v1679 = vsel %vm1603, %v1286, 0
      %v1680 = vsel %vm1610, %v1294, 0
      %v1681 = vsel %vm1617, %v1302, 0
      %v1682 = vsel %vm1624, %v1310, 0
      %v1683 = vsel %vm1631, %v1318, 0
      %v1684 = vsel %vm1638, %v1326, 0
      %v1685 = vsel %vm1645, %v1334, 0
      %v1686 = vsel %vm1652, %v1342, 0
      %v1687 = vsel %vm1659, %v1350, 0
      %v1688 = vsel %vm1666, %v1358, 0
      %v1689 = vsel %vm1673, %v1366, 0
      %vm1690 = vsmask.f32 7424
      %v1691 = vrot.slane %v1244, 1
      %v1692 = vor.u32 %v1241, %v1691
      %v1693 = vrot.slane %v1251, 1
      %v1694 = vsel %vm1690, %v1692, %v1693
      %v1695 = vor.u32 %v1248, %v1693
      %v1696 = vrot.slane %v1259, 1
      %v1697 = vsel %vm1690, %v1695, %v1696
      %v1698 = vor.u32 %v1256, %v1696
      %v1699 = vrot.slane %v1267, 1
      %v1700 = vsel %vm1690, %v1698, %v1699
      %v1701 = vor.u32 %v1264, %v1699
      %v1702 = vrot.slane %v1275, 1
      %v1703 = vsel %vm1690, %v1701, %v1702
      %v1704 = vor.u32 %v1272, %v1702
      %v1705 = vrot.slane %v1283, 1
      %v1706 = vsel %vm1690, %v1704, %v1705
      %v1707 = vor.u32 %v1280, %v1705
      %v1708 = vrot.slane %v1291, 1
      %v1709 = vsel %vm1690, %v1707, %v1708
      %v1710 = vor.u32 %v1288, %v1708
      %v1711 = vrot.slane %v1299, 1
      %v1712 = vsel %vm1690, %v1710, %v1711
      %v1713 = vor.u32 %v1296, %v1711
      %v1714 = vrot.slane %v1307, 1
      %v1715 = vsel %vm1690, %v1713, %v1714
      %v1716 = vor.u32 %v1304, %v1714
      %v1717 = vrot.slane %v1315, 1
      %v1718 = vsel %vm1690, %v1716, %v1717
      %v1719 = vor.u32 %v1312, %v1717
      %v1720 = vrot.slane %v1323, 1
      %v1721 = vsel %vm1690, %v1719, %v1720
      %v1722 = vor.u32 %v1320, %v1720
      %v1723 = vrot.slane %v1331, 1
      %v1724 = vsel %vm1690, %v1722, %v1723
      %v1725 = vor.u32 %v1328, %v1723
      %v1726 = vrot.slane %v1339, 1
      %v1727 = vsel %vm1690, %v1725, %v1726
      %v1728 = vor.u32 %v1336, %v1726
      %v1729 = vrot.slane %v1347, 1
      %v1730 = vsel %vm1690, %v1728, %v1729
      %v1731 = vor.u32 %v1344, %v1729
      %v1732 = vrot.slane %v1355, 1
      %v1733 = vsel %vm1690, %v1731, %v1732
      %v1734 = vor.u32 %v1352, %v1732
      %v1735 = vrot.slane %v1363, 1
      %v1736 = vsel %vm1690, %v1734, %v1735
      %v1737 = vor.u32 %v1360, %v1735
      %vm1754 = vcmask 1047552
      %vm1755 = vmand %vm1754, %vm1690
      %v1756 = vsel %vm1755, %v1737, 0
      %v1757 = vsel %vm1095, 1, 0
      %v1758 = vsel %vm1096, 1, 0
      %v1759 = vsel %vm1097, 1, 0
      %v1760 = vsel %vm1098, 1, 0
      %v1761 = vsel %vm1099, 1, 0
      %v1762 = vsel %vm1100, 1, 0
      %v1763 = vsel %vm1101, 1, 0
      %v1764 = vsel %vm1102, 1, 0
      %v1765 = vsel %vm1103, 1, 0
      %v1766 = vsel %vm1104, 1, 0
      %v1767 = vsel %vm1105, 1, 0
      %v1768 = vsel %vm1106, 1, 0
      %v1769 = vsel %vm1107, 1, 0
      %v1770 = vsel %vm1108, 1, 0
      %v1771 = vsel %vm1109, 1, 0
      %v1772 = vsel %vm1110, 1, 0
      %v1773 = vsel %vm1111, 1, 0
      %v1774 = vsel %vm1112, 1, 0
      %v1775 = vsel %vm1113, 1, 0
      %v1776 = vsel %vm1114, 1, 0
      %v1777 = vsel %vm1115, 1, 0
      %v1778 = vsel %vm1116, 1, 0
      %v1779 = vsel %vm1117, 1, 0
      %v1780 = vsel %vm1118, 1, 0
      %v1781 = vsel %vm1119, 1, 0
      %v1782 = vsel %vm1120, 1, 0
      %v1783 = vsel %vm1121, 1, 0
      %v1784 = vsel %vm1122, 1, 0
      %v1785 = vsel %vm1123, 1, 0
      %v1786 = vsel %vm1124, 1, 0
      %v1787 = vsel %vm1125, 1, 0
      %v1788 = vsel %vm1126, 1, 0
      %vm1789 = vcmp.eq.s32.totalorder %v1757, 1
      %vm1790 = vcmp.eq.s32.totalorder %v1758, 1
      %vm1791 = vcmp.eq.s32.totalorder %v1759, 1
      %vm1792 = vcmp.eq.s32.totalorder %v1760, 1
      %vm1793 = vcmp.eq.s32.totalorder %v1761, 1
      %vm1794 = vcmp.eq.s32.totalorder %v1762, 1
      %vm1795 = vcmp.eq.s32.totalorder %v1763, 1
      %vm1796 = vcmp.eq.s32.totalorder %v1764, 1
      %vm1797 = vcmp.eq.s32.totalorder %v1765, 1
      %vm1798 = vcmp.eq.s32.totalorder %v1766, 1
      %vm1799 = vcmp.eq.s32.totalorder %v1767, 1
      %vm1800 = vcmp.eq.s32.totalorder %v1768, 1
      %vm1801 = vcmp.eq.s32.totalorder %v1769, 1
      %vm1802 = vcmp.eq.s32.totalorder %v1770, 1
      %vm1803 = vcmp.eq.s32.totalorder %v1771, 1
      %vm1804 = vcmp.eq.s32.totalorder %v1772, 1
      %vm1805 = vcmp.eq.s32.totalorder %v1773, 1
      %vm1806 = vcmp.eq.s32.totalorder %v1774, 1
      %vm1807 = vcmp.eq.s32.totalorder %v1775, 1
      %vm1808 = vcmp.eq.s32.totalorder %v1776, 1
      %vm1809 = vcmp.eq.s32.totalorder %v1777, 1
      %vm1810 = vcmp.eq.s32.totalorder %v1778, 1
      %vm1811 = vcmp.eq.s32.totalorder %v1779, 1
      %vm1812 = vcmp.eq.s32.totalorder %v1780, 1
      %vm1813 = vcmp.eq.s32.totalorder %v1781, 1
      %vm1814 = vcmp.eq.s32.totalorder %v1782, 1
      %vm1815 = vcmp.eq.s32.totalorder %v1783, 1
      %vm1816 = vcmp.eq.s32.totalorder %v1784, 1
      %vm1817 = vcmp.eq.s32.totalorder %v1785, 1
      %vm1818 = vcmp.eq.s32.totalorder %v1786, 1
      %vm1819 = vcmp.eq.s32.totalorder %v1787, 1
      %vm1820 = vcmp.eq.s32.totalorder %v1788, 1
      %vm1821 = vmpackc.low %vm1789, %vm1789
      %vm1822 = vmpackc.low %vm1790, %vm1790
      %vm1823 = vmpackc.low %vm1791, %vm1791
      %vm1824 = vmpackc.low %vm1792, %vm1792
      %vm1825 = vmpackc.low %vm1793, %vm1793
      %vm1826 = vmpackc.low %vm1794, %vm1794
      %vm1827 = vmpackc.low %vm1795, %vm1795
      %vm1828 = vmpackc.low %vm1796, %vm1796
      %vm1829 = vmpackc.low %vm1797, %vm1797
      %vm1830 = vmpackc.low %vm1798, %vm1798
      %vm1831 = vmpackc.low %vm1799, %vm1799
      %vm1832 = vmpackc.low %vm1800, %vm1800
      %vm1833 = vmpackc.low %vm1801, %vm1801
      %vm1834 = vmpackc.low %vm1802, %vm1802
      %vm1835 = vmpackc.low %vm1803, %vm1803
      %vm1836 = vmpackc.low %vm1804, %vm1804
      %vm1837 = vmpackc.low %vm1805, %vm1805
      %vm1838 = vmpackc.low %vm1806, %vm1806
      %vm1839 = vmpackc.low %vm1807, %vm1807
      %vm1840 = vmpackc.low %vm1808, %vm1808
      %vm1841 = vmpackc.low %vm1809, %vm1809
      %vm1842 = vmpackc.low %vm1810, %vm1810
      %vm1843 = vmpackc.low %vm1811, %vm1811
      %vm1844 = vmpackc.low %vm1812, %vm1812
      %vm1845 = vmpackc.low %vm1813, %vm1813
      %vm1846 = vmpackc.low %vm1814, %vm1814
      %vm1847 = vmpackc.low %vm1815, %vm1815
      %vm1848 = vmpackc.low %vm1816, %vm1816
      %vm1849 = vmpackc.low %vm1817, %vm1817
      %vm1850 = vmpackc.low %vm1818, %vm1818
      %vm1851 = vmpackc.low %vm1819, %vm1819
      %vm1852 = vmpackc.low %vm1820, %vm1820
      %v1853 = vsel %vm1821, 65537, 0
      %v1854 = vsel %vm1822, 65537, 0
      %v1855 = vsel %vm1823, 65537, 0
      %v1856 = vsel %vm1824, 65537, 0
      %v1857 = vsel %vm1825, 65537, 0
      %v1858 = vsel %vm1826, 65537, 0
      %v1859 = vsel %vm1827, 65537, 0
      %v1860 = vsel %vm1828, 65537, 0
      %v1861 = vsel %vm1829, 65537, 0
      %v1862 = vsel %vm1830, 65537, 0
      %v1863 = vsel %vm1831, 65537, 0
      %v1864 = vsel %vm1832, 65537, 0
      %v1865 = vsel %vm1833, 65537, 0
      %v1866 = vsel %vm1834, 65537, 0
      %v1867 = vsel %vm1835, 65537, 0
      %v1868 = vsel %vm1836, 65537, 0
      %v1869 = vsel %vm1837, 65537, 0
      %v1870 = vsel %vm1838, 65537, 0
      %v1871 = vsel %vm1839, 65537, 0
      %v1872 = vsel %vm1840, 65537, 0
      %v1873 = vsel %vm1841, 65537, 0
      %v1874 = vsel %vm1842, 65537, 0
      %v1875 = vsel %vm1843, 65537, 0
      %v1876 = vsel %vm1844, 65537, 0
      %v1877 = vsel %vm1845, 65537, 0
      %v1878 = vsel %vm1846, 65537, 0
      %v1879 = vsel %vm1847, 65537, 0
      %v1880 = vsel %vm1848, 65537, 0
      %v1881 = vsel %vm1849, 65537, 0
      %v1882 = vsel %vm1850, 65537, 0
      %v1883 = vsel %vm1851, 65537, 0
      %v1884 = vsel %vm1852, 65537, 0
      %v1885 = vunpack.c.l.b16 %v1853
      %v1886 = vunpack.c.l.b16 %v1854
      %v1887 = vunpack.c.l.b16 %v1855
      %v1888 = vunpack.c.l.b16 %v1856
      %v1889 = vunpack.c.l.b16 %v1857
      %v1890 = vunpack.c.l.b16 %v1858
      %v1891 = vunpack.c.l.b16 %v1859
      %v1892 = vunpack.c.l.b16 %v1860
      %v1893 = vunpack.c.l.b16 %v1861
      %v1894 = vunpack.c.l.b16 %v1862
      %v1895 = vunpack.c.l.b16 %v1863
      %v1896 = vunpack.c.l.b16 %v1864
      %v1897 = vunpack.c.l.b16 %v1865
      %v1898 = vunpack.c.l.b16 %v1866
      %v1899 = vunpack.c.l.b16 %v1867
      %v1900 = vunpack.c.l.b16 %v1868
      %v1901 = vunpack.c.l.b16 %v1869
      %v1902 = vunpack.c.l.b16 %v1870
      %v1903 = vunpack.c.l.b16 %v1871
      %v1904 = vunpack.c.l.b16 %v1872
      %v1905 = vunpack.c.l.b16 %v1873
      %v1906 = vunpack.c.l.b16 %v1874
      %v1907 = vunpack.c.l.b16 %v1875
      %v1908 = vunpack.c.l.b16 %v1876
      %v1909 = vunpack.c.l.b16 %v1877
      %v1910 = vunpack.c.l.b16 %v1878
      %v1911 = vunpack.c.l.b16 %v1879
      %v1912 = vunpack.c.l.b16 %v1880
      %v1913 = vunpack.c.l.b16 %v1881
      %v1914 = vunpack.c.l.b16 %v1882
      %v1915 = vunpack.c.l.b16 %v1883
      %v1916 = vunpack.c.l.b16 %v1884
      %v1917 = vpack.c.b16 %v1886, %v1885
      %v1918 = vpack.c.b16 %v1888, %v1887
      %v1919 = vpack.c.b16 %v1890, %v1889
      %v1920 = vpack.c.b16 %v1892, %v1891
      %v1921 = vpack.c.b16 %v1894, %v1893
      %v1922 = vpack.c.b16 %v1896, %v1895
      %v1923 = vpack.c.b16 %v1898, %v1897
      %v1924 = vpack.c.b16 %v1900, %v1899
      %v1925 = vpack.c.b16 %v1902, %v1901
      %v1926 = vpack.c.b16 %v1904, %v1903
      %v1927 = vpack.c.b16 %v1906, %v1905
      %v1928 = vpack.c.b16 %v1908, %v1907
      %v1929 = vpack.c.b16 %v1910, %v1909
      %v1930 = vpack.c.b16 %v1912, %v1911
      %v1931 = vpack.c.b16 %v1914, %v1913
      %v1932 = vpack.c.b16 %v1916, %v1915
      %v1933 = vunpack.c.l.b16 %v1917
      %v1934 = vunpack.c.h.b16 %v1917
      %v1935 = vunpack.c.l.b16 0
      %v1936 = vunpack.c.h.b16 0
      %vm1937 = vcmp.ne.s32.totalorder %v1933, %v1935
      %vm1938 = vcmp.ne.s32.totalorder %v1934, %v1936
      %vm1939 = vmpackc.low %vm1938, %vm1937
      %v1940 = vunpack.c.l.b16 %v1918
      %v1941 = vunpack.c.h.b16 %v1918
      %v1942 = vunpack.c.l.b16 0
      %v1943 = vunpack.c.h.b16 0
      %vm1944 = vcmp.ne.s32.totalorder %v1940, %v1942
      %vm1945 = vcmp.ne.s32.totalorder %v1941, %v1943
      %vm1946 = vmpackc.low %vm1945, %vm1944
      %v1947 = vunpack.c.l.b16 %v1919
      %v1948 = vunpack.c.h.b16 %v1919
      %v1949 = vunpack.c.l.b16 0
      %v1950 = vunpack.c.h.b16 0
      %vm1951 = vcmp.ne.s32.totalorder %v1947, %v1949
      %vm1952 = vcmp.ne.s32.totalorder %v1948, %v1950
      %vm1953 = vmpackc.low %vm1952, %vm1951
      %v1954 = vunpack.c.l.b16 %v1920
      %v1955 = vunpack.c.h.b16 %v1920
      %v1956 = vunpack.c.l.b16 0
      %v1957 = vunpack.c.h.b16 0
      %vm1958 = vcmp.ne.s32.totalorder %v1954, %v1956
      %vm1959 = vcmp.ne.s32.totalorder %v1955, %v1957
      %vm1960 = vmpackc.low %vm1959, %vm1958
      %v1961 = vunpack.c.l.b16 %v1921
      %v1962 = vunpack.c.h.b16 %v1921
      %v1963 = vunpack.c.l.b16 0
      %v1964 = vunpack.c.h.b16 0
      %vm1965 = vcmp.ne.s32.totalorder %v1961, %v1963
      %vm1966 = vcmp.ne.s32.totalorder %v1962, %v1964
      %vm1967 = vmpackc.low %vm1966, %vm1965
      %v1968 = vunpack.c.l.b16 %v1922
      %v1969 = vunpack.c.h.b16 %v1922
      %v1970 = vunpack.c.l.b16 0
      %v1971 = vunpack.c.h.b16 0
      %vm1972 = vcmp.ne.s32.totalorder %v1968, %v1970
      %vm1973 = vcmp.ne.s32.totalorder %v1969, %v1971
      %vm1974 = vmpackc.low %vm1973, %vm1972
      %v1975 = vunpack.c.l.b16 %v1923
      %v1976 = vunpack.c.h.b16 %v1923
      %v1977 = vunpack.c.l.b16 0
      %v1978 = vunpack.c.h.b16 0
      %vm1979 = vcmp.ne.s32.totalorder %v1975, %v1977
      %vm1980 = vcmp.ne.s32.totalorder %v1976, %v1978
      %vm1981 = vmpackc.low %vm1980, %vm1979
      %v1982 = vunpack.c.l.b16 %v1924
      %v1983 = vunpack.c.h.b16 %v1924
      %v1984 = vunpack.c.l.b16 0
      %v1985 = vunpack.c.h.b16 0
      %vm1986 = vcmp.ne.s32.totalorder %v1982, %v1984
      %vm1987 = vcmp.ne.s32.totalorder %v1983, %v1985
      %vm1988 = vmpackc.low %vm1987, %vm1986
      %v1989 = vunpack.c.l.b16 %v1925
      %v1990 = vunpack.c.h.b16 %v1925
      %v1991 = vunpack.c.l.b16 0
      %v1992 = vunpack.c.h.b16 0
      %vm1993 = vcmp.ne.s32.totalorder %v1989, %v1991
      %vm1994 = vcmp.ne.s32.totalorder %v1990, %v1992
      %vm1995 = vmpackc.low %vm1994, %vm1993
      %v1996 = vunpack.c.l.b16 %v1926
      %v1997 = vunpack.c.h.b16 %v1926
      %v1998 = vunpack.c.l.b16 0
      %v1999 = vunpack.c.h.b16 0
      %vm2000 = vcmp.ne.s32.totalorder %v1996, %v1998
      %vm2001 = vcmp.ne.s32.totalorder %v1997, %v1999
      %vm2002 = vmpackc.low %vm2001, %vm2000
      %v2003 = vunpack.c.l.b16 %v1927
      %v2004 = vunpack.c.h.b16 %v1927
      %v2005 = vunpack.c.l.b16 0
      %v2006 = vunpack.c.h.b16 0
      %vm2007 = vcmp.ne.s32.totalorder %v2003, %v2005
      %vm2008 = vcmp.ne.s32.totalorder %v2004, %v2006
      %vm2009 = vmpackc.low %vm2008, %vm2007
      %v2010 = vunpack.c.l.b16 %v1928
      %v2011 = vunpack.c.h.b16 %v1928
      %v2012 = vunpack.c.l.b16 0
      %v2013 = vunpack.c.h.b16 0
      %vm2014 = vcmp.ne.s32.totalorder %v2010, %v2012
      %vm2015 = vcmp.ne.s32.totalorder %v2011, %v2013
      %vm2016 = vmpackc.low %vm2015, %vm2014
      %v2017 = vunpack.c.l.b16 %v1929
      %v2018 = vunpack.c.h.b16 %v1929
      %v2019 = vunpack.c.l.b16 0
      %v2020 = vunpack.c.h.b16 0
      %vm2021 = vcmp.ne.s32.totalorder %v2017, %v2019
      %vm2022 = vcmp.ne.s32.totalorder %v2018, %v2020
      %vm2023 = vmpackc.low %vm2022, %vm2021
      %v2024 = vunpack.c.l.b16 %v1930
      %v2025 = vunpack.c.h.b16 %v1930
      %v2026 = vunpack.c.l.b16 0
      %v2027 = vunpack.c.h.b16 0
      %vm2028 = vcmp.ne.s32.totalorder %v2024, %v2026
      %vm2029 = vcmp.ne.s32.totalorder %v2025, %v2027
      %vm2030 = vmpackc.low %vm2029, %vm2028
      %v2031 = vunpack.c.l.b16 %v1931
      %v2032 = vunpack.c.h.b16 %v1931
      %v2033 = vunpack.c.l.b16 0
      %v2034 = vunpack.c.h.b16 0
      %vm2035 = vcmp.ne.s32.totalorder %v2031, %v2033
      %vm2036 = vcmp.ne.s32.totalorder %v2032, %v2034
      %vm2037 = vmpackc.low %vm2036, %vm2035
      %v2038 = vunpack.c.l.b16 %v1932
      %v2039 = vunpack.c.h.b16 %v1932
      %v2040 = vunpack.c.l.b16 0
      %v2041 = vunpack.c.h.b16 0
      %vm2042 = vcmp.ne.s32.totalorder %v2038, %v2040
      %vm2043 = vcmp.ne.s32.totalorder %v2039, %v2041
      %vm2044 = vmpackc.low %vm2043, %vm2042
      %v2045 = vsel %vm1939, %v1694, 0
      %v2046 = vsel %vm1946, %v1697, 0
      %v2047 = vsel %vm1953, %v1700, 0
      %v2048 = vsel %vm1960, %v1703, 0
      %v2049 = vsel %vm1967, %v1706, 0
      %v2050 = vsel %vm1974, %v1709, 0
      %v2051 = vsel %vm1981, %v1712, 0
      %v2052 = vsel %vm1988, %v1715, 0
      %v2053 = vsel %vm1995, %v1718, 0
      %v2054 = vsel %vm2002, %v1721, 0
      %v2055 = vsel %vm2009, %v1724, 0
      %v2056 = vsel %vm2016, %v1727, 0
      %v2057 = vsel %vm2023, %v1730, 0
      %v2058 = vsel %vm2030, %v1733, 0
      %v2059 = vsel %vm2037, %v1736, 0
      %v2060 = vsel %vm2044, %v1756, 0
      %2062 = vrot.lane.b32.xlu0 0, 4
      %v2063 = vpop.permute.xlu0 %2062
      %2064 = vrot.lane.b32.xlu0 %v1223, 4
      %v2065 = vpop.permute.xlu0 %2064
      %2066 = vrot.lane.b32.xlu0 %v1224, 4
      %v2067 = vpop.permute.xlu0 %2066
      %2068 = vrot.lane.b32.xlu0 %v1225, 4
      %v2069 = vpop.permute.xlu0 %2068
      %2070 = vrot.lane.b32.xlu0 %v1226, 4
      %v2071 = vpop.permute.xlu0 %2070
      %2072 = vrot.lane.b32.xlu0 %v1227, 4
      %v2073 = vpop.permute.xlu0 %2072
      %2074 = vrot.lane.b32.xlu0 %v1228, 4
      %v2075 = vpop.permute.xlu0 %2074
      %2076 = vrot.lane.b32.xlu0 %v1229, 4
      %v2077 = vpop.permute.xlu0 %2076
      %2078 = vrot.lane.b32.xlu0 %v1230, 4
      %v2079 = vpop.permute.xlu0 %2078
      %2080 = vrot.lane.b32.xlu0 %v1231, 4
      %v2081 = vpop.permute.xlu0 %2080
      %2082 = vrot.lane.b32.xlu0 %v1232, 4
      %v2083 = vpop.permute.xlu0 %2082
      %2084 = vrot.lane.b32.xlu0 %v1233, 4
      %v2085 = vpop.permute.xlu0 %2084
      %2086 = vrot.lane.b32.xlu0 %v1234, 4
      %v2087 = vpop.permute.xlu0 %2086
      %2088 = vrot.lane.b32.xlu0 %v1235, 4
      %v2089 = vpop.permute.xlu0 %2088
      %2090 = vrot.lane.b32.xlu0 %v1236, 4
      %v2091 = vpop.permute.xlu0 %2090
      %2092 = vrot.lane.b32.xlu0 %v1237, 4
      %v2093 = vpop.permute.xlu0 %2092
      %2109 = vrot.lane.b32.xlu0 0, 8
      %v2110 = vpop.permute.xlu0 %2109
      %2111 = vrot.lane.b32.xlu0 %v2045, 8
      %v2112 = vpop.permute.xlu0 %2111
      %2113 = vrot.lane.b32.xlu0 %v2046, 8
      %v2114 = vpop.permute.xlu0 %2113
      %2115 = vrot.lane.b32.xlu0 %v2047, 8
      %v2116 = vpop.permute.xlu0 %2115
      %2117 = vrot.lane.b32.xlu0 %v2048, 8
      %v2118 = vpop.permute.xlu0 %2117
      %2119 = vrot.lane.b32.xlu0 %v2049, 8
      %v2120 = vpop.permute.xlu0 %2119
      %2121 = vrot.lane.b32.xlu0 %v2050, 8
      %v2122 = vpop.permute.xlu0 %2121
      %2123 = vrot.lane.b32.xlu0 %v2051, 8
      %v2124 = vpop.permute.xlu0 %2123
      %2125 = vrot.lane.b32.xlu0 %v2052, 8
      %v2126 = vpop.permute.xlu0 %2125
      %2127 = vrot.lane.b32.xlu0 %v2053, 8
      %v2128 = vpop.permute.xlu0 %2127
      %2129 = vrot.lane.b32.xlu0 %v2054, 8
      %v2130 = vpop.permute.xlu0 %2129
      %2131 = vrot.lane.b32.xlu0 %v2055, 8
      %v2132 = vpop.permute.xlu0 %2131
      %2133 = vrot.lane.b32.xlu0 %v2056, 8
      %v2134 = vpop.permute.xlu0 %2133
      %2135 = vrot.lane.b32.xlu0 %v2057, 8
      %v2136 = vpop.permute.xlu0 %2135
      %2137 = vrot.lane.b32.xlu0 %v2058, 8
      %v2138 = vpop.permute.xlu0 %2137
      %2139 = vrot.lane.b32.xlu0 %v2059, 8
      %v2140 = vpop.permute.xlu0 %2139
      %2157 = vrot.lane.b32.xlu0 %v1674, 12
      %v2158 = vpop.permute.xlu0 %2157
      %2159 = vrot.lane.b32.xlu0 %v1675, 12
      %v2160 = vpop.permute.xlu0 %2159
      %2161 = vrot.lane.b32.xlu0 %v1676, 12
      %v2162 = vpop.permute.xlu0 %2161
      %2163 = vrot.lane.b32.xlu0 %v1677, 12
      %v2164 = vpop.permute.xlu0 %2163
      %2165 = vrot.lane.b32.xlu0 %v1678, 12
      %v2166 = vpop.permute.xlu0 %2165
      %2167 = vrot.lane.b32.xlu0 %v1679, 12
      %v2168 = vpop.permute.xlu0 %2167
      %2169 = vrot.lane.b32.xlu0 %v1680, 12
      %v2170 = vpop.permute.xlu0 %2169
      %2171 = vrot.lane.b32.xlu0 %v1681, 12
      %v2172 = vpop.permute.xlu0 %2171
      %2173 = vrot.lane.b32.xlu0 %v1682, 12
      %v2174 = vpop.permute.xlu0 %2173
      %2175 = vrot.lane.b32.xlu0 %v1683, 12
      %v2176 = vpop.permute.xlu0 %2175
      %2177 = vrot.lane.b32.xlu0 %v1684, 12
      %v2178 = vpop.permute.xlu0 %2177
      %2179 = vrot.lane.b32.xlu0 %v1685, 12
      %v2180 = vpop.permute.xlu0 %2179
      %2181 = vrot.lane.b32.xlu0 %v1686, 12
      %v2182 = vpop.permute.xlu0 %2181
      %2183 = vrot.lane.b32.xlu0 %v1687, 12
      %v2184 = vpop.permute.xlu0 %2183
      %2185 = vrot.lane.b32.xlu0 %v1688, 12
      %v2186 = vpop.permute.xlu0 %2185
      %2187 = vrot.lane.b32.xlu0 %v1689, 12
      %v2188 = vpop.permute.xlu0 %2187
      %2189 = vrot.lane.b32.xlu0 %v1223, 16
      %v2190 = vpop.permute.xlu0 %2189
      %2191 = vrot.lane.b32.xlu0 %v1224, 16
      %v2192 = vpop.permute.xlu0 %2191
      %2193 = vrot.lane.b32.xlu0 %v1225, 16
      %v2194 = vpop.permute.xlu0 %2193
      %2195 = vrot.lane.b32.xlu0 %v1226, 16
      %v2196 = vpop.permute.xlu0 %2195
      %2197 = vrot.lane.b32.xlu0 %v1227, 16
      %v2198 = vpop.permute.xlu0 %2197
      %2199 = vrot.lane.b32.xlu0 %v1228, 16
      %v2200 = vpop.permute.xlu0 %2199
      %2201 = vrot.lane.b32.xlu0 %v1229, 16
      %v2202 = vpop.permute.xlu0 %2201
      %2203 = vrot.lane.b32.xlu0 %v1230, 16
      %v2204 = vpop.permute.xlu0 %2203
      %2205 = vrot.lane.b32.xlu0 %v1231, 16
      %v2206 = vpop.permute.xlu0 %2205
      %2207 = vrot.lane.b32.xlu0 %v1232, 16
      %v2208 = vpop.permute.xlu0 %2207
      %2209 = vrot.lane.b32.xlu0 %v1233, 16
      %v2210 = vpop.permute.xlu0 %2209
      %2211 = vrot.lane.b32.xlu0 %v1234, 16
      %v2212 = vpop.permute.xlu0 %2211
      %2213 = vrot.lane.b32.xlu0 %v1235, 16
      %v2214 = vpop.permute.xlu0 %2213
      %2215 = vrot.lane.b32.xlu0 %v1236, 16
      %v2216 = vpop.permute.xlu0 %2215
      %2217 = vrot.lane.b32.xlu0 %v1237, 16
      %v2218 = vpop.permute.xlu0 %2217
      %2219 = vrot.lane.b32.xlu0 %v1238, 16
      %v2220 = vpop.permute.xlu0 %2219
      %2222 = vrot.lane.b32.xlu0 %v2045, 20
      %v2223 = vpop.permute.xlu0 %2222
      %2224 = vrot.lane.b32.xlu0 %v2046, 20
      %v2225 = vpop.permute.xlu0 %2224
      %2226 = vrot.lane.b32.xlu0 %v2047, 20
      %v2227 = vpop.permute.xlu0 %2226
      %2228 = vrot.lane.b32.xlu0 %v2048, 20
      %v2229 = vpop.permute.xlu0 %2228
      %2230 = vrot.lane.b32.xlu0 %v2049, 20
      %v2231 = vpop.permute.xlu0 %2230
      %2232 = vrot.lane.b32.xlu0 %v2050, 20
      %v2233 = vpop.permute.xlu0 %2232
      %2234 = vrot.lane.b32.xlu0 %v2051, 20
      %v2235 = vpop.permute.xlu0 %2234
      %2236 = vrot.lane.b32.xlu0 %v2052, 20
      %v2237 = vpop.permute.xlu0 %2236
      %2238 = vrot.lane.b32.xlu0 %v2053, 20
      %v2239 = vpop.permute.xlu0 %2238
      %2240 = vrot.lane.b32.xlu0 %v2054, 20
      %v2241 = vpop.permute.xlu0 %2240
      %2242 = vrot.lane.b32.xlu0 %v2055, 20
      %v2243 = vpop.permute.xlu0 %2242
      %2244 = vrot.lane.b32.xlu0 %v2056, 20
      %v2245 = vpop.permute.xlu0 %2244
      %2246 = vrot.lane.b32.xlu0 %v2057, 20
      %v2247 = vpop.permute.xlu0 %2246
      %2248 = vrot.lane.b32.xlu0 %v2058, 20
      %v2249 = vpop.permute.xlu0 %2248
      %2250 = vrot.lane.b32.xlu0 %v2059, 20
      %v2251 = vpop.permute.xlu0 %2250
      %2252 = vrot.lane.b32.xlu0 %v2060, 20
      %v2253 = vpop.permute.xlu0 %2252
      %2254 = vrot.lane.b32.xlu0 %v1675, 24
      %v2255 = vpop.permute.xlu0 %2254
      %2256 = vrot.lane.b32.xlu0 %v1676, 24
      %v2257 = vpop.permute.xlu0 %2256
      %2258 = vrot.lane.b32.xlu0 %v1677, 24
      %v2259 = vpop.permute.xlu0 %2258
      %2260 = vrot.lane.b32.xlu0 %v1678, 24
      %v2261 = vpop.permute.xlu0 %2260
      %2262 = vrot.lane.b32.xlu0 %v1679, 24
      %v2263 = vpop.permute.xlu0 %2262
      %2264 = vrot.lane.b32.xlu0 %v1680, 24
      %v2265 = vpop.permute.xlu0 %2264
      %2266 = vrot.lane.b32.xlu0 %v1681, 24
      %v2267 = vpop.permute.xlu0 %2266
      %2268 = vrot.lane.b32.xlu0 %v1682, 24
      %v2269 = vpop.permute.xlu0 %2268
      %2270 = vrot.lane.b32.xlu0 %v1683, 24
      %v2271 = vpop.permute.xlu0 %2270
      %2272 = vrot.lane.b32.xlu0 %v1684, 24
      %v2273 = vpop.permute.xlu0 %2272
      %2274 = vrot.lane.b32.xlu0 %v1685, 24
      %v2275 = vpop.permute.xlu0 %2274
      %2276 = vrot.lane.b32.xlu0 %v1686, 24
      %v2277 = vpop.permute.xlu0 %2276
      %2278 = vrot.lane.b32.xlu0 %v1687, 24
      %v2279 = vpop.permute.xlu0 %2278
      %2280 = vrot.lane.b32.xlu0 %v1688, 24
      %v2281 = vpop.permute.xlu0 %2280
      %2282 = vrot.lane.b32.xlu0 %v1689, 24
      %v2283 = vpop.permute.xlu0 %2282
      %2284 = vrot.lane.b32.xlu0 0, 24
      %v2285 = vpop.permute.xlu0 %2284
      %2286 = vrot.lane.b32.xlu0 %v1224, 28
      %v2287 = vpop.permute.xlu0 %2286
      %2288 = vrot.lane.b32.xlu0 %v1225, 28
      %v2289 = vpop.permute.xlu0 %2288
      %2290 = vrot.lane.b32.xlu0 %v1226, 28
      %v2291 = vpop.permute.xlu0 %2290
      %2292 = vrot.lane.b32.xlu0 %v1227, 28
      %v2293 = vpop.permute.xlu0 %2292
      %2294 = vrot.lane.b32.xlu0 %v1228, 28
      %v2295 = vpop.permute.xlu0 %2294
      %2296 = vrot.lane.b32.xlu0 %v1229, 28
      %v2297 = vpop.permute.xlu0 %2296
      %2298 = vrot.lane.b32.xlu0 %v1230, 28
      %v2299 = vpop.permute.xlu0 %2298
      %2300 = vrot.lane.b32.xlu0 %v1231, 28
      %v2301 = vpop.permute.xlu0 %2300
      %2302 = vrot.lane.b32.xlu0 %v1232, 28
      %v2303 = vpop.permute.xlu0 %2302
      %2304 = vrot.lane.b32.xlu0 %v1233, 28
      %v2305 = vpop.permute.xlu0 %2304
      %2306 = vrot.lane.b32.xlu0 %v1234, 28
      %v2307 = vpop.permute.xlu0 %2306
      %2308 = vrot.lane.b32.xlu0 %v1235, 28
      %v2309 = vpop.permute.xlu0 %2308
      %2310 = vrot.lane.b32.xlu0 %v1236, 28
      %v2311 = vpop.permute.xlu0 %2310
      %2312 = vrot.lane.b32.xlu0 %v1237, 28
      %v2313 = vpop.permute.xlu0 %2312
      %2314 = vrot.lane.b32.xlu0 %v1238, 28
      %v2315 = vpop.permute.xlu0 %2314
      %2316 = vrot.lane.b32.xlu0 0, 28
      %v2317 = vpop.permute.xlu0 %2316
      %2318 = vrot.lane.b32.xlu0 %v2046, 32
      %v2319 = vpop.permute.xlu0 %2318
      %2320 = vrot.lane.b32.xlu0 %v2047, 32
      %v2321 = vpop.permute.xlu0 %2320
      %2322 = vrot.lane.b32.xlu0 %v2048, 32
      %v2323 = vpop.permute.xlu0 %2322
      %2324 = vrot.lane.b32.xlu0 %v2049, 32
      %v2325 = vpop.permute.xlu0 %2324
      %2326 = vrot.lane.b32.xlu0 %v2050, 32
      %v2327 = vpop.permute.xlu0 %2326
      %2328 = vrot.lane.b32.xlu0 %v2051, 32
      %v2329 = vpop.permute.xlu0 %2328
      %2330 = vrot.lane.b32.xlu0 %v2052, 32
      %v2331 = vpop.permute.xlu0 %2330
      %2332 = vrot.lane.b32.xlu0 %v2053, 32
      %v2333 = vpop.permute.xlu0 %2332
      %2334 = vrot.lane.b32.xlu0 %v2054, 32
      %v2335 = vpop.permute.xlu0 %2334
      %2336 = vrot.lane.b32.xlu0 %v2055, 32
      %v2337 = vpop.permute.xlu0 %2336
      %2338 = vrot.lane.b32.xlu0 %v2056, 32
      %v2339 = vpop.permute.xlu0 %2338
      %2340 = vrot.lane.b32.xlu0 %v2057, 32
      %v2341 = vpop.permute.xlu0 %2340
      %2342 = vrot.lane.b32.xlu0 %v2058, 32
      %v2343 = vpop.permute.xlu0 %2342
      %2344 = vrot.lane.b32.xlu0 %v2059, 32
      %v2345 = vpop.permute.xlu0 %2344
      %2346 = vrot.lane.b32.xlu0 %v2060, 32
      %v2347 = vpop.permute.xlu0 %2346
      %2348 = vrot.lane.b32.xlu0 0, 32
      %v2349 = vpop.permute.xlu0 %2348
      %vm2350 = vcmask 31744
      %v2353 = vsel %vm2350, 0, %v2063
      %v2356 = vsel %vm2350, %v1674, %v2065
      %v2359 = vsel %vm2350, %v1675, %v2067
      %v2362 = vsel %vm2350, %v1676, %v2069
      %v2365 = vsel %vm2350, %v1677, %v2071
      %v2368 = vsel %vm2350, %v1678, %v2073
      %v2371 = vsel %vm2350, %v1679, %v2075
      %v2374 = vsel %vm2350, %v1680, %v2077
      %v2377 = vsel %vm2350, %v1681, %v2079
      %v2380 = vsel %vm2350, %v1682, %v2081
      %v2383 = vsel %vm2350, %v1683, %v2083
      %v2386 = vsel %vm2350, %v1684, %v2085
      %v2389 = vsel %vm2350, %v1685, %v2087
      %v2392 = vsel %vm2350, %v1686, %v2089
      %v2395 = vsel %vm2350, %v1687, %v2091
      %v2398 = vsel %vm2350, %v1688, %v2093
      %vm2399 = vcmask 64512
      %v2401 = vsel %vm2399, %v2353, %v2110
      %v2403 = vsel %vm2399, %v2356, %v2112
      %v2405 = vsel %vm2399, %v2359, %v2114
      %v2407 = vsel %vm2399, %v2362, %v2116
      %v2409 = vsel %vm2399, %v2365, %v2118
      %v2411 = vsel %vm2399, %v2368, %v2120
      %v2413 = vsel %vm2399, %v2371, %v2122
      %v2415 = vsel %vm2399, %v2374, %v2124
      %v2417 = vsel %vm2399, %v2377, %v2126
      %v2419 = vsel %vm2399, %v2380, %v2128
      %v2421 = vsel %vm2399, %v2383, %v2130
      %v2423 = vsel %vm2399, %v2386, %v2132
      %v2425 = vsel %vm2399, %v2389, %v2134
      %v2427 = vsel %vm2399, %v2392, %v2136
      %v2429 = vsel %vm2399, %v2395, %v2138
      %v2431 = vsel %vm2399, %v2398, %v2140
      %vm2432 = vcmask 97280
      %v2434 = vsel %vm2432, %v2401, %v2158
      %v2436 = vsel %vm2432, %v2403, %v2160
      %v2438 = vsel %vm2432, %v2405, %v2162
      %v2440 = vsel %vm2432, %v2407, %v2164
      %v2442 = vsel %vm2432, %v2409, %v2166
      %v2444 = vsel %vm2432, %v2411, %v2168
      %v2446 = vsel %vm2432, %v2413, %v2170
      %v2448 = vsel %vm2432, %v2415, %v2172
      %v2450 = vsel %vm2432, %v2417, %v2174
      %v2452 = vsel %vm2432, %v2419, %v2176
      %v2454 = vsel %vm2432, %v2421, %v2178
      %v2456 = vsel %vm2432, %v2423, %v2180
      %v2458 = vsel %vm2432, %v2425, %v2182
      %v2460 = vsel %vm2432, %v2427, %v2184
      %v2462 = vsel %vm2432, %v2429, %v2186
      %v2464 = vsel %vm2432, %v2431, %v2188
      %vm2465 = vcmask 130048
      %v2467 = vsel %vm2465, %v2434, %v2190
      %v2469 = vsel %vm2465, %v2436, %v2192
      %v2471 = vsel %vm2465, %v2438, %v2194
      %v2473 = vsel %vm2465, %v2440, %v2196
      %v2475 = vsel %vm2465, %v2442, %v2198
      %v2477 = vsel %vm2465, %v2444, %v2200
      %v2479 = vsel %vm2465, %v2446, %v2202
      %v2481 = vsel %vm2465, %v2448, %v2204
      %v2483 = vsel %vm2465, %v2450, %v2206
      %v2485 = vsel %vm2465, %v2452, %v2208
      %v2487 = vsel %vm2465, %v2454, %v2210
      %v2489 = vsel %vm2465, %v2456, %v2212
      %v2491 = vsel %vm2465, %v2458, %v2214
      %v2493 = vsel %vm2465, %v2460, %v2216
      %v2495 = vsel %vm2465, %v2462, %v2218
      %v2497 = vsel %vm2465, %v2464, %v2220
      %vm2498 = vcmask 162816
      %v2500 = vsel %vm2498, %v2467, %v2223
      %v2502 = vsel %vm2498, %v2469, %v2225
      %v2504 = vsel %vm2498, %v2471, %v2227
      %v2506 = vsel %vm2498, %v2473, %v2229
      %v2508 = vsel %vm2498, %v2475, %v2231
      %v2510 = vsel %vm2498, %v2477, %v2233
      %v2512 = vsel %vm2498, %v2479, %v2235
      %v2514 = vsel %vm2498, %v2481, %v2237
      %v2516 = vsel %vm2498, %v2483, %v2239
      %v2518 = vsel %vm2498, %v2485, %v2241
      %v2520 = vsel %vm2498, %v2487, %v2243
      %v2522 = vsel %vm2498, %v2489, %v2245
      %v2524 = vsel %vm2498, %v2491, %v2247
      %v2526 = vsel %vm2498, %v2493, %v2249
      %v2528 = vsel %vm2498, %v2495, %v2251
      %v2530 = vsel %vm2498, %v2497, %v2253
      %vm2531 = vcmask 195584
      %v2533 = vsel %vm2531, %v2500, %v2255
      %v2535 = vsel %vm2531, %v2502, %v2257
      %v2537 = vsel %vm2531, %v2504, %v2259
      %v2539 = vsel %vm2531, %v2506, %v2261
      %v2541 = vsel %vm2531, %v2508, %v2263
      %v2543 = vsel %vm2531, %v2510, %v2265
      %v2545 = vsel %vm2531, %v2512, %v2267
      %v2547 = vsel %vm2531, %v2514, %v2269
      %v2549 = vsel %vm2531, %v2516, %v2271
      %v2551 = vsel %vm2531, %v2518, %v2273
      %v2553 = vsel %vm2531, %v2520, %v2275
      %v2555 = vsel %vm2531, %v2522, %v2277
      %v2557 = vsel %vm2531, %v2524, %v2279
      %v2559 = vsel %vm2531, %v2526, %v2281
      %v2561 = vsel %vm2531, %v2528, %v2283
      %v2563 = vsel %vm2531, %v2530, %v2285
      %vm2564 = vcmask 228352
      %v2566 = vsel %vm2564, %v2533, %v2287
      %v2568 = vsel %vm2564, %v2535, %v2289
      %v2570 = vsel %vm2564, %v2537, %v2291
      %v2572 = vsel %vm2564, %v2539, %v2293
      %v2574 = vsel %vm2564, %v2541, %v2295
      %v2576 = vsel %vm2564, %v2543, %v2297
      %v2578 = vsel %vm2564, %v2545, %v2299
      %v2580 = vsel %vm2564, %v2547, %v2301
      %v2582 = vsel %vm2564, %v2549, %v2303
      %v2584 = vsel %vm2564, %v2551, %v2305
      %v2586 = vsel %vm2564, %v2553, %v2307
      %v2588 = vsel %vm2564, %v2555, %v2309
      %v2590 = vsel %vm2564, %v2557, %v2311
      %v2592 = vsel %vm2564, %v2559, %v2313
      %v2594 = vsel %vm2564, %v2561, %v2315
      %v2596 = vsel %vm2564, %v2563, %v2317
      %vm2597 = vcmask 261120
      %v2599 = vsel %vm2597, %v2566, %v2319
      %v2601 = vsel %vm2597, %v2568, %v2321
      %v2603 = vsel %vm2597, %v2570, %v2323
      %v2605 = vsel %vm2597, %v2572, %v2325
      %v2607 = vsel %vm2597, %v2574, %v2327
      %v2609 = vsel %vm2597, %v2576, %v2329
      %v2611 = vsel %vm2597, %v2578, %v2331
      %v2613 = vsel %vm2597, %v2580, %v2333
      %v2615 = vsel %vm2597, %v2582, %v2335
      %v2617 = vsel %vm2597, %v2584, %v2337
      %v2619 = vsel %vm2597, %v2586, %v2339
      %v2621 = vsel %vm2597, %v2588, %v2341
      %v2623 = vsel %vm2597, %v2590, %v2343
      %v2625 = vsel %vm2597, %v2592, %v2345
      %v2627 = vsel %vm2597, %v2594, %v2347
      %v2629 = vsel %vm2597, %v2596, %v2349
      %v2630 = vld [vmem:[%s1] sm:$0xf]
      %v2631 = vld [vmem:[%s1 + $0x4] sm:$0xf]
      %v2632 = vld [vmem:[%s1 + $0x8] sm:$0xf]
      %v2633 = vld [vmem:[%s1 + $0xc] sm:$0xf]
      %v2634 = vld [vmem:[%s1 + $0x10] sm:$0x3]
      %v2635 = vld [vmem:[%s2] sm:$0x1]
      %v2637 = vperm.slane %v2635, 0
      %v2644 = vunpack.c.l.b16 %v2630
      %v2645 = vunpack.c.l.b16 %v2631
      %v2646 = vunpack.c.l.b16 %v2632
      %v2647 = vunpack.c.l.b16 %v2633
      %v2648 = vunpack.c.l.b16 %v2634
      %v2649 = vpack.c.b16 %v2645, %v2644
      %v2650 = vpack.c.b16 %v2647, %v2646
      %v2651 = vpack.c.b16 %v2648, %v2648
      %vm2654 = vcmask 293888
      %v2655 = vsel %vm2654, %v2599, 0
      %v2657 = vsel %vm2654, %v2601, 0
      %v2659 = vsel %vm2654, %v2603, 0
      %v2661 = vsel %vm2654, %v2605, 0
      %v2663 = vsel %vm2654, %v2607, 0
      %v2665 = vsel %vm2654, %v2609, 0
      %v2667 = vsel %vm2654, %v2611, 0
      %v2669 = vsel %vm2654, %v2613, 0
      %v2671 = vsel %vm2654, %v2615, 0
      %v2673 = vsel %vm2654, %v2617, 0
      %v2675 = vsel %vm2654, %v2619, 0
      %v2677 = vsel %vm2654, %v2621, 0
      %v2679 = vsel %vm2654, %v2623, 0
      %v2681 = vsel %vm2654, %v2625, 0
      %v2683 = vsel %vm2654, %v2627, 0
      %v2685 = vsel %vm2654, %v2629, 0
      %vm2687 = vcmask 1041408
      %v2689 = vsel %vm2687, %v2651, 0
      %2691 = vmatpush.bf16.msra.mxu0 0
      %2692 = vmatpush.bf16.msra.mxu0 0
      %2693 = vmatpush.bf16.msra.mxu0 0
      %2694 = vmatpush.bf16.msra.mxu0 0
      %2695 = vmatpush.bf16.msra.mxu0 0
      %2696 = vmatpush.bf16.msra.mxu0 %v2689
      %2697 = vmatpush.bf16.msra.mxu0 %v2650
      %2698 = vmatpush.bf16.msra.mxu0 %v2649
      %2699 = vmatmul.bf16.gmra.mxu0 %v2655
      %v2700 = vpop.f32.mrf.mxu0
      %v2701 = vadd.f32 %v2637, %v2700
      %v2702 = vpop.f32.mrf.mxu0
      %v2703 = vadd.f32 %v2637, %v2702
      %2704 = vmatmul.bf16.gmra.mxu0 %v2657
      %v2705 = vpop.f32.mrf.mxu0
      %v2706 = vadd.f32 %v2637, %v2705
      %v2707 = vpop.f32.mrf.mxu0
      %v2708 = vadd.f32 %v2637, %v2707
      %2709 = vmatmul.bf16.gmra.mxu0 %v2659
      %v2710 = vpop.f32.mrf.mxu0
      %v2711 = vadd.f32 %v2637, %v2710
      %v2712 = vpop.f32.mrf.mxu0
      %v2713 = vadd.f32 %v2637, %v2712
      %2714 = vmatmul.bf16.gmra.mxu0 %v2661
      %v2715 = vpop.f32.mrf.mxu0
      %v2716 = vadd.f32 %v2637, %v2715
      %v2717 = vpop.f32.mrf.mxu0
      %v2718 = vadd.f32 %v2637, %v2717
      %2719 = vmatmul.bf16.gmra.mxu0 %v2663
      %v2720 = vpop.f32.mrf.mxu0
      %v2721 = vadd.f32 %v2637, %v2720
      %v2722 = vpop.f32.mrf.mxu0
      %v2723 = vadd.f32 %v2637, %v2722
      %2724 = vmatmul.bf16.gmra.mxu0 %v2665
      %v2725 = vpop.f32.mrf.mxu0
      %v2726 = vadd.f32 %v2637, %v2725
      %v2727 = vpop.f32.mrf.mxu0
      %v2728 = vadd.f32 %v2637, %v2727
      %2729 = vmatmul.bf16.gmra.mxu0 %v2667
      %v2730 = vpop.f32.mrf.mxu0
      %v2731 = vadd.f32 %v2637, %v2730
      %v2732 = vpop.f32.mrf.mxu0
      %v2733 = vadd.f32 %v2637, %v2732
      %2734 = vmatmul.bf16.gmra.mxu0 %v2669
      %v2735 = vpop.f32.mrf.mxu0
      %v2736 = vadd.f32 %v2637, %v2735
      %v2737 = vpop.f32.mrf.mxu0
      %v2738 = vadd.f32 %v2637, %v2737
      %2739 = vmatmul.bf16.gmra.mxu0 %v2671
      %v2740 = vpop.f32.mrf.mxu0
      %v2741 = vadd.f32 %v2637, %v2740
      %v2742 = vpop.f32.mrf.mxu0
      %v2743 = vadd.f32 %v2637, %v2742
      %2744 = vmatmul.bf16.gmra.mxu0 %v2673
      %v2745 = vpop.f32.mrf.mxu0
      %v2746 = vadd.f32 %v2637, %v2745
      %v2747 = vpop.f32.mrf.mxu0
      %v2748 = vadd.f32 %v2637, %v2747
      %2749 = vmatmul.bf16.gmra.mxu0 %v2675
      %v2750 = vpop.f32.mrf.mxu0
      %v2751 = vadd.f32 %v2637, %v2750
      %v2752 = vpop.f32.mrf.mxu0
      %v2753 = vadd.f32 %v2637, %v2752
      %2754 = vmatmul.bf16.gmra.mxu0 %v2677
      %v2755 = vpop.f32.mrf.mxu0
      %v2756 = vadd.f32 %v2637, %v2755
      %v2757 = vpop.f32.mrf.mxu0
      %v2758 = vadd.f32 %v2637, %v2757
      %2759 = vmatmul.bf16.gmra.mxu0 %v2679
      %v2760 = vpop.f32.mrf.mxu0
      %v2761 = vadd.f32 %v2637, %v2760
      %v2762 = vpop.f32.mrf.mxu0
      %v2763 = vadd.f32 %v2637, %v2762
      %2764 = vmatmul.bf16.gmra.mxu0 %v2681
      %v2765 = vpop.f32.mrf.mxu0
      %v2766 = vadd.f32 %v2637, %v2765
      %v2767 = vpop.f32.mrf.mxu0
      %v2768 = vadd.f32 %v2637, %v2767
      %2769 = vmatmul.bf16.gmra.mxu0 %v2683
      %v2770 = vpop.f32.mrf.mxu0
      %v2771 = vadd.f32 %v2637, %v2770
      %v2772 = vpop.f32.mrf.mxu0
      %v2773 = vadd.f32 %v2637, %v2772
      %2774 = vmatmul.bf16.gmra.mxu0 %v2685
      %v2775 = vpop.f32.mrf.mxu0
      %v2776 = vadd.f32 %v2637, %v2775
      %v2777 = vpop.f32.mrf.mxu0
      %v2778 = vadd.f32 %v2637, %v2777
      %2779 = vdwg.mxu0
      %v2780 = vmax.f32 %v2701, 0.0
      %v2781 = vmax.f32 %v2703, 0.0
      %v2782 = vmax.f32 %v2706, 0.0
      %v2783 = vmax.f32 %v2708, 0.0
      %v2784 = vmax.f32 %v2711, 0.0
      %v2785 = vmax.f32 %v2713, 0.0
      %v2786 = vmax.f32 %v2716, 0.0
      %v2787 = vmax.f32 %v2718, 0.0
      %v2788 = vmax.f32 %v2721, 0.0
      %v2789 = vmax.f32 %v2723, 0.0
      %v2790 = vmax.f32 %v2726, 0.0
      %v2791 = vmax.f32 %v2728, 0.0
      %v2792 = vmax.f32 %v2731, 0.0
      %v2793 = vmax.f32 %v2733, 0.0
      %v2794 = vmax.f32 %v2736, 0.0
      %v2795 = vmax.f32 %v2738, 0.0
      %v2796 = vmax.f32 %v2741, 0.0
      %v2797 = vmax.f32 %v2743, 0.0
      %v2798 = vmax.f32 %v2746, 0.0
      %v2799 = vmax.f32 %v2748, 0.0
      %v2800 = vmax.f32 %v2751, 0.0
      %v2801 = vmax.f32 %v2753, 0.0
      %v2802 = vmax.f32 %v2756, 0.0
      %v2803 = vmax.f32 %v2758, 0.0
      %v2804 = vmax.f32 %v2761, 0.0
      %v2805 = vmax.f32 %v2763, 0.0
      %v2806 = vmax.f32 %v2766, 0.0
      %v2807 = vmax.f32 %v2768, 0.0
      %v2808 = vmax.f32 %v2771, 0.0
      %v2809 = vmax.f32 %v2773, 0.0
      %v2810 = vmax.f32 %v2776, 0.0
      %v2811 = vmax.f32 %v2778, 0.0
      %v2812 = vpack.c.bf16 %v2780, %v2780
      %v2813 = vpack.c.bf16 %v2781, %v2781
      %v2814 = vpack.c.bf16 %v2782, %v2782
      %v2815 = vpack.c.bf16 %v2783, %v2783
      %v2816 = vpack.c.bf16 %v2784, %v2784
      %v2817 = vpack.c.bf16 %v2785, %v2785
      %v2818 = vpack.c.bf16 %v2786, %v2786
      %v2819 = vpack.c.bf16 %v2787, %v2787
      %v2820 = vpack.c.bf16 %v2788, %v2788
      %v2821 = vpack.c.bf16 %v2789, %v2789
      %v2822 = vpack.c.bf16 %v2790, %v2790
      %v2823 = vpack.c.bf16 %v2791, %v2791
      %v2824 = vpack.c.bf16 %v2792, %v2792
      %v2825 = vpack.c.bf16 %v2793, %v2793
      %v2826 = vpack.c.bf16 %v2794, %v2794
      %v2827 = vpack.c.bf16 %v2795, %v2795
      %v2828 = vpack.c.bf16 %v2796, %v2796
      %v2829 = vpack.c.bf16 %v2797, %v2797
      %v2830 = vpack.c.bf16 %v2798, %v2798
      %v2831 = vpack.c.bf16 %v2799, %v2799
      %v2832 = vpack.c.bf16 %v2800, %v2800
      %v2833 = vpack.c.bf16 %v2801, %v2801
      %v2834 = vpack.c.bf16 %v2802, %v2802
      %v2835 = vpack.c.bf16 %v2803, %v2803
      %v2836 = vpack.c.bf16 %v2804, %v2804
      %v2837 = vpack.c.bf16 %v2805, %v2805
      %v2838 = vpack.c.bf16 %v2806, %v2806
      %v2839 = vpack.c.bf16 %v2807, %v2807
      %v2840 = vpack.c.bf16 %v2808, %v2808
      %v2841 = vpack.c.bf16 %v2809, %v2809
      %v2842 = vpack.c.bf16 %v2810, %v2810
      %v2843 = vpack.c.bf16 %v2811, %v2811
      %v2876 = vunpack.c.l.b16 %v2812
      %v2877 = vunpack.c.l.b16 %v2813
      %v2878 = vunpack.c.l.b16 %v2814
      %v2879 = vunpack.c.l.b16 %v2815
      %v2880 = vunpack.c.l.b16 %v2816
      %v2881 = vunpack.c.l.b16 %v2817
      %v2882 = vunpack.c.l.b16 %v2818
      %v2883 = vunpack.c.l.b16 %v2819
      %v2884 = vunpack.c.l.b16 %v2820
      %v2885 = vunpack.c.l.b16 %v2821
      %v2886 = vunpack.c.l.b16 %v2822
      %v2887 = vunpack.c.l.b16 %v2823
      %v2888 = vunpack.c.l.b16 %v2824
      %v2889 = vunpack.c.l.b16 %v2825
      %v2890 = vunpack.c.l.b16 %v2826
      %v2891 = vunpack.c.l.b16 %v2827
      %v2892 = vunpack.c.l.b16 %v2828
      %v2893 = vunpack.c.l.b16 %v2829
      %v2894 = vunpack.c.l.b16 %v2830
      %v2895 = vunpack.c.l.b16 %v2831
      %v2896 = vunpack.c.l.b16 %v2832
      %v2897 = vunpack.c.l.b16 %v2833
      %v2898 = vunpack.c.l.b16 %v2834
      %v2899 = vunpack.c.l.b16 %v2835
      %v2900 = vunpack.c.l.b16 %v2836
      %v2901 = vunpack.c.l.b16 %v2837
      %v2902 = vunpack.c.l.b16 %v2838
      %v2903 = vunpack.c.l.b16 %v2839
      %v2904 = vunpack.c.l.b16 %v2840
      %v2905 = vunpack.c.l.b16 %v2841
      %v2906 = vunpack.c.l.b16 %v2842
      %v2907 = vunpack.c.l.b16 %v2843
      %v2908 = vpack.c.b16 %v2877, %v2876
      %v2909 = vpack.c.b16 %v2879, %v2878
      %v2910 = vpack.c.b16 %v2881, %v2880
      %v2911 = vpack.c.b16 %v2883, %v2882
      %v2912 = vpack.c.b16 %v2885, %v2884
      %v2913 = vpack.c.b16 %v2887, %v2886
      %v2914 = vpack.c.b16 %v2889, %v2888
      %v2915 = vpack.c.b16 %v2891, %v2890
      %v2916 = vpack.c.b16 %v2893, %v2892
      %v2917 = vpack.c.b16 %v2895, %v2894
      %v2918 = vpack.c.b16 %v2897, %v2896
      %v2919 = vpack.c.b16 %v2899, %v2898
      %v2920 = vpack.c.b16 %v2901, %v2900
      %v2921 = vpack.c.b16 %v2903, %v2902
      %v2922 = vpack.c.b16 %v2905, %v2904
      %v2923 = vpack.c.b16 %v2907, %v2906
      %v2925 = vshrl.u32 %v2908, 16
      %v2927 = vrot.slane %v2925, 7
      %v2928 = vshll.u32 %v2908, 16
      %v2930 = vor.u32 %v2927, %v2928
      %v2932 = vshrl.u32 %v2909, 16
      %v2934 = vrot.slane %v2932, 7
      %v2935 = vshll.u32 %v2909, 16
      %v2937 = vor.u32 %v2934, %v2935
      %v2938 = vsel %vm1239, %v2927, %v2937
      %v2940 = vshrl.u32 %v2910, 16
      %v2942 = vrot.slane %v2940, 7
      %v2943 = vshll.u32 %v2910, 16
      %v2945 = vor.u32 %v2942, %v2943
      %v2946 = vsel %vm1239, %v2934, %v2945
      %v2948 = vshrl.u32 %v2911, 16
      %v2950 = vrot.slane %v2948, 7
      %v2951 = vshll.u32 %v2911, 16
      %v2953 = vor.u32 %v2950, %v2951
      %v2954 = vsel %vm1239, %v2942, %v2953
      %v2956 = vshrl.u32 %v2912, 16
      %v2958 = vrot.slane %v2956, 7
      %v2959 = vshll.u32 %v2912, 16
      %v2961 = vor.u32 %v2958, %v2959
      %v2962 = vsel %vm1239, %v2950, %v2961
      %v2964 = vshrl.u32 %v2913, 16
      %v2966 = vrot.slane %v2964, 7
      %v2967 = vshll.u32 %v2913, 16
      %v2969 = vor.u32 %v2966, %v2967
      %v2970 = vsel %vm1239, %v2958, %v2969
      %v2972 = vshrl.u32 %v2914, 16
      %v2974 = vrot.slane %v2972, 7
      %v2975 = vshll.u32 %v2914, 16
      %v2977 = vor.u32 %v2974, %v2975
      %v2978 = vsel %vm1239, %v2966, %v2977
      %v2980 = vshrl.u32 %v2915, 16
      %v2982 = vrot.slane %v2980, 7
      %v2983 = vshll.u32 %v2915, 16
      %v2985 = vor.u32 %v2982, %v2983
      %v2986 = vsel %vm1239, %v2974, %v2985
      %v2988 = vshrl.u32 %v2916, 16
      %v2990 = vrot.slane %v2988, 7
      %v2991 = vshll.u32 %v2916, 16
      %v2993 = vor.u32 %v2990, %v2991
      %v2994 = vsel %vm1239, %v2982, %v2993
      %v2996 = vshrl.u32 %v2917, 16
      %v2998 = vrot.slane %v2996, 7
      %v2999 = vshll.u32 %v2917, 16
      %v3001 = vor.u32 %v2998, %v2999
      %v3002 = vsel %vm1239, %v2990, %v3001
      %v3004 = vshrl.u32 %v2918, 16
      %v3006 = vrot.slane %v3004, 7
      %v3007 = vshll.u32 %v2918, 16
      %v3009 = vor.u32 %v3006, %v3007
      %v3010 = vsel %vm1239, %v2998, %v3009
      %v3012 = vshrl.u32 %v2919, 16
      %v3014 = vrot.slane %v3012, 7
      %v3015 = vshll.u32 %v2919, 16
      %v3017 = vor.u32 %v3014, %v3015
      %v3018 = vsel %vm1239, %v3006, %v3017
      %v3020 = vshrl.u32 %v2920, 16
      %v3022 = vrot.slane %v3020, 7
      %v3023 = vshll.u32 %v2920, 16
      %v3025 = vor.u32 %v3022, %v3023
      %v3026 = vsel %vm1239, %v3014, %v3025
      %v3028 = vshrl.u32 %v2921, 16
      %v3030 = vrot.slane %v3028, 7
      %v3031 = vshll.u32 %v2921, 16
      %v3033 = vor.u32 %v3030, %v3031
      %v3034 = vsel %vm1239, %v3022, %v3033
      %v3036 = vshrl.u32 %v2922, 16
      %v3038 = vrot.slane %v3036, 7
      %v3039 = vshll.u32 %v2922, 16
      %v3041 = vor.u32 %v3038, %v3039
      %v3042 = vsel %vm1239, %v3030, %v3041
      %v3044 = vshrl.u32 %v2923, 16
      %v3046 = vrot.slane %v3044, 7
      %v3047 = vshll.u32 %v2923, 16
      %v3049 = vor.u32 %v3046, %v3047
      %v3050 = vsel %vm1239, %v3038, %v3049
      %v3067 = vsel %vm1384, 0, %v2930
      %v3068 = vsel %vm1568, %v3067, 0
      %v3069 = vsel %vm1575, %v2938, 0
      %v3070 = vsel %vm1582, %v2946, 0
      %v3071 = vsel %vm1589, %v2954, 0
      %v3072 = vsel %vm1596, %v2962, 0
      %v3073 = vsel %vm1603, %v2970, 0
      %v3074 = vsel %vm1610, %v2978, 0
      %v3075 = vsel %vm1617, %v2986, 0
      %v3076 = vsel %vm1624, %v2994, 0
      %v3077 = vsel %vm1631, %v3002, 0
      %v3078 = vsel %vm1638, %v3010, 0
      %v3079 = vsel %vm1645, %v3018, 0
      %v3080 = vsel %vm1652, %v3026, 0
      %v3081 = vsel %vm1659, %v3034, 0
      %v3082 = vsel %vm1666, %v3042, 0
      %v3083 = vsel %vm1673, %v3050, 0
      %v3084 = vrot.slane %v2928, 1
      %v3085 = vor.u32 %v2925, %v3084
      %v3086 = vrot.slane %v2935, 1
      %v3087 = vsel %vm1690, %v3085, %v3086
      %v3088 = vor.u32 %v2932, %v3086
      %v3089 = vrot.slane %v2943, 1
      %v3090 = vsel %vm1690, %v3088, %v3089
      %v3091 = vor.u32 %v2940, %v3089
      %v3092 = vrot.slane %v2951, 1
      %v3093 = vsel %vm1690, %v3091, %v3092
      %v3094 = vor.u32 %v2948, %v3092
      %v3095 = vrot.slane %v2959, 1
      %v3096 = vsel %vm1690, %v3094, %v3095
      %v3097 = vor.u32 %v2956, %v3095
      %v3098 = vrot.slane %v2967, 1
      %v3099 = vsel %vm1690, %v3097, %v3098
      %v3100 = vor.u32 %v2964, %v3098
      %v3101 = vrot.slane %v2975, 1
      %v3102 = vsel %vm1690, %v3100, %v3101
      %v3103 = vor.u32 %v2972, %v3101
      %v3104 = vrot.slane %v2983, 1
      %v3105 = vsel %vm1690, %v3103, %v3104
      %v3106 = vor.u32 %v2980, %v3104
      %v3107 = vrot.slane %v2991, 1
      %v3108 = vsel %vm1690, %v3106, %v3107
      %v3109 = vor.u32 %v2988, %v3107
      %v3110 = vrot.slane %v2999, 1
      %v3111 = vsel %vm1690, %v3109, %v3110
      %v3112 = vor.u32 %v2996, %v3110
      %v3113 = vrot.slane %v3007, 1
      %v3114 = vsel %vm1690, %v3112, %v3113
      %v3115 = vor.u32 %v3004, %v3113
      %v3116 = vrot.slane %v3015, 1
      %v3117 = vsel %vm1690, %v3115, %v3116
      %v3118 = vor.u32 %v3012, %v3116
      %v3119 = vrot.slane %v3023, 1
      %v3120 = vsel %vm1690, %v3118, %v3119
      %v3121 = vor.u32 %v3020, %v3119
      %v3122 = vrot.slane %v3031, 1
      %v3123 = vsel %vm1690, %v3121, %v3122
      %v3124 = vor.u32 %v3028, %v3122
      %v3125 = vrot.slane %v3039, 1
      %v3126 = vsel %vm1690, %v3124, %v3125
      %v3127 = vor.u32 %v3036, %v3125
      %v3128 = vrot.slane %v3047, 1
      %v3129 = vsel %vm1690, %v3127, %v3128
      %v3130 = vor.u32 %v3044, %v3128
      %v3147 = vsel %vm1755, %v3130, 0
      %v3148 = vsel %vm1939, %v3087, 0
      %v3149 = vsel %vm1946, %v3090, 0
      %v3150 = vsel %vm1953, %v3093, 0
      %v3151 = vsel %vm1960, %v3096, 0
      %v3152 = vsel %vm1967, %v3099, 0
      %v3153 = vsel %vm1974, %v3102, 0
      %v3154 = vsel %vm1981, %v3105, 0
      %v3155 = vsel %vm1988, %v3108, 0
      %v3156 = vsel %vm1995, %v3111, 0
      %v3157 = vsel %vm2002, %v3114, 0
      %v3158 = vsel %vm2009, %v3117, 0
      %v3159 = vsel %vm2016, %v3120, 0
      %v3160 = vsel %vm2023, %v3123, 0
      %v3161 = vsel %vm2030, %v3126, 0
      %v3162 = vsel %vm2037, %v3129, 0
      %v3163 = vsel %vm2044, %v3147, 0
      %3164 = vrot.lane.b32.xlu0 %v2908, 32
      %v3165 = vpop.permute.xlu0 %3164
      %3166 = vrot.lane.b32.xlu0 %v2909, 32
      %v3167 = vpop.permute.xlu0 %3166
      %3168 = vrot.lane.b32.xlu0 %v2910, 32
      %v3169 = vpop.permute.xlu0 %3168
      %3170 = vrot.lane.b32.xlu0 %v2911, 32
      %v3171 = vpop.permute.xlu0 %3170
      %3172 = vrot.lane.b32.xlu0 %v2912, 32
      %v3173 = vpop.permute.xlu0 %3172
      %3174 = vrot.lane.b32.xlu0 %v2913, 32
      %v3175 = vpop.permute.xlu0 %3174
      %3176 = vrot.lane.b32.xlu0 %v2914, 32
      %v3177 = vpop.permute.xlu0 %3176
      %3178 = vrot.lane.b32.xlu0 %v2915, 32
      %v3179 = vpop.permute.xlu0 %3178
      %3180 = vrot.lane.b32.xlu0 %v2916, 32
      %v3181 = vpop.permute.xlu0 %3180
      %3182 = vrot.lane.b32.xlu0 %v2917, 32
      %v3183 = vpop.permute.xlu0 %3182
      %3184 = vrot.lane.b32.xlu0 %v2918, 32
      %v3185 = vpop.permute.xlu0 %3184
      %3186 = vrot.lane.b32.xlu0 %v2919, 32
      %v3187 = vpop.permute.xlu0 %3186
      %3188 = vrot.lane.b32.xlu0 %v2920, 32
      %v3189 = vpop.permute.xlu0 %3188
      %3190 = vrot.lane.b32.xlu0 %v2921, 32
      %v3191 = vpop.permute.xlu0 %3190
      %3192 = vrot.lane.b32.xlu0 %v2922, 32
      %v3193 = vpop.permute.xlu0 %3192
      %3209 = vrot.lane.b32.xlu0 0, 64
      %v3210 = vpop.permute.xlu0 %3209
      %3211 = vrot.lane.b32.xlu0 %v3148, 64
      %v3212 = vpop.permute.xlu0 %3211
      %3213 = vrot.lane.b32.xlu0 %v3149, 64
      %v3214 = vpop.permute.xlu0 %3213
      %3215 = vrot.lane.b32.xlu0 %v3150, 64
      %v3216 = vpop.permute.xlu0 %3215
      %3217 = vrot.lane.b32.xlu0 %v3151, 64
      %v3218 = vpop.permute.xlu0 %3217
      %3219 = vrot.lane.b32.xlu0 %v3152, 64
      %v3220 = vpop.permute.xlu0 %3219
      %3221 = vrot.lane.b32.xlu0 %v3153, 64
      %v3222 = vpop.permute.xlu0 %3221
      %3223 = vrot.lane.b32.xlu0 %v3154, 64
      %v3224 = vpop.permute.xlu0 %3223
      %3225 = vrot.lane.b32.xlu0 %v3155, 64
      %v3226 = vpop.permute.xlu0 %3225
      %3227 = vrot.lane.b32.xlu0 %v3156, 64
      %v3228 = vpop.permute.xlu0 %3227
      %3229 = vrot.lane.b32.xlu0 %v3157, 64
      %v3230 = vpop.permute.xlu0 %3229
      %3231 = vrot.lane.b32.xlu0 %v3158, 64
      %v3232 = vpop.permute.xlu0 %3231
      %3233 = vrot.lane.b32.xlu0 %v3159, 64
      %v3234 = vpop.permute.xlu0 %3233
      %3235 = vrot.lane.b32.xlu0 %v3160, 64
      %v3236 = vpop.permute.xlu0 %3235
      %3237 = vrot.lane.b32.xlu0 %v3161, 64
      %v3238 = vpop.permute.xlu0 %3237
      %3239 = vrot.lane.b32.xlu0 %v3162, 64
      %v3240 = vpop.permute.xlu0 %3239
      %3257 = vrot.lane.b32.xlu0 %v3068, 96
      %v3258 = vpop.permute.xlu0 %3257
      %3259 = vrot.lane.b32.xlu0 %v3069, 96
      %v3260 = vpop.permute.xlu0 %3259
      %3261 = vrot.lane.b32.xlu0 %v3070, 96
      %v3262 = vpop.permute.xlu0 %3261
      %3263 = vrot.lane.b32.xlu0 %v3071, 96
      %v3264 = vpop.permute.xlu0 %3263
      %3265 = vrot.lane.b32.xlu0 %v3072, 96
      %v3266 = vpop.permute.xlu0 %3265
      %3267 = vrot.lane.b32.xlu0 %v3073, 96
      %v3268 = vpop.permute.xlu0 %3267
      %3269 = vrot.lane.b32.xlu0 %v3074, 96
      %v3270 = vpop.permute.xlu0 %3269
      %3271 = vrot.lane.b32.xlu0 %v3075, 96
      %v3272 = vpop.permute.xlu0 %3271
      %3273 = vrot.lane.b32.xlu0 %v3076, 96
      %v3274 = vpop.permute.xlu0 %3273
      %3275 = vrot.lane.b32.xlu0 %v3077, 96
      %v3276 = vpop.permute.xlu0 %3275
      %3277 = vrot.lane.b32.xlu0 %v3078, 96
      %v3278 = vpop.permute.xlu0 %3277
      %3279 = vrot.lane.b32.xlu0 %v3079, 96
      %v3280 = vpop.permute.xlu0 %3279
      %3281 = vrot.lane.b32.xlu0 %v3080, 96
      %v3282 = vpop.permute.xlu0 %3281
      %3283 = vrot.lane.b32.xlu0 %v3081, 96
      %v3284 = vpop.permute.xlu0 %3283
      %3285 = vrot.lane.b32.xlu0 %v3082, 96
      %v3286 = vpop.permute.xlu0 %3285
      %3287 = vrot.lane.b32.xlu0 %v3083, 96
      %v3288 = vpop.permute.xlu0 %3287
      %3290 = vrot.lane.b32.xlu0 %v3148, 32
      %v3291 = vpop.permute.xlu0 %3290
      %3292 = vrot.lane.b32.xlu0 %v3149, 32
      %v3293 = vpop.permute.xlu0 %3292
      %3294 = vrot.lane.b32.xlu0 %v3150, 32
      %v3295 = vpop.permute.xlu0 %3294
      %3296 = vrot.lane.b32.xlu0 %v3151, 32
      %v3297 = vpop.permute.xlu0 %3296
      %3298 = vrot.lane.b32.xlu0 %v3152, 32
      %v3299 = vpop.permute.xlu0 %3298
      %3300 = vrot.lane.b32.xlu0 %v3153, 32
      %v3301 = vpop.permute.xlu0 %3300
      %3302 = vrot.lane.b32.xlu0 %v3154, 32
      %v3303 = vpop.permute.xlu0 %3302
      %3304 = vrot.lane.b32.xlu0 %v3155, 32
      %v3305 = vpop.permute.xlu0 %3304
      %3306 = vrot.lane.b32.xlu0 %v3156, 32
      %v3307 = vpop.permute.xlu0 %3306
      %3308 = vrot.lane.b32.xlu0 %v3157, 32
      %v3309 = vpop.permute.xlu0 %3308
      %3310 = vrot.lane.b32.xlu0 %v3158, 32
      %v3311 = vpop.permute.xlu0 %3310
      %3312 = vrot.lane.b32.xlu0 %v3159, 32
      %v3313 = vpop.permute.xlu0 %3312
      %3314 = vrot.lane.b32.xlu0 %v3160, 32
      %v3315 = vpop.permute.xlu0 %3314
      %3316 = vrot.lane.b32.xlu0 %v3161, 32
      %v3317 = vpop.permute.xlu0 %3316
      %3318 = vrot.lane.b32.xlu0 %v3162, 32
      %v3319 = vpop.permute.xlu0 %3318
      %3320 = vrot.lane.b32.xlu0 %v3163, 32
      %v3321 = vpop.permute.xlu0 %3320
      %3322 = vrot.lane.b32.xlu0 %v3069, 64
      %v3323 = vpop.permute.xlu0 %3322
      %3324 = vrot.lane.b32.xlu0 %v3070, 64
      %v3325 = vpop.permute.xlu0 %3324
      %3326 = vrot.lane.b32.xlu0 %v3071, 64
      %v3327 = vpop.permute.xlu0 %3326
      %3328 = vrot.lane.b32.xlu0 %v3072, 64
      %v3329 = vpop.permute.xlu0 %3328
      %3330 = vrot.lane.b32.xlu0 %v3073, 64
      %v3331 = vpop.permute.xlu0 %3330
      %3332 = vrot.lane.b32.xlu0 %v3074, 64
      %v3333 = vpop.permute.xlu0 %3332
      %3334 = vrot.lane.b32.xlu0 %v3075, 64
      %v3335 = vpop.permute.xlu0 %3334
      %3336 = vrot.lane.b32.xlu0 %v3076, 64
      %v3337 = vpop.permute.xlu0 %3336
      %3338 = vrot.lane.b32.xlu0 %v3077, 64
      %v3339 = vpop.permute.xlu0 %3338
      %3340 = vrot.lane.b32.xlu0 %v3078, 64
      %v3341 = vpop.permute.xlu0 %3340
      %3342 = vrot.lane.b32.xlu0 %v3079, 64
      %v3343 = vpop.permute.xlu0 %3342
      %3344 = vrot.lane.b32.xlu0 %v3080, 64
      %v3345 = vpop.permute.xlu0 %3344
      %3346 = vrot.lane.b32.xlu0 %v3081, 64
      %v3347 = vpop.permute.xlu0 %3346
      %3348 = vrot.lane.b32.xlu0 %v3082, 64
      %v3349 = vpop.permute.xlu0 %3348
      %3350 = vrot.lane.b32.xlu0 %v3083, 64
      %v3351 = vpop.permute.xlu0 %3350
      %3352 = vrot.lane.b32.xlu0 %v2909, 96
      %v3353 = vpop.permute.xlu0 %3352
      %3354 = vrot.lane.b32.xlu0 %v2910, 96
      %v3355 = vpop.permute.xlu0 %3354
      %3356 = vrot.lane.b32.xlu0 %v2911, 96
      %v3357 = vpop.permute.xlu0 %3356
      %3358 = vrot.lane.b32.xlu0 %v2912, 96
      %v3359 = vpop.permute.xlu0 %3358
      %3360 = vrot.lane.b32.xlu0 %v2913, 96
      %v3361 = vpop.permute.xlu0 %3360
      %3362 = vrot.lane.b32.xlu0 %v2914, 96
      %v3363 = vpop.permute.xlu0 %3362
      %3364 = vrot.lane.b32.xlu0 %v2915, 96
      %v3365 = vpop.permute.xlu0 %3364
      %3366 = vrot.lane.b32.xlu0 %v2916, 96
      %v3367 = vpop.permute.xlu0 %3366
      %3368 = vrot.lane.b32.xlu0 %v2917, 96
      %v3369 = vpop.permute.xlu0 %3368
      %3370 = vrot.lane.b32.xlu0 %v2918, 96
      %v3371 = vpop.permute.xlu0 %3370
      %3372 = vrot.lane.b32.xlu0 %v2919, 96
      %v3373 = vpop.permute.xlu0 %3372
      %3374 = vrot.lane.b32.xlu0 %v2920, 96
      %v3375 = vpop.permute.xlu0 %3374
      %3376 = vrot.lane.b32.xlu0 %v2921, 96
      %v3377 = vpop.permute.xlu0 %3376
      %3378 = vrot.lane.b32.xlu0 %v2922, 96
      %v3379 = vpop.permute.xlu0 %3378
      %3380 = vrot.lane.b32.xlu0 %v2923, 96
      %v3381 = vpop.permute.xlu0 %3380
      %3382 = vrot.lane.b32.xlu0 0, 96
      %v3383 = vpop.permute.xlu0 %3382
      %v3384 = vsel %vm2597, 0, %v2349
      %v3387 = vsel %vm2597, %v3068, %v3165
      %v3390 = vsel %vm2597, %v3069, %v3167
      %v3393 = vsel %vm2597, %v3070, %v3169
      %v3396 = vsel %vm2597, %v3071, %v3171
      %v3399 = vsel %vm2597, %v3072, %v3173
      %v3402 = vsel %vm2597, %v3073, %v3175
      %v3405 = vsel %vm2597, %v3074, %v3177
      %v3408 = vsel %vm2597, %v3075, %v3179
      %v3411 = vsel %vm2597, %v3076, %v3181
      %v3414 = vsel %vm2597, %v3077, %v3183
      %v3417 = vsel %vm2597, %v3078, %v3185
      %v3420 = vsel %vm2597, %v3079, %v3187
      %v3423 = vsel %vm2597, %v3080, %v3189
      %v3426 = vsel %vm2597, %v3081, %v3191
      %v3429 = vsel %vm2597, %v3082, %v3193
      %vm3430 = vcmask 523264
      %v3432 = vsel %vm3430, %v3384, %v3210
      %v3434 = vsel %vm3430, %v3387, %v3212
      %v3436 = vsel %vm3430, %v3390, %v3214
      %v3438 = vsel %vm3430, %v3393, %v3216
      %v3440 = vsel %vm3430, %v3396, %v3218
      %v3442 = vsel %vm3430, %v3399, %v3220
      %v3444 = vsel %vm3430, %v3402, %v3222
      %v3446 = vsel %vm3430, %v3405, %v3224
      %v3448 = vsel %vm3430, %v3408, %v3226
      %v3450 = vsel %vm3430, %v3411, %v3228
      %v3452 = vsel %vm3430, %v3414, %v3230
      %v3454 = vsel %vm3430, %v3417, %v3232
      %v3456 = vsel %vm3430, %v3420, %v3234
      %v3458 = vsel %vm3430, %v3423, %v3236
      %v3460 = vsel %vm3430, %v3426, %v3238
      %v3462 = vsel %vm3430, %v3429, %v3240
      %vm3463 = vcmask 785408
      %v3465 = vsel %vm3463, %v3432, %v3258
      %v3468 = vsel %vm3463, %v3434, %v3260
      %v3471 = vsel %vm3463, %v3436, %v3262
      %v3474 = vsel %vm3463, %v3438, %v3264
      %v3477 = vsel %vm3463, %v3440, %v3266
      %v3480 = vsel %vm3463, %v3442, %v3268
      %v3483 = vsel %vm3463, %v3444, %v3270
      %v3486 = vsel %vm3463, %v3446, %v3272
      %v3489 = vsel %vm3463, %v3448, %v3274
      %v3492 = vsel %vm3463, %v3450, %v3276
      %v3495 = vsel %vm3463, %v3452, %v3278
      %v3498 = vsel %vm3463, %v3454, %v3280
      %v3501 = vsel %vm3463, %v3456, %v3282
      %v3504 = vsel %vm3463, %v3458, %v3284
      %v3507 = vsel %vm3463, %v3460, %v3286
      %v3510 = vsel %vm3463, %v3462, %v3288
      %v3513 = vsel %vm2597, %v2908, %v3291
      %v3515 = vsel %vm2597, %v2909, %v3293
      %v3517 = vsel %vm2597, %v2910, %v3295
      %v3519 = vsel %vm2597, %v2911, %v3297
      %v3521 = vsel %vm2597, %v2912, %v3299
      %v3523 = vsel %vm2597, %v2913, %v3301
      %v3525 = vsel %vm2597, %v2914, %v3303
      %v3527 = vsel %vm2597, %v2915, %v3305
      %v3529 = vsel %vm2597, %v2916, %v3307
      %v3531 = vsel %vm2597, %v2917, %v3309
      %v3533 = vsel %vm2597, %v2918, %v3311
      %v3535 = vsel %vm2597, %v2919, %v3313
      %v3537 = vsel %vm2597, %v2920, %v3315
      %v3539 = vsel %vm2597, %v2921, %v3317
      %v3541 = vsel %vm2597, %v2922, %v3319
      %v3543 = vsel %vm2597, %v2923, %v3321
      %v3545 = vsel %vm3430, %v3513, %v3323
      %v3547 = vsel %vm3430, %v3515, %v3325
      %v3549 = vsel %vm3430, %v3517, %v3327
      %v3551 = vsel %vm3430, %v3519, %v3329
      %v3553 = vsel %vm3430, %v3521, %v3331
      %v3555 = vsel %vm3430, %v3523, %v3333
      %v3557 = vsel %vm3430, %v3525, %v3335
      %v3559 = vsel %vm3430, %v3527, %v3337
      %v3561 = vsel %vm3430, %v3529, %v3339
      %v3563 = vsel %vm3430, %v3531, %v3341
      %v3565 = vsel %vm3430, %v3533, %v3343
      %v3567 = vsel %vm3430, %v3535, %v3345
      %v3569 = vsel %vm3430, %v3537, %v3347
      %v3571 = vsel %vm3430, %v3539, %v3349
      %v3573 = vsel %vm3430, %v3541, %v3351
      %v3574 = vsel %vm3430, %v3543, %v3210
      %v3576 = vsel %vm3463, %v3545, %v3353
      %v3579 = vsel %vm3463, %v3547, %v3355
      %v3582 = vsel %vm3463, %v3549, %v3357
      %v3585 = vsel %vm3463, %v3551, %v3359
      %v3588 = vsel %vm3463, %v3553, %v3361
      %v3591 = vsel %vm3463, %v3555, %v3363
      %v3594 = vsel %vm3463, %v3557, %v3365
      %v3597 = vsel %vm3463, %v3559, %v3367
      %v3600 = vsel %vm3463, %v3561, %v3369
      %v3603 = vsel %vm3463, %v3563, %v3371
      %v3606 = vsel %vm3463, %v3565, %v3373
      %v3609 = vsel %vm3463, %v3567, %v3375
      %v3612 = vsel %vm3463, %v3569, %v3377
      %v3615 = vsel %vm3463, %v3571, %v3379
      %v3618 = vsel %vm3463, %v3573, %v3381
      %v3621 = vsel %vm3463, %v3574, %v3383
      %v3623 = vld [vmem:[%s3] sm:$0xf]
      %v3624 = vld [vmem:[%s3 + $0x4] sm:$0xf]
      %v3625 = vld [vmem:[%s3 + $0x8] sm:$0xf]
      %v3626 = vld [vmem:[%s3 + $0xc] sm:$0xf]
      %v3627 = vld [vmem:[%s3 + $0x10] sm:$0xf]
      %v3628 = vld [vmem:[%s3 + $0x14] sm:$0xf]
      %v3629 = vld [vmem:[%s3 + $0x18] sm:$0xf]
      %v3630 = vld [vmem:[%s3 + $0x1c] sm:$0xf]
      %v3631 = vld [vmem:[%s3 + $0x20] sm:$0xf]
      %v3632 = vld [vmem:[%s3 + $0x24] sm:$0xf]
      %v3633 = vld [vmem:[%s3 + $0x28] sm:$0xf]
      %v3634 = vld [vmem:[%s3 + $0x2c] sm:$0xf]
      %v3635 = vld [vmem:[%s3 + $0x30] sm:$0xf]
      %v3636 = vld [vmem:[%s3 + $0x34] sm:$0xf]
      %v3637 = vld [vmem:[%s3 + $0x38] sm:$0xf]
      %v3638 = vld [vmem:[%s3 + $0x3c] sm:$0xf]
      %v3639 = vld [vmem:[%s3 + $0x40] sm:$0xf]
      %v3640 = vld [vmem:[%s3 + $0x44] sm:$0xf]
      %v3641 = vld [vmem:[%s3 + $0x48] sm:$0xf]
      %v3642 = vld [vmem:[%s3 + $0x4c] sm:$0xf]
      %v3643 = vld [vmem:[%s3 + $0x50] sm:$0xf]
      %v3644 = vld [vmem:[%s3 + $0x54] sm:$0xf]
      %v3645 = vld [vmem:[%s3 + $0x58] sm:$0xf]
      %v3646 = vld [vmem:[%s3 + $0x5c] sm:$0xf]
      %v3647 = vld [vmem:[%s3 + $0x60] sm:$0xf]
      %v3648 = vld [vmem:[%s3 + $0x64] sm:$0xf]
      %v3649 = vld [vmem:[%s3 + $0x68] sm:$0xf]
      %v3650 = vld [vmem:[%s3 + $0x6c] sm:$0xf]
      %v3651 = vld [vmem:[%s3 + $0x70] sm:$0xf]
      %v3652 = vld [vmem:[%s3 + $0x74] sm:$0xf]
      %v3653 = vld [vmem:[%s3 + $0x78] sm:$0xf]
      %v3654 = vld [vmem:[%s3 + $0x7c] sm:$0xf]
      %v3655 = vld [vmem:[%s3 + $0x80] sm:$0xf]
      %v3656 = vld [vmem:[%s3 + $0x84] sm:$0xf]
      %v3657 = vld [vmem:[%s3 + $0x88] sm:$0xf]
      %v3658 = vld [vmem:[%s3 + $0x8c] sm:$0xf]
      %v3659 = vld [vmem:[%s4] sm:$0x1]
      %v3661 = vperm.slane %v3659, 0
      %v3699 = vunpack.c.l.b16 %v3623
      %v3700 = vunpack.c.l.b16 %v3624
      %v3701 = vunpack.c.l.b16 %v3625
      %v3702 = vunpack.c.l.b16 %v3626
      %v3703 = vunpack.c.l.b16 %v3627
      %v3704 = vunpack.c.l.b16 %v3628
      %v3705 = vunpack.c.l.b16 %v3629
      %v3706 = vunpack.c.l.b16 %v3630
      %v3707 = vunpack.c.l.b16 %v3631
      %v3708 = vunpack.c.l.b16 %v3632
      %v3709 = vunpack.c.l.b16 %v3633
      %v3710 = vunpack.c.l.b16 %v3634
      %v3711 = vunpack.c.l.b16 %v3635
      %v3712 = vunpack.c.l.b16 %v3636
      %v3713 = vunpack.c.l.b16 %v3637
      %v3714 = vunpack.c.l.b16 %v3638
      %v3715 = vunpack.c.l.b16 %v3639
      %v3716 = vunpack.c.l.b16 %v3640
      %v3717 = vunpack.c.l.b16 %v3641
      %v3718 = vunpack.c.l.b16 %v3642
      %v3719 = vunpack.c.l.b16 %v3643
      %v3720 = vunpack.c.l.b16 %v3644
      %v3721 = vunpack.c.l.b16 %v3645
      %v3722 = vunpack.c.l.b16 %v3646
      %v3723 = vunpack.c.l.b16 %v3647
      %v3724 = vunpack.c.l.b16 %v3648
      %v3725 = vunpack.c.l.b16 %v3649
      %v3726 = vunpack.c.l.b16 %v3650
      %v3727 = vunpack.c.l.b16 %v3651
      %v3728 = vunpack.c.l.b16 %v3652
      %v3729 = vunpack.c.l.b16 %v3653
      %v3730 = vunpack.c.l.b16 %v3654
      %v3731 = vunpack.c.l.b16 %v3655
      %v3732 = vunpack.c.l.b16 %v3656
      %v3733 = vunpack.c.l.b16 %v3657
      %v3734 = vunpack.c.l.b16 %v3658
      %v3735 = vpack.c.b16 %v3700, %v3699
      %v3736 = vpack.c.b16 %v3702, %v3701
      %v3737 = vpack.c.b16 %v3704, %v3703
      %v3738 = vpack.c.b16 %v3706, %v3705
      %v3739 = vpack.c.b16 %v3708, %v3707
      %v3740 = vpack.c.b16 %v3710, %v3709
      %v3741 = vpack.c.b16 %v3712, %v3711
      %v3742 = vpack.c.b16 %v3714, %v3713
      %v3743 = vpack.c.b16 %v3716, %v3715
      %v3744 = vpack.c.b16 %v3718, %v3717
      %v3745 = vpack.c.b16 %v3720, %v3719
      %v3746 = vpack.c.b16 %v3722, %v3721
      %v3747 = vpack.c.b16 %v3724, %v3723
      %v3748 = vpack.c.b16 %v3726, %v3725
      %v3749 = vpack.c.b16 %v3728, %v3727
      %v3750 = vpack.c.b16 %v3730, %v3729
      %v3751 = vpack.c.b16 %v3732, %v3731
      %v3752 = vpack.c.b16 %v3734, %v3733
      %v3772 = vsel %vm2597, %v3149, 0
      %v3775 = vsel %vm2597, %v3150, 0
      %v3778 = vsel %vm2597, %v3151, 0
      %v3781 = vsel %vm2597, %v3152, 0
      %v3784 = vsel %vm2597, %v3153, 0
      %v3787 = vsel %vm2597, %v3154, 0
      %v3790 = vsel %vm2597, %v3155, 0
      %v3793 = vsel %vm2597, %v3156, 0
      %v3796 = vsel %vm2597, %v3157, 0
      %v3799 = vsel %vm2597, %v3158, 0
      %v3802 = vsel %vm2597, %v3159, 0
      %v3805 = vsel %vm2597, %v3160, 0
      %v3808 = vsel %vm2597, %v3161, 0
      %v3811 = vsel %vm2597, %v3162, 0
      %v3814 = vsel %vm2597, %v3163, 0
      %v3816 = vsel %vm2597, 0, 0
      %3818 = vmatpush.bf16.msra.mxu0 %v3742
      %3819 = vmatpush.bf16.msra.mxu0 %v3741
      %3820 = vmatpush.bf16.msra.mxu0 %v3740
      %3821 = vmatpush.bf16.msra.mxu0 %v3739
      %3822 = vmatpush.bf16.msra.mxu0 %v3738
      %3823 = vmatpush.bf16.msra.mxu0 %v3737
      %3824 = vmatpush.bf16.msra.mxu0 %v3736
      %3825 = vmatpush.bf16.msra.mxu0 %v3735
      %3826 = vmatmul.bf16.gmra.mxu0 %v3465
      %v3827 = vpop.f32.mrf.mxu0
      %v3828 = vadd.f32 %v3661, %v3827
      %v3829 = vpop.f32.mrf.mxu0
      %v3830 = vadd.f32 %v3661, %v3829
      %3831 = vmatmul.bf16.gmra.mxu0 %v3468
      %v3832 = vpop.f32.mrf.mxu0
      %v3833 = vadd.f32 %v3661, %v3832
      %v3834 = vpop.f32.mrf.mxu0
      %v3835 = vadd.f32 %v3661, %v3834
      %3836 = vmatmul.bf16.gmra.mxu0 %v3471
      %v3837 = vpop.f32.mrf.mxu0
      %v3838 = vadd.f32 %v3661, %v3837
      %v3839 = vpop.f32.mrf.mxu0
      %v3840 = vadd.f32 %v3661, %v3839
      %3841 = vmatmul.bf16.gmra.mxu0 %v3474
      %v3842 = vpop.f32.mrf.mxu0
      %v3843 = vadd.f32 %v3661, %v3842
      %v3844 = vpop.f32.mrf.mxu0
      %v3845 = vadd.f32 %v3661, %v3844
      %3846 = vmatmul.bf16.gmra.mxu0 %v3477
      %v3847 = vpop.f32.mrf.mxu0
      %v3848 = vadd.f32 %v3661, %v3847
      %v3849 = vpop.f32.mrf.mxu0
      %v3850 = vadd.f32 %v3661, %v3849
      %3851 = vmatmul.bf16.gmra.mxu0 %v3480
      %v3852 = vpop.f32.mrf.mxu0
      %v3853 = vadd.f32 %v3661, %v3852
      %v3854 = vpop.f32.mrf.mxu0
      %v3855 = vadd.f32 %v3661, %v3854
      %3856 = vmatmul.bf16.gmra.mxu0 %v3483
      %v3857 = vpop.f32.mrf.mxu0
      %v3858 = vadd.f32 %v3661, %v3857
      %v3859 = vpop.f32.mrf.mxu0
      %v3860 = vadd.f32 %v3661, %v3859
      %3861 = vmatmul.bf16.gmra.mxu0 %v3486
      %v3862 = vpop.f32.mrf.mxu0
      %v3863 = vadd.f32 %v3661, %v3862
      %v3864 = vpop.f32.mrf.mxu0
      %v3865 = vadd.f32 %v3661, %v3864
      %3866 = vmatmul.bf16.gmra.mxu0 %v3489
      %v3867 = vpop.f32.mrf.mxu0
      %v3868 = vadd.f32 %v3661, %v3867
      %v3869 = vpop.f32.mrf.mxu0
      %v3870 = vadd.f32 %v3661, %v3869
      %3871 = vmatmul.bf16.gmra.mxu0 %v3492
      %v3872 = vpop.f32.mrf.mxu0
      %v3873 = vadd.f32 %v3661, %v3872
      %v3874 = vpop.f32.mrf.mxu0
      %v3875 = vadd.f32 %v3661, %v3874
      %3876 = vmatmul.bf16.gmra.mxu0 %v3495
      %v3877 = vpop.f32.mrf.mxu0
      %v3878 = vadd.f32 %v3661, %v3877
      %v3879 = vpop.f32.mrf.mxu0
      %v3880 = vadd.f32 %v3661, %v3879
      %3881 = vmatmul.bf16.gmra.mxu0 %v3498
      %v3882 = vpop.f32.mrf.mxu0
      %v3883 = vadd.f32 %v3661, %v3882
      %v3884 = vpop.f32.mrf.mxu0
      %v3885 = vadd.f32 %v3661, %v3884
      %3886 = vmatmul.bf16.gmra.mxu0 %v3501
      %v3887 = vpop.f32.mrf.mxu0
      %v3888 = vadd.f32 %v3661, %v3887
      %v3889 = vpop.f32.mrf.mxu0
      %v3890 = vadd.f32 %v3661, %v3889
      %3891 = vmatmul.bf16.gmra.mxu0 %v3504
      %v3892 = vpop.f32.mrf.mxu0
      %v3893 = vadd.f32 %v3661, %v3892
      %v3894 = vpop.f32.mrf.mxu0
      %v3895 = vadd.f32 %v3661, %v3894
      %3896 = vmatmul.bf16.gmra.mxu0 %v3507
      %v3897 = vpop.f32.mrf.mxu0
      %v3898 = vadd.f32 %v3661, %v3897
      %v3899 = vpop.f32.mrf.mxu0
      %v3900 = vadd.f32 %v3661, %v3899
      %3901 = vmatmul.bf16.gmra.mxu0 %v3510
      %v3902 = vpop.f32.mrf.mxu0
      %v3903 = vadd.f32 %v3661, %v3902
      %v3904 = vpop.f32.mrf.mxu0
      %v3905 = vadd.f32 %v3661, %v3904
      %3906 = vdwg.mxu0
      %3907 = vmatpush.bf16.msra.mxu0 %v3750
      %3908 = vmatpush.bf16.msra.mxu0 %v3749
      %3909 = vmatpush.bf16.msra.mxu0 %v3748
      %3910 = vmatpush.bf16.msra.mxu0 %v3747
      %3911 = vmatpush.bf16.msra.mxu0 %v3746
      %3912 = vmatpush.bf16.msra.mxu0 %v3745
      %3913 = vmatpush.bf16.msra.mxu0 %v3744
      %3914 = vmatpush.bf16.msra.mxu0 %v3743
      %3915 = vmatmul.bf16.gmra.mxu0 %v3576
      %v3916 = vpop.f32.mrf.mxu0
      %v3917 = vadd.f32 %v3828, %v3916
      %v3918 = vpop.f32.mrf.mxu0
      %v3919 = vadd.f32 %v3830, %v3918
      %3920 = vmatmul.bf16.gmra.mxu0 %v3579
      %v3921 = vpop.f32.mrf.mxu0
      %v3922 = vadd.f32 %v3833, %v3921
      %v3923 = vpop.f32.mrf.mxu0
      %v3924 = vadd.f32 %v3835, %v3923
      %3925 = vmatmul.bf16.gmra.mxu0 %v3582
      %v3926 = vpop.f32.mrf.mxu0
      %v3927 = vadd.f32 %v3838, %v3926
      %v3928 = vpop.f32.mrf.mxu0
      %v3929 = vadd.f32 %v3840, %v3928
      %3930 = vmatmul.bf16.gmra.mxu0 %v3585
      %v3931 = vpop.f32.mrf.mxu0
      %v3932 = vadd.f32 %v3843, %v3931
      %v3933 = vpop.f32.mrf.mxu0
      %v3934 = vadd.f32 %v3845, %v3933
      %3935 = vmatmul.bf16.gmra.mxu0 %v3588
      %v3936 = vpop.f32.mrf.mxu0
      %v3937 = vadd.f32 %v3848, %v3936
      %v3938 = vpop.f32.mrf.mxu0
      %v3939 = vadd.f32 %v3850, %v3938
      %3940 = vmatmul.bf16.gmra.mxu0 %v3591
      %v3941 = vpop.f32.mrf.mxu0
      %v3942 = vadd.f32 %v3853, %v3941
      %v3943 = vpop.f32.mrf.mxu0
      %v3944 = vadd.f32 %v3855, %v3943
      %3945 = vmatmul.bf16.gmra.mxu0 %v3594
      %v3946 = vpop.f32.mrf.mxu0
      %v3947 = vadd.f32 %v3858, %v3946
      %v3948 = vpop.f32.mrf.mxu0
      %v3949 = vadd.f32 %v3860, %v3948
      %3950 = vmatmul.bf16.gmra.mxu0 %v3597
      %v3951 = vpop.f32.mrf.mxu0
      %v3952 = vadd.f32 %v3863, %v3951
      %v3953 = vpop.f32.mrf.mxu0
      %v3954 = vadd.f32 %v3865, %v3953
      %3955 = vmatmul.bf16.gmra.mxu0 %v3600
      %v3956 = vpop.f32.mrf.mxu0
      %v3957 = vadd.f32 %v3868, %v3956
      %v3958 = vpop.f32.mrf.mxu0
      %v3959 = vadd.f32 %v3870, %v3958
      %3960 = vmatmul.bf16.gmra.mxu0 %v3603
      %v3961 = vpop.f32.mrf.mxu0
      %v3962 = vadd.f32 %v3873, %v3961
      %v3963 = vpop.f32.mrf.mxu0
      %v3964 = vadd.f32 %v3875, %v3963
      %3965 = vmatmul.bf16.gmra.mxu0 %v3606
      %v3966 = vpop.f32.mrf.mxu0
      %v3967 = vadd.f32 %v3878, %v3966
      %v3968 = vpop.f32.mrf.mxu0
      %v3969 = vadd.f32 %v3880, %v3968
      %3970 = vmatmul.bf16.gmra.mxu0 %v3609
      %v3971 = vpop.f32.mrf.mxu0
      %v3972 = vadd.f32 %v3883, %v3971
      %v3973 = vpop.f32.mrf.mxu0
      %v3974 = vadd.f32 %v3885, %v3973
      %3975 = vmatmul.bf16.gmra.mxu0 %v3612
      %v3976 = vpop.f32.mrf.mxu0
      %v3977 = vadd.f32 %v3888, %v3976
      %v3978 = vpop.f32.mrf.mxu0
      %v3979 = vadd.f32 %v3890, %v3978
      %3980 = vmatmul.bf16.gmra.mxu0 %v3615
      %v3981 = vpop.f32.mrf.mxu0
      %v3982 = vadd.f32 %v3893, %v3981
      %v3983 = vpop.f32.mrf.mxu0
      %v3984 = vadd.f32 %v3895, %v3983
      %3985 = vmatmul.bf16.gmra.mxu0 %v3618
      %v3986 = vpop.f32.mrf.mxu0
      %v3987 = vadd.f32 %v3898, %v3986
      %v3988 = vpop.f32.mrf.mxu0
      %v3989 = vadd.f32 %v3900, %v3988
      %3990 = vmatmul.bf16.gmra.mxu0 %v3621
      %v3991 = vpop.f32.mrf.mxu0
      %v3992 = vadd.f32 %v3903, %v3991
      %v3993 = vpop.f32.mrf.mxu0
      %v3994 = vadd.f32 %v3905, %v3993
      %3995 = vdwg.mxu0
      %3996 = vmatpush.bf16.msra.mxu0 0
      %3997 = vmatpush.bf16.msra.mxu0 0
      %3998 = vmatpush.bf16.msra.mxu0 0
      %3999 = vmatpush.bf16.msra.mxu0 0
      %4000 = vmatpush.bf16.msra.mxu0 0
      %4001 = vmatpush.bf16.msra.mxu0 0
      %4002 = vmatpush.bf16.msra.mxu0 %v3752
      %4003 = vmatpush.bf16.msra.mxu0 %v3751
      %4004 = vmatmul.bf16.gmra.mxu0 %v3772
      %v4005 = vpop.f32.mrf.mxu0
      %v4006 = vadd.f32 %v3917, %v4005
      %v4007 = vpop.f32.mrf.mxu0
      %v4008 = vadd.f32 %v3919, %v4007
      %4009 = vmatmul.bf16.gmra.mxu0 %v3775
      %v4010 = vpop.f32.mrf.mxu0
      %v4011 = vadd.f32 %v3922, %v4010
      %v4012 = vpop.f32.mrf.mxu0
      %v4013 = vadd.f32 %v3924, %v4012
      %4014 = vmatmul.bf16.gmra.mxu0 %v3778
      %v4015 = vpop.f32.mrf.mxu0
      %v4016 = vadd.f32 %v3927, %v4015
      %v4017 = vpop.f32.mrf.mxu0
      %v4018 = vadd.f32 %v3929, %v4017
      %4019 = vmatmul.bf16.gmra.mxu0 %v3781
      %v4020 = vpop.f32.mrf.mxu0
      %v4021 = vadd.f32 %v3932, %v4020
      %v4022 = vpop.f32.mrf.mxu0
      %v4023 = vadd.f32 %v3934, %v4022
      %4024 = vmatmul.bf16.gmra.mxu0 %v3784
      %v4025 = vpop.f32.mrf.mxu0
      %v4026 = vadd.f32 %v3937, %v4025
      %v4027 = vpop.f32.mrf.mxu0
      %v4028 = vadd.f32 %v3939, %v4027
      %4029 = vmatmul.bf16.gmra.mxu0 %v3787
      %v4030 = vpop.f32.mrf.mxu0
      %v4031 = vadd.f32 %v3942, %v4030
      %v4032 = vpop.f32.mrf.mxu0
      %v4033 = vadd.f32 %v3944, %v4032
      %4034 = vmatmul.bf16.gmra.mxu0 %v3790
      %v4035 = vpop.f32.mrf.mxu0
      %v4036 = vadd.f32 %v3947, %v4035
      %v4037 = vpop.f32.mrf.mxu0
      %v4038 = vadd.f32 %v3949, %v4037
      %4039 = vmatmul.bf16.gmra.mxu0 %v3793
      %v4040 = vpop.f32.mrf.mxu0
      %v4041 = vadd.f32 %v3952, %v4040
      %v4042 = vpop.f32.mrf.mxu0
      %v4043 = vadd.f32 %v3954, %v4042
      %4044 = vmatmul.bf16.gmra.mxu0 %v3796
      %v4045 = vpop.f32.mrf.mxu0
      %v4046 = vadd.f32 %v3957, %v4045
      %v4047 = vpop.f32.mrf.mxu0
      %v4048 = vadd.f32 %v3959, %v4047
      %4049 = vmatmul.bf16.gmra.mxu0 %v3799
      %v4050 = vpop.f32.mrf.mxu0
      %v4051 = vadd.f32 %v3962, %v4050
      %v4052 = vpop.f32.mrf.mxu0
      %v4053 = vadd.f32 %v3964, %v4052
      %4054 = vmatmul.bf16.gmra.mxu0 %v3802
      %v4055 = vpop.f32.mrf.mxu0
      %v4056 = vadd.f32 %v3967, %v4055
      %v4057 = vpop.f32.mrf.mxu0
      %v4058 = vadd.f32 %v3969, %v4057
      %4059 = vmatmul.bf16.gmra.mxu0 %v3805
      %v4060 = vpop.f32.mrf.mxu0
      %v4061 = vadd.f32 %v3972, %v4060
      %v4062 = vpop.f32.mrf.mxu0
      %v4063 = vadd.f32 %v3974, %v4062
      %4064 = vmatmul.bf16.gmra.mxu0 %v3808
      %v4065 = vpop.f32.mrf.mxu0
      %v4066 = vadd.f32 %v3977, %v4065
      %v4067 = vpop.f32.mrf.mxu0
      %v4068 = vadd.f32 %v3979, %v4067
      %4069 = vmatmul.bf16.gmra.mxu0 %v3811
      %v4070 = vpop.f32.mrf.mxu0
      %v4071 = vadd.f32 %v3982, %v4070
      %v4072 = vpop.f32.mrf.mxu0
      %v4073 = vadd.f32 %v3984, %v4072
      %4074 = vmatmul.bf16.gmra.mxu0 %v3814
      %v4075 = vpop.f32.mrf.mxu0
      %v4076 = vadd.f32 %v3987, %v4075
      %v4077 = vpop.f32.mrf.mxu0
      %v4078 = vadd.f32 %v3989, %v4077
      %4079 = vmatmul.bf16.gmra.mxu0 %v3816
      %v4080 = vpop.f32.mrf.mxu0
      %v4081 = vadd.f32 %v3992, %v4080
      %v4082 = vpop.f32.mrf.mxu0
      %v4083 = vadd.f32 %v3994, %v4082
      %4084 = vdwg.mxu0
      %v4085 = vmax.f32 %v4006, 0.0
      %v4086 = vmax.f32 %v4008, 0.0
      %v4087 = vmax.f32 %v4011, 0.0
      %v4088 = vmax.f32 %v4013, 0.0
      %v4089 = vmax.f32 %v4016, 0.0
      %v4090 = vmax.f32 %v4018, 0.0
      %v4091 = vmax.f32 %v4021, 0.0
      %v4092 = vmax.f32 %v4023, 0.0
      %v4093 = vmax.f32 %v4026, 0.0
      %v4094 = vmax.f32 %v4028, 0.0
      %v4095 = vmax.f32 %v4031, 0.0
      %v4096 = vmax.f32 %v4033, 0.0
      %v4097 = vmax.f32 %v4036, 0.0
      %v4098 = vmax.f32 %v4038, 0.0
      %v4099 = vmax.f32 %v4041, 0.0
      %v4100 = vmax.f32 %v4043, 0.0
      %v4101 = vmax.f32 %v4046, 0.0
      %v4102 = vmax.f32 %v4048, 0.0
      %v4103 = vmax.f32 %v4051, 0.0
      %v4104 = vmax.f32 %v4053, 0.0
      %v4105 = vmax.f32 %v4056, 0.0
      %v4106 = vmax.f32 %v4058, 0.0
      %v4107 = vmax.f32 %v4061, 0.0
      %v4108 = vmax.f32 %v4063, 0.0
      %v4109 = vmax.f32 %v4066, 0.0
      %v4110 = vmax.f32 %v4068, 0.0
      %v4111 = vmax.f32 %v4071, 0.0
      %v4112 = vmax.f32 %v4073, 0.0
      %v4113 = vmax.f32 %v4076, 0.0
      %v4114 = vmax.f32 %v4078, 0.0
      %v4115 = vmax.f32 %v4081, 0.0
      %v4116 = vmax.f32 %v4083, 0.0
      %v4117 = vpack.c.bf16 %v4085, %v4085
      %v4118 = vpack.c.bf16 %v4086, %v4086
      %v4119 = vpack.c.bf16 %v4087, %v4087
      %v4120 = vpack.c.bf16 %v4088, %v4088
      %v4121 = vpack.c.bf16 %v4089, %v4089
      %v4122 = vpack.c.bf16 %v4090, %v4090
      %v4123 = vpack.c.bf16 %v4091, %v4091
      %v4124 = vpack.c.bf16 %v4092, %v4092
      %v4125 = vpack.c.bf16 %v4093, %v4093
      %v4126 = vpack.c.bf16 %v4094, %v4094
      %v4127 = vpack.c.bf16 %v4095, %v4095
      %v4128 = vpack.c.bf16 %v4096, %v4096
      %v4129 = vpack.c.bf16 %v4097, %v4097
      %v4130 = vpack.c.bf16 %v4098, %v4098
      %v4131 = vpack.c.bf16 %v4099, %v4099
      %v4132 = vpack.c.bf16 %v4100, %v4100
      %v4133 = vpack.c.bf16 %v4101, %v4101
      %v4134 = vpack.c.bf16 %v4102, %v4102
      %v4135 = vpack.c.bf16 %v4103, %v4103
      %v4136 = vpack.c.bf16 %v4104, %v4104
      %v4137 = vpack.c.bf16 %v4105, %v4105
      %v4138 = vpack.c.bf16 %v4106, %v4106
      %v4139 = vpack.c.bf16 %v4107, %v4107
      %v4140 = vpack.c.bf16 %v4108, %v4108
      %v4141 = vpack.c.bf16 %v4109, %v4109
      %v4142 = vpack.c.bf16 %v4110, %v4110
      %v4143 = vpack.c.bf16 %v4111, %v4111
      %v4144 = vpack.c.bf16 %v4112, %v4112
      %v4145 = vpack.c.bf16 %v4113, %v4113
      %v4146 = vpack.c.bf16 %v4114, %v4114
      %v4147 = vpack.c.bf16 %v4115, %v4115
      %v4148 = vpack.c.bf16 %v4116, %v4116
      %v4181 = vunpack.c.l.b16 %v4117
      %v4182 = vunpack.c.l.b16 %v4118
      %v4183 = vunpack.c.l.b16 %v4119
      %v4184 = vunpack.c.l.b16 %v4120
      %v4185 = vunpack.c.l.b16 %v4121
      %v4186 = vunpack.c.l.b16 %v4122
      %v4187 = vunpack.c.l.b16 %v4123
      %v4188 = vunpack.c.l.b16 %v4124
      %v4189 = vunpack.c.l.b16 %v4125
      %v4190 = vunpack.c.l.b16 %v4126
      %v4191 = vunpack.c.l.b16 %v4127
      %v4192 = vunpack.c.l.b16 %v4128
      %v4193 = vunpack.c.l.b16 %v4129
      %v4194 = vunpack.c.l.b16 %v4130
      %v4195 = vunpack.c.l.b16 %v4131
      %v4196 = vunpack.c.l.b16 %v4132
      %v4197 = vunpack.c.l.b16 %v4133
      %v4198 = vunpack.c.l.b16 %v4134
      %v4199 = vunpack.c.l.b16 %v4135
      %v4200 = vunpack.c.l.b16 %v4136
      %v4201 = vunpack.c.l.b16 %v4137
      %v4202 = vunpack.c.l.b16 %v4138
      %v4203 = vunpack.c.l.b16 %v4139
      %v4204 = vunpack.c.l.b16 %v4140
      %v4205 = vunpack.c.l.b16 %v4141
      %v4206 = vunpack.c.l.b16 %v4142
      %v4207 = vunpack.c.l.b16 %v4143
      %v4208 = vunpack.c.l.b16 %v4144
      %v4209 = vunpack.c.l.b16 %v4145
      %v4210 = vunpack.c.l.b16 %v4146
      %v4211 = vunpack.c.l.b16 %v4147
      %v4212 = vunpack.c.l.b16 %v4148
      %v4213 = vpack.c.b16 %v4182, %v4181
      %v4214 = vpack.c.b16 %v4184, %v4183
      %v4215 = vpack.c.b16 %v4186, %v4185
      %v4216 = vpack.c.b16 %v4188, %v4187
      %v4217 = vpack.c.b16 %v4190, %v4189
      %v4218 = vpack.c.b16 %v4192, %v4191
      %v4219 = vpack.c.b16 %v4194, %v4193
      %v4220 = vpack.c.b16 %v4196, %v4195
      %v4221 = vpack.c.b16 %v4198, %v4197
      %v4222 = vpack.c.b16 %v4200, %v4199
      %v4223 = vpack.c.b16 %v4202, %v4201
      %v4224 = vpack.c.b16 %v4204, %v4203
      %v4225 = vpack.c.b16 %v4206, %v4205
      %v4226 = vpack.c.b16 %v4208, %v4207
      %v4227 = vpack.c.b16 %v4210, %v4209
      %v4228 = vpack.c.b16 %v4212, %v4211
      %v4230 = vshrl.u32 %v4213, 16
      %v4232 = vrot.slane %v4230, 7
      %v4233 = vshll.u32 %v4213, 16
      %v4235 = vor.u32 %v4232, %v4233
      %v4237 = vshrl.u32 %v4214, 16
      %v4239 = vrot.slane %v4237, 7
      %v4240 = vshll.u32 %v4214, 16
      %v4242 = vor.u32 %v4239, %v4240
      %v4243 = vsel %vm1239, %v4232, %v4242
      %v4245 = vshrl.u32 %v4215, 16
      %v4247 = vrot.slane %v4245, 7
      %v4248 = vshll.u32 %v4215, 16
      %v4250 = vor.u32 %v4247, %v4248
      %v4251 = vsel %vm1239, %v4239, %v4250
      %v4253 = vshrl.u32 %v4216, 16
      %v4255 = vrot.slane %v4253, 7
      %v4256 = vshll.u32 %v4216, 16
      %v4258 = vor.u32 %v4255, %v4256
      %v4259 = vsel %vm1239, %v4247, %v4258
      %v4261 = vshrl.u32 %v4217, 16
      %v4263 = vrot.slane %v4261, 7
      %v4264 = vshll.u32 %v4217, 16
      %v4266 = vor.u32 %v4263, %v4264
      %v4267 = vsel %vm1239, %v4255, %v4266
      %v4269 = vshrl.u32 %v4218, 16
      %v4271 = vrot.slane %v4269, 7
      %v4272 = vshll.u32 %v4218, 16
      %v4274 = vor.u32 %v4271, %v4272
      %v4275 = vsel %vm1239, %v4263, %v4274
      %v4277 = vshrl.u32 %v4219, 16
      %v4279 = vrot.slane %v4277, 7
      %v4280 = vshll.u32 %v4219, 16
      %v4282 = vor.u32 %v4279, %v4280
      %v4283 = vsel %vm1239, %v4271, %v4282
      %v4285 = vshrl.u32 %v4220, 16
      %v4287 = vrot.slane %v4285, 7
      %v4288 = vshll.u32 %v4220, 16
      %v4290 = vor.u32 %v4287, %v4288
      %v4291 = vsel %vm1239, %v4279, %v4290
      %v4293 = vshrl.u32 %v4221, 16
      %v4295 = vrot.slane %v4293, 7
      %v4296 = vshll.u32 %v4221, 16
      %v4298 = vor.u32 %v4295, %v4296
      %v4299 = vsel %vm1239, %v4287, %v4298
      %v4301 = vshrl.u32 %v4222, 16
      %v4303 = vrot.slane %v4301, 7
      %v4304 = vshll.u32 %v4222, 16
      %v4306 = vor.u32 %v4303, %v4304
      %v4307 = vsel %vm1239, %v4295, %v4306
      %v4309 = vshrl.u32 %v4223, 16
      %v4311 = vrot.slane %v4309, 7
      %v4312 = vshll.u32 %v4223, 16
      %v4314 = vor.u32 %v4311, %v4312
      %v4315 = vsel %vm1239, %v4303, %v4314
      %v4317 = vshrl.u32 %v4224, 16
      %v4319 = vrot.slane %v4317, 7
      %v4320 = vshll.u32 %v4224, 16
      %v4322 = vor.u32 %v4319, %v4320
      %v4323 = vsel %vm1239, %v4311, %v4322
      %v4325 = vshrl.u32 %v4225, 16
      %v4327 = vrot.slane %v4325, 7
      %v4328 = vshll.u32 %v4225, 16
      %v4330 = vor.u32 %v4327, %v4328
      %v4331 = vsel %vm1239, %v4319, %v4330
      %v4333 = vshrl.u32 %v4226, 16
      %v4335 = vrot.slane %v4333, 7
      %v4336 = vshll.u32 %v4226, 16
      %v4338 = vor.u32 %v4335, %v4336
      %v4339 = vsel %vm1239, %v4327, %v4338
      %v4341 = vshrl.u32 %v4227, 16
      %v4343 = vrot.slane %v4341, 7
      %v4344 = vshll.u32 %v4227, 16
      %v4346 = vor.u32 %v4343, %v4344
      %v4347 = vsel %vm1239, %v4335, %v4346
      %v4349 = vshrl.u32 %v4228, 16
      %v4351 = vrot.slane %v4349, 7
      %v4352 = vshll.u32 %v4228, 16
      %v4354 = vor.u32 %v4351, %v4352
      %v4355 = vsel %vm1239, %v4343, %v4354
      %v4372 = vsel %vm1384, 0, %v4235
      %v4373 = vsel %vm1568, %v4372, 0
      %v4374 = vsel %vm1575, %v4243, 0
      %v4375 = vsel %vm1582, %v4251, 0
      %v4376 = vsel %vm1589, %v4259, 0
      %v4377 = vsel %vm1596, %v4267, 0
      %v4378 = vsel %vm1603, %v4275, 0
      %v4379 = vsel %vm1610, %v4283, 0
      %v4380 = vsel %vm1617, %v4291, 0
      %v4381 = vsel %vm1624, %v4299, 0
      %v4382 = vsel %vm1631, %v4307, 0
      %v4383 = vsel %vm1638, %v4315, 0
      %v4384 = vsel %vm1645, %v4323, 0
      %v4385 = vsel %vm1652, %v4331, 0
      %v4386 = vsel %vm1659, %v4339, 0
      %v4387 = vsel %vm1666, %v4347, 0
      %v4388 = vsel %vm1673, %v4355, 0
      %v4389 = vrot.slane %v4233, 1
      %v4390 = vor.u32 %v4230, %v4389
      %v4391 = vrot.slane %v4240, 1
      %v4392 = vsel %vm1690, %v4390, %v4391
      %v4393 = vor.u32 %v4237, %v4391
      %v4394 = vrot.slane %v4248, 1
      %v4395 = vsel %vm1690, %v4393, %v4394
      %v4396 = vor.u32 %v4245, %v4394
      %v4397 = vrot.slane %v4256, 1
      %v4398 = vsel %vm1690, %v4396, %v4397
      %v4399 = vor.u32 %v4253, %v4397
      %v4400 = vrot.slane %v4264, 1
      %v4401 = vsel %vm1690, %v4399, %v4400
      %v4402 = vor.u32 %v4261, %v4400
      %v4403 = vrot.slane %v4272, 1
      %v4404 = vsel %vm1690, %v4402, %v4403
      %v4405 = vor.u32 %v4269, %v4403
      %v4406 = vrot.slane %v4280, 1
      %v4407 = vsel %vm1690, %v4405, %v4406
      %v4408 = vor.u32 %v4277, %v4406
      %v4409 = vrot.slane %v4288, 1
      %v4410 = vsel %vm1690, %v4408, %v4409
      %v4411 = vor.u32 %v4285, %v4409
      %v4412 = vrot.slane %v4296, 1
      %v4413 = vsel %vm1690, %v4411, %v4412
      %v4414 = vor.u32 %v4293, %v4412
      %v4415 = vrot.slane %v4304, 1
      %v4416 = vsel %vm1690, %v4414, %v4415
      %v4417 = vor.u32 %v4301, %v4415
      %v4418 = vrot.slane %v4312, 1
      %v4419 = vsel %vm1690, %v4417, %v4418
      %v4420 = vor.u32 %v4309, %v4418
      %v4421 = vrot.slane %v4320, 1
      %v4422 = vsel %vm1690, %v4420, %v4421
      %v4423 = vor.u32 %v4317, %v4421
      %v4424 = vrot.slane %v4328, 1
      %v4425 = vsel %vm1690, %v4423, %v4424
      %v4426 = vor.u32 %v4325, %v4424
      %v4427 = vrot.slane %v4336, 1
      %v4428 = vsel %vm1690, %v4426, %v4427
      %v4429 = vor.u32 %v4333, %v4427
      %v4430 = vrot.slane %v4344, 1
      %v4431 = vsel %vm1690, %v4429, %v4430
      %v4432 = vor.u32 %v4341, %v4430
      %v4433 = vrot.slane %v4352, 1
      %v4434 = vsel %vm1690, %v4432, %v4433
      %v4435 = vor.u32 %v4349, %v4433
      %v4452 = vsel %vm1755, %v4435, 0
      %v4453 = vsel %vm1939, %v4392, 0
      %v4454 = vsel %vm1946, %v4395, 0
      %v4455 = vsel %vm1953, %v4398, 0
      %v4456 = vsel %vm1960, %v4401, 0
      %v4457 = vsel %vm1967, %v4404, 0
      %v4458 = vsel %vm1974, %v4407, 0
      %v4459 = vsel %vm1981, %v4410, 0
      %v4460 = vsel %vm1988, %v4413, 0
      %v4461 = vsel %vm1995, %v4416, 0
      %v4462 = vsel %vm2002, %v4419, 0
      %v4463 = vsel %vm2009, %v4422, 0
      %v4464 = vsel %vm2016, %v4425, 0
      %v4465 = vsel %vm2023, %v4428, 0
      %v4466 = vsel %vm2030, %v4431, 0
      %v4467 = vsel %vm2037, %v4434, 0
      %v4468 = vsel %vm2044, %v4452, 0
      %4469 = vrot.lane.b32.xlu0 %v4213, 32
      %v4470 = vpop.permute.xlu0 %4469
      %4471 = vrot.lane.b32.xlu0 %v4214, 32
      %v4472 = vpop.permute.xlu0 %4471
      %4473 = vrot.lane.b32.xlu0 %v4215, 32
      %v4474 = vpop.permute.xlu0 %4473
      %4475 = vrot.lane.b32.xlu0 %v4216, 32
      %v4476 = vpop.permute.xlu0 %4475
      %4477 = vrot.lane.b32.xlu0 %v4217, 32
      %v4478 = vpop.permute.xlu0 %4477
      %4479 = vrot.lane.b32.xlu0 %v4218, 32
      %v4480 = vpop.permute.xlu0 %4479
      %4481 = vrot.lane.b32.xlu0 %v4219, 32
      %v4482 = vpop.permute.xlu0 %4481
      %4483 = vrot.lane.b32.xlu0 %v4220, 32
      %v4484 = vpop.permute.xlu0 %4483
      %4485 = vrot.lane.b32.xlu0 %v4221, 32
      %v4486 = vpop.permute.xlu0 %4485
      %4487 = vrot.lane.b32.xlu0 %v4222, 32
      %v4488 = vpop.permute.xlu0 %4487
      %4489 = vrot.lane.b32.xlu0 %v4223, 32
      %v4490 = vpop.permute.xlu0 %4489
      %4491 = vrot.lane.b32.xlu0 %v4224, 32
      %v4492 = vpop.permute.xlu0 %4491
      %4493 = vrot.lane.b32.xlu0 %v4225, 32
      %v4494 = vpop.permute.xlu0 %4493
      %4495 = vrot.lane.b32.xlu0 %v4226, 32
      %v4496 = vpop.permute.xlu0 %4495
      %4497 = vrot.lane.b32.xlu0 %v4227, 32
      %v4498 = vpop.permute.xlu0 %4497
      %4514 = vrot.lane.b32.xlu0 %v4453, 64
      %v4515 = vpop.permute.xlu0 %4514
      %4516 = vrot.lane.b32.xlu0 %v4454, 64
      %v4517 = vpop.permute.xlu0 %4516
      %4518 = vrot.lane.b32.xlu0 %v4455, 64
      %v4519 = vpop.permute.xlu0 %4518
      %4520 = vrot.lane.b32.xlu0 %v4456, 64
      %v4521 = vpop.permute.xlu0 %4520
      %4522 = vrot.lane.b32.xlu0 %v4457, 64
      %v4523 = vpop.permute.xlu0 %4522
      %4524 = vrot.lane.b32.xlu0 %v4458, 64
      %v4525 = vpop.permute.xlu0 %4524
      %4526 = vrot.lane.b32.xlu0 %v4459, 64
      %v4527 = vpop.permute.xlu0 %4526
      %4528 = vrot.lane.b32.xlu0 %v4460, 64
      %v4529 = vpop.permute.xlu0 %4528
      %4530 = vrot.lane.b32.xlu0 %v4461, 64
      %v4531 = vpop.permute.xlu0 %4530
      %4532 = vrot.lane.b32.xlu0 %v4462, 64
      %v4533 = vpop.permute.xlu0 %4532
      %4534 = vrot.lane.b32.xlu0 %v4463, 64
      %v4535 = vpop.permute.xlu0 %4534
      %4536 = vrot.lane.b32.xlu0 %v4464, 64
      %v4537 = vpop.permute.xlu0 %4536
      %4538 = vrot.lane.b32.xlu0 %v4465, 64
      %v4539 = vpop.permute.xlu0 %4538
      %4540 = vrot.lane.b32.xlu0 %v4466, 64
      %v4541 = vpop.permute.xlu0 %4540
      %4542 = vrot.lane.b32.xlu0 %v4467, 64
      %v4543 = vpop.permute.xlu0 %4542
      %4560 = vrot.lane.b32.xlu0 %v4373, 96
      %v4561 = vpop.permute.xlu0 %4560
      %4562 = vrot.lane.b32.xlu0 %v4374, 96
      %v4563 = vpop.permute.xlu0 %4562
      %4564 = vrot.lane.b32.xlu0 %v4375, 96
      %v4565 = vpop.permute.xlu0 %4564
      %4566 = vrot.lane.b32.xlu0 %v4376, 96
      %v4567 = vpop.permute.xlu0 %4566
      %4568 = vrot.lane.b32.xlu0 %v4377, 96
      %v4569 = vpop.permute.xlu0 %4568
      %4570 = vrot.lane.b32.xlu0 %v4378, 96
      %v4571 = vpop.permute.xlu0 %4570
      %4572 = vrot.lane.b32.xlu0 %v4379, 96
      %v4573 = vpop.permute.xlu0 %4572
      %4574 = vrot.lane.b32.xlu0 %v4380, 96
      %v4575 = vpop.permute.xlu0 %4574
      %4576 = vrot.lane.b32.xlu0 %v4381, 96
      %v4577 = vpop.permute.xlu0 %4576
      %4578 = vrot.lane.b32.xlu0 %v4382, 96
      %v4579 = vpop.permute.xlu0 %4578
      %4580 = vrot.lane.b32.xlu0 %v4383, 96
      %v4581 = vpop.permute.xlu0 %4580
      %4582 = vrot.lane.b32.xlu0 %v4384, 96
      %v4583 = vpop.permute.xlu0 %4582
      %4584 = vrot.lane.b32.xlu0 %v4385, 96
      %v4585 = vpop.permute.xlu0 %4584
      %4586 = vrot.lane.b32.xlu0 %v4386, 96
      %v4587 = vpop.permute.xlu0 %4586
      %4588 = vrot.lane.b32.xlu0 %v4387, 96
      %v4589 = vpop.permute.xlu0 %4588
      %4590 = vrot.lane.b32.xlu0 %v4388, 96
      %v4591 = vpop.permute.xlu0 %4590
      %4593 = vrot.lane.b32.xlu0 %v4453, 32
      %v4594 = vpop.permute.xlu0 %4593
      %4595 = vrot.lane.b32.xlu0 %v4454, 32
      %v4596 = vpop.permute.xlu0 %4595
      %4597 = vrot.lane.b32.xlu0 %v4455, 32
      %v4598 = vpop.permute.xlu0 %4597
      %4599 = vrot.lane.b32.xlu0 %v4456, 32
      %v4600 = vpop.permute.xlu0 %4599
      %4601 = vrot.lane.b32.xlu0 %v4457, 32
      %v4602 = vpop.permute.xlu0 %4601
      %4603 = vrot.lane.b32.xlu0 %v4458, 32
      %v4604 = vpop.permute.xlu0 %4603
      %4605 = vrot.lane.b32.xlu0 %v4459, 32
      %v4606 = vpop.permute.xlu0 %4605
      %4607 = vrot.lane.b32.xlu0 %v4460, 32
      %v4608 = vpop.permute.xlu0 %4607
      %4609 = vrot.lane.b32.xlu0 %v4461, 32
      %v4610 = vpop.permute.xlu0 %4609
      %4611 = vrot.lane.b32.xlu0 %v4462, 32
      %v4612 = vpop.permute.xlu0 %4611
      %4613 = vrot.lane.b32.xlu0 %v4463, 32
      %v4614 = vpop.permute.xlu0 %4613
      %4615 = vrot.lane.b32.xlu0 %v4464, 32
      %v4616 = vpop.permute.xlu0 %4615
      %4617 = vrot.lane.b32.xlu0 %v4465, 32
      %v4618 = vpop.permute.xlu0 %4617
      %4619 = vrot.lane.b32.xlu0 %v4466, 32
      %v4620 = vpop.permute.xlu0 %4619
      %4621 = vrot.lane.b32.xlu0 %v4467, 32
      %v4622 = vpop.permute.xlu0 %4621
      %4623 = vrot.lane.b32.xlu0 %v4468, 32
      %v4624 = vpop.permute.xlu0 %4623
      %4625 = vrot.lane.b32.xlu0 %v4374, 64
      %v4626 = vpop.permute.xlu0 %4625
      %4627 = vrot.lane.b32.xlu0 %v4375, 64
      %v4628 = vpop.permute.xlu0 %4627
      %4629 = vrot.lane.b32.xlu0 %v4376, 64
      %v4630 = vpop.permute.xlu0 %4629
      %4631 = vrot.lane.b32.xlu0 %v4377, 64
      %v4632 = vpop.permute.xlu0 %4631
      %4633 = vrot.lane.b32.xlu0 %v4378, 64
      %v4634 = vpop.permute.xlu0 %4633
      %4635 = vrot.lane.b32.xlu0 %v4379, 64
      %v4636 = vpop.permute.xlu0 %4635
      %4637 = vrot.lane.b32.xlu0 %v4380, 64
      %v4638 = vpop.permute.xlu0 %4637
      %4639 = vrot.lane.b32.xlu0 %v4381, 64
      %v4640 = vpop.permute.xlu0 %4639
      %4641 = vrot.lane.b32.xlu0 %v4382, 64
      %v4642 = vpop.permute.xlu0 %4641
      %4643 = vrot.lane.b32.xlu0 %v4383, 64
      %v4644 = vpop.permute.xlu0 %4643
      %4645 = vrot.lane.b32.xlu0 %v4384, 64
      %v4646 = vpop.permute.xlu0 %4645
      %4647 = vrot.lane.b32.xlu0 %v4385, 64
      %v4648 = vpop.permute.xlu0 %4647
      %4649 = vrot.lane.b32.xlu0 %v4386, 64
      %v4650 = vpop.permute.xlu0 %4649
      %4651 = vrot.lane.b32.xlu0 %v4387, 64
      %v4652 = vpop.permute.xlu0 %4651
      %4653 = vrot.lane.b32.xlu0 %v4388, 64
      %v4654 = vpop.permute.xlu0 %4653
      %4655 = vrot.lane.b32.xlu0 %v4214, 96
      %v4656 = vpop.permute.xlu0 %4655
      %4657 = vrot.lane.b32.xlu0 %v4215, 96
      %v4658 = vpop.permute.xlu0 %4657
      %4659 = vrot.lane.b32.xlu0 %v4216, 96
      %v4660 = vpop.permute.xlu0 %4659
      %4661 = vrot.lane.b32.xlu0 %v4217, 96
      %v4662 = vpop.permute.xlu0 %4661
      %4663 = vrot.lane.b32.xlu0 %v4218, 96
      %v4664 = vpop.permute.xlu0 %4663
      %4665 = vrot.lane.b32.xlu0 %v4219, 96
      %v4666 = vpop.permute.xlu0 %4665
      %4667 = vrot.lane.b32.xlu0 %v4220, 96
      %v4668 = vpop.permute.xlu0 %4667
      %4669 = vrot.lane.b32.xlu0 %v4221, 96
      %v4670 = vpop.permute.xlu0 %4669
      %4671 = vrot.lane.b32.xlu0 %v4222, 96
      %v4672 = vpop.permute.xlu0 %4671
      %4673 = vrot.lane.b32.xlu0 %v4223, 96
      %v4674 = vpop.permute.xlu0 %4673
      %4675 = vrot.lane.b32.xlu0 %v4224, 96
      %v4676 = vpop.permute.xlu0 %4675
      %4677 = vrot.lane.b32.xlu0 %v4225, 96
      %v4678 = vpop.permute.xlu0 %4677
      %4679 = vrot.lane.b32.xlu0 %v4226, 96
      %v4680 = vpop.permute.xlu0 %4679
      %4681 = vrot.lane.b32.xlu0 %v4227, 96
      %v4682 = vpop.permute.xlu0 %4681
      %4683 = vrot.lane.b32.xlu0 %v4228, 96
      %v4684 = vpop.permute.xlu0 %4683
      %v4687 = vsel %vm2597, %v4373, %v4470
      %v4690 = vsel %vm2597, %v4374, %v4472
      %v4693 = vsel %vm2597, %v4375, %v4474
      %v4696 = vsel %vm2597, %v4376, %v4476
      %v4699 = vsel %vm2597, %v4377, %v4478
      %v4702 = vsel %vm2597, %v4378, %v4480
      %v4705 = vsel %vm2597, %v4379, %v4482
      %v4708 = vsel %vm2597, %v4380, %v4484
      %v4711 = vsel %vm2597, %v4381, %v4486
      %v4714 = vsel %vm2597, %v4382, %v4488
      %v4717 = vsel %vm2597, %v4383, %v4490
      %v4720 = vsel %vm2597, %v4384, %v4492
      %v4723 = vsel %vm2597, %v4385, %v4494
      %v4726 = vsel %vm2597, %v4386, %v4496
      %v4729 = vsel %vm2597, %v4387, %v4498
      %v4731 = vsel %vm3430, %v4687, %v4515
      %v4733 = vsel %vm3430, %v4690, %v4517
      %v4735 = vsel %vm3430, %v4693, %v4519
      %v4737 = vsel %vm3430, %v4696, %v4521
      %v4739 = vsel %vm3430, %v4699, %v4523
      %v4741 = vsel %vm3430, %v4702, %v4525
      %v4743 = vsel %vm3430, %v4705, %v4527
      %v4745 = vsel %vm3430, %v4708, %v4529
      %v4747 = vsel %vm3430, %v4711, %v4531
      %v4749 = vsel %vm3430, %v4714, %v4533
      %v4751 = vsel %vm3430, %v4717, %v4535
      %v4753 = vsel %vm3430, %v4720, %v4537
      %v4755 = vsel %vm3430, %v4723, %v4539
      %v4757 = vsel %vm3430, %v4726, %v4541
      %v4759 = vsel %vm3430, %v4729, %v4543
      %v4761 = vsel %vm3463, %v3432, %v4561
      %v4764 = vsel %vm3463, %v4731, %v4563
      %v4767 = vsel %vm3463, %v4733, %v4565
      %v4770 = vsel %vm3463, %v4735, %v4567
      %v4773 = vsel %vm3463, %v4737, %v4569
      %v4776 = vsel %vm3463, %v4739, %v4571
      %v4779 = vsel %vm3463, %v4741, %v4573
      %v4782 = vsel %vm3463, %v4743, %v4575
      %v4785 = vsel %vm3463, %v4745, %v4577
      %v4788 = vsel %vm3463, %v4747, %v4579
      %v4791 = vsel %vm3463, %v4749, %v4581
      %v4794 = vsel %vm3463, %v4751, %v4583
      %v4797 = vsel %vm3463, %v4753, %v4585
      %v4800 = vsel %vm3463, %v4755, %v4587
      %v4803 = vsel %vm3463, %v4757, %v4589
      %v4806 = vsel %vm3463, %v4759, %v4591
      %v4809 = vsel %vm2597, %v4213, %v4594
      %v4811 = vsel %vm2597, %v4214, %v4596
      %v4813 = vsel %vm2597, %v4215, %v4598
      %v4815 = vsel %vm2597, %v4216, %v4600
      %v4817 = vsel %vm2597, %v4217, %v4602
      %v4819 = vsel %vm2597, %v4218, %v4604
      %v4821 = vsel %vm2597, %v4219, %v4606
      %v4823 = vsel %vm2597, %v4220, %v4608
      %v4825 = vsel %vm2597, %v4221, %v4610
      %v4827 = vsel %vm2597, %v4222, %v4612
      %v4829 = vsel %vm2597, %v4223, %v4614
      %v4831 = vsel %vm2597, %v4224, %v4616
      %v4833 = vsel %vm2597, %v4225, %v4618
      %v4835 = vsel %vm2597, %v4226, %v4620
      %v4837 = vsel %vm2597, %v4227, %v4622
      %v4839 = vsel %vm2597, %v4228, %v4624
      %v4841 = vsel %vm3430, %v4809, %v4626
      %v4843 = vsel %vm3430, %v4811, %v4628
      %v4845 = vsel %vm3430, %v4813, %v4630
      %v4847 = vsel %vm3430, %v4815, %v4632
      %v4849 = vsel %vm3430, %v4817, %v4634
      %v4851 = vsel %vm3430, %v4819, %v4636
      %v4853 = vsel %vm3430, %v4821, %v4638
      %v4855 = vsel %vm3430, %v4823, %v4640
      %v4857 = vsel %vm3430, %v4825, %v4642
      %v4859 = vsel %vm3430, %v4827, %v4644
      %v4861 = vsel %vm3430, %v4829, %v4646
      %v4863 = vsel %vm3430, %v4831, %v4648
      %v4865 = vsel %vm3430, %v4833, %v4650
      %v4867 = vsel %vm3430, %v4835, %v4652
      %v4869 = vsel %vm3430, %v4837, %v4654
      %v4870 = vsel %vm3430, %v4839, %v3210
      %v4872 = vsel %vm3463, %v4841, %v4656
      %v4875 = vsel %vm3463, %v4843, %v4658
      %v4878 = vsel %vm3463, %v4845, %v4660
      %v4881 = vsel %vm3463, %v4847, %v4662
      %v4884 = vsel %vm3463, %v4849, %v4664
      %v4887 = vsel %vm3463, %v4851, %v4666
      %v4890 = vsel %vm3463, %v4853, %v4668
      %v4893 = vsel %vm3463, %v4855, %v4670
      %v4896 = vsel %vm3463, %v4857, %v4672
      %v4899 = vsel %vm3463, %v4859, %v4674
      %v4902 = vsel %vm3463, %v4861, %v4676
      %v4905 = vsel %vm3463, %v4863, %v4678
      %v4908 = vsel %vm3463, %v4865, %v4680
      %v4911 = vsel %vm3463, %v4867, %v4682
      %v4914 = vsel %vm3463, %v4869, %v4684
      %v4916 = vsel %vm3463, %v4870, %v3383
      %v4918 = vld [vmem:[%s5] sm:$0xf]
      %v4919 = vld [vmem:[%s5 + $0x4] sm:$0xf]
      %v4920 = vld [vmem:[%s5 + $0x8] sm:$0xf]
      %v4921 = vld [vmem:[%s5 + $0xc] sm:$0xf]
      %v4922 = vld [vmem:[%s5 + $0x10] sm:$0xf]
      %v4923 = vld [vmem:[%s5 + $0x14] sm:$0xf]
      %v4924 = vld [vmem:[%s5 + $0x18] sm:$0xf]
      %v4925 = vld [vmem:[%s5 + $0x1c] sm:$0xf]
      %v4926 = vld [vmem:[%s5 + $0x20] sm:$0xf]
      %v4927 = vld [vmem:[%s5 + $0x24] sm:$0xf]
      %v4928 = vld [vmem:[%s5 + $0x28] sm:$0xf]
      %v4929 = vld [vmem:[%s5 + $0x2c] sm:$0xf]
      %v4930 = vld [vmem:[%s5 + $0x30] sm:$0xf]
      %v4931 = vld [vmem:[%s5 + $0x34] sm:$0xf]
      %v4932 = vld [vmem:[%s5 + $0x38] sm:$0xf]
      %v4933 = vld [vmem:[%s5 + $0x3c] sm:$0xf]
      %v4934 = vld [vmem:[%s5 + $0x40] sm:$0xf]
      %v4935 = vld [vmem:[%s5 + $0x44] sm:$0xf]
      %v4936 = vld [vmem:[%s5 + $0x48] sm:$0xf]
      %v4937 = vld [vmem:[%s5 + $0x4c] sm:$0xf]
      %v4938 = vld [vmem:[%s5 + $0x50] sm:$0xf]
      %v4939 = vld [vmem:[%s5 + $0x54] sm:$0xf]
      %v4940 = vld [vmem:[%s5 + $0x58] sm:$0xf]
      %v4941 = vld [vmem:[%s5 + $0x5c] sm:$0xf]
      %v4942 = vld [vmem:[%s5 + $0x60] sm:$0xf]
      %v4943 = vld [vmem:[%s5 + $0x64] sm:$0xf]
      %v4944 = vld [vmem:[%s5 + $0x68] sm:$0xf]
      %v4945 = vld [vmem:[%s5 + $0x6c] sm:$0xf]
      %v4946 = vld [vmem:[%s5 + $0x70] sm:$0xf]
      %v4947 = vld [vmem:[%s5 + $0x74] sm:$0xf]
      %v4948 = vld [vmem:[%s5 + $0x78] sm:$0xf]
      %v4949 = vld [vmem:[%s5 + $0x7c] sm:$0xf]
      %v4950 = vld [vmem:[%s5 + $0x80] sm:$0xf]
      %v4951 = vld [vmem:[%s5 + $0x84] sm:$0xf]
      %v4952 = vld [vmem:[%s5 + $0x88] sm:$0xf]
      %v4953 = vld [vmem:[%s5 + $0x8c] sm:$0xf]
      %v4954 = vld [vmem:[%s6] sm:$0x1]
      %v4956 = vperm.slane %v4954, 0
      %v4994 = vunpack.c.l.b16 %v4918
      %v4995 = vunpack.c.l.b16 %v4919
      %v4996 = vunpack.c.l.b16 %v4920
      %v4997 = vunpack.c.l.b16 %v4921
      %v4998 = vunpack.c.l.b16 %v4922
      %v4999 = vunpack.c.l.b16 %v4923
      %v5000 = vunpack.c.l.b16 %v4924
      %v5001 = vunpack.c.l.b16 %v4925
      %v5002 = vunpack.c.l.b16 %v4926
      %v5003 = vunpack.c.l.b16 %v4927
      %v5004 = vunpack.c.l.b16 %v4928
      %v5005 = vunpack.c.l.b16 %v4929
      %v5006 = vunpack.c.l.b16 %v4930
      %v5007 = vunpack.c.l.b16 %v4931
      %v5008 = vunpack.c.l.b16 %v4932
      %v5009 = vunpack.c.l.b16 %v4933
      %v5010 = vunpack.c.l.b16 %v4934
      %v5011 = vunpack.c.l.b16 %v4935
      %v5012 = vunpack.c.l.b16 %v4936
      %v5013 = vunpack.c.l.b16 %v4937
      %v5014 = vunpack.c.l.b16 %v4938
      %v5015 = vunpack.c.l.b16 %v4939
      %v5016 = vunpack.c.l.b16 %v4940
      %v5017 = vunpack.c.l.b16 %v4941
      %v5018 = vunpack.c.l.b16 %v4942
      %v5019 = vunpack.c.l.b16 %v4943
      %v5020 = vunpack.c.l.b16 %v4944
      %v5021 = vunpack.c.l.b16 %v4945
      %v5022 = vunpack.c.l.b16 %v4946
      %v5023 = vunpack.c.l.b16 %v4947
      %v5024 = vunpack.c.l.b16 %v4948
      %v5025 = vunpack.c.l.b16 %v4949
      %v5026 = vunpack.c.l.b16 %v4950
      %v5027 = vunpack.c.l.b16 %v4951
      %v5028 = vunpack.c.l.b16 %v4952
      %v5029 = vunpack.c.l.b16 %v4953
      %v5030 = vpack.c.b16 %v4995, %v4994
      %v5031 = vpack.c.b16 %v4997, %v4996
      %v5032 = vpack.c.b16 %v4999, %v4998
      %v5033 = vpack.c.b16 %v5001, %v5000
      %v5034 = vpack.c.b16 %v5003, %v5002
      %v5035 = vpack.c.b16 %v5005, %v5004
      %v5036 = vpack.c.b16 %v5007, %v5006
      %v5037 = vpack.c.b16 %v5009, %v5008
      %v5038 = vpack.c.b16 %v5011, %v5010
      %v5039 = vpack.c.b16 %v5013, %v5012
      %v5040 = vpack.c.b16 %v5015, %v5014
      %v5041 = vpack.c.b16 %v5017, %v5016
      %v5042 = vpack.c.b16 %v5019, %v5018
      %v5043 = vpack.c.b16 %v5021, %v5020
      %v5044 = vpack.c.b16 %v5023, %v5022
      %v5045 = vpack.c.b16 %v5025, %v5024
      %v5046 = vpack.c.b16 %v5027, %v5026
      %v5047 = vpack.c.b16 %v5029, %v5028
      %v5067 = vsel %vm2597, %v4454, 0
      %v5070 = vsel %vm2597, %v4455, 0
      %v5073 = vsel %vm2597, %v4456, 0
      %v5076 = vsel %vm2597, %v4457, 0
      %v5079 = vsel %vm2597, %v4458, 0
      %v5082 = vsel %vm2597, %v4459, 0
      %v5085 = vsel %vm2597, %v4460, 0
      %v5088 = vsel %vm2597, %v4461, 0
      %v5091 = vsel %vm2597, %v4462, 0
      %v5094 = vsel %vm2597, %v4463, 0
      %v5097 = vsel %vm2597, %v4464, 0
      %v5100 = vsel %vm2597, %v4465, 0
      %v5103 = vsel %vm2597, %v4466, 0
      %v5106 = vsel %vm2597, %v4467, 0
      %v5109 = vsel %vm2597, %v4468, 0
      %5111 = vmatpush.bf16.msra.mxu0 %v5037
      %5112 = vmatpush.bf16.msra.mxu0 %v5036
      %5113 = vmatpush.bf16.msra.mxu0 %v5035
      %5114 = vmatpush.bf16.msra.mxu0 %v5034
      %5115 = vmatpush.bf16.msra.mxu0 %v5033
      %5116 = vmatpush.bf16.msra.mxu0 %v5032
      %5117 = vmatpush.bf16.msra.mxu0 %v5031
      %5118 = vmatpush.bf16.msra.mxu0 %v5030
      %5119 = vmatmul.bf16.gmra.mxu0 %v4761
      %v5120 = vpop.f32.mrf.mxu0
      %v5121 = vadd.f32 %v4956, %v5120
      %v5122 = vpop.f32.mrf.mxu0
      %v5123 = vadd.f32 %v4956, %v5122
      %5124 = vmatmul.bf16.gmra.mxu0 %v4764
      %v5125 = vpop.f32.mrf.mxu0
      %v5126 = vadd.f32 %v4956, %v5125
      %v5127 = vpop.f32.mrf.mxu0
      %v5128 = vadd.f32 %v4956, %v5127
      %5129 = vmatmul.bf16.gmra.mxu0 %v4767
      %v5130 = vpop.f32.mrf.mxu0
      %v5131 = vadd.f32 %v4956, %v5130
      %v5132 = vpop.f32.mrf.mxu0
      %v5133 = vadd.f32 %v4956, %v5132
      %5134 = vmatmul.bf16.gmra.mxu0 %v4770
      %v5135 = vpop.f32.mrf.mxu0
      %v5136 = vadd.f32 %v4956, %v5135
      %v5137 = vpop.f32.mrf.mxu0
      %v5138 = vadd.f32 %v4956, %v5137
      %5139 = vmatmul.bf16.gmra.mxu0 %v4773
      %v5140 = vpop.f32.mrf.mxu0
      %v5141 = vadd.f32 %v4956, %v5140
      %v5142 = vpop.f32.mrf.mxu0
      %v5143 = vadd.f32 %v4956, %v5142
      %5144 = vmatmul.bf16.gmra.mxu0 %v4776
      %v5145 = vpop.f32.mrf.mxu0
      %v5146 = vadd.f32 %v4956, %v5145
      %v5147 = vpop.f32.mrf.mxu0
      %v5148 = vadd.f32 %v4956, %v5147
      %5149 = vmatmul.bf16.gmra.mxu0 %v4779
      %v5150 = vpop.f32.mrf.mxu0
      %v5151 = vadd.f32 %v4956, %v5150
      %v5152 = vpop.f32.mrf.mxu0
      %v5153 = vadd.f32 %v4956, %v5152
      %5154 = vmatmul.bf16.gmra.mxu0 %v4782
      %v5155 = vpop.f32.mrf.mxu0
      %v5156 = vadd.f32 %v4956, %v5155
      %v5157 = vpop.f32.mrf.mxu0
      %v5158 = vadd.f32 %v4956, %v5157
      %5159 = vmatmul.bf16.gmra.mxu0 %v4785
      %v5160 = vpop.f32.mrf.mxu0
      %v5161 = vadd.f32 %v4956, %v5160
      %v5162 = vpop.f32.mrf.mxu0
      %v5163 = vadd.f32 %v4956, %v5162
      %5164 = vmatmul.bf16.gmra.mxu0 %v4788
      %v5165 = vpop.f32.mrf.mxu0
      %v5166 = vadd.f32 %v4956, %v5165
      %v5167 = vpop.f32.mrf.mxu0
      %v5168 = vadd.f32 %v4956, %v5167
      %5169 = vmatmul.bf16.gmra.mxu0 %v4791
      %v5170 = vpop.f32.mrf.mxu0
      %v5171 = vadd.f32 %v4956, %v5170
      %v5172 = vpop.f32.mrf.mxu0
      %v5173 = vadd.f32 %v4956, %v5172
      %5174 = vmatmul.bf16.gmra.mxu0 %v4794
      %v5175 = vpop.f32.mrf.mxu0
      %v5176 = vadd.f32 %v4956, %v5175
      %v5177 = vpop.f32.mrf.mxu0
      %v5178 = vadd.f32 %v4956, %v5177
      %5179 = vmatmul.bf16.gmra.mxu0 %v4797
      %v5180 = vpop.f32.mrf.mxu0
      %v5181 = vadd.f32 %v4956, %v5180
      %v5182 = vpop.f32.mrf.mxu0
      %v5183 = vadd.f32 %v4956, %v5182
      %5184 = vmatmul.bf16.gmra.mxu0 %v4800
      %v5185 = vpop.f32.mrf.mxu0
      %v5186 = vadd.f32 %v4956, %v5185
      %v5187 = vpop.f32.mrf.mxu0
      %v5188 = vadd.f32 %v4956, %v5187
      %5189 = vmatmul.bf16.gmra.mxu0 %v4803
      %v5190 = vpop.f32.mrf.mxu0
      %v5191 = vadd.f32 %v4956, %v5190
      %v5192 = vpop.f32.mrf.mxu0
      %v5193 = vadd.f32 %v4956, %v5192
      %5194 = vmatmul.bf16.gmra.mxu0 %v4806
      %v5195 = vpop.f32.mrf.mxu0
      %v5196 = vadd.f32 %v4956, %v5195
      %v5197 = vpop.f32.mrf.mxu0
      %v5198 = vadd.f32 %v4956, %v5197
      %5199 = vdwg.mxu0
      %5200 = vmatpush.bf16.msra.mxu0 %v5045
      %5201 = vmatpush.bf16.msra.mxu0 %v5044
      %5202 = vmatpush.bf16.msra.mxu0 %v5043
      %5203 = vmatpush.bf16.msra.mxu0 %v5042
      %5204 = vmatpush.bf16.msra.mxu0 %v5041
      %5205 = vmatpush.bf16.msra.mxu0 %v5040
      %5206 = vmatpush.bf16.msra.mxu0 %v5039
      %5207 = vmatpush.bf16.msra.mxu0 %v5038
      %5208 = vmatmul.bf16.gmra.mxu0 %v4872
      %v5209 = vpop.f32.mrf.mxu0
      %v5210 = vadd.f32 %v5121, %v5209
      %v5211 = vpop.f32.mrf.mxu0
      %v5212 = vadd.f32 %v5123, %v5211
      %5213 = vmatmul.bf16.gmra.mxu0 %v4875
      %v5214 = vpop.f32.mrf.mxu0
      %v5215 = vadd.f32 %v5126, %v5214
      %v5216 = vpop.f32.mrf.mxu0
      %v5217 = vadd.f32 %v5128, %v5216
      %5218 = vmatmul.bf16.gmra.mxu0 %v4878
      %v5219 = vpop.f32.mrf.mxu0
      %v5220 = vadd.f32 %v5131, %v5219
      %v5221 = vpop.f32.mrf.mxu0
      %v5222 = vadd.f32 %v5133, %v5221
      %5223 = vmatmul.bf16.gmra.mxu0 %v4881
      %v5224 = vpop.f32.mrf.mxu0
      %v5225 = vadd.f32 %v5136, %v5224
      %v5226 = vpop.f32.mrf.mxu0
      %v5227 = vadd.f32 %v5138, %v5226
      %5228 = vmatmul.bf16.gmra.mxu0 %v4884
      %v5229 = vpop.f32.mrf.mxu0
      %v5230 = vadd.f32 %v5141, %v5229
      %v5231 = vpop.f32.mrf.mxu0
      %v5232 = vadd.f32 %v5143, %v5231
      %5233 = vmatmul.bf16.gmra.mxu0 %v4887
      %v5234 = vpop.f32.mrf.mxu0
      %v5235 = vadd.f32 %v5146, %v5234
      %v5236 = vpop.f32.mrf.mxu0
      %v5237 = vadd.f32 %v5148, %v5236
      %5238 = vmatmul.bf16.gmra.mxu0 %v4890
      %v5239 = vpop.f32.mrf.mxu0
      %v5240 = vadd.f32 %v5151, %v5239
      %v5241 = vpop.f32.mrf.mxu0
      %v5242 = vadd.f32 %v5153, %v5241
      %5243 = vmatmul.bf16.gmra.mxu0 %v4893
      %v5244 = vpop.f32.mrf.mxu0
      %v5245 = vadd.f32 %v5156, %v5244
      %v5246 = vpop.f32.mrf.mxu0
      %v5247 = vadd.f32 %v5158, %v5246
      %5248 = vmatmul.bf16.gmra.mxu0 %v4896
      %v5249 = vpop.f32.mrf.mxu0
      %v5250 = vadd.f32 %v5161, %v5249
      %v5251 = vpop.f32.mrf.mxu0
      %v5252 = vadd.f32 %v5163, %v5251
      %5253 = vmatmul.bf16.gmra.mxu0 %v4899
      %v5254 = vpop.f32.mrf.mxu0
      %v5255 = vadd.f32 %v5166, %v5254
      %v5256 = vpop.f32.mrf.mxu0
      %v5257 = vadd.f32 %v5168, %v5256
      %5258 = vmatmul.bf16.gmra.mxu0 %v4902
      %v5259 = vpop.f32.mrf.mxu0
      %v5260 = vadd.f32 %v5171, %v5259
      %v5261 = vpop.f32.mrf.mxu0
      %v5262 = vadd.f32 %v5173, %v5261
      %5263 = vmatmul.bf16.gmra.mxu0 %v4905
      %v5264 = vpop.f32.mrf.mxu0
      %v5265 = vadd.f32 %v5176, %v5264
      %v5266 = vpop.f32.mrf.mxu0
      %v5267 = vadd.f32 %v5178, %v5266
      %5268 = vmatmul.bf16.gmra.mxu0 %v4908
      %v5269 = vpop.f32.mrf.mxu0
      %v5270 = vadd.f32 %v5181, %v5269
      %v5271 = vpop.f32.mrf.mxu0
      %v5272 = vadd.f32 %v5183, %v5271
      %5273 = vmatmul.bf16.gmra.mxu0 %v4911
      %v5274 = vpop.f32.mrf.mxu0
      %v5275 = vadd.f32 %v5186, %v5274
      %v5276 = vpop.f32.mrf.mxu0
      %v5277 = vadd.f32 %v5188, %v5276
      %5278 = vmatmul.bf16.gmra.mxu0 %v4914
      %v5279 = vpop.f32.mrf.mxu0
      %v5280 = vadd.f32 %v5191, %v5279
      %v5281 = vpop.f32.mrf.mxu0
      %v5282 = vadd.f32 %v5193, %v5281
      %5283 = vmatmul.bf16.gmra.mxu0 %v4916
      %v5284 = vpop.f32.mrf.mxu0
      %v5285 = vadd.f32 %v5196, %v5284
      %v5286 = vpop.f32.mrf.mxu0
      %v5287 = vadd.f32 %v5198, %v5286
      %5288 = vdwg.mxu0
      %5289 = vmatpush.bf16.msra.mxu0 0
      %5290 = vmatpush.bf16.msra.mxu0 0
      %5291 = vmatpush.bf16.msra.mxu0 0
      %5292 = vmatpush.bf16.msra.mxu0 0
      %5293 = vmatpush.bf16.msra.mxu0 0
      %5294 = vmatpush.bf16.msra.mxu0 0
      %5295 = vmatpush.bf16.msra.mxu0 %v5047
      %5296 = vmatpush.bf16.msra.mxu0 %v5046
      %5297 = vmatmul.bf16.gmra.mxu0 %v5067
      %v5298 = vpop.f32.mrf.mxu0
      %v5299 = vadd.f32 %v5210, %v5298
      %v5300 = vpop.f32.mrf.mxu0
      %v5301 = vadd.f32 %v5212, %v5300
      %5302 = vmatmul.bf16.gmra.mxu0 %v5070
      %v5303 = vpop.f32.mrf.mxu0
      %v5304 = vadd.f32 %v5215, %v5303
      %v5305 = vpop.f32.mrf.mxu0
      %v5306 = vadd.f32 %v5217, %v5305
      %5307 = vmatmul.bf16.gmra.mxu0 %v5073
      %v5308 = vpop.f32.mrf.mxu0
      %v5309 = vadd.f32 %v5220, %v5308
      %v5310 = vpop.f32.mrf.mxu0
      %v5311 = vadd.f32 %v5222, %v5310
      %5312 = vmatmul.bf16.gmra.mxu0 %v5076
      %v5313 = vpop.f32.mrf.mxu0
      %v5314 = vadd.f32 %v5225, %v5313
      %v5315 = vpop.f32.mrf.mxu0
      %v5316 = vadd.f32 %v5227, %v5315
      %5317 = vmatmul.bf16.gmra.mxu0 %v5079
      %v5318 = vpop.f32.mrf.mxu0
      %v5319 = vadd.f32 %v5230, %v5318
      %v5320 = vpop.f32.mrf.mxu0
      %v5321 = vadd.f32 %v5232, %v5320
      %5322 = vmatmul.bf16.gmra.mxu0 %v5082
      %v5323 = vpop.f32.mrf.mxu0
      %v5324 = vadd.f32 %v5235, %v5323
      %v5325 = vpop.f32.mrf.mxu0
      %v5326 = vadd.f32 %v5237, %v5325
      %5327 = vmatmul.bf16.gmra.mxu0 %v5085
      %v5328 = vpop.f32.mrf.mxu0
      %v5329 = vadd.f32 %v5240, %v5328
      %v5330 = vpop.f32.mrf.mxu0
      %v5331 = vadd.f32 %v5242, %v5330
      %5332 = vmatmul.bf16.gmra.mxu0 %v5088
      %v5333 = vpop.f32.mrf.mxu0
      %v5334 = vadd.f32 %v5245, %v5333
      %v5335 = vpop.f32.mrf.mxu0
      %v5336 = vadd.f32 %v5247, %v5335
      %5337 = vmatmul.bf16.gmra.mxu0 %v5091
      %v5338 = vpop.f32.mrf.mxu0
      %v5339 = vadd.f32 %v5250, %v5338
      %v5340 = vpop.f32.mrf.mxu0
      %v5341 = vadd.f32 %v5252, %v5340
      %5342 = vmatmul.bf16.gmra.mxu0 %v5094
      %v5343 = vpop.f32.mrf.mxu0
      %v5344 = vadd.f32 %v5255, %v5343
      %v5345 = vpop.f32.mrf.mxu0
      %v5346 = vadd.f32 %v5257, %v5345
      %5347 = vmatmul.bf16.gmra.mxu0 %v5097
      %v5348 = vpop.f32.mrf.mxu0
      %v5349 = vadd.f32 %v5260, %v5348
      %v5350 = vpop.f32.mrf.mxu0
      %v5351 = vadd.f32 %v5262, %v5350
      %5352 = vmatmul.bf16.gmra.mxu0 %v5100
      %v5353 = vpop.f32.mrf.mxu0
      %v5354 = vadd.f32 %v5265, %v5353
      %v5355 = vpop.f32.mrf.mxu0
      %v5356 = vadd.f32 %v5267, %v5355
      %5357 = vmatmul.bf16.gmra.mxu0 %v5103
      %v5358 = vpop.f32.mrf.mxu0
      %v5359 = vadd.f32 %v5270, %v5358
      %v5360 = vpop.f32.mrf.mxu0
      %v5361 = vadd.f32 %v5272, %v5360
      %5362 = vmatmul.bf16.gmra.mxu0 %v5106
      %v5363 = vpop.f32.mrf.mxu0
      %v5364 = vadd.f32 %v5275, %v5363
      %v5365 = vpop.f32.mrf.mxu0
      %v5366 = vadd.f32 %v5277, %v5365
      %5367 = vmatmul.bf16.gmra.mxu0 %v5109
      %v5368 = vpop.f32.mrf.mxu0
      %v5369 = vadd.f32 %v5280, %v5368
      %v5370 = vpop.f32.mrf.mxu0
      %v5371 = vadd.f32 %v5282, %v5370
      %5372 = vmatmul.bf16.gmra.mxu0 %v3816
      %v5373 = vpop.f32.mrf.mxu0
      %v5374 = vadd.f32 %v5285, %v5373
      %v5375 = vpop.f32.mrf.mxu0
      %v5376 = vadd.f32 %v5287, %v5375
      %5377 = vdwg.mxu0
      %v5378 = vmax.f32 %v5299, 0.0
      %v5379 = vmax.f32 %v5301, 0.0
      %v5380 = vmax.f32 %v5304, 0.0
      %v5381 = vmax.f32 %v5306, 0.0
      %v5382 = vmax.f32 %v5309, 0.0
      %v5383 = vmax.f32 %v5311, 0.0
      %v5384 = vmax.f32 %v5314, 0.0
      %v5385 = vmax.f32 %v5316, 0.0
      %v5386 = vmax.f32 %v5319, 0.0
      %v5387 = vmax.f32 %v5321, 0.0
      %v5388 = vmax.f32 %v5324, 0.0
      %v5389 = vmax.f32 %v5326, 0.0
      %v5390 = vmax.f32 %v5329, 0.0
      %v5391 = vmax.f32 %v5331, 0.0
      %v5392 = vmax.f32 %v5334, 0.0
      %v5393 = vmax.f32 %v5336, 0.0
      %v5394 = vmax.f32 %v5339, 0.0
      %v5395 = vmax.f32 %v5341, 0.0
      %v5396 = vmax.f32 %v5344, 0.0
      %v5397 = vmax.f32 %v5346, 0.0
      %v5398 = vmax.f32 %v5349, 0.0
      %v5399 = vmax.f32 %v5351, 0.0
      %v5400 = vmax.f32 %v5354, 0.0
      %v5401 = vmax.f32 %v5356, 0.0
      %v5402 = vmax.f32 %v5359, 0.0
      %v5403 = vmax.f32 %v5361, 0.0
      %v5404 = vmax.f32 %v5364, 0.0
      %v5405 = vmax.f32 %v5366, 0.0
      %v5406 = vmax.f32 %v5369, 0.0
      %v5407 = vmax.f32 %v5371, 0.0
      %v5408 = vmax.f32 %v5374, 0.0
      %v5409 = vmax.f32 %v5376, 0.0
      %v5410 = vpack.c.bf16 %v5378, %v5378
      %v5411 = vpack.c.bf16 %v5379, %v5379
      %v5412 = vpack.c.bf16 %v5380, %v5380
      %v5413 = vpack.c.bf16 %v5381, %v5381
      %v5414 = vpack.c.bf16 %v5382, %v5382
      %v5415 = vpack.c.bf16 %v5383, %v5383
      %v5416 = vpack.c.bf16 %v5384, %v5384
      %v5417 = vpack.c.bf16 %v5385, %v5385
      %v5418 = vpack.c.bf16 %v5386, %v5386
      %v5419 = vpack.c.bf16 %v5387, %v5387
      %v5420 = vpack.c.bf16 %v5388, %v5388
      %v5421 = vpack.c.bf16 %v5389, %v5389
      %v5422 = vpack.c.bf16 %v5390, %v5390
      %v5423 = vpack.c.bf16 %v5391, %v5391
      %v5424 = vpack.c.bf16 %v5392, %v5392
      %v5425 = vpack.c.bf16 %v5393, %v5393
      %v5426 = vpack.c.bf16 %v5394, %v5394
      %v5427 = vpack.c.bf16 %v5395, %v5395
      %v5428 = vpack.c.bf16 %v5396, %v5396
      %v5429 = vpack.c.bf16 %v5397, %v5397
      %v5430 = vpack.c.bf16 %v5398, %v5398
      %v5431 = vpack.c.bf16 %v5399, %v5399
      %v5432 = vpack.c.bf16 %v5400, %v5400
      %v5433 = vpack.c.bf16 %v5401, %v5401
      %v5434 = vpack.c.bf16 %v5402, %v5402
      %v5435 = vpack.c.bf16 %v5403, %v5403
      %v5436 = vpack.c.bf16 %v5404, %v5404
      %v5437 = vpack.c.bf16 %v5405, %v5405
      %v5438 = vpack.c.bf16 %v5406, %v5406
      %v5439 = vpack.c.bf16 %v5407, %v5407
      %v5440 = vpack.c.bf16 %v5408, %v5408
      %v5441 = vpack.c.bf16 %v5409, %v5409
      %v5474 = vunpack.c.l.b16 %v5410
      %v5475 = vunpack.c.l.b16 %v5411
      %v5476 = vunpack.c.l.b16 %v5412
      %v5477 = vunpack.c.l.b16 %v5413
      %v5478 = vunpack.c.l.b16 %v5414
      %v5479 = vunpack.c.l.b16 %v5415
      %v5480 = vunpack.c.l.b16 %v5416
      %v5481 = vunpack.c.l.b16 %v5417
      %v5482 = vunpack.c.l.b16 %v5418
      %v5483 = vunpack.c.l.b16 %v5419
      %v5484 = vunpack.c.l.b16 %v5420
      %v5485 = vunpack.c.l.b16 %v5421
      %v5486 = vunpack.c.l.b16 %v5422
      %v5487 = vunpack.c.l.b16 %v5423
      %v5488 = vunpack.c.l.b16 %v5424
      %v5489 = vunpack.c.l.b16 %v5425
      %v5490 = vunpack.c.l.b16 %v5426
      %v5491 = vunpack.c.l.b16 %v5427
      %v5492 = vunpack.c.l.b16 %v5428
      %v5493 = vunpack.c.l.b16 %v5429
      %v5494 = vunpack.c.l.b16 %v5430
      %v5495 = vunpack.c.l.b16 %v5431
      %v5496 = vunpack.c.l.b16 %v5432
      %v5497 = vunpack.c.l.b16 %v5433
      %v5498 = vunpack.c.l.b16 %v5434
      %v5499 = vunpack.c.l.b16 %v5435
      %v5500 = vunpack.c.l.b16 %v5436
      %v5501 = vunpack.c.l.b16 %v5437
      %v5502 = vunpack.c.l.b16 %v5438
      %v5503 = vunpack.c.l.b16 %v5439
      %v5504 = vunpack.c.l.b16 %v5440
      %v5505 = vunpack.c.l.b16 %v5441
      %v5506 = vpack.c.b16 %v5475, %v5474
      %v5507 = vpack.c.b16 %v5477, %v5476
      %v5508 = vpack.c.b16 %v5479, %v5478
      %v5509 = vpack.c.b16 %v5481, %v5480
      %v5510 = vpack.c.b16 %v5483, %v5482
      %v5511 = vpack.c.b16 %v5485, %v5484
      %v5512 = vpack.c.b16 %v5487, %v5486
      %v5513 = vpack.c.b16 %v5489, %v5488
      %v5514 = vpack.c.b16 %v5491, %v5490
      %v5515 = vpack.c.b16 %v5493, %v5492
      %v5516 = vpack.c.b16 %v5495, %v5494
      %v5517 = vpack.c.b16 %v5497, %v5496
      %v5518 = vpack.c.b16 %v5499, %v5498
      %v5519 = vpack.c.b16 %v5501, %v5500
      %v5520 = vpack.c.b16 %v5503, %v5502
      %v5521 = vpack.c.b16 %v5505, %v5504
      %v5523 = vshrl.u32 %v5506, 16
      %v5525 = vrot.slane %v5523, 7
      %v5526 = vshll.u32 %v5506, 16
      %v5528 = vor.u32 %v5525, %v5526
      %v5530 = vshrl.u32 %v5507, 16
      %v5532 = vrot.slane %v5530, 7
      %v5533 = vshll.u32 %v5507, 16
      %v5535 = vor.u32 %v5532, %v5533
      %v5536 = vsel %vm1239, %v5525, %v5535
      %v5538 = vshrl.u32 %v5508, 16
      %v5540 = vrot.slane %v5538, 7
      %v5541 = vshll.u32 %v5508, 16
      %v5543 = vor.u32 %v5540, %v5541
      %v5544 = vsel %vm1239, %v5532, %v5543
      %v5546 = vshrl.u32 %v5509, 16
      %v5548 = vrot.slane %v5546, 7
      %v5549 = vshll.u32 %v5509, 16
      %v5551 = vor.u32 %v5548, %v5549
      %v5552 = vsel %vm1239, %v5540, %v5551
      %v5554 = vshrl.u32 %v5510, 16
      %v5556 = vrot.slane %v5554, 7
      %v5557 = vshll.u32 %v5510, 16
      %v5559 = vor.u32 %v5556, %v5557
      %v5560 = vsel %vm1239, %v5548, %v5559
      %v5562 = vshrl.u32 %v5511, 16
      %v5564 = vrot.slane %v5562, 7
      %v5565 = vshll.u32 %v5511, 16
      %v5567 = vor.u32 %v5564, %v5565
      %v5568 = vsel %vm1239, %v5556, %v5567
      %v5570 = vshrl.u32 %v5512, 16
      %v5572 = vrot.slane %v5570, 7
      %v5573 = vshll.u32 %v5512, 16
      %v5575 = vor.u32 %v5572, %v5573
      %v5576 = vsel %vm1239, %v5564, %v5575
      %v5578 = vshrl.u32 %v5513, 16
      %v5580 = vrot.slane %v5578, 7
      %v5581 = vshll.u32 %v5513, 16
      %v5583 = vor.u32 %v5580, %v5581
      %v5584 = vsel %vm1239, %v5572, %v5583
      %v5586 = vshrl.u32 %v5514, 16
      %v5588 = vrot.slane %v5586, 7
      %v5589 = vshll.u32 %v5514, 16
      %v5591 = vor.u32 %v5588, %v5589
      %v5592 = vsel %vm1239, %v5580, %v5591
      %v5594 = vshrl.u32 %v5515, 16
      %v5596 = vrot.slane %v5594, 7
      %v5597 = vshll.u32 %v5515, 16
      %v5599 = vor.u32 %v5596, %v5597
      %v5600 = vsel %vm1239, %v5588, %v5599
      %v5602 = vshrl.u32 %v5516, 16
      %v5604 = vrot.slane %v5602, 7
      %v5605 = vshll.u32 %v5516, 16
      %v5607 = vor.u32 %v5604, %v5605
      %v5608 = vsel %vm1239, %v5596, %v5607
      %v5610 = vshrl.u32 %v5517, 16
      %v5612 = vrot.slane %v5610, 7
      %v5613 = vshll.u32 %v5517, 16
      %v5615 = vor.u32 %v5612, %v5613
      %v5616 = vsel %vm1239, %v5604, %v5615
      %v5618 = vshrl.u32 %v5518, 16
      %v5620 = vrot.slane %v5618, 7
      %v5621 = vshll.u32 %v5518, 16
      %v5623 = vor.u32 %v5620, %v5621
      %v5624 = vsel %vm1239, %v5612, %v5623
      %v5626 = vshrl.u32 %v5519, 16
      %v5628 = vrot.slane %v5626, 7
      %v5629 = vshll.u32 %v5519, 16
      %v5631 = vor.u32 %v5628, %v5629
      %v5632 = vsel %vm1239, %v5620, %v5631
      %v5634 = vshrl.u32 %v5520, 16
      %v5636 = vrot.slane %v5634, 7
      %v5637 = vshll.u32 %v5520, 16
      %v5639 = vor.u32 %v5636, %v5637
      %v5640 = vsel %vm1239, %v5628, %v5639
      %v5642 = vshrl.u32 %v5521, 16
      %v5644 = vrot.slane %v5642, 7
      %v5645 = vshll.u32 %v5521, 16
      %v5647 = vor.u32 %v5644, %v5645
      %v5648 = vsel %vm1239, %v5636, %v5647
      %v5665 = vsel %vm1384, 0, %v5528
      %v5666 = vsel %vm1568, %v5665, 0
      %v5667 = vsel %vm1575, %v5536, 0
      %v5668 = vsel %vm1582, %v5544, 0
      %v5669 = vsel %vm1589, %v5552, 0
      %v5670 = vsel %vm1596, %v5560, 0
      %v5671 = vsel %vm1603, %v5568, 0
      %v5672 = vsel %vm1610, %v5576, 0
      %v5673 = vsel %vm1617, %v5584, 0
      %v5674 = vsel %vm1624, %v5592, 0
      %v5675 = vsel %vm1631, %v5600, 0
      %v5676 = vsel %vm1638, %v5608, 0
      %v5677 = vsel %vm1645, %v5616, 0
      %v5678 = vsel %vm1652, %v5624, 0
      %v5679 = vsel %vm1659, %v5632, 0
      %v5680 = vsel %vm1666, %v5640, 0
      %v5681 = vsel %vm1673, %v5648, 0
      %v5682 = vrot.slane %v5526, 1
      %v5683 = vor.u32 %v5523, %v5682
      %v5684 = vrot.slane %v5533, 1
      %v5685 = vsel %vm1690, %v5683, %v5684
      %v5686 = vor.u32 %v5530, %v5684
      %v5687 = vrot.slane %v5541, 1
      %v5688 = vsel %vm1690, %v5686, %v5687
      %v5689 = vor.u32 %v5538, %v5687
      %v5690 = vrot.slane %v5549, 1
      %v5691 = vsel %vm1690, %v5689, %v5690
      %v5692 = vor.u32 %v5546, %v5690
      %v5693 = vrot.slane %v5557, 1
      %v5694 = vsel %vm1690, %v5692, %v5693
      %v5695 = vor.u32 %v5554, %v5693
      %v5696 = vrot.slane %v5565, 1
      %v5697 = vsel %vm1690, %v5695, %v5696
      %v5698 = vor.u32 %v5562, %v5696
      %v5699 = vrot.slane %v5573, 1
      %v5700 = vsel %vm1690, %v5698, %v5699
      %v5701 = vor.u32 %v5570, %v5699
      %v5702 = vrot.slane %v5581, 1
      %v5703 = vsel %vm1690, %v5701, %v5702
      %v5704 = vor.u32 %v5578, %v5702
      %v5705 = vrot.slane %v5589, 1
      %v5706 = vsel %vm1690, %v5704, %v5705
      %v5707 = vor.u32 %v5586, %v5705
      %v5708 = vrot.slane %v5597, 1
      %v5709 = vsel %vm1690, %v5707, %v5708
      %v5710 = vor.u32 %v5594, %v5708
      %v5711 = vrot.slane %v5605, 1
      %v5712 = vsel %vm1690, %v5710, %v5711
      %v5713 = vor.u32 %v5602, %v5711
      %v5714 = vrot.slane %v5613, 1
      %v5715 = vsel %vm1690, %v5713, %v5714
      %v5716 = vor.u32 %v5610, %v5714
      %v5717 = vrot.slane %v5621, 1
      %v5718 = vsel %vm1690, %v5716, %v5717
      %v5719 = vor.u32 %v5618, %v5717
      %v5720 = vrot.slane %v5629, 1
      %v5721 = vsel %vm1690, %v5719, %v5720
      %v5722 = vor.u32 %v5626, %v5720
      %v5723 = vrot.slane %v5637, 1
      %v5724 = vsel %vm1690, %v5722, %v5723
      %v5725 = vor.u32 %v5634, %v5723
      %v5726 = vrot.slane %v5645, 1
      %v5727 = vsel %vm1690, %v5725, %v5726
      %v5728 = vor.u32 %v5642, %v5726
      %v5745 = vsel %vm1755, %v5728, 0
      %v5746 = vsel %vm1939, %v5685, 0
      %v5747 = vsel %vm1946, %v5688, 0
      %v5748 = vsel %vm1953, %v5691, 0
      %v5749 = vsel %vm1960, %v5694, 0
      %v5750 = vsel %vm1967, %v5697, 0
      %v5751 = vsel %vm1974, %v5700, 0
      %v5752 = vsel %vm1981, %v5703, 0
      %v5753 = vsel %vm1988, %v5706, 0
      %v5754 = vsel %vm1995, %v5709, 0
      %v5755 = vsel %vm2002, %v5712, 0
      %v5756 = vsel %vm2009, %v5715, 0
      %v5757 = vsel %vm2016, %v5718, 0
      %v5758 = vsel %vm2023, %v5721, 0
      %v5759 = vsel %vm2030, %v5724, 0
      %v5760 = vsel %vm2037, %v5727, 0
      %v5761 = vsel %vm2044, %v5745, 0
      %5762 = vrot.lane.b32.xlu0 %v5506, 32
      %v5763 = vpop.permute.xlu0 %5762
      %5764 = vrot.lane.b32.xlu0 %v5507, 32
      %v5765 = vpop.permute.xlu0 %5764
      %5766 = vrot.lane.b32.xlu0 %v5508, 32
      %v5767 = vpop.permute.xlu0 %5766
      %5768 = vrot.lane.b32.xlu0 %v5509, 32
      %v5769 = vpop.permute.xlu0 %5768
      %5770 = vrot.lane.b32.xlu0 %v5510, 32
      %v5771 = vpop.permute.xlu0 %5770
      %5772 = vrot.lane.b32.xlu0 %v5511, 32
      %v5773 = vpop.permute.xlu0 %5772
      %5774 = vrot.lane.b32.xlu0 %v5512, 32
      %v5775 = vpop.permute.xlu0 %5774
      %5776 = vrot.lane.b32.xlu0 %v5513, 32
      %v5777 = vpop.permute.xlu0 %5776
      %5778 = vrot.lane.b32.xlu0 %v5514, 32
      %v5779 = vpop.permute.xlu0 %5778
      %5780 = vrot.lane.b32.xlu0 %v5515, 32
      %v5781 = vpop.permute.xlu0 %5780
      %5782 = vrot.lane.b32.xlu0 %v5516, 32
      %v5783 = vpop.permute.xlu0 %5782
      %5784 = vrot.lane.b32.xlu0 %v5517, 32
      %v5785 = vpop.permute.xlu0 %5784
      %5786 = vrot.lane.b32.xlu0 %v5518, 32
      %v5787 = vpop.permute.xlu0 %5786
      %5788 = vrot.lane.b32.xlu0 %v5519, 32
      %v5789 = vpop.permute.xlu0 %5788
      %5790 = vrot.lane.b32.xlu0 %v5520, 32
      %v5791 = vpop.permute.xlu0 %5790
      %5807 = vrot.lane.b32.xlu0 %v5746, 64
      %v5808 = vpop.permute.xlu0 %5807
      %5809 = vrot.lane.b32.xlu0 %v5747, 64
      %v5810 = vpop.permute.xlu0 %5809
      %5811 = vrot.lane.b32.xlu0 %v5748, 64
      %v5812 = vpop.permute.xlu0 %5811
      %5813 = vrot.lane.b32.xlu0 %v5749, 64
      %v5814 = vpop.permute.xlu0 %5813
      %5815 = vrot.lane.b32.xlu0 %v5750, 64
      %v5816 = vpop.permute.xlu0 %5815
      %5817 = vrot.lane.b32.xlu0 %v5751, 64
      %v5818 = vpop.permute.xlu0 %5817
      %5819 = vrot.lane.b32.xlu0 %v5752, 64
      %v5820 = vpop.permute.xlu0 %5819
      %5821 = vrot.lane.b32.xlu0 %v5753, 64
      %v5822 = vpop.permute.xlu0 %5821
      %5823 = vrot.lane.b32.xlu0 %v5754, 64
      %v5824 = vpop.permute.xlu0 %5823
      %5825 = vrot.lane.b32.xlu0 %v5755, 64
      %v5826 = vpop.permute.xlu0 %5825
      %5827 = vrot.lane.b32.xlu0 %v5756, 64
      %v5828 = vpop.permute.xlu0 %5827
      %5829 = vrot.lane.b32.xlu0 %v5757, 64
      %v5830 = vpop.permute.xlu0 %5829
      %5831 = vrot.lane.b32.xlu0 %v5758, 64
      %v5832 = vpop.permute.xlu0 %5831
      %5833 = vrot.lane.b32.xlu0 %v5759, 64
      %v5834 = vpop.permute.xlu0 %5833
      %5835 = vrot.lane.b32.xlu0 %v5760, 64
      %v5836 = vpop.permute.xlu0 %5835
      %5853 = vrot.lane.b32.xlu0 %v5666, 96
      %v5854 = vpop.permute.xlu0 %5853
      %5855 = vrot.lane.b32.xlu0 %v5667, 96
      %v5856 = vpop.permute.xlu0 %5855
      %5857 = vrot.lane.b32.xlu0 %v5668, 96
      %v5858 = vpop.permute.xlu0 %5857
      %5859 = vrot.lane.b32.xlu0 %v5669, 96
      %v5860 = vpop.permute.xlu0 %5859
      %5861 = vrot.lane.b32.xlu0 %v5670, 96
      %v5862 = vpop.permute.xlu0 %5861
      %5863 = vrot.lane.b32.xlu0 %v5671, 96
      %v5864 = vpop.permute.xlu0 %5863
      %5865 = vrot.lane.b32.xlu0 %v5672, 96
      %v5866 = vpop.permute.xlu0 %5865
      %5867 = vrot.lane.b32.xlu0 %v5673, 96
      %v5868 = vpop.permute.xlu0 %5867
      %5869 = vrot.lane.b32.xlu0 %v5674, 96
      %v5870 = vpop.permute.xlu0 %5869
      %5871 = vrot.lane.b32.xlu0 %v5675, 96
      %v5872 = vpop.permute.xlu0 %5871
      %5873 = vrot.lane.b32.xlu0 %v5676, 96
      %v5874 = vpop.permute.xlu0 %5873
      %5875 = vrot.lane.b32.xlu0 %v5677, 96
      %v5876 = vpop.permute.xlu0 %5875
      %5877 = vrot.lane.b32.xlu0 %v5678, 96
      %v5878 = vpop.permute.xlu0 %5877
      %5879 = vrot.lane.b32.xlu0 %v5679, 96
      %v5880 = vpop.permute.xlu0 %5879
      %5881 = vrot.lane.b32.xlu0 %v5680, 96
      %v5882 = vpop.permute.xlu0 %5881
      %5883 = vrot.lane.b32.xlu0 %v5681, 96
      %v5884 = vpop.permute.xlu0 %5883
      %5886 = vrot.lane.b32.xlu0 %v5746, 32
      %v5887 = vpop.permute.xlu0 %5886
      %5888 = vrot.lane.b32.xlu0 %v5747, 32
      %v5889 = vpop.permute.xlu0 %5888
      %5890 = vrot.lane.b32.xlu0 %v5748, 32
      %v5891 = vpop.permute.xlu0 %5890
      %5892 = vrot.lane.b32.xlu0 %v5749, 32
      %v5893 = vpop.permute.xlu0 %5892
      %5894 = vrot.lane.b32.xlu0 %v5750, 32
      %v5895 = vpop.permute.xlu0 %5894
      %5896 = vrot.lane.b32.xlu0 %v5751, 32
      %v5897 = vpop.permute.xlu0 %5896
      %5898 = vrot.lane.b32.xlu0 %v5752, 32
      %v5899 = vpop.permute.xlu0 %5898
      %5900 = vrot.lane.b32.xlu0 %v5753, 32
      %v5901 = vpop.permute.xlu0 %5900
      %5902 = vrot.lane.b32.xlu0 %v5754, 32
      %v5903 = vpop.permute.xlu0 %5902
      %5904 = vrot.lane.b32.xlu0 %v5755, 32
      %v5905 = vpop.permute.xlu0 %5904
      %5906 = vrot.lane.b32.xlu0 %v5756, 32
      %v5907 = vpop.permute.xlu0 %5906
      %5908 = vrot.lane.b32.xlu0 %v5757, 32
      %v5909 = vpop.permute.xlu0 %5908
      %5910 = vrot.lane.b32.xlu0 %v5758, 32
      %v5911 = vpop.permute.xlu0 %5910
      %5912 = vrot.lane.b32.xlu0 %v5759, 32
      %v5913 = vpop.permute.xlu0 %5912
      %5914 = vrot.lane.b32.xlu0 %v5760, 32
      %v5915 = vpop.permute.xlu0 %5914
      %5916 = vrot.lane.b32.xlu0 %v5761, 32
      %v5917 = vpop.permute.xlu0 %5916
      %5918 = vrot.lane.b32.xlu0 %v5667, 64
      %v5919 = vpop.permute.xlu0 %5918
      %5920 = vrot.lane.b32.xlu0 %v5668, 64
      %v5921 = vpop.permute.xlu0 %5920
      %5922 = vrot.lane.b32.xlu0 %v5669, 64
      %v5923 = vpop.permute.xlu0 %5922
      %5924 = vrot.lane.b32.xlu0 %v5670, 64
      %v5925 = vpop.permute.xlu0 %5924
      %5926 = vrot.lane.b32.xlu0 %v5671, 64
      %v5927 = vpop.permute.xlu0 %5926
      %5928 = vrot.lane.b32.xlu0 %v5672, 64
      %v5929 = vpop.permute.xlu0 %5928
      %5930 = vrot.lane.b32.xlu0 %v5673, 64
      %v5931 = vpop.permute.xlu0 %5930
      %5932 = vrot.lane.b32.xlu0 %v5674, 64
      %v5933 = vpop.permute.xlu0 %5932
      %5934 = vrot.lane.b32.xlu0 %v5675, 64
      %v5935 = vpop.permute.xlu0 %5934
      %5936 = vrot.lane.b32.xlu0 %v5676, 64
      %v5937 = vpop.permute.xlu0 %5936
      %5938 = vrot.lane.b32.xlu0 %v5677, 64
      %v5939 = vpop.permute.xlu0 %5938
      %5940 = vrot.lane.b32.xlu0 %v5678, 64
      %v5941 = vpop.permute.xlu0 %5940
      %5942 = vrot.lane.b32.xlu0 %v5679, 64
      %v5943 = vpop.permute.xlu0 %5942
      %5944 = vrot.lane.b32.xlu0 %v5680, 64
      %v5945 = vpop.permute.xlu0 %5944
      %5946 = vrot.lane.b32.xlu0 %v5681, 64
      %v5947 = vpop.permute.xlu0 %5946
      %5948 = vrot.lane.b32.xlu0 %v5507, 96
      %v5949 = vpop.permute.xlu0 %5948
      %5950 = vrot.lane.b32.xlu0 %v5508, 96
      %v5951 = vpop.permute.xlu0 %5950
      %5952 = vrot.lane.b32.xlu0 %v5509, 96
      %v5953 = vpop.permute.xlu0 %5952
      %5954 = vrot.lane.b32.xlu0 %v5510, 96
      %v5955 = vpop.permute.xlu0 %5954
      %5956 = vrot.lane.b32.xlu0 %v5511, 96
      %v5957 = vpop.permute.xlu0 %5956
      %5958 = vrot.lane.b32.xlu0 %v5512, 96
      %v5959 = vpop.permute.xlu0 %5958
      %5960 = vrot.lane.b32.xlu0 %v5513, 96
      %v5961 = vpop.permute.xlu0 %5960
      %5962 = vrot.lane.b32.xlu0 %v5514, 96
      %v5963 = vpop.permute.xlu0 %5962
      %5964 = vrot.lane.b32.xlu0 %v5515, 96
      %v5965 = vpop.permute.xlu0 %5964
      %5966 = vrot.lane.b32.xlu0 %v5516, 96
      %v5967 = vpop.permute.xlu0 %5966
      %5968 = vrot.lane.b32.xlu0 %v5517, 96
      %v5969 = vpop.permute.xlu0 %5968
      %5970 = vrot.lane.b32.xlu0 %v5518, 96
      %v5971 = vpop.permute.xlu0 %5970
      %5972 = vrot.lane.b32.xlu0 %v5519, 96
      %v5973 = vpop.permute.xlu0 %5972
      %5974 = vrot.lane.b32.xlu0 %v5520, 96
      %v5975 = vpop.permute.xlu0 %5974
      %5976 = vrot.lane.b32.xlu0 %v5521, 96
      %v5977 = vpop.permute.xlu0 %5976
      %v5980 = vsel %vm2597, %v5666, %v5763
      %v5983 = vsel %vm2597, %v5667, %v5765
      %v5986 = vsel %vm2597, %v5668, %v5767
      %v5989 = vsel %vm2597, %v5669, %v5769
      %v5992 = vsel %vm2597, %v5670, %v5771
      %v5995 = vsel %vm2597, %v5671, %v5773
      %v5998 = vsel %vm2597, %v5672, %v5775
      %v6001 = vsel %vm2597, %v5673, %v5777
      %v6004 = vsel %vm2597, %v5674, %v5779
      %v6007 = vsel %vm2597, %v5675, %v5781
      %v6010 = vsel %vm2597, %v5676, %v5783
      %v6013 = vsel %vm2597, %v5677, %v5785
      %v6016 = vsel %vm2597, %v5678, %v5787
      %v6019 = vsel %vm2597, %v5679, %v5789
      %v6022 = vsel %vm2597, %v5680, %v5791
      %v6024 = vsel %vm3430, %v5980, %v5808
      %v6026 = vsel %vm3430, %v5983, %v5810
      %v6028 = vsel %vm3430, %v5986, %v5812
      %v6030 = vsel %vm3430, %v5989, %v5814
      %v6032 = vsel %vm3430, %v5992, %v5816
      %v6034 = vsel %vm3430, %v5995, %v5818
      %v6036 = vsel %vm3430, %v5998, %v5820
      %v6038 = vsel %vm3430, %v6001, %v5822
      %v6040 = vsel %vm3430, %v6004, %v5824
      %v6042 = vsel %vm3430, %v6007, %v5826
      %v6044 = vsel %vm3430, %v6010, %v5828
      %v6046 = vsel %vm3430, %v6013, %v5830
      %v6048 = vsel %vm3430, %v6016, %v5832
      %v6050 = vsel %vm3430, %v6019, %v5834
      %v6052 = vsel %vm3430, %v6022, %v5836
      %v6054 = vsel %vm3463, %v3432, %v5854
      %v6057 = vsel %vm3463, %v6024, %v5856
      %v6060 = vsel %vm3463, %v6026, %v5858
      %v6063 = vsel %vm3463, %v6028, %v5860
      %v6066 = vsel %vm3463, %v6030, %v5862
      %v6069 = vsel %vm3463, %v6032, %v5864
      %v6072 = vsel %vm3463, %v6034, %v5866
      %v6075 = vsel %vm3463, %v6036, %v5868
      %v6078 = vsel %vm3463, %v6038, %v5870
      %v6081 = vsel %vm3463, %v6040, %v5872
      %v6084 = vsel %vm3463, %v6042, %v5874
      %v6087 = vsel %vm3463, %v6044, %v5876
      %v6090 = vsel %vm3463, %v6046, %v5878
      %v6093 = vsel %vm3463, %v6048, %v5880
      %v6096 = vsel %vm3463, %v6050, %v5882
      %v6099 = vsel %vm3463, %v6052, %v5884
      %v6102 = vsel %vm2597, %v5506, %v5887
      %v6104 = vsel %vm2597, %v5507, %v5889
      %v6106 = vsel %vm2597, %v5508, %v5891
      %v6108 = vsel %vm2597, %v5509, %v5893
      %v6110 = vsel %vm2597, %v5510, %v5895
      %v6112 = vsel %vm2597, %v5511, %v5897
      %v6114 = vsel %vm2597, %v5512, %v5899
      %v6116 = vsel %vm2597, %v5513, %v5901
      %v6118 = vsel %vm2597, %v5514, %v5903
      %v6120 = vsel %vm2597, %v5515, %v5905
      %v6122 = vsel %vm2597, %v5516, %v5907
      %v6124 = vsel %vm2597, %v5517, %v5909
      %v6126 = vsel %vm2597, %v5518, %v5911
      %v6128 = vsel %vm2597, %v5519, %v5913
      %v6130 = vsel %vm2597, %v5520, %v5915
      %v6132 = vsel %vm2597, %v5521, %v5917
      %v6134 = vsel %vm3430, %v6102, %v5919
      %v6136 = vsel %vm3430, %v6104, %v5921
      %v6138 = vsel %vm3430, %v6106, %v5923
      %v6140 = vsel %vm3430, %v6108, %v5925
      %v6142 = vsel %vm3430, %v6110, %v5927
      %v6144 = vsel %vm3430, %v6112, %v5929
      %v6146 = vsel %vm3430, %v6114, %v5931
      %v6148 = vsel %vm3430, %v6116, %v5933
      %v6150 = vsel %vm3430, %v6118, %v5935
      %v6152 = vsel %vm3430, %v6120, %v5937
      %v6154 = vsel %vm3430, %v6122, %v5939
      %v6156 = vsel %vm3430, %v6124, %v5941
      %v6158 = vsel %vm3430, %v6126, %v5943
      %v6160 = vsel %vm3430, %v6128, %v5945
      %v6162 = vsel %vm3430, %v6130, %v5947
      %v6163 = vsel %vm3430, %v6132, %v3210
      %v6165 = vsel %vm3463, %v6134, %v5949
      %v6168 = vsel %vm3463, %v6136, %v5951
      %v6171 = vsel %vm3463, %v6138, %v5953
      %v6174 = vsel %vm3463, %v6140, %v5955
      %v6177 = vsel %vm3463, %v6142, %v5957
      %v6180 = vsel %vm3463, %v6144, %v5959
      %v6183 = vsel %vm3463, %v6146, %v5961
      %v6186 = vsel %vm3463, %v6148, %v5963
      %v6189 = vsel %vm3463, %v6150, %v5965
      %v6192 = vsel %vm3463, %v6152, %v5967
      %v6195 = vsel %vm3463, %v6154, %v5969
      %v6198 = vsel %vm3463, %v6156, %v5971
      %v6201 = vsel %vm3463, %v6158, %v5973
      %v6204 = vsel %vm3463, %v6160, %v5975
      %v6207 = vsel %vm3463, %v6162, %v5977
      %v6209 = vsel %vm3463, %v6163, %v3383
      %v6211 = vld [vmem:[%s7] sm:$0xf]
      %v6212 = vld [vmem:[%s7 + $0x4] sm:$0xf]
      %v6213 = vld [vmem:[%s7 + $0x8] sm:$0xf]
      %v6214 = vld [vmem:[%s7 + $0xc] sm:$0xf]
      %v6215 = vld [vmem:[%s7 + $0x10] sm:$0xf]
      %v6216 = vld [vmem:[%s7 + $0x14] sm:$0xf]
      %v6217 = vld [vmem:[%s7 + $0x18] sm:$0xf]
      %v6218 = vld [vmem:[%s7 + $0x1c] sm:$0xf]
      %v6219 = vld [vmem:[%s7 + $0x20] sm:$0xf]
      %v6220 = vld [vmem:[%s7 + $0x24] sm:$0xf]
      %v6221 = vld [vmem:[%s7 + $0x28] sm:$0xf]
      %v6222 = vld [vmem:[%s7 + $0x2c] sm:$0xf]
      %v6223 = vld [vmem:[%s7 + $0x30] sm:$0xf]
      %v6224 = vld [vmem:[%s7 + $0x34] sm:$0xf]
      %v6225 = vld [vmem:[%s7 + $0x38] sm:$0xf]
      %v6226 = vld [vmem:[%s7 + $0x3c] sm:$0xf]
      %v6227 = vld [vmem:[%s7 + $0x40] sm:$0xf]
      %v6228 = vld [vmem:[%s7 + $0x44] sm:$0xf]
      %v6229 = vld [vmem:[%s7 + $0x48] sm:$0xf]
      %v6230 = vld [vmem:[%s7 + $0x4c] sm:$0xf]
      %v6231 = vld [vmem:[%s7 + $0x50] sm:$0xf]
      %v6232 = vld [vmem:[%s7 + $0x54] sm:$0xf]
      %v6233 = vld [vmem:[%s7 + $0x58] sm:$0xf]
      %v6234 = vld [vmem:[%s7 + $0x5c] sm:$0xf]
      %v6235 = vld [vmem:[%s7 + $0x60] sm:$0xf]
      %v6236 = vld [vmem:[%s7 + $0x64] sm:$0xf]
      %v6237 = vld [vmem:[%s7 + $0x68] sm:$0xf]
      %v6238 = vld [vmem:[%s7 + $0x6c] sm:$0xf]
      %v6239 = vld [vmem:[%s7 + $0x70] sm:$0xf]
      %v6240 = vld [vmem:[%s7 + $0x74] sm:$0xf]
      %v6241 = vld [vmem:[%s7 + $0x78] sm:$0xf]
      %v6242 = vld [vmem:[%s7 + $0x7c] sm:$0xf]
      %v6243 = vld [vmem:[%s7 + $0x80] sm:$0xf]
      %v6244 = vld [vmem:[%s7 + $0x84] sm:$0xf]
      %v6245 = vld [vmem:[%s7 + $0x88] sm:$0xf]
      %v6246 = vld [vmem:[%s7 + $0x8c] sm:$0xf]
      %v6247 = vld [vmem:[%s8] sm:$0x1]
      %v6249 = vperm.slane %v6247, 0
      %v6287 = vunpack.c.l.b16 %v6211
      %v6288 = vunpack.c.l.b16 %v6212
      %v6289 = vunpack.c.l.b16 %v6213
      %v6290 = vunpack.c.l.b16 %v6214
      %v6291 = vunpack.c.l.b16 %v6215
      %v6292 = vunpack.c.l.b16 %v6216
      %v6293 = vunpack.c.l.b16 %v6217
      %v6294 = vunpack.c.l.b16 %v6218
      %v6295 = vunpack.c.l.b16 %v6219
      %v6296 = vunpack.c.l.b16 %v6220
      %v6297 = vunpack.c.l.b16 %v6221
      %v6298 = vunpack.c.l.b16 %v6222
      %v6299 = vunpack.c.l.b16 %v6223
      %v6300 = vunpack.c.l.b16 %v6224
      %v6301 = vunpack.c.l.b16 %v6225
      %v6302 = vunpack.c.l.b16 %v6226
      %v6303 = vunpack.c.l.b16 %v6227
      %v6304 = vunpack.c.l.b16 %v6228
      %v6305 = vunpack.c.l.b16 %v6229
      %v6306 = vunpack.c.l.b16 %v6230
      %v6307 = vunpack.c.l.b16 %v6231
      %v6308 = vunpack.c.l.b16 %v6232
      %v6309 = vunpack.c.l.b16 %v6233
      %v6310 = vunpack.c.l.b16 %v6234
      %v6311 = vunpack.c.l.b16 %v6235
      %v6312 = vunpack.c.l.b16 %v6236
      %v6313 = vunpack.c.l.b16 %v6237
      %v6314 = vunpack.c.l.b16 %v6238
      %v6315 = vunpack.c.l.b16 %v6239
      %v6316 = vunpack.c.l.b16 %v6240
      %v6317 = vunpack.c.l.b16 %v6241
      %v6318 = vunpack.c.l.b16 %v6242
      %v6319 = vunpack.c.l.b16 %v6243
      %v6320 = vunpack.c.l.b16 %v6244
      %v6321 = vunpack.c.l.b16 %v6245
      %v6322 = vunpack.c.l.b16 %v6246
      %v6323 = vpack.c.b16 %v6288, %v6287
      %v6324 = vpack.c.b16 %v6290, %v6289
      %v6325 = vpack.c.b16 %v6292, %v6291
      %v6326 = vpack.c.b16 %v6294, %v6293
      %v6327 = vpack.c.b16 %v6296, %v6295
      %v6328 = vpack.c.b16 %v6298, %v6297
      %v6329 = vpack.c.b16 %v6300, %v6299
      %v6330 = vpack.c.b16 %v6302, %v6301
      %v6331 = vpack.c.b16 %v6304, %v6303
      %v6332 = vpack.c.b16 %v6306, %v6305
      %v6333 = vpack.c.b16 %v6308, %v6307
      %v6334 = vpack.c.b16 %v6310, %v6309
      %v6335 = vpack.c.b16 %v6312, %v6311
      %v6336 = vpack.c.b16 %v6314, %v6313
      %v6337 = vpack.c.b16 %v6316, %v6315
      %v6338 = vpack.c.b16 %v6318, %v6317
      %v6339 = vpack.c.b16 %v6320, %v6319
      %v6340 = vpack.c.b16 %v6322, %v6321
      %v6360 = vsel %vm2597, %v5747, 0
      %v6363 = vsel %vm2597, %v5748, 0
      %v6366 = vsel %vm2597, %v5749, 0
      %v6369 = vsel %vm2597, %v5750, 0
      %v6372 = vsel %vm2597, %v5751, 0
      %v6375 = vsel %vm2597, %v5752, 0
      %v6378 = vsel %vm2597, %v5753, 0
      %v6381 = vsel %vm2597, %v5754, 0
      %v6384 = vsel %vm2597, %v5755, 0
      %v6387 = vsel %vm2597, %v5756, 0
      %v6390 = vsel %vm2597, %v5757, 0
      %v6393 = vsel %vm2597, %v5758, 0
      %v6396 = vsel %vm2597, %v5759, 0
      %v6399 = vsel %vm2597, %v5760, 0
      %v6402 = vsel %vm2597, %v5761, 0
      %6404 = vmatpush.bf16.msra.mxu0 %v6330
      %6405 = vmatpush.bf16.msra.mxu0 %v6329
      %6406 = vmatpush.bf16.msra.mxu0 %v6328
      %6407 = vmatpush.bf16.msra.mxu0 %v6327
      %6408 = vmatpush.bf16.msra.mxu0 %v6326
      %6409 = vmatpush.bf16.msra.mxu0 %v6325
      %6410 = vmatpush.bf16.msra.mxu0 %v6324
      %6411 = vmatpush.bf16.msra.mxu0 %v6323
      %6412 = vmatmul.bf16.gmra.mxu0 %v6054
      %v6413 = vpop.f32.mrf.mxu0
      %v6414 = vadd.f32 %v6249, %v6413
      %v6415 = vpop.f32.mrf.mxu0
      %v6416 = vadd.f32 %v6249, %v6415
      %6417 = vmatmul.bf16.gmra.mxu0 %v6057
      %v6418 = vpop.f32.mrf.mxu0
      %v6419 = vadd.f32 %v6249, %v6418
      %v6420 = vpop.f32.mrf.mxu0
      %v6421 = vadd.f32 %v6249, %v6420
      %6422 = vmatmul.bf16.gmra.mxu0 %v6060
      %v6423 = vpop.f32.mrf.mxu0
      %v6424 = vadd.f32 %v6249, %v6423
      %v6425 = vpop.f32.mrf.mxu0
      %v6426 = vadd.f32 %v6249, %v6425
      %6427 = vmatmul.bf16.gmra.mxu0 %v6063
      %v6428 = vpop.f32.mrf.mxu0
      %v6429 = vadd.f32 %v6249, %v6428
      %v6430 = vpop.f32.mrf.mxu0
      %v6431 = vadd.f32 %v6249, %v6430
      %6432 = vmatmul.bf16.gmra.mxu0 %v6066
      %v6433 = vpop.f32.mrf.mxu0
      %v6434 = vadd.f32 %v6249, %v6433
      %v6435 = vpop.f32.mrf.mxu0
      %v6436 = vadd.f32 %v6249, %v6435
      %6437 = vmatmul.bf16.gmra.mxu0 %v6069
      %v6438 = vpop.f32.mrf.mxu0
      %v6439 = vadd.f32 %v6249, %v6438
      %v6440 = vpop.f32.mrf.mxu0
      %v6441 = vadd.f32 %v6249, %v6440
      %6442 = vmatmul.bf16.gmra.mxu0 %v6072
      %v6443 = vpop.f32.mrf.mxu0
      %v6444 = vadd.f32 %v6249, %v6443
      %v6445 = vpop.f32.mrf.mxu0
      %v6446 = vadd.f32 %v6249, %v6445
      %6447 = vmatmul.bf16.gmra.mxu0 %v6075
      %v6448 = vpop.f32.mrf.mxu0
      %v6449 = vadd.f32 %v6249, %v6448
      %v6450 = vpop.f32.mrf.mxu0
      %v6451 = vadd.f32 %v6249, %v6450
      %6452 = vmatmul.bf16.gmra.mxu0 %v6078
      %v6453 = vpop.f32.mrf.mxu0
      %v6454 = vadd.f32 %v6249, %v6453
      %v6455 = vpop.f32.mrf.mxu0
      %v6456 = vadd.f32 %v6249, %v6455
      %6457 = vmatmul.bf16.gmra.mxu0 %v6081
      %v6458 = vpop.f32.mrf.mxu0
      %v6459 = vadd.f32 %v6249, %v6458
      %v6460 = vpop.f32.mrf.mxu0
      %v6461 = vadd.f32 %v6249, %v6460
      %6462 = vmatmul.bf16.gmra.mxu0 %v6084
      %v6463 = vpop.f32.mrf.mxu0
      %v6464 = vadd.f32 %v6249, %v6463
      %v6465 = vpop.f32.mrf.mxu0
      %v6466 = vadd.f32 %v6249, %v6465
      %6467 = vmatmul.bf16.gmra.mxu0 %v6087
      %v6468 = vpop.f32.mrf.mxu0
      %v6469 = vadd.f32 %v6249, %v6468
      %v6470 = vpop.f32.mrf.mxu0
      %v6471 = vadd.f32 %v6249, %v6470
      %6472 = vmatmul.bf16.gmra.mxu0 %v6090
      %v6473 = vpop.f32.mrf.mxu0
      %v6474 = vadd.f32 %v6249, %v6473
      %v6475 = vpop.f32.mrf.mxu0
      %v6476 = vadd.f32 %v6249, %v6475
      %6477 = vmatmul.bf16.gmra.mxu0 %v6093
      %v6478 = vpop.f32.mrf.mxu0
      %v6479 = vadd.f32 %v6249, %v6478
      %v6480 = vpop.f32.mrf.mxu0
      %v6481 = vadd.f32 %v6249, %v6480
      %6482 = vmatmul.bf16.gmra.mxu0 %v6096
      %v6483 = vpop.f32.mrf.mxu0
      %v6484 = vadd.f32 %v6249, %v6483
      %v6485 = vpop.f32.mrf.mxu0
      %v6486 = vadd.f32 %v6249, %v6485
      %6487 = vmatmul.bf16.gmra.mxu0 %v6099
      %v6488 = vpop.f32.mrf.mxu0
      %v6489 = vadd.f32 %v6249, %v6488
      %v6490 = vpop.f32.mrf.mxu0
      %v6491 = vadd.f32 %v6249, %v6490
      %6492 = vdwg.mxu0
      %6493 = vmatpush.bf16.msra.mxu0 %v6338
      %6494 = vmatpush.bf16.msra.mxu0 %v6337
      %6495 = vmatpush.bf16.msra.mxu0 %v6336
      %6496 = vmatpush.bf16.msra.mxu0 %v6335
      %6497 = vmatpush.bf16.msra.mxu0 %v6334
      %6498 = vmatpush.bf16.msra.mxu0 %v6333
      %6499 = vmatpush.bf16.msra.mxu0 %v6332
      %6500 = vmatpush.bf16.msra.mxu0 %v6331
      %6501 = vmatmul.bf16.gmra.mxu0 %v6165
      %v6502 = vpop.f32.mrf.mxu0
      %v6503 = vadd.f32 %v6414, %v6502
      %v6504 = vpop.f32.mrf.mxu0
      %v6505 = vadd.f32 %v6416, %v6504
      %6506 = vmatmul.bf16.gmra.mxu0 %v6168
      %v6507 = vpop.f32.mrf.mxu0
      %v6508 = vadd.f32 %v6419, %v6507
      %v6509 = vpop.f32.mrf.mxu0
      %v6510 = vadd.f32 %v6421, %v6509
      %6511 = vmatmul.bf16.gmra.mxu0 %v6171
      %v6512 = vpop.f32.mrf.mxu0
      %v6513 = vadd.f32 %v6424, %v6512
      %v6514 = vpop.f32.mrf.mxu0
      %v6515 = vadd.f32 %v6426, %v6514
      %6516 = vmatmul.bf16.gmra.mxu0 %v6174
      %v6517 = vpop.f32.mrf.mxu0
      %v6518 = vadd.f32 %v6429, %v6517
      %v6519 = vpop.f32.mrf.mxu0
      %v6520 = vadd.f32 %v6431, %v6519
      %6521 = vmatmul.bf16.gmra.mxu0 %v6177
      %v6522 = vpop.f32.mrf.mxu0
      %v6523 = vadd.f32 %v6434, %v6522
      %v6524 = vpop.f32.mrf.mxu0
      %v6525 = vadd.f32 %v6436, %v6524
      %6526 = vmatmul.bf16.gmra.mxu0 %v6180
      %v6527 = vpop.f32.mrf.mxu0
      %v6528 = vadd.f32 %v6439, %v6527
      %v6529 = vpop.f32.mrf.mxu0
      %v6530 = vadd.f32 %v6441, %v6529
      %6531 = vmatmul.bf16.gmra.mxu0 %v6183
      %v6532 = vpop.f32.mrf.mxu0
      %v6533 = vadd.f32 %v6444, %v6532
      %v6534 = vpop.f32.mrf.mxu0
      %v6535 = vadd.f32 %v6446, %v6534
      %6536 = vmatmul.bf16.gmra.mxu0 %v6186
      %v6537 = vpop.f32.mrf.mxu0
      %v6538 = vadd.f32 %v6449, %v6537
      %v6539 = vpop.f32.mrf.mxu0
      %v6540 = vadd.f32 %v6451, %v6539
      %6541 = vmatmul.bf16.gmra.mxu0 %v6189
      %v6542 = vpop.f32.mrf.mxu0
      %v6543 = vadd.f32 %v6454, %v6542
      %v6544 = vpop.f32.mrf.mxu0
      %v6545 = vadd.f32 %v6456, %v6544
      %6546 = vmatmul.bf16.gmra.mxu0 %v6192
      %v6547 = vpop.f32.mrf.mxu0
      %v6548 = vadd.f32 %v6459, %v6547
      %v6549 = vpop.f32.mrf.mxu0
      %v6550 = vadd.f32 %v6461, %v6549
      %6551 = vmatmul.bf16.gmra.mxu0 %v6195
      %v6552 = vpop.f32.mrf.mxu0
      %v6553 = vadd.f32 %v6464, %v6552
      %v6554 = vpop.f32.mrf.mxu0
      %v6555 = vadd.f32 %v6466, %v6554
      %6556 = vmatmul.bf16.gmra.mxu0 %v6198
      %v6557 = vpop.f32.mrf.mxu0
      %v6558 = vadd.f32 %v6469, %v6557
      %v6559 = vpop.f32.mrf.mxu0
      %v6560 = vadd.f32 %v6471, %v6559
      %6561 = vmatmul.bf16.gmra.mxu0 %v6201
      %v6562 = vpop.f32.mrf.mxu0
      %v6563 = vadd.f32 %v6474, %v6562
      %v6564 = vpop.f32.mrf.mxu0
      %v6565 = vadd.f32 %v6476, %v6564
      %6566 = vmatmul.bf16.gmra.mxu0 %v6204
      %v6567 = vpop.f32.mrf.mxu0
      %v6568 = vadd.f32 %v6479, %v6567
      %v6569 = vpop.f32.mrf.mxu0
      %v6570 = vadd.f32 %v6481, %v6569
      %6571 = vmatmul.bf16.gmra.mxu0 %v6207
      %v6572 = vpop.f32.mrf.mxu0
      %v6573 = vadd.f32 %v6484, %v6572
      %v6574 = vpop.f32.mrf.mxu0
      %v6575 = vadd.f32 %v6486, %v6574
      %6576 = vmatmul.bf16.gmra.mxu0 %v6209
      %v6577 = vpop.f32.mrf.mxu0
      %v6578 = vadd.f32 %v6489, %v6577
      %v6579 = vpop.f32.mrf.mxu0
      %v6580 = vadd.f32 %v6491, %v6579
      %6581 = vdwg.mxu0
      %6582 = vmatpush.bf16.msra.mxu0 0
      %6583 = vmatpush.bf16.msra.mxu0 0
      %6584 = vmatpush.bf16.msra.mxu0 0
      %6585 = vmatpush.bf16.msra.mxu0 0
      %6586 = vmatpush.bf16.msra.mxu0 0
      %6587 = vmatpush.bf16.msra.mxu0 0
      %6588 = vmatpush.bf16.msra.mxu0 %v6340
      %6589 = vmatpush.bf16.msra.mxu0 %v6339
      %6590 = vmatmul.bf16.gmra.mxu0 %v6360
      %v6591 = vpop.f32.mrf.mxu0
      %v6592 = vadd.f32 %v6503, %v6591
      %v6593 = vpop.f32.mrf.mxu0
      %v6594 = vadd.f32 %v6505, %v6593
      %6595 = vmatmul.bf16.gmra.mxu0 %v6363
      %v6596 = vpop.f32.mrf.mxu0
      %v6597 = vadd.f32 %v6508, %v6596
      %v6598 = vpop.f32.mrf.mxu0
      %v6599 = vadd.f32 %v6510, %v6598
      %6600 = vmatmul.bf16.gmra.mxu0 %v6366
      %v6601 = vpop.f32.mrf.mxu0
      %v6602 = vadd.f32 %v6513, %v6601
      %v6603 = vpop.f32.mrf.mxu0
      %v6604 = vadd.f32 %v6515, %v6603
      %6605 = vmatmul.bf16.gmra.mxu0 %v6369
      %v6606 = vpop.f32.mrf.mxu0
      %v6607 = vadd.f32 %v6518, %v6606
      %v6608 = vpop.f32.mrf.mxu0
      %v6609 = vadd.f32 %v6520, %v6608
      %6610 = vmatmul.bf16.gmra.mxu0 %v6372
      %v6611 = vpop.f32.mrf.mxu0
      %v6612 = vadd.f32 %v6523, %v6611
      %v6613 = vpop.f32.mrf.mxu0
      %v6614 = vadd.f32 %v6525, %v6613
      %6615 = vmatmul.bf16.gmra.mxu0 %v6375
      %v6616 = vpop.f32.mrf.mxu0
      %v6617 = vadd.f32 %v6528, %v6616
      %v6618 = vpop.f32.mrf.mxu0
      %v6619 = vadd.f32 %v6530, %v6618
      %6620 = vmatmul.bf16.gmra.mxu0 %v6378
      %v6621 = vpop.f32.mrf.mxu0
      %v6622 = vadd.f32 %v6533, %v6621
      %v6623 = vpop.f32.mrf.mxu0
      %v6624 = vadd.f32 %v6535, %v6623
      %6625 = vmatmul.bf16.gmra.mxu0 %v6381
      %v6626 = vpop.f32.mrf.mxu0
      %v6627 = vadd.f32 %v6538, %v6626
      %v6628 = vpop.f32.mrf.mxu0
      %v6629 = vadd.f32 %v6540, %v6628
      %6630 = vmatmul.bf16.gmra.mxu0 %v6384
      %v6631 = vpop.f32.mrf.mxu0
      %v6632 = vadd.f32 %v6543, %v6631
      %v6633 = vpop.f32.mrf.mxu0
      %v6634 = vadd.f32 %v6545, %v6633
      %6635 = vmatmul.bf16.gmra.mxu0 %v6387
      %v6636 = vpop.f32.mrf.mxu0
      %v6637 = vadd.f32 %v6548, %v6636
      %v6638 = vpop.f32.mrf.mxu0
      %v6639 = vadd.f32 %v6550, %v6638
      %6640 = vmatmul.bf16.gmra.mxu0 %v6390
      %v6641 = vpop.f32.mrf.mxu0
      %v6642 = vadd.f32 %v6553, %v6641
      %v6643 = vpop.f32.mrf.mxu0
      %v6644 = vadd.f32 %v6555, %v6643
      %6645 = vmatmul.bf16.gmra.mxu0 %v6393
      %v6646 = vpop.f32.mrf.mxu0
      %v6647 = vadd.f32 %v6558, %v6646
      %v6648 = vpop.f32.mrf.mxu0
      %v6649 = vadd.f32 %v6560, %v6648
      %6650 = vmatmul.bf16.gmra.mxu0 %v6396
      %v6651 = vpop.f32.mrf.mxu0
      %v6652 = vadd.f32 %v6563, %v6651
      %v6653 = vpop.f32.mrf.mxu0
      %v6654 = vadd.f32 %v6565, %v6653
      %6655 = vmatmul.bf16.gmra.mxu0 %v6399
      %v6656 = vpop.f32.mrf.mxu0
      %v6657 = vadd.f32 %v6568, %v6656
      %v6658 = vpop.f32.mrf.mxu0
      %v6659 = vadd.f32 %v6570, %v6658
      %6660 = vmatmul.bf16.gmra.mxu0 %v6402
      %v6661 = vpop.f32.mrf.mxu0
      %v6662 = vadd.f32 %v6573, %v6661
      %v6663 = vpop.f32.mrf.mxu0
      %v6664 = vadd.f32 %v6575, %v6663
      %6665 = vmatmul.bf16.gmra.mxu0 %v3816
      %v6666 = vpop.f32.mrf.mxu0
      %v6667 = vadd.f32 %v6578, %v6666
      %v6668 = vpop.f32.mrf.mxu0
      %v6669 = vadd.f32 %v6580, %v6668
      %6670 = vdwg.mxu0
      %v6671 = vmax.f32 %v6592, 0.0
      %v6672 = vmax.f32 %v6594, 0.0
      %v6673 = vmax.f32 %v6597, 0.0
      %v6674 = vmax.f32 %v6599, 0.0
      %v6675 = vmax.f32 %v6602, 0.0
      %v6676 = vmax.f32 %v6604, 0.0
      %v6677 = vmax.f32 %v6607, 0.0
      %v6678 = vmax.f32 %v6609, 0.0
      %v6679 = vmax.f32 %v6612, 0.0
      %v6680 = vmax.f32 %v6614, 0.0
      %v6681 = vmax.f32 %v6617, 0.0
      %v6682 = vmax.f32 %v6619, 0.0
      %v6683 = vmax.f32 %v6622, 0.0
      %v6684 = vmax.f32 %v6624, 0.0
      %v6685 = vmax.f32 %v6627, 0.0
      %v6686 = vmax.f32 %v6629, 0.0
      %v6687 = vmax.f32 %v6632, 0.0
      %v6688 = vmax.f32 %v6634, 0.0
      %v6689 = vmax.f32 %v6637, 0.0
      %v6690 = vmax.f32 %v6639, 0.0
      %v6691 = vmax.f32 %v6642, 0.0
      %v6692 = vmax.f32 %v6644, 0.0
      %v6693 = vmax.f32 %v6647, 0.0
      %v6694 = vmax.f32 %v6649, 0.0
      %v6695 = vmax.f32 %v6652, 0.0
      %v6696 = vmax.f32 %v6654, 0.0
      %v6697 = vmax.f32 %v6657, 0.0
      %v6698 = vmax.f32 %v6659, 0.0
      %v6699 = vmax.f32 %v6662, 0.0
      %v6700 = vmax.f32 %v6664, 0.0
      %v6701 = vmax.f32 %v6667, 0.0
      %v6702 = vmax.f32 %v6669, 0.0
      %v6703 = vpack.c.bf16 %v6671, %v6671
      %v6704 = vpack.c.bf16 %v6672, %v6672
      %v6705 = vpack.c.bf16 %v6673, %v6673
      %v6706 = vpack.c.bf16 %v6674, %v6674
      %v6707 = vpack.c.bf16 %v6675, %v6675
      %v6708 = vpack.c.bf16 %v6676, %v6676
      %v6709 = vpack.c.bf16 %v6677, %v6677
      %v6710 = vpack.c.bf16 %v6678, %v6678
      %v6711 = vpack.c.bf16 %v6679, %v6679
      %v6712 = vpack.c.bf16 %v6680, %v6680
      %v6713 = vpack.c.bf16 %v6681, %v6681
      %v6714 = vpack.c.bf16 %v6682, %v6682
      %v6715 = vpack.c.bf16 %v6683, %v6683
      %v6716 = vpack.c.bf16 %v6684, %v6684
      %v6717 = vpack.c.bf16 %v6685, %v6685
      %v6718 = vpack.c.bf16 %v6686, %v6686
      %v6719 = vpack.c.bf16 %v6687, %v6687
      %v6720 = vpack.c.bf16 %v6688, %v6688
      %v6721 = vpack.c.bf16 %v6689, %v6689
      %v6722 = vpack.c.bf16 %v6690, %v6690
      %v6723 = vpack.c.bf16 %v6691, %v6691
      %v6724 = vpack.c.bf16 %v6692, %v6692
      %v6725 = vpack.c.bf16 %v6693, %v6693
      %v6726 = vpack.c.bf16 %v6694, %v6694
      %v6727 = vpack.c.bf16 %v6695, %v6695
      %v6728 = vpack.c.bf16 %v6696, %v6696
      %v6729 = vpack.c.bf16 %v6697, %v6697
      %v6730 = vpack.c.bf16 %v6698, %v6698
      %v6731 = vpack.c.bf16 %v6699, %v6699
      %v6732 = vpack.c.bf16 %v6700, %v6700
      %v6733 = vpack.c.bf16 %v6701, %v6701
      %v6734 = vpack.c.bf16 %v6702, %v6702
      %v6767 = vunpack.c.l.b16 %v6703
      %v6768 = vunpack.c.l.b16 %v6704
      %v6769 = vunpack.c.l.b16 %v6705
      %v6770 = vunpack.c.l.b16 %v6706
      %v6771 = vunpack.c.l.b16 %v6707
      %v6772 = vunpack.c.l.b16 %v6708
      %v6773 = vunpack.c.l.b16 %v6709
      %v6774 = vunpack.c.l.b16 %v6710
      %v6775 = vunpack.c.l.b16 %v6711
      %v6776 = vunpack.c.l.b16 %v6712
      %v6777 = vunpack.c.l.b16 %v6713
      %v6778 = vunpack.c.l.b16 %v6714
      %v6779 = vunpack.c.l.b16 %v6715
      %v6780 = vunpack.c.l.b16 %v6716
      %v6781 = vunpack.c.l.b16 %v6717
      %v6782 = vunpack.c.l.b16 %v6718
      %v6783 = vunpack.c.l.b16 %v6719
      %v6784 = vunpack.c.l.b16 %v6720
      %v6785 = vunpack.c.l.b16 %v6721
      %v6786 = vunpack.c.l.b16 %v6722
      %v6787 = vunpack.c.l.b16 %v6723
      %v6788 = vunpack.c.l.b16 %v6724
      %v6789 = vunpack.c.l.b16 %v6725
      %v6790 = vunpack.c.l.b16 %v6726
      %v6791 = vunpack.c.l.b16 %v6727
      %v6792 = vunpack.c.l.b16 %v6728
      %v6793 = vunpack.c.l.b16 %v6729
      %v6794 = vunpack.c.l.b16 %v6730
      %v6795 = vunpack.c.l.b16 %v6731
      %v6796 = vunpack.c.l.b16 %v6732
      %v6797 = vunpack.c.l.b16 %v6733
      %v6798 = vunpack.c.l.b16 %v6734
      %v6799 = vpack.c.b16 %v6768, %v6767
      %v6800 = vpack.c.b16 %v6770, %v6769
      %v6801 = vpack.c.b16 %v6772, %v6771
      %v6802 = vpack.c.b16 %v6774, %v6773
      %v6803 = vpack.c.b16 %v6776, %v6775
      %v6804 = vpack.c.b16 %v6778, %v6777
      %v6805 = vpack.c.b16 %v6780, %v6779
      %v6806 = vpack.c.b16 %v6782, %v6781
      %v6807 = vpack.c.b16 %v6784, %v6783
      %v6808 = vpack.c.b16 %v6786, %v6785
      %v6809 = vpack.c.b16 %v6788, %v6787
      %v6810 = vpack.c.b16 %v6790, %v6789
      %v6811 = vpack.c.b16 %v6792, %v6791
      %v6812 = vpack.c.b16 %v6794, %v6793
      %v6813 = vpack.c.b16 %v6796, %v6795
      %v6814 = vpack.c.b16 %v6798, %v6797
      %v6816 = vshrl.u32 %v6799, 16
      %v6818 = vrot.slane %v6816, 7
      %v6819 = vshll.u32 %v6799, 16
      %v6821 = vor.u32 %v6818, %v6819
      %v6823 = vshrl.u32 %v6800, 16
      %v6825 = vrot.slane %v6823, 7
      %v6826 = vshll.u32 %v6800, 16
      %v6828 = vor.u32 %v6825, %v6826
      %v6829 = vsel %vm1239, %v6818, %v6828
      %v6831 = vshrl.u32 %v6801, 16
      %v6833 = vrot.slane %v6831, 7
      %v6834 = vshll.u32 %v6801, 16
      %v6836 = vor.u32 %v6833, %v6834
      %v6837 = vsel %vm1239, %v6825, %v6836
      %v6839 = vshrl.u32 %v6802, 16
      %v6841 = vrot.slane %v6839, 7
      %v6842 = vshll.u32 %v6802, 16
      %v6844 = vor.u32 %v6841, %v6842
      %v6845 = vsel %vm1239, %v6833, %v6844
      %v6847 = vshrl.u32 %v6803, 16
      %v6849 = vrot.slane %v6847, 7
      %v6850 = vshll.u32 %v6803, 16
      %v6852 = vor.u32 %v6849, %v6850
      %v6853 = vsel %vm1239, %v6841, %v6852
      %v6855 = vshrl.u32 %v6804, 16
      %v6857 = vrot.slane %v6855, 7
      %v6858 = vshll.u32 %v6804, 16
      %v6860 = vor.u32 %v6857, %v6858
      %v6861 = vsel %vm1239, %v6849, %v6860
      %v6863 = vshrl.u32 %v6805, 16
      %v6865 = vrot.slane %v6863, 7
      %v6866 = vshll.u32 %v6805, 16
      %v6868 = vor.u32 %v6865, %v6866
      %v6869 = vsel %vm1239, %v6857, %v6868
      %v6871 = vshrl.u32 %v6806, 16
      %v6873 = vrot.slane %v6871, 7
      %v6874 = vshll.u32 %v6806, 16
      %v6876 = vor.u32 %v6873, %v6874
      %v6877 = vsel %vm1239, %v6865, %v6876
      %v6879 = vshrl.u32 %v6807, 16
      %v6881 = vrot.slane %v6879, 7
      %v6882 = vshll.u32 %v6807, 16
      %v6884 = vor.u32 %v6881, %v6882
      %v6885 = vsel %vm1239, %v6873, %v6884
      %v6887 = vshrl.u32 %v6808, 16
      %v6889 = vrot.slane %v6887, 7
      %v6890 = vshll.u32 %v6808, 16
      %v6892 = vor.u32 %v6889, %v6890
      %v6893 = vsel %vm1239, %v6881, %v6892
      %v6895 = vshrl.u32 %v6809, 16
      %v6897 = vrot.slane %v6895, 7
      %v6898 = vshll.u32 %v6809, 16
      %v6900 = vor.u32 %v6897, %v6898
      %v6901 = vsel %vm1239, %v6889, %v6900
      %v6903 = vshrl.u32 %v6810, 16
      %v6905 = vrot.slane %v6903, 7
      %v6906 = vshll.u32 %v6810, 16
      %v6908 = vor.u32 %v6905, %v6906
      %v6909 = vsel %vm1239, %v6897, %v6908
      %v6911 = vshrl.u32 %v6811, 16
      %v6913 = vrot.slane %v6911, 7
      %v6914 = vshll.u32 %v6811, 16
      %v6916 = vor.u32 %v6913, %v6914
      %v6917 = vsel %vm1239, %v6905, %v6916
      %v6919 = vshrl.u32 %v6812, 16
      %v6921 = vrot.slane %v6919, 7
      %v6922 = vshll.u32 %v6812, 16
      %v6924 = vor.u32 %v6921, %v6922
      %v6925 = vsel %vm1239, %v6913, %v6924
      %v6927 = vshrl.u32 %v6813, 16
      %v6929 = vrot.slane %v6927, 7
      %v6930 = vshll.u32 %v6813, 16
      %v6932 = vor.u32 %v6929, %v6930
      %v6933 = vsel %vm1239, %v6921, %v6932
      %v6935 = vshrl.u32 %v6814, 16
      %v6937 = vrot.slane %v6935, 7
      %v6938 = vshll.u32 %v6814, 16
      %v6940 = vor.u32 %v6937, %v6938
      %v6941 = vsel %vm1239, %v6929, %v6940
      %v6958 = vsel %vm1384, 0, %v6821
      %v6959 = vsel %vm1568, %v6958, 0
      %v6960 = vsel %vm1575, %v6829, 0
      %v6961 = vsel %vm1582, %v6837, 0
      %v6962 = vsel %vm1589, %v6845, 0
      %v6963 = vsel %vm1596, %v6853, 0
      %v6964 = vsel %vm1603, %v6861, 0
      %v6965 = vsel %vm1610, %v6869, 0
      %v6966 = vsel %vm1617, %v6877, 0
      %v6967 = vsel %vm1624, %v6885, 0
      %v6968 = vsel %vm1631, %v6893, 0
      %v6969 = vsel %vm1638, %v6901, 0
      %v6970 = vsel %vm1645, %v6909, 0
      %v6971 = vsel %vm1652, %v6917, 0
      %v6972 = vsel %vm1659, %v6925, 0
      %v6973 = vsel %vm1666, %v6933, 0
      %v6974 = vsel %vm1673, %v6941, 0
      %v6975 = vrot.slane %v6819, 1
      %v6976 = vor.u32 %v6816, %v6975
      %v6977 = vrot.slane %v6826, 1
      %v6978 = vsel %vm1690, %v6976, %v6977
      %v6979 = vor.u32 %v6823, %v6977
      %v6980 = vrot.slane %v6834, 1
      %v6981 = vsel %vm1690, %v6979, %v6980
      %v6982 = vor.u32 %v6831, %v6980
      %v6983 = vrot.slane %v6842, 1
      %v6984 = vsel %vm1690, %v6982, %v6983
      %v6985 = vor.u32 %v6839, %v6983
      %v6986 = vrot.slane %v6850, 1
      %v6987 = vsel %vm1690, %v6985, %v6986
      %v6988 = vor.u32 %v6847, %v6986
      %v6989 = vrot.slane %v6858, 1
      %v6990 = vsel %vm1690, %v6988, %v6989
      %v6991 = vor.u32 %v6855, %v6989
      %v6992 = vrot.slane %v6866, 1
      %v6993 = vsel %vm1690, %v6991, %v6992
      %v6994 = vor.u32 %v6863, %v6992
      %v6995 = vrot.slane %v6874, 1
      %v6996 = vsel %vm1690, %v6994, %v6995
      %v6997 = vor.u32 %v6871, %v6995
      %v6998 = vrot.slane %v6882, 1
      %v6999 = vsel %vm1690, %v6997, %v6998
      %v7000 = vor.u32 %v6879, %v6998
      %v7001 = vrot.slane %v6890, 1
      %v7002 = vsel %vm1690, %v7000, %v7001
      %v7003 = vor.u32 %v6887, %v7001
      %v7004 = vrot.slane %v6898, 1
      %v7005 = vsel %vm1690, %v7003, %v7004
      %v7006 = vor.u32 %v6895, %v7004
      %v7007 = vrot.slane %v6906, 1
      %v7008 = vsel %vm1690, %v7006, %v7007
      %v7009 = vor.u32 %v6903, %v7007
      %v7010 = vrot.slane %v6914, 1
      %v7011 = vsel %vm1690, %v7009, %v7010
      %v7012 = vor.u32 %v6911, %v7010
      %v7013 = vrot.slane %v6922, 1
      %v7014 = vsel %vm1690, %v7012, %v7013
      %v7015 = vor.u32 %v6919, %v7013
      %v7016 = vrot.slane %v6930, 1
      %v7017 = vsel %vm1690, %v7015, %v7016
      %v7018 = vor.u32 %v6927, %v7016
      %v7019 = vrot.slane %v6938, 1
      %v7020 = vsel %vm1690, %v7018, %v7019
      %v7021 = vor.u32 %v6935, %v7019
      %v7038 = vsel %vm1755, %v7021, 0
      %v7039 = vsel %vm1939, %v6978, 0
      %v7040 = vsel %vm1946, %v6981, 0
      %v7041 = vsel %vm1953, %v6984, 0
      %v7042 = vsel %vm1960, %v6987, 0
      %v7043 = vsel %vm1967, %v6990, 0
      %v7044 = vsel %vm1974, %v6993, 0
      %v7045 = vsel %vm1981, %v6996, 0
      %v7046 = vsel %vm1988, %v6999, 0
      %v7047 = vsel %vm1995, %v7002, 0
      %v7048 = vsel %vm2002, %v7005, 0
      %v7049 = vsel %vm2009, %v7008, 0
      %v7050 = vsel %vm2016, %v7011, 0
      %v7051 = vsel %vm2023, %v7014, 0
      %v7052 = vsel %vm2030, %v7017, 0
      %v7053 = vsel %vm2037, %v7020, 0
      %v7054 = vsel %vm2044, %v7038, 0
      %7055 = vrot.lane.b32.xlu0 %v6799, 32
      %v7056 = vpop.permute.xlu0 %7055
      %7057 = vrot.lane.b32.xlu0 %v6800, 32
      %v7058 = vpop.permute.xlu0 %7057
      %7059 = vrot.lane.b32.xlu0 %v6801, 32
      %v7060 = vpop.permute.xlu0 %7059
      %7061 = vrot.lane.b32.xlu0 %v6802, 32
      %v7062 = vpop.permute.xlu0 %7061
      %7063 = vrot.lane.b32.xlu0 %v6803, 32
      %v7064 = vpop.permute.xlu0 %7063
      %7065 = vrot.lane.b32.xlu0 %v6804, 32
      %v7066 = vpop.permute.xlu0 %7065
      %7067 = vrot.lane.b32.xlu0 %v6805, 32
      %v7068 = vpop.permute.xlu0 %7067
      %7069 = vrot.lane.b32.xlu0 %v6806, 32
      %v7070 = vpop.permute.xlu0 %7069
      %7071 = vrot.lane.b32.xlu0 %v6807, 32
      %v7072 = vpop.permute.xlu0 %7071
      %7073 = vrot.lane.b32.xlu0 %v6808, 32
      %v7074 = vpop.permute.xlu0 %7073
      %7075 = vrot.lane.b32.xlu0 %v6809, 32
      %v7076 = vpop.permute.xlu0 %7075
      %7077 = vrot.lane.b32.xlu0 %v6810, 32
      %v7078 = vpop.permute.xlu0 %7077
      %7079 = vrot.lane.b32.xlu0 %v6811, 32
      %v7080 = vpop.permute.xlu0 %7079
      %7081 = vrot.lane.b32.xlu0 %v6812, 32
      %v7082 = vpop.permute.xlu0 %7081
      %7083 = vrot.lane.b32.xlu0 %v6813, 32
      %v7084 = vpop.permute.xlu0 %7083
      %7100 = vrot.lane.b32.xlu0 %v7039, 64
      %v7101 = vpop.permute.xlu0 %7100
      %7102 = vrot.lane.b32.xlu0 %v7040, 64
      %v7103 = vpop.permute.xlu0 %7102
      %7104 = vrot.lane.b32.xlu0 %v7041, 64
      %v7105 = vpop.permute.xlu0 %7104
      %7106 = vrot.lane.b32.xlu0 %v7042, 64
      %v7107 = vpop.permute.xlu0 %7106
      %7108 = vrot.lane.b32.xlu0 %v7043, 64
      %v7109 = vpop.permute.xlu0 %7108
      %7110 = vrot.lane.b32.xlu0 %v7044, 64
      %v7111 = vpop.permute.xlu0 %7110
      %7112 = vrot.lane.b32.xlu0 %v7045, 64
      %v7113 = vpop.permute.xlu0 %7112
      %7114 = vrot.lane.b32.xlu0 %v7046, 64
      %v7115 = vpop.permute.xlu0 %7114
      %7116 = vrot.lane.b32.xlu0 %v7047, 64
      %v7117 = vpop.permute.xlu0 %7116
      %7118 = vrot.lane.b32.xlu0 %v7048, 64
      %v7119 = vpop.permute.xlu0 %7118
      %7120 = vrot.lane.b32.xlu0 %v7049, 64
      %v7121 = vpop.permute.xlu0 %7120
      %7122 = vrot.lane.b32.xlu0 %v7050, 64
      %v7123 = vpop.permute.xlu0 %7122
      %7124 = vrot.lane.b32.xlu0 %v7051, 64
      %v7125 = vpop.permute.xlu0 %7124
      %7126 = vrot.lane.b32.xlu0 %v7052, 64
      %v7127 = vpop.permute.xlu0 %7126
      %7128 = vrot.lane.b32.xlu0 %v7053, 64
      %v7129 = vpop.permute.xlu0 %7128
      %7146 = vrot.lane.b32.xlu0 %v6959, 96
      %v7147 = vpop.permute.xlu0 %7146
      %7148 = vrot.lane.b32.xlu0 %v6960, 96
      %v7149 = vpop.permute.xlu0 %7148
      %7150 = vrot.lane.b32.xlu0 %v6961, 96
      %v7151 = vpop.permute.xlu0 %7150
      %7152 = vrot.lane.b32.xlu0 %v6962, 96
      %v7153 = vpop.permute.xlu0 %7152
      %7154 = vrot.lane.b32.xlu0 %v6963, 96
      %v7155 = vpop.permute.xlu0 %7154
      %7156 = vrot.lane.b32.xlu0 %v6964, 96
      %v7157 = vpop.permute.xlu0 %7156
      %7158 = vrot.lane.b32.xlu0 %v6965, 96
      %v7159 = vpop.permute.xlu0 %7158
      %7160 = vrot.lane.b32.xlu0 %v6966, 96
      %v7161 = vpop.permute.xlu0 %7160
      %7162 = vrot.lane.b32.xlu0 %v6967, 96
      %v7163 = vpop.permute.xlu0 %7162
      %7164 = vrot.lane.b32.xlu0 %v6968, 96
      %v7165 = vpop.permute.xlu0 %7164
      %7166 = vrot.lane.b32.xlu0 %v6969, 96
      %v7167 = vpop.permute.xlu0 %7166
      %7168 = vrot.lane.b32.xlu0 %v6970, 96
      %v7169 = vpop.permute.xlu0 %7168
      %7170 = vrot.lane.b32.xlu0 %v6971, 96
      %v7171 = vpop.permute.xlu0 %7170
      %7172 = vrot.lane.b32.xlu0 %v6972, 96
      %v7173 = vpop.permute.xlu0 %7172
      %7174 = vrot.lane.b32.xlu0 %v6973, 96
      %v7175 = vpop.permute.xlu0 %7174
      %7176 = vrot.lane.b32.xlu0 %v6974, 96
      %v7177 = vpop.permute.xlu0 %7176
      %7179 = vrot.lane.b32.xlu0 %v7039, 32
      %v7180 = vpop.permute.xlu0 %7179
      %7181 = vrot.lane.b32.xlu0 %v7040, 32
      %v7182 = vpop.permute.xlu0 %7181
      %7183 = vrot.lane.b32.xlu0 %v7041, 32
      %v7184 = vpop.permute.xlu0 %7183
      %7185 = vrot.lane.b32.xlu0 %v7042, 32
      %v7186 = vpop.permute.xlu0 %7185
      %7187 = vrot.lane.b32.xlu0 %v7043, 32
      %v7188 = vpop.permute.xlu0 %7187
      %7189 = vrot.lane.b32.xlu0 %v7044, 32
      %v7190 = vpop.permute.xlu0 %7189
      %7191 = vrot.lane.b32.xlu0 %v7045, 32
      %v7192 = vpop.permute.xlu0 %7191
      %7193 = vrot.lane.b32.xlu0 %v7046, 32
      %v7194 = vpop.permute.xlu0 %7193
      %7195 = vrot.lane.b32.xlu0 %v7047, 32
      %v7196 = vpop.permute.xlu0 %7195
      %7197 = vrot.lane.b32.xlu0 %v7048, 32
      %v7198 = vpop.permute.xlu0 %7197
      %7199 = vrot.lane.b32.xlu0 %v7049, 32
      %v7200 = vpop.permute.xlu0 %7199
      %7201 = vrot.lane.b32.xlu0 %v7050, 32
      %v7202 = vpop.permute.xlu0 %7201
      %7203 = vrot.lane.b32.xlu0 %v7051, 32
      %v7204 = vpop.permute.xlu0 %7203
      %7205 = vrot.lane.b32.xlu0 %v7052, 32
      %v7206 = vpop.permute.xlu0 %7205
      %7207 = vrot.lane.b32.xlu0 %v7053, 32
      %v7208 = vpop.permute.xlu0 %7207
      %7209 = vrot.lane.b32.xlu0 %v7054, 32
      %v7210 = vpop.permute.xlu0 %7209
      %7211 = vrot.lane.b32.xlu0 %v6960, 64
      %v7212 = vpop.permute.xlu0 %7211
      %7213 = vrot.lane.b32.xlu0 %v6961, 64
      %v7214 = vpop.permute.xlu0 %7213
      %7215 = vrot.lane.b32.xlu0 %v6962, 64
      %v7216 = vpop.permute.xlu0 %7215
      %7217 = vrot.lane.b32.xlu0 %v6963, 64
      %v7218 = vpop.permute.xlu0 %7217
      %7219 = vrot.lane.b32.xlu0 %v6964, 64
      %v7220 = vpop.permute.xlu0 %7219
      %7221 = vrot.lane.b32.xlu0 %v6965, 64
      %v7222 = vpop.permute.xlu0 %7221
      %7223 = vrot.lane.b32.xlu0 %v6966, 64
      %v7224 = vpop.permute.xlu0 %7223
      %7225 = vrot.lane.b32.xlu0 %v6967, 64
      %v7226 = vpop.permute.xlu0 %7225
      %7227 = vrot.lane.b32.xlu0 %v6968, 64
      %v7228 = vpop.permute.xlu0 %7227
      %7229 = vrot.lane.b32.xlu0 %v6969, 64
      %v7230 = vpop.permute.xlu0 %7229
      %7231 = vrot.lane.b32.xlu0 %v6970, 64
      %v7232 = vpop.permute.xlu0 %7231
      %7233 = vrot.lane.b32.xlu0 %v6971, 64
      %v7234 = vpop.permute.xlu0 %7233
      %7235 = vrot.lane.b32.xlu0 %v6972, 64
      %v7236 = vpop.permute.xlu0 %7235
      %7237 = vrot.lane.b32.xlu0 %v6973, 64
      %v7238 = vpop.permute.xlu0 %7237
      %7239 = vrot.lane.b32.xlu0 %v6974, 64
      %v7240 = vpop.permute.xlu0 %7239
      %7241 = vrot.lane.b32.xlu0 %v6800, 96
      %v7242 = vpop.permute.xlu0 %7241
      %7243 = vrot.lane.b32.xlu0 %v6801, 96
      %v7244 = vpop.permute.xlu0 %7243
      %7245 = vrot.lane.b32.xlu0 %v6802, 96
      %v7246 = vpop.permute.xlu0 %7245
      %7247 = vrot.lane.b32.xlu0 %v6803, 96
      %v7248 = vpop.permute.xlu0 %7247
      %7249 = vrot.lane.b32.xlu0 %v6804, 96
      %v7250 = vpop.permute.xlu0 %7249
      %7251 = vrot.lane.b32.xlu0 %v6805, 96
      %v7252 = vpop.permute.xlu0 %7251
      %7253 = vrot.lane.b32.xlu0 %v6806, 96
      %v7254 = vpop.permute.xlu0 %7253
      %7255 = vrot.lane.b32.xlu0 %v6807, 96
      %v7256 = vpop.permute.xlu0 %7255
      %7257 = vrot.lane.b32.xlu0 %v6808, 96
      %v7258 = vpop.permute.xlu0 %7257
      %7259 = vrot.lane.b32.xlu0 %v6809, 96
      %v7260 = vpop.permute.xlu0 %7259
      %7261 = vrot.lane.b32.xlu0 %v6810, 96
      %v7262 = vpop.permute.xlu0 %7261
      %7263 = vrot.lane.b32.xlu0 %v6811, 96
      %v7264 = vpop.permute.xlu0 %7263
      %7265 = vrot.lane.b32.xlu0 %v6812, 96
      %v7266 = vpop.permute.xlu0 %7265
      %7267 = vrot.lane.b32.xlu0 %v6813, 96
      %v7268 = vpop.permute.xlu0 %7267
      %7269 = vrot.lane.b32.xlu0 %v6814, 96
      %v7270 = vpop.permute.xlu0 %7269
      %v7273 = vsel %vm2597, %v6959, %v7056
      %v7276 = vsel %vm2597, %v6960, %v7058
      %v7279 = vsel %vm2597, %v6961, %v7060
      %v7282 = vsel %vm2597, %v6962, %v7062
      %v7285 = vsel %vm2597, %v6963, %v7064
      %v7288 = vsel %vm2597, %v6964, %v7066
      %v7291 = vsel %vm2597, %v6965, %v7068
      %v7294 = vsel %vm2597, %v6966, %v7070
      %v7297 = vsel %vm2597, %v6967, %v7072
      %v7300 = vsel %vm2597, %v6968, %v7074
      %v7303 = vsel %vm2597, %v6969, %v7076
      %v7306 = vsel %vm2597, %v6970, %v7078
      %v7309 = vsel %vm2597, %v6971, %v7080
      %v7312 = vsel %vm2597, %v6972, %v7082
      %v7315 = vsel %vm2597, %v6973, %v7084
      %v7317 = vsel %vm3430, %v7273, %v7101
      %v7319 = vsel %vm3430, %v7276, %v7103
      %v7321 = vsel %vm3430, %v7279, %v7105
      %v7323 = vsel %vm3430, %v7282, %v7107
      %v7325 = vsel %vm3430, %v7285, %v7109
      %v7327 = vsel %vm3430, %v7288, %v7111
      %v7329 = vsel %vm3430, %v7291, %v7113
      %v7331 = vsel %vm3430, %v7294, %v7115
      %v7333 = vsel %vm3430, %v7297, %v7117
      %v7335 = vsel %vm3430, %v7300, %v7119
      %v7337 = vsel %vm3430, %v7303, %v7121
      %v7339 = vsel %vm3430, %v7306, %v7123
      %v7341 = vsel %vm3430, %v7309, %v7125
      %v7343 = vsel %vm3430, %v7312, %v7127
      %v7345 = vsel %vm3430, %v7315, %v7129
      %v7347 = vsel %vm3463, %v3432, %v7147
      %v7350 = vsel %vm3463, %v7317, %v7149
      %v7353 = vsel %vm3463, %v7319, %v7151
      %v7356 = vsel %vm3463, %v7321, %v7153
      %v7359 = vsel %vm3463, %v7323, %v7155
      %v7362 = vsel %vm3463, %v7325, %v7157
      %v7365 = vsel %vm3463, %v7327, %v7159
      %v7368 = vsel %vm3463, %v7329, %v7161
      %v7371 = vsel %vm3463, %v7331, %v7163
      %v7374 = vsel %vm3463, %v7333, %v7165
      %v7377 = vsel %vm3463, %v7335, %v7167
      %v7380 = vsel %vm3463, %v7337, %v7169
      %v7383 = vsel %vm3463, %v7339, %v7171
      %v7386 = vsel %vm3463, %v7341, %v7173
      %v7389 = vsel %vm3463, %v7343, %v7175
      %v7392 = vsel %vm3463, %v7345, %v7177
      %v7395 = vsel %vm2597, %v6799, %v7180
      %v7397 = vsel %vm2597, %v6800, %v7182
      %v7399 = vsel %vm2597, %v6801, %v7184
      %v7401 = vsel %vm2597, %v6802, %v7186
      %v7403 = vsel %vm2597, %v6803, %v7188
      %v7405 = vsel %vm2597, %v6804, %v7190
      %v7407 = vsel %vm2597, %v6805, %v7192
      %v7409 = vsel %vm2597, %v6806, %v7194
      %v7411 = vsel %vm2597, %v6807, %v7196
      %v7413 = vsel %vm2597, %v6808, %v7198
      %v7415 = vsel %vm2597, %v6809, %v7200
      %v7417 = vsel %vm2597, %v6810, %v7202
      %v7419 = vsel %vm2597, %v6811, %v7204
      %v7421 = vsel %vm2597, %v6812, %v7206
      %v7423 = vsel %vm2597, %v6813, %v7208
      %v7425 = vsel %vm2597, %v6814, %v7210
      %v7427 = vsel %vm3430, %v7395, %v7212
      %v7429 = vsel %vm3430, %v7397, %v7214
      %v7431 = vsel %vm3430, %v7399, %v7216
      %v7433 = vsel %vm3430, %v7401, %v7218
      %v7435 = vsel %vm3430, %v7403, %v7220
      %v7437 = vsel %vm3430, %v7405, %v7222
      %v7439 = vsel %vm3430, %v7407, %v7224
      %v7441 = vsel %vm3430, %v7409, %v7226
      %v7443 = vsel %vm3430, %v7411, %v7228
      %v7445 = vsel %vm3430, %v7413, %v7230
      %v7447 = vsel %vm3430, %v7415, %v7232
      %v7449 = vsel %vm3430, %v7417, %v7234
      %v7451 = vsel %vm3430, %v7419, %v7236
      %v7453 = vsel %vm3430, %v7421, %v7238
      %v7455 = vsel %vm3430, %v7423, %v7240
      %v7456 = vsel %vm3430, %v7425, %v3210
      %v7458 = vsel %vm3463, %v7427, %v7242
      %v7461 = vsel %vm3463, %v7429, %v7244
      %v7464 = vsel %vm3463, %v7431, %v7246
      %v7467 = vsel %vm3463, %v7433, %v7248
      %v7470 = vsel %vm3463, %v7435, %v7250
      %v7473 = vsel %vm3463, %v7437, %v7252
      %v7476 = vsel %vm3463, %v7439, %v7254
      %v7479 = vsel %vm3463, %v7441, %v7256
      %v7482 = vsel %vm3463, %v7443, %v7258
      %v7485 = vsel %vm3463, %v7445, %v7260
      %v7488 = vsel %vm3463, %v7447, %v7262
      %v7491 = vsel %vm3463, %v7449, %v7264
      %v7494 = vsel %vm3463, %v7451, %v7266
      %v7497 = vsel %vm3463, %v7453, %v7268
      %v7500 = vsel %vm3463, %v7455, %v7270
      %v7502 = vsel %vm3463, %v7456, %v3383
      %v7504 = vld [vmem:[%s9] sm:$0xf]
      %v7505 = vld [vmem:[%s9 + $0x4] sm:$0xf]
      %v7506 = vld [vmem:[%s9 + $0x8] sm:$0xf]
      %v7507 = vld [vmem:[%s9 + $0xc] sm:$0xf]
      %v7508 = vld [vmem:[%s9 + $0x10] sm:$0xf]
      %v7509 = vld [vmem:[%s9 + $0x14] sm:$0xf]
      %v7510 = vld [vmem:[%s9 + $0x18] sm:$0xf]
      %v7511 = vld [vmem:[%s9 + $0x1c] sm:$0xf]
      %v7512 = vld [vmem:[%s9 + $0x20] sm:$0xf]
      %v7513 = vld [vmem:[%s9 + $0x24] sm:$0xf]
      %v7514 = vld [vmem:[%s9 + $0x28] sm:$0xf]
      %v7515 = vld [vmem:[%s9 + $0x2c] sm:$0xf]
      %v7516 = vld [vmem:[%s9 + $0x30] sm:$0xf]
      %v7517 = vld [vmem:[%s9 + $0x34] sm:$0xf]
      %v7518 = vld [vmem:[%s9 + $0x38] sm:$0xf]
      %v7519 = vld [vmem:[%s9 + $0x3c] sm:$0xf]
      %v7520 = vld [vmem:[%s9 + $0x40] sm:$0xf]
      %v7521 = vld [vmem:[%s9 + $0x44] sm:$0xf]
      %v7522 = vld [vmem:[%s9 + $0x48] sm:$0xf]
      %v7523 = vld [vmem:[%s9 + $0x4c] sm:$0xf]
      %v7524 = vld [vmem:[%s9 + $0x50] sm:$0xf]
      %v7525 = vld [vmem:[%s9 + $0x54] sm:$0xf]
      %v7526 = vld [vmem:[%s9 + $0x58] sm:$0xf]
      %v7527 = vld [vmem:[%s9 + $0x5c] sm:$0xf]
      %v7528 = vld [vmem:[%s9 + $0x60] sm:$0xf]
      %v7529 = vld [vmem:[%s9 + $0x64] sm:$0xf]
      %v7530 = vld [vmem:[%s9 + $0x68] sm:$0xf]
      %v7531 = vld [vmem:[%s9 + $0x6c] sm:$0xf]
      %v7532 = vld [vmem:[%s9 + $0x70] sm:$0xf]
      %v7533 = vld [vmem:[%s9 + $0x74] sm:$0xf]
      %v7534 = vld [vmem:[%s9 + $0x78] sm:$0xf]
      %v7535 = vld [vmem:[%s9 + $0x7c] sm:$0xf]
      %v7536 = vld [vmem:[%s9 + $0x80] sm:$0xf]
      %v7537 = vld [vmem:[%s9 + $0x84] sm:$0xf]
      %v7538 = vld [vmem:[%s9 + $0x88] sm:$0xf]
      %v7539 = vld [vmem:[%s9 + $0x8c] sm:$0xf]
      %v7540 = vld [vmem:[%s10] sm:$0x1]
      %v7542 = vperm.slane %v7540, 0
      %v7580 = vunpack.c.l.b16 %v7504
      %v7581 = vunpack.c.l.b16 %v7505
      %v7582 = vunpack.c.l.b16 %v7506
      %v7583 = vunpack.c.l.b16 %v7507
      %v7584 = vunpack.c.l.b16 %v7508
      %v7585 = vunpack.c.l.b16 %v7509
      %v7586 = vunpack.c.l.b16 %v7510
      %v7587 = vunpack.c.l.b16 %v7511
      %v7588 = vunpack.c.l.b16 %v7512
      %v7589 = vunpack.c.l.b16 %v7513
      %v7590 = vunpack.c.l.b16 %v7514
      %v7591 = vunpack.c.l.b16 %v7515
      %v7592 = vunpack.c.l.b16 %v7516
      %v7593 = vunpack.c.l.b16 %v7517
      %v7594 = vunpack.c.l.b16 %v7518
      %v7595 = vunpack.c.l.b16 %v7519
      %v7596 = vunpack.c.l.b16 %v7520
      %v7597 = vunpack.c.l.b16 %v7521
      %v7598 = vunpack.c.l.b16 %v7522
      %v7599 = vunpack.c.l.b16 %v7523
      %v7600 = vunpack.c.l.b16 %v7524
      %v7601 = vunpack.c.l.b16 %v7525
      %v7602 = vunpack.c.l.b16 %v7526
      %v7603 = vunpack.c.l.b16 %v7527
      %v7604 = vunpack.c.l.b16 %v7528
      %v7605 = vunpack.c.l.b16 %v7529
      %v7606 = vunpack.c.l.b16 %v7530
      %v7607 = vunpack.c.l.b16 %v7531
      %v7608 = vunpack.c.l.b16 %v7532
      %v7609 = vunpack.c.l.b16 %v7533
      %v7610 = vunpack.c.l.b16 %v7534
      %v7611 = vunpack.c.l.b16 %v7535
      %v7612 = vunpack.c.l.b16 %v7536
      %v7613 = vunpack.c.l.b16 %v7537
      %v7614 = vunpack.c.l.b16 %v7538
      %v7615 = vunpack.c.l.b16 %v7539
      %v7616 = vpack.c.b16 %v7581, %v7580
      %v7617 = vpack.c.b16 %v7583, %v7582
      %v7618 = vpack.c.b16 %v7585, %v7584
      %v7619 = vpack.c.b16 %v7587, %v7586
      %v7620 = vpack.c.b16 %v7589, %v7588
      %v7621 = vpack.c.b16 %v7591, %v7590
      %v7622 = vpack.c.b16 %v7593, %v7592
      %v7623 = vpack.c.b16 %v7595, %v7594
      %v7624 = vpack.c.b16 %v7597, %v7596
      %v7625 = vpack.c.b16 %v7599, %v7598
      %v7626 = vpack.c.b16 %v7601, %v7600
      %v7627 = vpack.c.b16 %v7603, %v7602
      %v7628 = vpack.c.b16 %v7605, %v7604
      %v7629 = vpack.c.b16 %v7607, %v7606
      %v7630 = vpack.c.b16 %v7609, %v7608
      %v7631 = vpack.c.b16 %v7611, %v7610
      %v7632 = vpack.c.b16 %v7613, %v7612
      %v7633 = vpack.c.b16 %v7615, %v7614
      %v7653 = vsel %vm2597, %v7040, 0
      %v7656 = vsel %vm2597, %v7041, 0
      %v7659 = vsel %vm2597, %v7042, 0
      %v7662 = vsel %vm2597, %v7043, 0
      %v7665 = vsel %vm2597, %v7044, 0
      %v7668 = vsel %vm2597, %v7045, 0
      %v7671 = vsel %vm2597, %v7046, 0
      %v7674 = vsel %vm2597, %v7047, 0
      %v7677 = vsel %vm2597, %v7048, 0
      %v7680 = vsel %vm2597, %v7049, 0
      %v7683 = vsel %vm2597, %v7050, 0
      %v7686 = vsel %vm2597, %v7051, 0
      %v7689 = vsel %vm2597, %v7052, 0
      %v7692 = vsel %vm2597, %v7053, 0
      %v7695 = vsel %vm2597, %v7054, 0
      %7697 = vmatpush.bf16.msra.mxu0 %v7623
      %7698 = vmatpush.bf16.msra.mxu0 %v7622
      %7699 = vmatpush.bf16.msra.mxu0 %v7621
      %7700 = vmatpush.bf16.msra.mxu0 %v7620
      %7701 = vmatpush.bf16.msra.mxu0 %v7619
      %7702 = vmatpush.bf16.msra.mxu0 %v7618
      %7703 = vmatpush.bf16.msra.mxu0 %v7617
      %7704 = vmatpush.bf16.msra.mxu0 %v7616
      %7705 = vmatmul.bf16.gmra.mxu0 %v7347
      %v7706 = vpop.f32.mrf.mxu0
      %v7707 = vadd.f32 %v7542, %v7706
      %v7708 = vpop.f32.mrf.mxu0
      %v7709 = vadd.f32 %v7542, %v7708
      %7710 = vmatmul.bf16.gmra.mxu0 %v7350
      %v7711 = vpop.f32.mrf.mxu0
      %v7712 = vadd.f32 %v7542, %v7711
      %v7713 = vpop.f32.mrf.mxu0
      %v7714 = vadd.f32 %v7542, %v7713
      %7715 = vmatmul.bf16.gmra.mxu0 %v7353
      %v7716 = vpop.f32.mrf.mxu0
      %v7717 = vadd.f32 %v7542, %v7716
      %v7718 = vpop.f32.mrf.mxu0
      %v7719 = vadd.f32 %v7542, %v7718
      %7720 = vmatmul.bf16.gmra.mxu0 %v7356
      %v7721 = vpop.f32.mrf.mxu0
      %v7722 = vadd.f32 %v7542, %v7721
      %v7723 = vpop.f32.mrf.mxu0
      %v7724 = vadd.f32 %v7542, %v7723
      %7725 = vmatmul.bf16.gmra.mxu0 %v7359
      %v7726 = vpop.f32.mrf.mxu0
      %v7727 = vadd.f32 %v7542, %v7726
      %v7728 = vpop.f32.mrf.mxu0
      %v7729 = vadd.f32 %v7542, %v7728
      %7730 = vmatmul.bf16.gmra.mxu0 %v7362
      %v7731 = vpop.f32.mrf.mxu0
      %v7732 = vadd.f32 %v7542, %v7731
      %v7733 = vpop.f32.mrf.mxu0
      %v7734 = vadd.f32 %v7542, %v7733
      %7735 = vmatmul.bf16.gmra.mxu0 %v7365
      %v7736 = vpop.f32.mrf.mxu0
      %v7737 = vadd.f32 %v7542, %v7736
      %v7738 = vpop.f32.mrf.mxu0
      %v7739 = vadd.f32 %v7542, %v7738
      %7740 = vmatmul.bf16.gmra.mxu0 %v7368
      %v7741 = vpop.f32.mrf.mxu0
      %v7742 = vadd.f32 %v7542, %v7741
      %v7743 = vpop.f32.mrf.mxu0
      %v7744 = vadd.f32 %v7542, %v7743
      %7745 = vmatmul.bf16.gmra.mxu0 %v7371
      %v7746 = vpop.f32.mrf.mxu0
      %v7747 = vadd.f32 %v7542, %v7746
      %v7748 = vpop.f32.mrf.mxu0
      %v7749 = vadd.f32 %v7542, %v7748
      %7750 = vmatmul.bf16.gmra.mxu0 %v7374
      %v7751 = vpop.f32.mrf.mxu0
      %v7752 = vadd.f32 %v7542, %v7751
      %v7753 = vpop.f32.mrf.mxu0
      %v7754 = vadd.f32 %v7542, %v7753
      %7755 = vmatmul.bf16.gmra.mxu0 %v7377
      %v7756 = vpop.f32.mrf.mxu0
      %v7757 = vadd.f32 %v7542, %v7756
      %v7758 = vpop.f32.mrf.mxu0
      %v7759 = vadd.f32 %v7542, %v7758
      %7760 = vmatmul.bf16.gmra.mxu0 %v7380
      %v7761 = vpop.f32.mrf.mxu0
      %v7762 = vadd.f32 %v7542, %v7761
      %v7763 = vpop.f32.mrf.mxu0
      %v7764 = vadd.f32 %v7542, %v7763
      %7765 = vmatmul.bf16.gmra.mxu0 %v7383
      %v7766 = vpop.f32.mrf.mxu0
      %v7767 = vadd.f32 %v7542, %v7766
      %v7768 = vpop.f32.mrf.mxu0
      %v7769 = vadd.f32 %v7542, %v7768
      %7770 = vmatmul.bf16.gmra.mxu0 %v7386
      %v7771 = vpop.f32.mrf.mxu0
      %v7772 = vadd.f32 %v7542, %v7771
      %v7773 = vpop.f32.mrf.mxu0
      %v7774 = vadd.f32 %v7542, %v7773
      %7775 = vmatmul.bf16.gmra.mxu0 %v7389
      %v7776 = vpop.f32.mrf.mxu0
      %v7777 = vadd.f32 %v7542, %v7776
      %v7778 = vpop.f32.mrf.mxu0
      %v7779 = vadd.f32 %v7542, %v7778
      %7780 = vmatmul.bf16.gmra.mxu0 %v7392
      %v7781 = vpop.f32.mrf.mxu0
      %v7782 = vadd.f32 %v7542, %v7781
      %v7783 = vpop.f32.mrf.mxu0
      %v7784 = vadd.f32 %v7542, %v7783
      %7785 = vdwg.mxu0
      %7786 = vmatpush.bf16.msra.mxu0 %v7631
      %7787 = vmatpush.bf16.msra.mxu0 %v7630
      %7788 = vmatpush.bf16.msra.mxu0 %v7629
      %7789 = vmatpush.bf16.msra.mxu0 %v7628
      %7790 = vmatpush.bf16.msra.mxu0 %v7627
      %7791 = vmatpush.bf16.msra.mxu0 %v7626
      %7792 = vmatpush.bf16.msra.mxu0 %v7625
      %7793 = vmatpush.bf16.msra.mxu0 %v7624
      %7794 = vmatmul.bf16.gmra.mxu0 %v7458
      %v7795 = vpop.f32.mrf.mxu0
      %v7796 = vadd.f32 %v7707, %v7795
      %v7797 = vpop.f32.mrf.mxu0
      %v7798 = vadd.f32 %v7709, %v7797
      %7799 = vmatmul.bf16.gmra.mxu0 %v7461
      %v7800 = vpop.f32.mrf.mxu0
      %v7801 = vadd.f32 %v7712, %v7800
      %v7802 = vpop.f32.mrf.mxu0
      %v7803 = vadd.f32 %v7714, %v7802
      %7804 = vmatmul.bf16.gmra.mxu0 %v7464
      %v7805 = vpop.f32.mrf.mxu0
      %v7806 = vadd.f32 %v7717, %v7805
      %v7807 = vpop.f32.mrf.mxu0
      %v7808 = vadd.f32 %v7719, %v7807
      %7809 = vmatmul.bf16.gmra.mxu0 %v7467
      %v7810 = vpop.f32.mrf.mxu0
      %v7811 = vadd.f32 %v7722, %v7810
      %v7812 = vpop.f32.mrf.mxu0
      %v7813 = vadd.f32 %v7724, %v7812
      %7814 = vmatmul.bf16.gmra.mxu0 %v7470
      %v7815 = vpop.f32.mrf.mxu0
      %v7816 = vadd.f32 %v7727, %v7815
      %v7817 = vpop.f32.mrf.mxu0
      %v7818 = vadd.f32 %v7729, %v7817
      %7819 = vmatmul.bf16.gmra.mxu0 %v7473
      %v7820 = vpop.f32.mrf.mxu0
      %v7821 = vadd.f32 %v7732, %v7820
      %v7822 = vpop.f32.mrf.mxu0
      %v7823 = vadd.f32 %v7734, %v7822
      %7824 = vmatmul.bf16.gmra.mxu0 %v7476
      %v7825 = vpop.f32.mrf.mxu0
      %v7826 = vadd.f32 %v7737, %v7825
      %v7827 = vpop.f32.mrf.mxu0
      %v7828 = vadd.f32 %v7739, %v7827
      %7829 = vmatmul.bf16.gmra.mxu0 %v7479
      %v7830 = vpop.f32.mrf.mxu0
      %v7831 = vadd.f32 %v7742, %v7830
      %v7832 = vpop.f32.mrf.mxu0
      %v7833 = vadd.f32 %v7744, %v7832
      %7834 = vmatmul.bf16.gmra.mxu0 %v7482
      %v7835 = vpop.f32.mrf.mxu0
      %v7836 = vadd.f32 %v7747, %v7835
      %v7837 = vpop.f32.mrf.mxu0
      %v7838 = vadd.f32 %v7749, %v7837
      %7839 = vmatmul.bf16.gmra.mxu0 %v7485
      %v7840 = vpop.f32.mrf.mxu0
      %v7841 = vadd.f32 %v7752, %v7840
      %v7842 = vpop.f32.mrf.mxu0
      %v7843 = vadd.f32 %v7754, %v7842
      %7844 = vmatmul.bf16.gmra.mxu0 %v7488
      %v7845 = vpop.f32.mrf.mxu0
      %v7846 = vadd.f32 %v7757, %v7845
      %v7847 = vpop.f32.mrf.mxu0
      %v7848 = vadd.f32 %v7759, %v7847
      %7849 = vmatmul.bf16.gmra.mxu0 %v7491
      %v7850 = vpop.f32.mrf.mxu0
      %v7851 = vadd.f32 %v7762, %v7850
      %v7852 = vpop.f32.mrf.mxu0
      %v7853 = vadd.f32 %v7764, %v7852
      %7854 = vmatmul.bf16.gmra.mxu0 %v7494
      %v7855 = vpop.f32.mrf.mxu0
      %v7856 = vadd.f32 %v7767, %v7855
      %v7857 = vpop.f32.mrf.mxu0
      %v7858 = vadd.f32 %v7769, %v7857
      %7859 = vmatmul.bf16.gmra.mxu0 %v7497
      %v7860 = vpop.f32.mrf.mxu0
      %v7861 = vadd.f32 %v7772, %v7860
      %v7862 = vpop.f32.mrf.mxu0
      %v7863 = vadd.f32 %v7774, %v7862
      %7864 = vmatmul.bf16.gmra.mxu0 %v7500
      %v7865 = vpop.f32.mrf.mxu0
      %v7866 = vadd.f32 %v7777, %v7865
      %v7867 = vpop.f32.mrf.mxu0
      %v7868 = vadd.f32 %v7779, %v7867
      %7869 = vmatmul.bf16.gmra.mxu0 %v7502
      %v7870 = vpop.f32.mrf.mxu0
      %v7871 = vadd.f32 %v7782, %v7870
      %v7872 = vpop.f32.mrf.mxu0
      %v7873 = vadd.f32 %v7784, %v7872
      %7874 = vdwg.mxu0
      %7875 = vmatpush.bf16.msra.mxu0 0
      %7876 = vmatpush.bf16.msra.mxu0 0
      %7877 = vmatpush.bf16.msra.mxu0 0
      %7878 = vmatpush.bf16.msra.mxu0 0
      %7879 = vmatpush.bf16.msra.mxu0 0
      %7880 = vmatpush.bf16.msra.mxu0 0
      %7881 = vmatpush.bf16.msra.mxu0 %v7633
      %7882 = vmatpush.bf16.msra.mxu0 %v7632
      %7883 = vmatmul.bf16.gmra.mxu0 %v7653
      %v7884 = vpop.f32.mrf.mxu0
      %v7885 = vadd.f32 %v7796, %v7884
      %v7886 = vpop.f32.mrf.mxu0
      %v7887 = vadd.f32 %v7798, %v7886
      %7888 = vmatmul.bf16.gmra.mxu0 %v7656
      %v7889 = vpop.f32.mrf.mxu0
      %v7890 = vadd.f32 %v7801, %v7889
      %v7891 = vpop.f32.mrf.mxu0
      %v7892 = vadd.f32 %v7803, %v7891
      %7893 = vmatmul.bf16.gmra.mxu0 %v7659
      %v7894 = vpop.f32.mrf.mxu0
      %v7895 = vadd.f32 %v7806, %v7894
      %v7896 = vpop.f32.mrf.mxu0
      %v7897 = vadd.f32 %v7808, %v7896
      %7898 = vmatmul.bf16.gmra.mxu0 %v7662
      %v7899 = vpop.f32.mrf.mxu0
      %v7900 = vadd.f32 %v7811, %v7899
      %v7901 = vpop.f32.mrf.mxu0
      %v7902 = vadd.f32 %v7813, %v7901
      %7903 = vmatmul.bf16.gmra.mxu0 %v7665
      %v7904 = vpop.f32.mrf.mxu0
      %v7905 = vadd.f32 %v7816, %v7904
      %v7906 = vpop.f32.mrf.mxu0
      %v7907 = vadd.f32 %v7818, %v7906
      %7908 = vmatmul.bf16.gmra.mxu0 %v7668
      %v7909 = vpop.f32.mrf.mxu0
      %v7910 = vadd.f32 %v7821, %v7909
      %v7911 = vpop.f32.mrf.mxu0
      %v7912 = vadd.f32 %v7823, %v7911
      %7913 = vmatmul.bf16.gmra.mxu0 %v7671
      %v7914 = vpop.f32.mrf.mxu0
      %v7915 = vadd.f32 %v7826, %v7914
      %v7916 = vpop.f32.mrf.mxu0
      %v7917 = vadd.f32 %v7828, %v7916
      %7918 = vmatmul.bf16.gmra.mxu0 %v7674
      %v7919 = vpop.f32.mrf.mxu0
      %v7920 = vadd.f32 %v7831, %v7919
      %v7921 = vpop.f32.mrf.mxu0
      %v7922 = vadd.f32 %v7833, %v7921
      %7923 = vmatmul.bf16.gmra.mxu0 %v7677
      %v7924 = vpop.f32.mrf.mxu0
      %v7925 = vadd.f32 %v7836, %v7924
      %v7926 = vpop.f32.mrf.mxu0
      %v7927 = vadd.f32 %v7838, %v7926
      %7928 = vmatmul.bf16.gmra.mxu0 %v7680
      %v7929 = vpop.f32.mrf.mxu0
      %v7930 = vadd.f32 %v7841, %v7929
      %v7931 = vpop.f32.mrf.mxu0
      %v7932 = vadd.f32 %v7843, %v7931
      %7933 = vmatmul.bf16.gmra.mxu0 %v7683
      %v7934 = vpop.f32.mrf.mxu0
      %v7935 = vadd.f32 %v7846, %v7934
      %v7936 = vpop.f32.mrf.mxu0
      %v7937 = vadd.f32 %v7848, %v7936
      %7938 = vmatmul.bf16.gmra.mxu0 %v7686
      %v7939 = vpop.f32.mrf.mxu0
      %v7940 = vadd.f32 %v7851, %v7939
      %v7941 = vpop.f32.mrf.mxu0
      %v7942 = vadd.f32 %v7853, %v7941
      %7943 = vmatmul.bf16.gmra.mxu0 %v7689
      %v7944 = vpop.f32.mrf.mxu0
      %v7945 = vadd.f32 %v7856, %v7944
      %v7946 = vpop.f32.mrf.mxu0
      %v7947 = vadd.f32 %v7858, %v7946
      %7948 = vmatmul.bf16.gmra.mxu0 %v7692
      %v7949 = vpop.f32.mrf.mxu0
      %v7950 = vadd.f32 %v7861, %v7949
      %v7951 = vpop.f32.mrf.mxu0
      %v7952 = vadd.f32 %v7863, %v7951
      %7953 = vmatmul.bf16.gmra.mxu0 %v7695
      %v7954 = vpop.f32.mrf.mxu0
      %v7955 = vadd.f32 %v7866, %v7954
      %v7956 = vpop.f32.mrf.mxu0
      %v7957 = vadd.f32 %v7868, %v7956
      %7958 = vmatmul.bf16.gmra.mxu0 %v3816
      %v7959 = vpop.f32.mrf.mxu0
      %v7960 = vadd.f32 %v7871, %v7959
      %v7961 = vpop.f32.mrf.mxu0
      %v7962 = vadd.f32 %v7873, %v7961
      %7963 = vdwg.mxu0
      %7964 = vst [vmem:[%s637] sm:$0xff] %v7885
      %7965 = vst [vmem:[%s637 + $0x8] sm:$0xff] %v7887
      %7966 = vst [vmem:[%s637 + $0x10] sm:$0xff] %v7890
      %7967 = vst [vmem:[%s637 + $0x18] sm:$0xff] %v7892
      %7968 = vst [vmem:[%s637 + $0x20] sm:$0xff] %v7895
      %7969 = vst [vmem:[%s637 + $0x28] sm:$0xff] %v7897
      %7970 = vst [vmem:[%s637 + $0x30] sm:$0xff] %v7900
      %7971 = vst [vmem:[%s637 + $0x38] sm:$0xff] %v7902
      %7972 = vst [vmem:[%s637 + $0x40] sm:$0xff] %v7905
      %7973 = vst [vmem:[%s637 + $0x48] sm:$0xff] %v7907
      %7974 = vst [vmem:[%s637 + $0x50] sm:$0xff] %v7910
      %7975 = vst [vmem:[%s637 + $0x58] sm:$0xff] %v7912
      %7976 = vst [vmem:[%s637 + $0x60] sm:$0xff] %v7915
      %7977 = vst [vmem:[%s637 + $0x68] sm:$0xff] %v7917
      %7978 = vst [vmem:[%s637 + $0x70] sm:$0xff] %v7920
      %7979 = vst [vmem:[%s637 + $0x78] sm:$0xff] %v7922
      %7980 = vst [vmem:[%s637 + $0x80] sm:$0xff] %v7925
      %7981 = vst [vmem:[%s637 + $0x88] sm:$0xff] %v7927
      %7982 = vst [vmem:[%s637 + $0x90] sm:$0xff] %v7930
      %7983 = vst [vmem:[%s637 + $0x98] sm:$0xff] %v7932
      %7984 = vst [vmem:[%s637 + $0xa0] sm:$0xff] %v7935
      %7985 = vst [vmem:[%s637 + $0xa8] sm:$0xff] %v7937
      %7986 = vst [vmem:[%s637 + $0xb0] sm:$0xff] %v7940
      %7987 = vst [vmem:[%s637 + $0xb8] sm:$0xff] %v7942
      %7988 = vst [vmem:[%s637 + $0xc0] sm:$0xff] %v7945
      %7989 = vst [vmem:[%s637 + $0xc8] sm:$0xff] %v7947
      %7990 = vst [vmem:[%s637 + $0xd0] sm:$0xff] %v7950
      %7991 = vst [vmem:[%s637 + $0xd8] sm:$0xff] %v7952
      %7992 = vst [vmem:[%s637 + $0xe0] sm:$0xff] %v7955
      %7993 = vst [vmem:[%s637 + $0xe8] sm:$0xff] %v7957
      %7994 = vst [vmem:[%s637 + $0xf0] sm:$0xff] %v7960
      %7995 = vst [vmem:[%s637 + $0xf8] sm:$0xff] %v7962
      %7996 = vrot.lane.b32.xlu0 %v2930, 96
      %v7997 = vpop.permute.xlu0 %7996
      %7998 = vrot.lane.b32.xlu0 %v2938, 96
      %v7999 = vpop.permute.xlu0 %7998
      %8000 = vrot.lane.b32.xlu0 %v2946, 96
      %v8001 = vpop.permute.xlu0 %8000
      %8002 = vrot.lane.b32.xlu0 %v2954, 96
      %v8003 = vpop.permute.xlu0 %8002
      %8004 = vrot.lane.b32.xlu0 %v2962, 96
      %v8005 = vpop.permute.xlu0 %8004
      %8006 = vrot.lane.b32.xlu0 %v2970, 96
      %v8007 = vpop.permute.xlu0 %8006
      %8008 = vrot.lane.b32.xlu0 %v2978, 96
      %v8009 = vpop.permute.xlu0 %8008
      %8010 = vrot.lane.b32.xlu0 %v2986, 96
      %v8011 = vpop.permute.xlu0 %8010
      %8012 = vrot.lane.b32.xlu0 %v2994, 96
      %v8013 = vpop.permute.xlu0 %8012
      %8014 = vrot.lane.b32.xlu0 %v3002, 96
      %v8015 = vpop.permute.xlu0 %8014
      %8016 = vrot.lane.b32.xlu0 %v3010, 96
      %v8017 = vpop.permute.xlu0 %8016
      %8018 = vrot.lane.b32.xlu0 %v3018, 96
      %v8019 = vpop.permute.xlu0 %8018
      %8020 = vrot.lane.b32.xlu0 %v3026, 96
      %v8021 = vpop.permute.xlu0 %8020
      %8022 = vrot.lane.b32.xlu0 %v3034, 96
      %v8023 = vpop.permute.xlu0 %8022
      %8024 = vrot.lane.b32.xlu0 %v3042, 96
      %v8025 = vpop.permute.xlu0 %8024
      %8026 = vrot.lane.b32.xlu0 %v3050, 96
      %v8027 = vpop.permute.xlu0 %8026
      %v8044 = vsel %vm1384, 0, %v7997
      %v8045 = vsel %vm1568, %v8044, 0
      %v8046 = vsel %vm1575, %v7999, 0
      %v8047 = vsel %vm1582, %v8001, 0
      %v8048 = vsel %vm1589, %v8003, 0
      %v8049 = vsel %vm1596, %v8005, 0
      %v8050 = vsel %vm1603, %v8007, 0
      %v8051 = vsel %vm1610, %v8009, 0
      %v8052 = vsel %vm1617, %v8011, 0
      %v8053 = vsel %vm1624, %v8013, 0
      %v8054 = vsel %vm1631, %v8015, 0
      %v8055 = vsel %vm1638, %v8017, 0
      %v8056 = vsel %vm1645, %v8019, 0
      %v8057 = vsel %vm1652, %v8021, 0
      %v8058 = vsel %vm1659, %v8023, 0
      %v8059 = vsel %vm1666, %v8025, 0
      %v8060 = vsel %vm1673, %v8027, 0
      %8061 = vrot.lane.b32.xlu0 %v2908, 96
      %v8062 = vpop.permute.xlu0 %8061
      %8063 = vrot.lane.b32.xlu0 %v3148, 96
      %v8064 = vpop.permute.xlu0 %8063
      %8065 = vrot.lane.b32.xlu0 %v3149, 96
      %v8066 = vpop.permute.xlu0 %8065
      %8067 = vrot.lane.b32.xlu0 %v3150, 96
      %v8068 = vpop.permute.xlu0 %8067
      %8069 = vrot.lane.b32.xlu0 %v3151, 96
      %v8070 = vpop.permute.xlu0 %8069
      %8071 = vrot.lane.b32.xlu0 %v3152, 96
      %v8072 = vpop.permute.xlu0 %8071
      %8073 = vrot.lane.b32.xlu0 %v3153, 96
      %v8074 = vpop.permute.xlu0 %8073
      %8075 = vrot.lane.b32.xlu0 %v3154, 96
      %v8076 = vpop.permute.xlu0 %8075
      %8077 = vrot.lane.b32.xlu0 %v3155, 96
      %v8078 = vpop.permute.xlu0 %8077
      %8079 = vrot.lane.b32.xlu0 %v3156, 96
      %v8080 = vpop.permute.xlu0 %8079
      %8081 = vrot.lane.b32.xlu0 %v3157, 96
      %v8082 = vpop.permute.xlu0 %8081
      %8083 = vrot.lane.b32.xlu0 %v3158, 96
      %v8084 = vpop.permute.xlu0 %8083
      %8085 = vrot.lane.b32.xlu0 %v3159, 96
      %v8086 = vpop.permute.xlu0 %8085
      %8087 = vrot.lane.b32.xlu0 %v3160, 96
      %v8088 = vpop.permute.xlu0 %8087
      %8089 = vrot.lane.b32.xlu0 %v3161, 96
      %v8090 = vpop.permute.xlu0 %8089
      %8091 = vrot.lane.b32.xlu0 %v3162, 96
      %v8092 = vpop.permute.xlu0 %8091
      %8093 = vrot.lane.b32.xlu0 %v8062, 32
      %v8094 = vpop.permute.xlu0 %8093
      %8095 = vrot.lane.b32.xlu0 %v3353, 32
      %v8096 = vpop.permute.xlu0 %8095
      %8097 = vrot.lane.b32.xlu0 %v3355, 32
      %v8098 = vpop.permute.xlu0 %8097
      %8099 = vrot.lane.b32.xlu0 %v3357, 32
      %v8100 = vpop.permute.xlu0 %8099
      %8101 = vrot.lane.b32.xlu0 %v3359, 32
      %v8102 = vpop.permute.xlu0 %8101
      %8103 = vrot.lane.b32.xlu0 %v3361, 32
      %v8104 = vpop.permute.xlu0 %8103
      %8105 = vrot.lane.b32.xlu0 %v3363, 32
      %v8106 = vpop.permute.xlu0 %8105
      %8107 = vrot.lane.b32.xlu0 %v3365, 32
      %v8108 = vpop.permute.xlu0 %8107
      %8109 = vrot.lane.b32.xlu0 %v3367, 32
      %v8110 = vpop.permute.xlu0 %8109
      %8111 = vrot.lane.b32.xlu0 %v3369, 32
      %v8112 = vpop.permute.xlu0 %8111
      %8113 = vrot.lane.b32.xlu0 %v3371, 32
      %v8114 = vpop.permute.xlu0 %8113
      %8115 = vrot.lane.b32.xlu0 %v3373, 32
      %v8116 = vpop.permute.xlu0 %8115
      %8117 = vrot.lane.b32.xlu0 %v3375, 32
      %v8118 = vpop.permute.xlu0 %8117
      %8119 = vrot.lane.b32.xlu0 %v3377, 32
      %v8120 = vpop.permute.xlu0 %8119
      %8121 = vrot.lane.b32.xlu0 %v3379, 32
      %v8122 = vpop.permute.xlu0 %8121
      %8123 = vrot.lane.b32.xlu0 %v8064, 64
      %v8124 = vpop.permute.xlu0 %8123
      %8125 = vrot.lane.b32.xlu0 %v8066, 64
      %v8126 = vpop.permute.xlu0 %8125
      %8127 = vrot.lane.b32.xlu0 %v8068, 64
      %v8128 = vpop.permute.xlu0 %8127
      %8129 = vrot.lane.b32.xlu0 %v8070, 64
      %v8130 = vpop.permute.xlu0 %8129
      %8131 = vrot.lane.b32.xlu0 %v8072, 64
      %v8132 = vpop.permute.xlu0 %8131
      %8133 = vrot.lane.b32.xlu0 %v8074, 64
      %v8134 = vpop.permute.xlu0 %8133
      %8135 = vrot.lane.b32.xlu0 %v8076, 64
      %v8136 = vpop.permute.xlu0 %8135
      %8137 = vrot.lane.b32.xlu0 %v8078, 64
      %v8138 = vpop.permute.xlu0 %8137
      %8139 = vrot.lane.b32.xlu0 %v8080, 64
      %v8140 = vpop.permute.xlu0 %8139
      %8141 = vrot.lane.b32.xlu0 %v8082, 64
      %v8142 = vpop.permute.xlu0 %8141
      %8143 = vrot.lane.b32.xlu0 %v8084, 64
      %v8144 = vpop.permute.xlu0 %8143
      %8145 = vrot.lane.b32.xlu0 %v8086, 64
      %v8146 = vpop.permute.xlu0 %8145
      %8147 = vrot.lane.b32.xlu0 %v8088, 64
      %v8148 = vpop.permute.xlu0 %8147
      %8149 = vrot.lane.b32.xlu0 %v8090, 64
      %v8150 = vpop.permute.xlu0 %8149
      %8151 = vrot.lane.b32.xlu0 %v8092, 64
      %v8152 = vpop.permute.xlu0 %8151
      %8169 = vrot.lane.b32.xlu0 %v8045, 96
      %v8170 = vpop.permute.xlu0 %8169
      %8171 = vrot.lane.b32.xlu0 %v8046, 96
      %v8172 = vpop.permute.xlu0 %8171
      %8173 = vrot.lane.b32.xlu0 %v8047, 96
      %v8174 = vpop.permute.xlu0 %8173
      %8175 = vrot.lane.b32.xlu0 %v8048, 96
      %v8176 = vpop.permute.xlu0 %8175
      %8177 = vrot.lane.b32.xlu0 %v8049, 96
      %v8178 = vpop.permute.xlu0 %8177
      %8179 = vrot.lane.b32.xlu0 %v8050, 96
      %v8180 = vpop.permute.xlu0 %8179
      %8181 = vrot.lane.b32.xlu0 %v8051, 96
      %v8182 = vpop.permute.xlu0 %8181
      %8183 = vrot.lane.b32.xlu0 %v8052, 96
      %v8184 = vpop.permute.xlu0 %8183
      %8185 = vrot.lane.b32.xlu0 %v8053, 96
      %v8186 = vpop.permute.xlu0 %8185
      %8187 = vrot.lane.b32.xlu0 %v8054, 96
      %v8188 = vpop.permute.xlu0 %8187
      %8189 = vrot.lane.b32.xlu0 %v8055, 96
      %v8190 = vpop.permute.xlu0 %8189
      %8191 = vrot.lane.b32.xlu0 %v8056, 96
      %v8192 = vpop.permute.xlu0 %8191
      %8193 = vrot.lane.b32.xlu0 %v8057, 96
      %v8194 = vpop.permute.xlu0 %8193
      %8195 = vrot.lane.b32.xlu0 %v8058, 96
      %v8196 = vpop.permute.xlu0 %8195
      %8197 = vrot.lane.b32.xlu0 %v8059, 96
      %v8198 = vpop.permute.xlu0 %8197
      %8199 = vrot.lane.b32.xlu0 %v8060, 96
      %v8200 = vpop.permute.xlu0 %8199
      %8201 = vrot.lane.b32.xlu0 %v8046, 64
      %v8202 = vpop.permute.xlu0 %8201
      %8203 = vrot.lane.b32.xlu0 %v8047, 64
      %v8204 = vpop.permute.xlu0 %8203
      %8205 = vrot.lane.b32.xlu0 %v8048, 64
      %v8206 = vpop.permute.xlu0 %8205
      %8207 = vrot.lane.b32.xlu0 %v8049, 64
      %v8208 = vpop.permute.xlu0 %8207
      %8209 = vrot.lane.b32.xlu0 %v8050, 64
      %v8210 = vpop.permute.xlu0 %8209
      %8211 = vrot.lane.b32.xlu0 %v8051, 64
      %v8212 = vpop.permute.xlu0 %8211
      %8213 = vrot.lane.b32.xlu0 %v8052, 64
      %v8214 = vpop.permute.xlu0 %8213
      %8215 = vrot.lane.b32.xlu0 %v8053, 64
      %v8216 = vpop.permute.xlu0 %8215
      %8217 = vrot.lane.b32.xlu0 %v8054, 64
      %v8218 = vpop.permute.xlu0 %8217
      %8219 = vrot.lane.b32.xlu0 %v8055, 64
      %v8220 = vpop.permute.xlu0 %8219
      %8221 = vrot.lane.b32.xlu0 %v8056, 64
      %v8222 = vpop.permute.xlu0 %8221
      %8223 = vrot.lane.b32.xlu0 %v8057, 64
      %v8224 = vpop.permute.xlu0 %8223
      %8225 = vrot.lane.b32.xlu0 %v8058, 64
      %v8226 = vpop.permute.xlu0 %8225
      %8227 = vrot.lane.b32.xlu0 %v8059, 64
      %v8228 = vpop.permute.xlu0 %8227
      %8229 = vrot.lane.b32.xlu0 %v8060, 64
      %v8230 = vpop.permute.xlu0 %8229
      %8231 = vrot.lane.b32.xlu0 %v2909, 64
      %v8232 = vpop.permute.xlu0 %8231
      %8233 = vrot.lane.b32.xlu0 %v2910, 64
      %v8234 = vpop.permute.xlu0 %8233
      %8235 = vrot.lane.b32.xlu0 %v2911, 64
      %v8236 = vpop.permute.xlu0 %8235
      %8237 = vrot.lane.b32.xlu0 %v2912, 64
      %v8238 = vpop.permute.xlu0 %8237
      %8239 = vrot.lane.b32.xlu0 %v2913, 64
      %v8240 = vpop.permute.xlu0 %8239
      %8241 = vrot.lane.b32.xlu0 %v2914, 64
      %v8242 = vpop.permute.xlu0 %8241
      %8243 = vrot.lane.b32.xlu0 %v2915, 64
      %v8244 = vpop.permute.xlu0 %8243
      %8245 = vrot.lane.b32.xlu0 %v2916, 64
      %v8246 = vpop.permute.xlu0 %8245
      %8247 = vrot.lane.b32.xlu0 %v2917, 64
      %v8248 = vpop.permute.xlu0 %8247
      %8249 = vrot.lane.b32.xlu0 %v2918, 64
      %v8250 = vpop.permute.xlu0 %8249
      %8251 = vrot.lane.b32.xlu0 %v2919, 64
      %v8252 = vpop.permute.xlu0 %8251
      %8253 = vrot.lane.b32.xlu0 %v2920, 64
      %v8254 = vpop.permute.xlu0 %8253
      %8255 = vrot.lane.b32.xlu0 %v2921, 64
      %v8256 = vpop.permute.xlu0 %8255
      %8257 = vrot.lane.b32.xlu0 %v2922, 64
      %v8258 = vpop.permute.xlu0 %8257
      %8259 = vrot.lane.b32.xlu0 %v2923, 64
      %v8260 = vpop.permute.xlu0 %8259
      %8261 = vrot.lane.b32.xlu0 %v3163, 96
      %v8262 = vpop.permute.xlu0 %8261
      %v8265 = vsel %vm2597, %v8045, %v8094
      %v8268 = vsel %vm2597, %v8046, %v8096
      %v8271 = vsel %vm2597, %v8047, %v8098
      %v8274 = vsel %vm2597, %v8048, %v8100
      %v8277 = vsel %vm2597, %v8049, %v8102
      %v8280 = vsel %vm2597, %v8050, %v8104
      %v8283 = vsel %vm2597, %v8051, %v8106
      %v8286 = vsel %vm2597, %v8052, %v8108
      %v8289 = vsel %vm2597, %v8053, %v8110
      %v8292 = vsel %vm2597, %v8054, %v8112
      %v8295 = vsel %vm2597, %v8055, %v8114
      %v8298 = vsel %vm2597, %v8056, %v8116
      %v8301 = vsel %vm2597, %v8057, %v8118
      %v8304 = vsel %vm2597, %v8058, %v8120
      %v8307 = vsel %vm2597, %v8059, %v8122
      %v8309 = vsel %vm3430, %v8265, %v8124
      %v8311 = vsel %vm3430, %v8268, %v8126
      %v8313 = vsel %vm3430, %v8271, %v8128
      %v8315 = vsel %vm3430, %v8274, %v8130
      %v8317 = vsel %vm3430, %v8277, %v8132
      %v8319 = vsel %vm3430, %v8280, %v8134
      %v8321 = vsel %vm3430, %v8283, %v8136
      %v8323 = vsel %vm3430, %v8286, %v8138
      %v8325 = vsel %vm3430, %v8289, %v8140
      %v8327 = vsel %vm3430, %v8292, %v8142
      %v8329 = vsel %vm3430, %v8295, %v8144
      %v8331 = vsel %vm3430, %v8298, %v8146
      %v8333 = vsel %vm3430, %v8301, %v8148
      %v8335 = vsel %vm3430, %v8304, %v8150
      %v8337 = vsel %vm3430, %v8307, %v8152
      %v8339 = vsel %vm3463, %v3432, %v8170
      %v8342 = vsel %vm3463, %v8309, %v8172
      %v8345 = vsel %vm3463, %v8311, %v8174
      %v8348 = vsel %vm3463, %v8313, %v8176
      %v8351 = vsel %vm3463, %v8315, %v8178
      %v8354 = vsel %vm3463, %v8317, %v8180
      %v8357 = vsel %vm3463, %v8319, %v8182
      %v8360 = vsel %vm3463, %v8321, %v8184
      %v8363 = vsel %vm3463, %v8323, %v8186
      %v8366 = vsel %vm3463, %v8325, %v8188
      %v8369 = vsel %vm3463, %v8327, %v8190
      %v8372 = vsel %vm3463, %v8329, %v8192
      %v8375 = vsel %vm3463, %v8331, %v8194
      %v8378 = vsel %vm3463, %v8333, %v8196
      %v8381 = vsel %vm3463, %v8335, %v8198
      %v8384 = vsel %vm3463, %v8337, %v8200
      %v8388 = vsel %vm2597, %v8062, %v3148
      %v8389 = vsel %vm2597, %v3353, %v3149
      %v8390 = vsel %vm2597, %v3355, %v3150
      %v8391 = vsel %vm2597, %v3357, %v3151
      %v8392 = vsel %vm2597, %v3359, %v3152
      %v8393 = vsel %vm2597, %v3361, %v3153
      %v8394 = vsel %vm2597, %v3363, %v3154
      %v8395 = vsel %vm2597, %v3365, %v3155
      %v8396 = vsel %vm2597, %v3367, %v3156
      %v8397 = vsel %vm2597, %v3369, %v3157
      %v8398 = vsel %vm2597, %v3371, %v3158
      %v8399 = vsel %vm2597, %v3373, %v3159
      %v8400 = vsel %vm2597, %v3375, %v3160
      %v8401 = vsel %vm2597, %v3377, %v3161
      %v8402 = vsel %vm2597, %v3379, %v3162
      %v8403 = vsel %vm2597, %v3381, %v3163
      %v8405 = vsel %vm3430, %v8388, %v8202
      %v8407 = vsel %vm3430, %v8389, %v8204
      %v8409 = vsel %vm3430, %v8390, %v8206
      %v8411 = vsel %vm3430, %v8391, %v8208
      %v8413 = vsel %vm3430, %v8392, %v8210
      %v8415 = vsel %vm3430, %v8393, %v8212
      %v8417 = vsel %vm3430, %v8394, %v8214
      %v8419 = vsel %vm3430, %v8395, %v8216
      %v8421 = vsel %vm3430, %v8396, %v8218
      %v8423 = vsel %vm3430, %v8397, %v8220
      %v8425 = vsel %vm3430, %v8398, %v8222
      %v8427 = vsel %vm3430, %v8399, %v8224
      %v8429 = vsel %vm3430, %v8400, %v8226
      %v8431 = vsel %vm3430, %v8401, %v8228
      %v8433 = vsel %vm3430, %v8402, %v8230
      %v8434 = vsel %vm3430, %v8403, %v3210
      %v8436 = vsel %vm3463, %v8405, %v8232
      %v8439 = vsel %vm3463, %v8407, %v8234
      %v8442 = vsel %vm3463, %v8409, %v8236
      %v8445 = vsel %vm3463, %v8411, %v8238
      %v8448 = vsel %vm3463, %v8413, %v8240
      %v8451 = vsel %vm3463, %v8415, %v8242
      %v8454 = vsel %vm3463, %v8417, %v8244
      %v8457 = vsel %vm3463, %v8419, %v8246
      %v8460 = vsel %vm3463, %v8421, %v8248
      %v8463 = vsel %vm3463, %v8423, %v8250
      %v8466 = vsel %vm3463, %v8425, %v8252
      %v8469 = vsel %vm3463, %v8427, %v8254
      %v8472 = vsel %vm3463, %v8429, %v8256
      %v8475 = vsel %vm3463, %v8431, %v8258
      %v8478 = vsel %vm3463, %v8433, %v8260
      %v8480 = vsel %vm3463, %v8434, %v3210
      %v8482 = vld [vmem:[%s11] sm:$0xf]
      %v8483 = vld [vmem:[%s11 + $0x4] sm:$0xf]
      %v8484 = vld [vmem:[%s11 + $0x8] sm:$0xf]
      %v8485 = vld [vmem:[%s11 + $0xc] sm:$0xf]
      %v8486 = vld [vmem:[%s11 + $0x10] sm:$0xf]
      %v8487 = vld [vmem:[%s11 + $0x14] sm:$0xf]
      %v8488 = vld [vmem:[%s11 + $0x18] sm:$0xf]
      %v8489 = vld [vmem:[%s11 + $0x1c] sm:$0xf]
      %v8490 = vld [vmem:[%s11 + $0x20] sm:$0xf]
      %v8491 = vld [vmem:[%s11 + $0x24] sm:$0xf]
      %v8492 = vld [vmem:[%s11 + $0x28] sm:$0xf]
      %v8493 = vld [vmem:[%s11 + $0x2c] sm:$0xf]
      %v8494 = vld [vmem:[%s11 + $0x30] sm:$0xf]
      %v8495 = vld [vmem:[%s11 + $0x34] sm:$0xf]
      %v8496 = vld [vmem:[%s11 + $0x38] sm:$0xf]
      %v8497 = vld [vmem:[%s11 + $0x3c] sm:$0xf]
      %v8498 = vld [vmem:[%s11 + $0x40] sm:$0xf]
      %v8499 = vld [vmem:[%s11 + $0x44] sm:$0xf]
      %v8500 = vld [vmem:[%s11 + $0x48] sm:$0xf]
      %v8501 = vld [vmem:[%s11 + $0x4c] sm:$0xf]
      %v8502 = vld [vmem:[%s11 + $0x50] sm:$0xf]
      %v8503 = vld [vmem:[%s11 + $0x54] sm:$0xf]
      %v8504 = vld [vmem:[%s11 + $0x58] sm:$0xf]
      %v8505 = vld [vmem:[%s11 + $0x5c] sm:$0xf]
      %v8506 = vld [vmem:[%s11 + $0x60] sm:$0xf]
      %v8507 = vld [vmem:[%s11 + $0x64] sm:$0xf]
      %v8508 = vld [vmem:[%s11 + $0x68] sm:$0xf]
      %v8509 = vld [vmem:[%s11 + $0x6c] sm:$0xf]
      %v8510 = vld [vmem:[%s11 + $0x70] sm:$0xf]
      %v8511 = vld [vmem:[%s11 + $0x74] sm:$0xf]
      %v8512 = vld [vmem:[%s11 + $0x78] sm:$0xf]
      %v8513 = vld [vmem:[%s11 + $0x7c] sm:$0xf]
      %v8514 = vld [vmem:[%s11 + $0x80] sm:$0xf]
      %v8515 = vld [vmem:[%s11 + $0x84] sm:$0xf]
      %v8516 = vld [vmem:[%s11 + $0x88] sm:$0xf]
      %v8517 = vld [vmem:[%s11 + $0x8c] sm:$0xf]
      %v8518 = vld [vmem:[%s12] sm:$0x1]
      %v8520 = vperm.slane %v8518, 0
      %v8558 = vunpack.c.l.b16 %v8482
      %v8559 = vunpack.c.l.b16 %v8483
      %v8560 = vunpack.c.l.b16 %v8484
      %v8561 = vunpack.c.l.b16 %v8485
      %v8562 = vunpack.c.l.b16 %v8486
      %v8563 = vunpack.c.l.b16 %v8487
      %v8564 = vunpack.c.l.b16 %v8488
      %v8565 = vunpack.c.l.b16 %v8489
      %v8566 = vunpack.c.l.b16 %v8490
      %v8567 = vunpack.c.l.b16 %v8491
      %v8568 = vunpack.c.l.b16 %v8492
      %v8569 = vunpack.c.l.b16 %v8493
      %v8570 = vunpack.c.l.b16 %v8494
      %v8571 = vunpack.c.l.b16 %v8495
      %v8572 = vunpack.c.l.b16 %v8496
      %v8573 = vunpack.c.l.b16 %v8497
      %v8574 = vunpack.c.l.b16 %v8498
      %v8575 = vunpack.c.l.b16 %v8499
      %v8576 = vunpack.c.l.b16 %v8500
      %v8577 = vunpack.c.l.b16 %v8501
      %v8578 = vunpack.c.l.b16 %v8502
      %v8579 = vunpack.c.l.b16 %v8503
      %v8580 = vunpack.c.l.b16 %v8504
      %v8581 = vunpack.c.l.b16 %v8505
      %v8582 = vunpack.c.l.b16 %v8506
      %v8583 = vunpack.c.l.b16 %v8507
      %v8584 = vunpack.c.l.b16 %v8508
      %v8585 = vunpack.c.l.b16 %v8509
      %v8586 = vunpack.c.l.b16 %v8510
      %v8587 = vunpack.c.l.b16 %v8511
      %v8588 = vunpack.c.l.b16 %v8512
      %v8589 = vunpack.c.l.b16 %v8513
      %v8590 = vunpack.c.l.b16 %v8514
      %v8591 = vunpack.c.l.b16 %v8515
      %v8592 = vunpack.c.l.b16 %v8516
      %v8593 = vunpack.c.l.b16 %v8517
      %v8594 = vpack.c.b16 %v8559, %v8558
      %v8595 = vpack.c.b16 %v8561, %v8560
      %v8596 = vpack.c.b16 %v8563, %v8562
      %v8597 = vpack.c.b16 %v8565, %v8564
      %v8598 = vpack.c.b16 %v8567, %v8566
      %v8599 = vpack.c.b16 %v8569, %v8568
      %v8600 = vpack.c.b16 %v8571, %v8570
      %v8601 = vpack.c.b16 %v8573, %v8572
      %v8602 = vpack.c.b16 %v8575, %v8574
      %v8603 = vpack.c.b16 %v8577, %v8576
      %v8604 = vpack.c.b16 %v8579, %v8578
      %v8605 = vpack.c.b16 %v8581, %v8580
      %v8606 = vpack.c.b16 %v8583, %v8582
      %v8607 = vpack.c.b16 %v8585, %v8584
      %v8608 = vpack.c.b16 %v8587, %v8586
      %v8609 = vpack.c.b16 %v8589, %v8588
      %v8610 = vpack.c.b16 %v8591, %v8590
      %v8611 = vpack.c.b16 %v8593, %v8592
      %v8631 = vsel %vm2597, %v8066, 0
      %v8634 = vsel %vm2597, %v8068, 0
      %v8637 = vsel %vm2597, %v8070, 0
      %v8640 = vsel %vm2597, %v8072, 0
      %v8643 = vsel %vm2597, %v8074, 0
      %v8646 = vsel %vm2597, %v8076, 0
      %v8649 = vsel %vm2597, %v8078, 0
      %v8652 = vsel %vm2597, %v8080, 0
      %v8655 = vsel %vm2597, %v8082, 0
      %v8658 = vsel %vm2597, %v8084, 0
      %v8661 = vsel %vm2597, %v8086, 0
      %v8664 = vsel %vm2597, %v8088, 0
      %v8667 = vsel %vm2597, %v8090, 0
      %v8670 = vsel %vm2597, %v8092, 0
      %v8673 = vsel %vm2597, %v8262, 0
      %v8675 = vsel %vm2597, %v3383, 0
      %8677 = vmatpush.bf16.msra.mxu0 %v8601
      %8678 = vmatpush.bf16.msra.mxu0 %v8600
      %8679 = vmatpush.bf16.msra.mxu0 %v8599
      %8680 = vmatpush.bf16.msra.mxu0 %v8598
      %8681 = vmatpush.bf16.msra.mxu0 %v8597
      %8682 = vmatpush.bf16.msra.mxu0 %v8596
      %8683 = vmatpush.bf16.msra.mxu0 %v8595
      %8684 = vmatpush.bf16.msra.mxu0 %v8594
      %8685 = vmatmul.bf16.gmra.mxu0 %v8339
      %v8686 = vpop.f32.mrf.mxu0
      %v8687 = vadd.f32 %v8520, %v8686
      %v8688 = vpop.f32.mrf.mxu0
      %v8689 = vadd.f32 %v8520, %v8688
      %8690 = vmatmul.bf16.gmra.mxu0 %v8342
      %v8691 = vpop.f32.mrf.mxu0
      %v8692 = vadd.f32 %v8520, %v8691
      %v8693 = vpop.f32.mrf.mxu0
      %v8694 = vadd.f32 %v8520, %v8693
      %8695 = vmatmul.bf16.gmra.mxu0 %v8345
      %v8696 = vpop.f32.mrf.mxu0
      %v8697 = vadd.f32 %v8520, %v8696
      %v8698 = vpop.f32.mrf.mxu0
      %v8699 = vadd.f32 %v8520, %v8698
      %8700 = vmatmul.bf16.gmra.mxu0 %v8348
      %v8701 = vpop.f32.mrf.mxu0
      %v8702 = vadd.f32 %v8520, %v8701
      %v8703 = vpop.f32.mrf.mxu0
      %v8704 = vadd.f32 %v8520, %v8703
      %8705 = vmatmul.bf16.gmra.mxu0 %v8351
      %v8706 = vpop.f32.mrf.mxu0
      %v8707 = vadd.f32 %v8520, %v8706
      %v8708 = vpop.f32.mrf.mxu0
      %v8709 = vadd.f32 %v8520, %v8708
      %8710 = vmatmul.bf16.gmra.mxu0 %v8354
      %v8711 = vpop.f32.mrf.mxu0
      %v8712 = vadd.f32 %v8520, %v8711
      %v8713 = vpop.f32.mrf.mxu0
      %v8714 = vadd.f32 %v8520, %v8713
      %8715 = vmatmul.bf16.gmra.mxu0 %v8357
      %v8716 = vpop.f32.mrf.mxu0
      %v8717 = vadd.f32 %v8520, %v8716
      %v8718 = vpop.f32.mrf.mxu0
      %v8719 = vadd.f32 %v8520, %v8718
      %8720 = vmatmul.bf16.gmra.mxu0 %v8360
      %v8721 = vpop.f32.mrf.mxu0
      %v8722 = vadd.f32 %v8520, %v8721
      %v8723 = vpop.f32.mrf.mxu0
      %v8724 = vadd.f32 %v8520, %v8723
      %8725 = vmatmul.bf16.gmra.mxu0 %v8363
      %v8726 = vpop.f32.mrf.mxu0
      %v8727 = vadd.f32 %v8520, %v8726
      %v8728 = vpop.f32.mrf.mxu0
      %v8729 = vadd.f32 %v8520, %v8728
      %8730 = vmatmul.bf16.gmra.mxu0 %v8366
      %v8731 = vpop.f32.mrf.mxu0
      %v8732 = vadd.f32 %v8520, %v8731
      %v8733 = vpop.f32.mrf.mxu0
      %v8734 = vadd.f32 %v8520, %v8733
      %8735 = vmatmul.bf16.gmra.mxu0 %v8369
      %v8736 = vpop.f32.mrf.mxu0
      %v8737 = vadd.f32 %v8520, %v8736
      %v8738 = vpop.f32.mrf.mxu0
      %v8739 = vadd.f32 %v8520, %v8738
      %8740 = vmatmul.bf16.gmra.mxu0 %v8372
      %v8741 = vpop.f32.mrf.mxu0
      %v8742 = vadd.f32 %v8520, %v8741
      %v8743 = vpop.f32.mrf.mxu0
      %v8744 = vadd.f32 %v8520, %v8743
      %8745 = vmatmul.bf16.gmra.mxu0 %v8375
      %v8746 = vpop.f32.mrf.mxu0
      %v8747 = vadd.f32 %v8520, %v8746
      %v8748 = vpop.f32.mrf.mxu0
      %v8749 = vadd.f32 %v8520, %v8748
      %8750 = vmatmul.bf16.gmra.mxu0 %v8378
      %v8751 = vpop.f32.mrf.mxu0
      %v8752 = vadd.f32 %v8520, %v8751
      %v8753 = vpop.f32.mrf.mxu0
      %v8754 = vadd.f32 %v8520, %v8753
      %8755 = vmatmul.bf16.gmra.mxu0 %v8381
      %v8756 = vpop.f32.mrf.mxu0
      %v8757 = vadd.f32 %v8520, %v8756
      %v8758 = vpop.f32.mrf.mxu0
      %v8759 = vadd.f32 %v8520, %v8758
      %8760 = vmatmul.bf16.gmra.mxu0 %v8384
      %v8761 = vpop.f32.mrf.mxu0
      %v8762 = vadd.f32 %v8520, %v8761
      %v8763 = vpop.f32.mrf.mxu0
      %v8764 = vadd.f32 %v8520, %v8763
      %8765 = vdwg.mxu0
      %8766 = vmatpush.bf16.msra.mxu0 %v8609
      %8767 = vmatpush.bf16.msra.mxu0 %v8608
      %8768 = vmatpush.bf16.msra.mxu0 %v8607
      %8769 = vmatpush.bf16.msra.mxu0 %v8606
      %8770 = vmatpush.bf16.msra.mxu0 %v8605
      %8771 = vmatpush.bf16.msra.mxu0 %v8604
      %8772 = vmatpush.bf16.msra.mxu0 %v8603
      %8773 = vmatpush.bf16.msra.mxu0 %v8602
      %8774 = vmatmul.bf16.gmra.mxu0 %v8436
      %v8775 = vpop.f32.mrf.mxu0
      %v8776 = vadd.f32 %v8687, %v8775
      %v8777 = vpop.f32.mrf.mxu0
      %v8778 = vadd.f32 %v8689, %v8777
      %8779 = vmatmul.bf16.gmra.mxu0 %v8439
      %v8780 = vpop.f32.mrf.mxu0
      %v8781 = vadd.f32 %v8692, %v8780
      %v8782 = vpop.f32.mrf.mxu0
      %v8783 = vadd.f32 %v8694, %v8782
      %8784 = vmatmul.bf16.gmra.mxu0 %v8442
      %v8785 = vpop.f32.mrf.mxu0
      %v8786 = vadd.f32 %v8697, %v8785
      %v8787 = vpop.f32.mrf.mxu0
      %v8788 = vadd.f32 %v8699, %v8787
      %8789 = vmatmul.bf16.gmra.mxu0 %v8445
      %v8790 = vpop.f32.mrf.mxu0
      %v8791 = vadd.f32 %v8702, %v8790
      %v8792 = vpop.f32.mrf.mxu0
      %v8793 = vadd.f32 %v8704, %v8792
      %8794 = vmatmul.bf16.gmra.mxu0 %v8448
      %v8795 = vpop.f32.mrf.mxu0
      %v8796 = vadd.f32 %v8707, %v8795
      %v8797 = vpop.f32.mrf.mxu0
      %v8798 = vadd.f32 %v8709, %v8797
      %8799 = vmatmul.bf16.gmra.mxu0 %v8451
      %v8800 = vpop.f32.mrf.mxu0
      %v8801 = vadd.f32 %v8712, %v8800
      %v8802 = vpop.f32.mrf.mxu0
      %v8803 = vadd.f32 %v8714, %v8802
      %8804 = vmatmul.bf16.gmra.mxu0 %v8454
      %v8805 = vpop.f32.mrf.mxu0
      %v8806 = vadd.f32 %v8717, %v8805
      %v8807 = vpop.f32.mrf.mxu0
      %v8808 = vadd.f32 %v8719, %v8807
      %8809 = vmatmul.bf16.gmra.mxu0 %v8457
      %v8810 = vpop.f32.mrf.mxu0
      %v8811 = vadd.f32 %v8722, %v8810
      %v8812 = vpop.f32.mrf.mxu0
      %v8813 = vadd.f32 %v8724, %v8812
      %8814 = vmatmul.bf16.gmra.mxu0 %v8460
      %v8815 = vpop.f32.mrf.mxu0
      %v8816 = vadd.f32 %v8727, %v8815
      %v8817 = vpop.f32.mrf.mxu0
      %v8818 = vadd.f32 %v8729, %v8817
      %8819 = vmatmul.bf16.gmra.mxu0 %v8463
      %v8820 = vpop.f32.mrf.mxu0
      %v8821 = vadd.f32 %v8732, %v8820
      %v8822 = vpop.f32.mrf.mxu0
      %v8823 = vadd.f32 %v8734, %v8822
      %8824 = vmatmul.bf16.gmra.mxu0 %v8466
      %v8825 = vpop.f32.mrf.mxu0
      %v8826 = vadd.f32 %v8737, %v8825
      %v8827 = vpop.f32.mrf.mxu0
      %v8828 = vadd.f32 %v8739, %v8827
      %8829 = vmatmul.bf16.gmra.mxu0 %v8469
      %v8830 = vpop.f32.mrf.mxu0
      %v8831 = vadd.f32 %v8742, %v8830
      %v8832 = vpop.f32.mrf.mxu0
      %v8833 = vadd.f32 %v8744, %v8832
      %8834 = vmatmul.bf16.gmra.mxu0 %v8472
      %v8835 = vpop.f32.mrf.mxu0
      %v8836 = vadd.f32 %v8747, %v8835
      %v8837 = vpop.f32.mrf.mxu0
      %v8838 = vadd.f32 %v8749, %v8837
      %8839 = vmatmul.bf16.gmra.mxu0 %v8475
      %v8840 = vpop.f32.mrf.mxu0
      %v8841 = vadd.f32 %v8752, %v8840
      %v8842 = vpop.f32.mrf.mxu0
      %v8843 = vadd.f32 %v8754, %v8842
      %8844 = vmatmul.bf16.gmra.mxu0 %v8478
      %v8845 = vpop.f32.mrf.mxu0
      %v8846 = vadd.f32 %v8757, %v8845
      %v8847 = vpop.f32.mrf.mxu0
      %v8848 = vadd.f32 %v8759, %v8847
      %8849 = vmatmul.bf16.gmra.mxu0 %v8480
      %v8850 = vpop.f32.mrf.mxu0
      %v8851 = vadd.f32 %v8762, %v8850
      %v8852 = vpop.f32.mrf.mxu0
      %v8853 = vadd.f32 %v8764, %v8852
      %8854 = vdwg.mxu0
      %8855 = vmatpush.bf16.msra.mxu0 0
      %8856 = vmatpush.bf16.msra.mxu0 0
      %8857 = vmatpush.bf16.msra.mxu0 0
      %8858 = vmatpush.bf16.msra.mxu0 0
      %8859 = vmatpush.bf16.msra.mxu0 0
      %8860 = vmatpush.bf16.msra.mxu0 0
      %8861 = vmatpush.bf16.msra.mxu0 %v8611
      %8862 = vmatpush.bf16.msra.mxu0 %v8610
      %8863 = vmatmul.bf16.gmra.mxu0 %v8631
      %v8864 = vpop.f32.mrf.mxu0
      %v8865 = vadd.f32 %v8776, %v8864
      %v8866 = vpop.f32.mrf.mxu0
      %v8867 = vadd.f32 %v8778, %v8866
      %8868 = vmatmul.bf16.gmra.mxu0 %v8634
      %v8869 = vpop.f32.mrf.mxu0
      %v8870 = vadd.f32 %v8781, %v8869
      %v8871 = vpop.f32.mrf.mxu0
      %v8872 = vadd.f32 %v8783, %v8871
      %8873 = vmatmul.bf16.gmra.mxu0 %v8637
      %v8874 = vpop.f32.mrf.mxu0
      %v8875 = vadd.f32 %v8786, %v8874
      %v8876 = vpop.f32.mrf.mxu0
      %v8877 = vadd.f32 %v8788, %v8876
      %8878 = vmatmul.bf16.gmra.mxu0 %v8640
      %v8879 = vpop.f32.mrf.mxu0
      %v8880 = vadd.f32 %v8791, %v8879
      %v8881 = vpop.f32.mrf.mxu0
      %v8882 = vadd.f32 %v8793, %v8881
      %8883 = vmatmul.bf16.gmra.mxu0 %v8643
      %v8884 = vpop.f32.mrf.mxu0
      %v8885 = vadd.f32 %v8796, %v8884
      %v8886 = vpop.f32.mrf.mxu0
      %v8887 = vadd.f32 %v8798, %v8886
      %8888 = vmatmul.bf16.gmra.mxu0 %v8646
      %v8889 = vpop.f32.mrf.mxu0
      %v8890 = vadd.f32 %v8801, %v8889
      %v8891 = vpop.f32.mrf.mxu0
      %v8892 = vadd.f32 %v8803, %v8891
      %8893 = vmatmul.bf16.gmra.mxu0 %v8649
      %v8894 = vpop.f32.mrf.mxu0
      %v8895 = vadd.f32 %v8806, %v8894
      %v8896 = vpop.f32.mrf.mxu0
      %v8897 = vadd.f32 %v8808, %v8896
      %8898 = vmatmul.bf16.gmra.mxu0 %v8652
      %v8899 = vpop.f32.mrf.mxu0
      %v8900 = vadd.f32 %v8811, %v8899
      %v8901 = vpop.f32.mrf.mxu0
      %v8902 = vadd.f32 %v8813, %v8901
      %8903 = vmatmul.bf16.gmra.mxu0 %v8655
      %v8904 = vpop.f32.mrf.mxu0
      %v8905 = vadd.f32 %v8816, %v8904
      %v8906 = vpop.f32.mrf.mxu0
      %v8907 = vadd.f32 %v8818, %v8906
      %8908 = vmatmul.bf16.gmra.mxu0 %v8658
      %v8909 = vpop.f32.mrf.mxu0
      %v8910 = vadd.f32 %v8821, %v8909
      %v8911 = vpop.f32.mrf.mxu0
      %v8912 = vadd.f32 %v8823, %v8911
      %8913 = vmatmul.bf16.gmra.mxu0 %v8661
      %v8914 = vpop.f32.mrf.mxu0
      %v8915 = vadd.f32 %v8826, %v8914
      %v8916 = vpop.f32.mrf.mxu0
      %v8917 = vadd.f32 %v8828, %v8916
      %8918 = vmatmul.bf16.gmra.mxu0 %v8664
      %v8919 = vpop.f32.mrf.mxu0
      %v8920 = vadd.f32 %v8831, %v8919
      %v8921 = vpop.f32.mrf.mxu0
      %v8922 = vadd.f32 %v8833, %v8921
      %8923 = vmatmul.bf16.gmra.mxu0 %v8667
      %v8924 = vpop.f32.mrf.mxu0
      %v8925 = vadd.f32 %v8836, %v8924
      %v8926 = vpop.f32.mrf.mxu0
      %v8927 = vadd.f32 %v8838, %v8926
      %8928 = vmatmul.bf16.gmra.mxu0 %v8670
      %v8929 = vpop.f32.mrf.mxu0
      %v8930 = vadd.f32 %v8841, %v8929
      %v8931 = vpop.f32.mrf.mxu0
      %v8932 = vadd.f32 %v8843, %v8931
      %8933 = vmatmul.bf16.gmra.mxu0 %v8673
      %v8934 = vpop.f32.mrf.mxu0
      %v8935 = vadd.f32 %v8846, %v8934
      %v8936 = vpop.f32.mrf.mxu0
      %v8937 = vadd.f32 %v8848, %v8936
      %8938 = vmatmul.bf16.gmra.mxu0 %v8675
      %v8939 = vpop.f32.mrf.mxu0
      %v8940 = vadd.f32 %v8851, %v8939
      %v8941 = vpop.f32.mrf.mxu0
      %v8942 = vadd.f32 %v8853, %v8941
      %8943 = vdwg.mxu0
      %v8944 = vmax.f32 %v8865, 0.0
      %v8945 = vmax.f32 %v8867, 0.0
      %v8946 = vmax.f32 %v8870, 0.0
      %v8947 = vmax.f32 %v8872, 0.0
      %v8948 = vmax.f32 %v8875, 0.0
      %v8949 = vmax.f32 %v8877, 0.0
      %v8950 = vmax.f32 %v8880, 0.0
      %v8951 = vmax.f32 %v8882, 0.0
      %v8952 = vmax.f32 %v8885, 0.0
      %v8953 = vmax.f32 %v8887, 0.0
      %v8954 = vmax.f32 %v8890, 0.0
      %v8955 = vmax.f32 %v8892, 0.0
      %v8956 = vmax.f32 %v8895, 0.0
      %v8957 = vmax.f32 %v8897, 0.0
      %v8958 = vmax.f32 %v8900, 0.0
      %v8959 = vmax.f32 %v8902, 0.0
      %v8960 = vmax.f32 %v8905, 0.0
      %v8961 = vmax.f32 %v8907, 0.0
      %v8962 = vmax.f32 %v8910, 0.0
      %v8963 = vmax.f32 %v8912, 0.0
      %v8964 = vmax.f32 %v8915, 0.0
      %v8965 = vmax.f32 %v8917, 0.0
      %v8966 = vmax.f32 %v8920, 0.0
      %v8967 = vmax.f32 %v8922, 0.0
      %v8968 = vmax.f32 %v8925, 0.0
      %v8969 = vmax.f32 %v8927, 0.0
      %v8970 = vmax.f32 %v8930, 0.0
      %v8971 = vmax.f32 %v8932, 0.0
      %v8972 = vmax.f32 %v8935, 0.0
      %v8973 = vmax.f32 %v8937, 0.0
      %v8974 = vmax.f32 %v8940, 0.0
      %v8975 = vmax.f32 %v8942, 0.0
      %v8976 = vpack.c.bf16 %v8944, %v8944
      %v8977 = vpack.c.bf16 %v8945, %v8945
      %v8978 = vpack.c.bf16 %v8946, %v8946
      %v8979 = vpack.c.bf16 %v8947, %v8947
      %v8980 = vpack.c.bf16 %v8948, %v8948
      %v8981 = vpack.c.bf16 %v8949, %v8949
      %v8982 = vpack.c.bf16 %v8950, %v8950
      %v8983 = vpack.c.bf16 %v8951, %v8951
      %v8984 = vpack.c.bf16 %v8952, %v8952
      %v8985 = vpack.c.bf16 %v8953, %v8953
      %v8986 = vpack.c.bf16 %v8954, %v8954
      %v8987 = vpack.c.bf16 %v8955, %v8955
      %v8988 = vpack.c.bf16 %v8956, %v8956
      %v8989 = vpack.c.bf16 %v8957, %v8957
      %v8990 = vpack.c.bf16 %v8958, %v8958
      %v8991 = vpack.c.bf16 %v8959, %v8959
      %v8992 = vpack.c.bf16 %v8960, %v8960
      %v8993 = vpack.c.bf16 %v8961, %v8961
      %v8994 = vpack.c.bf16 %v8962, %v8962
      %v8995 = vpack.c.bf16 %v8963, %v8963
      %v8996 = vpack.c.bf16 %v8964, %v8964
      %v8997 = vpack.c.bf16 %v8965, %v8965
      %v8998 = vpack.c.bf16 %v8966, %v8966
      %v8999 = vpack.c.bf16 %v8967, %v8967
      %v9000 = vpack.c.bf16 %v8968, %v8968
      %v9001 = vpack.c.bf16 %v8969, %v8969
      %v9002 = vpack.c.bf16 %v8970, %v8970
      %v9003 = vpack.c.bf16 %v8971, %v8971
      %v9004 = vpack.c.bf16 %v8972, %v8972
      %v9005 = vpack.c.bf16 %v8973, %v8973
      %v9006 = vpack.c.bf16 %v8974, %v8974
      %v9007 = vpack.c.bf16 %v8975, %v8975
      %v9040 = vunpack.c.l.b16 %v8976
      %v9041 = vunpack.c.l.b16 %v8977
      %v9042 = vunpack.c.l.b16 %v8978
      %v9043 = vunpack.c.l.b16 %v8979
      %v9044 = vunpack.c.l.b16 %v8980
      %v9045 = vunpack.c.l.b16 %v8981
      %v9046 = vunpack.c.l.b16 %v8982
      %v9047 = vunpack.c.l.b16 %v8983
      %v9048 = vunpack.c.l.b16 %v8984
      %v9049 = vunpack.c.l.b16 %v8985
      %v9050 = vunpack.c.l.b16 %v8986
      %v9051 = vunpack.c.l.b16 %v8987
      %v9052 = vunpack.c.l.b16 %v8988
      %v9053 = vunpack.c.l.b16 %v8989
      %v9054 = vunpack.c.l.b16 %v8990
      %v9055 = vunpack.c.l.b16 %v8991
      %v9056 = vunpack.c.l.b16 %v8992
      %v9057 = vunpack.c.l.b16 %v8993
      %v9058 = vunpack.c.l.b16 %v8994
      %v9059 = vunpack.c.l.b16 %v8995
      %v9060 = vunpack.c.l.b16 %v8996
      %v9061 = vunpack.c.l.b16 %v8997
      %v9062 = vunpack.c.l.b16 %v8998
      %v9063 = vunpack.c.l.b16 %v8999
      %v9064 = vunpack.c.l.b16 %v9000
      %v9065 = vunpack.c.l.b16 %v9001
      %v9066 = vunpack.c.l.b16 %v9002
      %v9067 = vunpack.c.l.b16 %v9003
      %v9068 = vunpack.c.l.b16 %v9004
      %v9069 = vunpack.c.l.b16 %v9005
      %v9070 = vunpack.c.l.b16 %v9006
      %v9071 = vunpack.c.l.b16 %v9007
      %v9072 = vpack.c.b16 %v9041, %v9040
      %v9073 = vpack.c.b16 %v9043, %v9042
      %v9074 = vpack.c.b16 %v9045, %v9044
      %v9075 = vpack.c.b16 %v9047, %v9046
      %v9076 = vpack.c.b16 %v9049, %v9048
      %v9077 = vpack.c.b16 %v9051, %v9050
      %v9078 = vpack.c.b16 %v9053, %v9052
      %v9079 = vpack.c.b16 %v9055, %v9054
      %v9080 = vpack.c.b16 %v9057, %v9056
      %v9081 = vpack.c.b16 %v9059, %v9058
      %v9082 = vpack.c.b16 %v9061, %v9060
      %v9083 = vpack.c.b16 %v9063, %v9062
      %v9084 = vpack.c.b16 %v9065, %v9064
      %v9085 = vpack.c.b16 %v9067, %v9066
      %v9086 = vpack.c.b16 %v9069, %v9068
      %v9087 = vpack.c.b16 %v9071, %v9070
      %v9089 = vshrl.u32 %v9072, 16
      %v9091 = vrot.slane %v9089, 7
      %v9092 = vshll.u32 %v9072, 16
      %v9094 = vor.u32 %v9091, %v9092
      %v9096 = vshrl.u32 %v9073, 16
      %v9098 = vrot.slane %v9096, 7
      %v9099 = vshll.u32 %v9073, 16
      %v9101 = vor.u32 %v9098, %v9099
      %v9102 = vsel %vm1239, %v9091, %v9101
      %v9104 = vshrl.u32 %v9074, 16
      %v9106 = vrot.slane %v9104, 7
      %v9107 = vshll.u32 %v9074, 16
      %v9109 = vor.u32 %v9106, %v9107
      %v9110 = vsel %vm1239, %v9098, %v9109
      %v9112 = vshrl.u32 %v9075, 16
      %v9114 = vrot.slane %v9112, 7
      %v9115 = vshll.u32 %v9075, 16
      %v9117 = vor.u32 %v9114, %v9115
      %v9118 = vsel %vm1239, %v9106, %v9117
      %v9120 = vshrl.u32 %v9076, 16
      %v9122 = vrot.slane %v9120, 7
      %v9123 = vshll.u32 %v9076, 16
      %v9125 = vor.u32 %v9122, %v9123
      %v9126 = vsel %vm1239, %v9114, %v9125
      %v9128 = vshrl.u32 %v9077, 16
      %v9130 = vrot.slane %v9128, 7
      %v9131 = vshll.u32 %v9077, 16
      %v9133 = vor.u32 %v9130, %v9131
      %v9134 = vsel %vm1239, %v9122, %v9133
      %v9136 = vshrl.u32 %v9078, 16
      %v9138 = vrot.slane %v9136, 7
      %v9139 = vshll.u32 %v9078, 16
      %v9141 = vor.u32 %v9138, %v9139
      %v9142 = vsel %vm1239, %v9130, %v9141
      %v9144 = vshrl.u32 %v9079, 16
      %v9146 = vrot.slane %v9144, 7
      %v9147 = vshll.u32 %v9079, 16
      %v9149 = vor.u32 %v9146, %v9147
      %v9150 = vsel %vm1239, %v9138, %v9149
      %v9152 = vshrl.u32 %v9080, 16
      %v9154 = vrot.slane %v9152, 7
      %v9155 = vshll.u32 %v9080, 16
      %v9157 = vor.u32 %v9154, %v9155
      %v9158 = vsel %vm1239, %v9146, %v9157
      %v9160 = vshrl.u32 %v9081, 16
      %v9162 = vrot.slane %v9160, 7
      %v9163 = vshll.u32 %v9081, 16
      %v9165 = vor.u32 %v9162, %v9163
      %v9166 = vsel %vm1239, %v9154, %v9165
      %v9168 = vshrl.u32 %v9082, 16
      %v9170 = vrot.slane %v9168, 7
      %v9171 = vshll.u32 %v9082, 16
      %v9173 = vor.u32 %v9170, %v9171
      %v9174 = vsel %vm1239, %v9162, %v9173
      %v9176 = vshrl.u32 %v9083, 16
      %v9178 = vrot.slane %v9176, 7
      %v9179 = vshll.u32 %v9083, 16
      %v9181 = vor.u32 %v9178, %v9179
      %v9182 = vsel %vm1239, %v9170, %v9181
      %v9184 = vshrl.u32 %v9084, 16
      %v9186 = vrot.slane %v9184, 7
      %v9187 = vshll.u32 %v9084, 16
      %v9189 = vor.u32 %v9186, %v9187
      %v9190 = vsel %vm1239, %v9178, %v9189
      %v9192 = vshrl.u32 %v9085, 16
      %v9194 = vrot.slane %v9192, 7
      %v9195 = vshll.u32 %v9085, 16
      %v9197 = vor.u32 %v9194, %v9195
      %v9198 = vsel %vm1239, %v9186, %v9197
      %v9200 = vshrl.u32 %v9086, 16
      %v9202 = vrot.slane %v9200, 7
      %v9203 = vshll.u32 %v9086, 16
      %v9205 = vor.u32 %v9202, %v9203
      %v9206 = vsel %vm1239, %v9194, %v9205
      %v9208 = vshrl.u32 %v9087, 16
      %v9210 = vrot.slane %v9208, 7
      %v9211 = vshll.u32 %v9087, 16
      %v9213 = vor.u32 %v9210, %v9211
      %v9214 = vsel %vm1239, %v9202, %v9213
      %v9231 = vsel %vm1384, 0, %v9094
      %v9232 = vsel %vm1568, %v9231, 0
      %v9233 = vsel %vm1575, %v9102, 0
      %v9234 = vsel %vm1582, %v9110, 0
      %v9235 = vsel %vm1589, %v9118, 0
      %v9236 = vsel %vm1596, %v9126, 0
      %v9237 = vsel %vm1603, %v9134, 0
      %v9238 = vsel %vm1610, %v9142, 0
      %v9239 = vsel %vm1617, %v9150, 0
      %v9240 = vsel %vm1624, %v9158, 0
      %v9241 = vsel %vm1631, %v9166, 0
      %v9242 = vsel %vm1638, %v9174, 0
      %v9243 = vsel %vm1645, %v9182, 0
      %v9244 = vsel %vm1652, %v9190, 0
      %v9245 = vsel %vm1659, %v9198, 0
      %v9246 = vsel %vm1666, %v9206, 0
      %v9247 = vsel %vm1673, %v9214, 0
      %v9248 = vrot.slane %v9092, 1
      %v9249 = vor.u32 %v9089, %v9248
      %v9250 = vrot.slane %v9099, 1
      %v9251 = vsel %vm1690, %v9249, %v9250
      %v9252 = vor.u32 %v9096, %v9250
      %v9253 = vrot.slane %v9107, 1
      %v9254 = vsel %vm1690, %v9252, %v9253
      %v9255 = vor.u32 %v9104, %v9253
      %v9256 = vrot.slane %v9115, 1
      %v9257 = vsel %vm1690, %v9255, %v9256
      %v9258 = vor.u32 %v9112, %v9256
      %v9259 = vrot.slane %v9123, 1
      %v9260 = vsel %vm1690, %v9258, %v9259
      %v9261 = vor.u32 %v9120, %v9259
      %v9262 = vrot.slane %v9131, 1
      %v9263 = vsel %vm1690, %v9261, %v9262
      %v9264 = vor.u32 %v9128, %v9262
      %v9265 = vrot.slane %v9139, 1
      %v9266 = vsel %vm1690, %v9264, %v9265
      %v9267 = vor.u32 %v9136, %v9265
      %v9268 = vrot.slane %v9147, 1
      %v9269 = vsel %vm1690, %v9267, %v9268
      %v9270 = vor.u32 %v9144, %v9268
      %v9271 = vrot.slane %v9155, 1
      %v9272 = vsel %vm1690, %v9270, %v9271
      %v9273 = vor.u32 %v9152, %v9271
      %v9274 = vrot.slane %v9163, 1
      %v9275 = vsel %vm1690, %v9273, %v9274
      %v9276 = vor.u32 %v9160, %v9274
      %v9277 = vrot.slane %v9171, 1
      %v9278 = vsel %vm1690, %v9276, %v9277
      %v9279 = vor.u32 %v9168, %v9277
      %v9280 = vrot.slane %v9179, 1
      %v9281 = vsel %vm1690, %v9279, %v9280
      %v9282 = vor.u32 %v9176, %v9280
      %v9283 = vrot.slane %v9187, 1
      %v9284 = vsel %vm1690, %v9282, %v9283
      %v9285 = vor.u32 %v9184, %v9283
      %v9286 = vrot.slane %v9195, 1
      %v9287 = vsel %vm1690, %v9285, %v9286
      %v9288 = vor.u32 %v9192, %v9286
      %v9289 = vrot.slane %v9203, 1
      %v9290 = vsel %vm1690, %v9288, %v9289
      %v9291 = vor.u32 %v9200, %v9289
      %v9292 = vrot.slane %v9211, 1
      %v9293 = vsel %vm1690, %v9291, %v9292
      %v9294 = vor.u32 %v9208, %v9292
      %v9311 = vsel %vm1755, %v9294, 0
      %v9312 = vsel %vm1939, %v9251, 0
      %v9313 = vsel %vm1946, %v9254, 0
      %v9314 = vsel %vm1953, %v9257, 0
      %v9315 = vsel %vm1960, %v9260, 0
      %v9316 = vsel %vm1967, %v9263, 0
      %v9317 = vsel %vm1974, %v9266, 0
      %v9318 = vsel %vm1981, %v9269, 0
      %v9319 = vsel %vm1988, %v9272, 0
      %v9320 = vsel %vm1995, %v9275, 0
      %v9321 = vsel %vm2002, %v9278, 0
      %v9322 = vsel %vm2009, %v9281, 0
      %v9323 = vsel %vm2016, %v9284, 0
      %v9324 = vsel %vm2023, %v9287, 0
      %v9325 = vsel %vm2030, %v9290, 0
      %v9326 = vsel %vm2037, %v9293, 0
      %v9327 = vsel %vm2044, %v9311, 0
      %9328 = vrot.lane.b32.xlu0 %v9072, 32
      %v9329 = vpop.permute.xlu0 %9328
      %9330 = vrot.lane.b32.xlu0 %v9073, 32
      %v9331 = vpop.permute.xlu0 %9330
      %9332 = vrot.lane.b32.xlu0 %v9074, 32
      %v9333 = vpop.permute.xlu0 %9332
      %9334 = vrot.lane.b32.xlu0 %v9075, 32
      %v9335 = vpop.permute.xlu0 %9334
      %9336 = vrot.lane.b32.xlu0 %v9076, 32
      %v9337 = vpop.permute.xlu0 %9336
      %9338 = vrot.lane.b32.xlu0 %v9077, 32
      %v9339 = vpop.permute.xlu0 %9338
      %9340 = vrot.lane.b32.xlu0 %v9078, 32
      %v9341 = vpop.permute.xlu0 %9340
      %9342 = vrot.lane.b32.xlu0 %v9079, 32
      %v9343 = vpop.permute.xlu0 %9342
      %9344 = vrot.lane.b32.xlu0 %v9080, 32
      %v9345 = vpop.permute.xlu0 %9344
      %9346 = vrot.lane.b32.xlu0 %v9081, 32
      %v9347 = vpop.permute.xlu0 %9346
      %9348 = vrot.lane.b32.xlu0 %v9082, 32
      %v9349 = vpop.permute.xlu0 %9348
      %9350 = vrot.lane.b32.xlu0 %v9083, 32
      %v9351 = vpop.permute.xlu0 %9350
      %9352 = vrot.lane.b32.xlu0 %v9084, 32
      %v9353 = vpop.permute.xlu0 %9352
      %9354 = vrot.lane.b32.xlu0 %v9085, 32
      %v9355 = vpop.permute.xlu0 %9354
      %9356 = vrot.lane.b32.xlu0 %v9086, 32
      %v9357 = vpop.permute.xlu0 %9356
      %9373 = vrot.lane.b32.xlu0 %v9312, 64
      %v9374 = vpop.permute.xlu0 %9373
      %9375 = vrot.lane.b32.xlu0 %v9313, 64
      %v9376 = vpop.permute.xlu0 %9375
      %9377 = vrot.lane.b32.xlu0 %v9314, 64
      %v9378 = vpop.permute.xlu0 %9377
      %9379 = vrot.lane.b32.xlu0 %v9315, 64
      %v9380 = vpop.permute.xlu0 %9379
      %9381 = vrot.lane.b32.xlu0 %v9316, 64
      %v9382 = vpop.permute.xlu0 %9381
      %9383 = vrot.lane.b32.xlu0 %v9317, 64
      %v9384 = vpop.permute.xlu0 %9383
      %9385 = vrot.lane.b32.xlu0 %v9318, 64
      %v9386 = vpop.permute.xlu0 %9385
      %9387 = vrot.lane.b32.xlu0 %v9319, 64
      %v9388 = vpop.permute.xlu0 %9387
      %9389 = vrot.lane.b32.xlu0 %v9320, 64
      %v9390 = vpop.permute.xlu0 %9389
      %9391 = vrot.lane.b32.xlu0 %v9321, 64
      %v9392 = vpop.permute.xlu0 %9391
      %9393 = vrot.lane.b32.xlu0 %v9322, 64
      %v9394 = vpop.permute.xlu0 %9393
      %9395 = vrot.lane.b32.xlu0 %v9323, 64
      %v9396 = vpop.permute.xlu0 %9395
      %9397 = vrot.lane.b32.xlu0 %v9324, 64
      %v9398 = vpop.permute.xlu0 %9397
      %9399 = vrot.lane.b32.xlu0 %v9325, 64
      %v9400 = vpop.permute.xlu0 %9399
      %9401 = vrot.lane.b32.xlu0 %v9326, 64
      %v9402 = vpop.permute.xlu0 %9401
      %9419 = vrot.lane.b32.xlu0 %v9232, 96
      %v9420 = vpop.permute.xlu0 %9419
      %9421 = vrot.lane.b32.xlu0 %v9233, 96
      %v9422 = vpop.permute.xlu0 %9421
      %9423 = vrot.lane.b32.xlu0 %v9234, 96
      %v9424 = vpop.permute.xlu0 %9423
      %9425 = vrot.lane.b32.xlu0 %v9235, 96
      %v9426 = vpop.permute.xlu0 %9425
      %9427 = vrot.lane.b32.xlu0 %v9236, 96
      %v9428 = vpop.permute.xlu0 %9427
      %9429 = vrot.lane.b32.xlu0 %v9237, 96
      %v9430 = vpop.permute.xlu0 %9429
      %9431 = vrot.lane.b32.xlu0 %v9238, 96
      %v9432 = vpop.permute.xlu0 %9431
      %9433 = vrot.lane.b32.xlu0 %v9239, 96
      %v9434 = vpop.permute.xlu0 %9433
      %9435 = vrot.lane.b32.xlu0 %v9240, 96
      %v9436 = vpop.permute.xlu0 %9435
      %9437 = vrot.lane.b32.xlu0 %v9241, 96
      %v9438 = vpop.permute.xlu0 %9437
      %9439 = vrot.lane.b32.xlu0 %v9242, 96
      %v9440 = vpop.permute.xlu0 %9439
      %9441 = vrot.lane.b32.xlu0 %v9243, 96
      %v9442 = vpop.permute.xlu0 %9441
      %9443 = vrot.lane.b32.xlu0 %v9244, 96
      %v9444 = vpop.permute.xlu0 %9443
      %9445 = vrot.lane.b32.xlu0 %v9245, 96
      %v9446 = vpop.permute.xlu0 %9445
      %9447 = vrot.lane.b32.xlu0 %v9246, 96
      %v9448 = vpop.permute.xlu0 %9447
      %9449 = vrot.lane.b32.xlu0 %v9247, 96
      %v9450 = vpop.permute.xlu0 %9449
      %9452 = vrot.lane.b32.xlu0 %v9312, 32
      %v9453 = vpop.permute.xlu0 %9452
      %9454 = vrot.lane.b32.xlu0 %v9313, 32
      %v9455 = vpop.permute.xlu0 %9454
      %9456 = vrot.lane.b32.xlu0 %v9314, 32
      %v9457 = vpop.permute.xlu0 %9456
      %9458 = vrot.lane.b32.xlu0 %v9315, 32
      %v9459 = vpop.permute.xlu0 %9458
      %9460 = vrot.lane.b32.xlu0 %v9316, 32
      %v9461 = vpop.permute.xlu0 %9460
      %9462 = vrot.lane.b32.xlu0 %v9317, 32
      %v9463 = vpop.permute.xlu0 %9462
      %9464 = vrot.lane.b32.xlu0 %v9318, 32
      %v9465 = vpop.permute.xlu0 %9464
      %9466 = vrot.lane.b32.xlu0 %v9319, 32
      %v9467 = vpop.permute.xlu0 %9466
      %9468 = vrot.lane.b32.xlu0 %v9320, 32
      %v9469 = vpop.permute.xlu0 %9468
      %9470 = vrot.lane.b32.xlu0 %v9321, 32
      %v9471 = vpop.permute.xlu0 %9470
      %9472 = vrot.lane.b32.xlu0 %v9322, 32
      %v9473 = vpop.permute.xlu0 %9472
      %9474 = vrot.lane.b32.xlu0 %v9323, 32
      %v9475 = vpop.permute.xlu0 %9474
      %9476 = vrot.lane.b32.xlu0 %v9324, 32
      %v9477 = vpop.permute.xlu0 %9476
      %9478 = vrot.lane.b32.xlu0 %v9325, 32
      %v9479 = vpop.permute.xlu0 %9478
      %9480 = vrot.lane.b32.xlu0 %v9326, 32
      %v9481 = vpop.permute.xlu0 %9480
      %9482 = vrot.lane.b32.xlu0 %v9327, 32
      %v9483 = vpop.permute.xlu0 %9482
      %9484 = vrot.lane.b32.xlu0 %v9233, 64
      %v9485 = vpop.permute.xlu0 %9484
      %9486 = vrot.lane.b32.xlu0 %v9234, 64
      %v9487 = vpop.permute.xlu0 %9486
      %9488 = vrot.lane.b32.xlu0 %v9235, 64
      %v9489 = vpop.permute.xlu0 %9488
      %9490 = vrot.lane.b32.xlu0 %v9236, 64
      %v9491 = vpop.permute.xlu0 %9490
      %9492 = vrot.lane.b32.xlu0 %v9237, 64
      %v9493 = vpop.permute.xlu0 %9492
      %9494 = vrot.lane.b32.xlu0 %v9238, 64
      %v9495 = vpop.permute.xlu0 %9494
      %9496 = vrot.lane.b32.xlu0 %v9239, 64
      %v9497 = vpop.permute.xlu0 %9496
      %9498 = vrot.lane.b32.xlu0 %v9240, 64
      %v9499 = vpop.permute.xlu0 %9498
      %9500 = vrot.lane.b32.xlu0 %v9241, 64
      %v9501 = vpop.permute.xlu0 %9500
      %9502 = vrot.lane.b32.xlu0 %v9242, 64
      %v9503 = vpop.permute.xlu0 %9502
      %9504 = vrot.lane.b32.xlu0 %v9243, 64
      %v9505 = vpop.permute.xlu0 %9504
      %9506 = vrot.lane.b32.xlu0 %v9244, 64
      %v9507 = vpop.permute.xlu0 %9506
      %9508 = vrot.lane.b32.xlu0 %v9245, 64
      %v9509 = vpop.permute.xlu0 %9508
      %9510 = vrot.lane.b32.xlu0 %v9246, 64
      %v9511 = vpop.permute.xlu0 %9510
      %9512 = vrot.lane.b32.xlu0 %v9247, 64
      %v9513 = vpop.permute.xlu0 %9512
      %9514 = vrot.lane.b32.xlu0 %v9073, 96
      %v9515 = vpop.permute.xlu0 %9514
      %9516 = vrot.lane.b32.xlu0 %v9074, 96
      %v9517 = vpop.permute.xlu0 %9516
      %9518 = vrot.lane.b32.xlu0 %v9075, 96
      %v9519 = vpop.permute.xlu0 %9518
      %9520 = vrot.lane.b32.xlu0 %v9076, 96
      %v9521 = vpop.permute.xlu0 %9520
      %9522 = vrot.lane.b32.xlu0 %v9077, 96
      %v9523 = vpop.permute.xlu0 %9522
      %9524 = vrot.lane.b32.xlu0 %v9078, 96
      %v9525 = vpop.permute.xlu0 %9524
      %9526 = vrot.lane.b32.xlu0 %v9079, 96
      %v9527 = vpop.permute.xlu0 %9526
      %9528 = vrot.lane.b32.xlu0 %v9080, 96
      %v9529 = vpop.permute.xlu0 %9528
      %9530 = vrot.lane.b32.xlu0 %v9081, 96
      %v9531 = vpop.permute.xlu0 %9530
      %9532 = vrot.lane.b32.xlu0 %v9082, 96
      %v9533 = vpop.permute.xlu0 %9532
      %9534 = vrot.lane.b32.xlu0 %v9083, 96
      %v9535 = vpop.permute.xlu0 %9534
      %9536 = vrot.lane.b32.xlu0 %v9084, 96
      %v9537 = vpop.permute.xlu0 %9536
      %9538 = vrot.lane.b32.xlu0 %v9085, 96
      %v9539 = vpop.permute.xlu0 %9538
      %9540 = vrot.lane.b32.xlu0 %v9086, 96
      %v9541 = vpop.permute.xlu0 %9540
      %9542 = vrot.lane.b32.xlu0 %v9087, 96
      %v9543 = vpop.permute.xlu0 %9542
      %v9546 = vsel %vm2597, %v9232, %v9329
      %v9549 = vsel %vm2597, %v9233, %v9331
      %v9552 = vsel %vm2597, %v9234, %v9333
      %v9555 = vsel %vm2597, %v9235, %v9335
      %v9558 = vsel %vm2597, %v9236, %v9337
      %v9561 = vsel %vm2597, %v9237, %v9339
      %v9564 = vsel %vm2597, %v9238, %v9341
      %v9567 = vsel %vm2597, %v9239, %v9343
      %v9570 = vsel %vm2597, %v9240, %v9345
      %v9573 = vsel %vm2597, %v9241, %v9347
      %v9576 = vsel %vm2597, %v9242, %v9349
      %v9579 = vsel %vm2597, %v9243, %v9351
      %v9582 = vsel %vm2597, %v9244, %v9353
      %v9585 = vsel %vm2597, %v9245, %v9355
      %v9588 = vsel %vm2597, %v9246, %v9357
      %v9590 = vsel %vm3430, %v9546, %v9374
      %v9592 = vsel %vm3430, %v9549, %v9376
      %v9594 = vsel %vm3430, %v9552, %v9378
      %v9596 = vsel %vm3430, %v9555, %v9380
      %v9598 = vsel %vm3430, %v9558, %v9382
      %v9600 = vsel %vm3430, %v9561, %v9384
      %v9602 = vsel %vm3430, %v9564, %v9386
      %v9604 = vsel %vm3430, %v9567, %v9388
      %v9606 = vsel %vm3430, %v9570, %v9390
      %v9608 = vsel %vm3430, %v9573, %v9392
      %v9610 = vsel %vm3430, %v9576, %v9394
      %v9612 = vsel %vm3430, %v9579, %v9396
      %v9614 = vsel %vm3430, %v9582, %v9398
      %v9616 = vsel %vm3430, %v9585, %v9400
      %v9618 = vsel %vm3430, %v9588, %v9402
      %v9620 = vsel %vm3463, %v3432, %v9420
      %v9623 = vsel %vm3463, %v9590, %v9422
      %v9626 = vsel %vm3463, %v9592, %v9424
      %v9629 = vsel %vm3463, %v9594, %v9426
      %v9632 = vsel %vm3463, %v9596, %v9428
      %v9635 = vsel %vm3463, %v9598, %v9430
      %v9638 = vsel %vm3463, %v9600, %v9432
      %v9641 = vsel %vm3463, %v9602, %v9434
      %v9644 = vsel %vm3463, %v9604, %v9436
      %v9647 = vsel %vm3463, %v9606, %v9438
      %v9650 = vsel %vm3463, %v9608, %v9440
      %v9653 = vsel %vm3463, %v9610, %v9442
      %v9656 = vsel %vm3463, %v9612, %v9444
      %v9659 = vsel %vm3463, %v9614, %v9446
      %v9662 = vsel %vm3463, %v9616, %v9448
      %v9665 = vsel %vm3463, %v9618, %v9450
      %v9668 = vsel %vm2597, %v9072, %v9453
      %v9670 = vsel %vm2597, %v9073, %v9455
      %v9672 = vsel %vm2597, %v9074, %v9457
      %v9674 = vsel %vm2597, %v9075, %v9459
      %v9676 = vsel %vm2597, %v9076, %v9461
      %v9678 = vsel %vm2597, %v9077, %v9463
      %v9680 = vsel %vm2597, %v9078, %v9465
      %v9682 = vsel %vm2597, %v9079, %v9467
      %v9684 = vsel %vm2597, %v9080, %v9469
      %v9686 = vsel %vm2597, %v9081, %v9471
      %v9688 = vsel %vm2597, %v9082, %v9473
      %v9690 = vsel %vm2597, %v9083, %v9475
      %v9692 = vsel %vm2597, %v9084, %v9477
      %v9694 = vsel %vm2597, %v9085, %v9479
      %v9696 = vsel %vm2597, %v9086, %v9481
      %v9698 = vsel %vm2597, %v9087, %v9483
      %v9700 = vsel %vm3430, %v9668, %v9485
      %v9702 = vsel %vm3430, %v9670, %v9487
      %v9704 = vsel %vm3430, %v9672, %v9489
      %v9706 = vsel %vm3430, %v9674, %v9491
      %v9708 = vsel %vm3430, %v9676, %v9493
      %v9710 = vsel %vm3430, %v9678, %v9495
      %v9712 = vsel %vm3430, %v9680, %v9497
      %v9714 = vsel %vm3430, %v9682, %v9499
      %v9716 = vsel %vm3430, %v9684, %v9501
      %v9718 = vsel %vm3430, %v9686, %v9503
      %v9720 = vsel %vm3430, %v9688, %v9505
      %v9722 = vsel %vm3430, %v9690, %v9507
      %v9724 = vsel %vm3430, %v9692, %v9509
      %v9726 = vsel %vm3430, %v9694, %v9511
      %v9728 = vsel %vm3430, %v9696, %v9513
      %v9729 = vsel %vm3430, %v9698, %v3210
      %v9731 = vsel %vm3463, %v9700, %v9515
      %v9734 = vsel %vm3463, %v9702, %v9517
      %v9737 = vsel %vm3463, %v9704, %v9519
      %v9740 = vsel %vm3463, %v9706, %v9521
      %v9743 = vsel %vm3463, %v9708, %v9523
      %v9746 = vsel %vm3463, %v9710, %v9525
      %v9749 = vsel %vm3463, %v9712, %v9527
      %v9752 = vsel %vm3463, %v9714, %v9529
      %v9755 = vsel %vm3463, %v9716, %v9531
      %v9758 = vsel %vm3463, %v9718, %v9533
      %v9761 = vsel %vm3463, %v9720, %v9535
      %v9764 = vsel %vm3463, %v9722, %v9537
      %v9767 = vsel %vm3463, %v9724, %v9539
      %v9770 = vsel %vm3463, %v9726, %v9541
      %v9773 = vsel %vm3463, %v9728, %v9543
      %v9775 = vsel %vm3463, %v9729, %v3383
      %v9777 = vld [vmem:[%s13] sm:$0xf]
      %v9778 = vld [vmem:[%s13 + $0x4] sm:$0xf]
      %v9779 = vld [vmem:[%s13 + $0x8] sm:$0xf]
      %v9780 = vld [vmem:[%s13 + $0xc] sm:$0xf]
      %v9781 = vld [vmem:[%s13 + $0x10] sm:$0xf]
      %v9782 = vld [vmem:[%s13 + $0x14] sm:$0xf]
      %v9783 = vld [vmem:[%s13 + $0x18] sm:$0xf]
      %v9784 = vld [vmem:[%s13 + $0x1c] sm:$0xf]
      %v9785 = vld [vmem:[%s13 + $0x20] sm:$0xf]
      %v9786 = vld [vmem:[%s13 + $0x24] sm:$0xf]
      %v9787 = vld [vmem:[%s13 + $0x28] sm:$0xf]
      %v9788 = vld [vmem:[%s13 + $0x2c] sm:$0xf]
      %v9789 = vld [vmem:[%s13 + $0x30] sm:$0xf]
      %v9790 = vld [vmem:[%s13 + $0x34] sm:$0xf]
      %v9791 = vld [vmem:[%s13 + $0x38] sm:$0xf]
      %v9792 = vld [vmem:[%s13 + $0x3c] sm:$0xf]
      %v9793 = vld [vmem:[%s13 + $0x40] sm:$0xf]
      %v9794 = vld [vmem:[%s13 + $0x44] sm:$0xf]
      %v9795 = vld [vmem:[%s13 + $0x48] sm:$0xf]
      %v9796 = vld [vmem:[%s13 + $0x4c] sm:$0xf]
      %v9797 = vld [vmem:[%s13 + $0x50] sm:$0xf]
      %v9798 = vld [vmem:[%s13 + $0x54] sm:$0xf]
      %v9799 = vld [vmem:[%s13 + $0x58] sm:$0xf]
      %v9800 = vld [vmem:[%s13 + $0x5c] sm:$0xf]
      %v9801 = vld [vmem:[%s13 + $0x60] sm:$0xf]
      %v9802 = vld [vmem:[%s13 + $0x64] sm:$0xf]
      %v9803 = vld [vmem:[%s13 + $0x68] sm:$0xf]
      %v9804 = vld [vmem:[%s13 + $0x6c] sm:$0xf]
      %v9805 = vld [vmem:[%s13 + $0x70] sm:$0xf]
      %v9806 = vld [vmem:[%s13 + $0x74] sm:$0xf]
      %v9807 = vld [vmem:[%s13 + $0x78] sm:$0xf]
      %v9808 = vld [vmem:[%s13 + $0x7c] sm:$0xf]
      %v9809 = vld [vmem:[%s13 + $0x80] sm:$0xf]
      %v9810 = vld [vmem:[%s13 + $0x84] sm:$0xf]
      %v9811 = vld [vmem:[%s13 + $0x88] sm:$0xf]
      %v9812 = vld [vmem:[%s13 + $0x8c] sm:$0xf]
      %v9813 = vld [vmem:[%s14] sm:$0x1]
      %v9815 = vperm.slane %v9813, 0
      %v9853 = vunpack.c.l.b16 %v9777
      %v9854 = vunpack.c.l.b16 %v9778
      %v9855 = vunpack.c.l.b16 %v9779
      %v9856 = vunpack.c.l.b16 %v9780
      %v9857 = vunpack.c.l.b16 %v9781
      %v9858 = vunpack.c.l.b16 %v9782
      %v9859 = vunpack.c.l.b16 %v9783
      %v9860 = vunpack.c.l.b16 %v9784
      %v9861 = vunpack.c.l.b16 %v9785
      %v9862 = vunpack.c.l.b16 %v9786
      %v9863 = vunpack.c.l.b16 %v9787
      %v9864 = vunpack.c.l.b16 %v9788
      %v9865 = vunpack.c.l.b16 %v9789
      %v9866 = vunpack.c.l.b16 %v9790
      %v9867 = vunpack.c.l.b16 %v9791
      %v9868 = vunpack.c.l.b16 %v9792
      %v9869 = vunpack.c.l.b16 %v9793
      %v9870 = vunpack.c.l.b16 %v9794
      %v9871 = vunpack.c.l.b16 %v9795
      %v9872 = vunpack.c.l.b16 %v9796
      %v9873 = vunpack.c.l.b16 %v9797
      %v9874 = vunpack.c.l.b16 %v9798
      %v9875 = vunpack.c.l.b16 %v9799
      %v9876 = vunpack.c.l.b16 %v9800
      %v9877 = vunpack.c.l.b16 %v9801
      %v9878 = vunpack.c.l.b16 %v9802
      %v9879 = vunpack.c.l.b16 %v9803
      %v9880 = vunpack.c.l.b16 %v9804
      %v9881 = vunpack.c.l.b16 %v9805
      %v9882 = vunpack.c.l.b16 %v9806
      %v9883 = vunpack.c.l.b16 %v9807
      %v9884 = vunpack.c.l.b16 %v9808
      %v9885 = vunpack.c.l.b16 %v9809
      %v9886 = vunpack.c.l.b16 %v9810
      %v9887 = vunpack.c.l.b16 %v9811
      %v9888 = vunpack.c.l.b16 %v9812
      %v9889 = vpack.c.b16 %v9854, %v9853
      %v9890 = vpack.c.b16 %v9856, %v9855
      %v9891 = vpack.c.b16 %v9858, %v9857
      %v9892 = vpack.c.b16 %v9860, %v9859
      %v9893 = vpack.c.b16 %v9862, %v9861
      %v9894 = vpack.c.b16 %v9864, %v9863
      %v9895 = vpack.c.b16 %v9866, %v9865
      %v9896 = vpack.c.b16 %v9868, %v9867
      %v9897 = vpack.c.b16 %v9870, %v9869
      %v9898 = vpack.c.b16 %v9872, %v9871
      %v9899 = vpack.c.b16 %v9874, %v9873
      %v9900 = vpack.c.b16 %v9876, %v9875
      %v9901 = vpack.c.b16 %v9878, %v9877
      %v9902 = vpack.c.b16 %v9880, %v9879
      %v9903 = vpack.c.b16 %v9882, %v9881
      %v9904 = vpack.c.b16 %v9884, %v9883
      %v9905 = vpack.c.b16 %v9886, %v9885
      %v9906 = vpack.c.b16 %v9888, %v9887
      %v9926 = vsel %vm2597, %v9313, 0
      %v9929 = vsel %vm2597, %v9314, 0
      %v9932 = vsel %vm2597, %v9315, 0
      %v9935 = vsel %vm2597, %v9316, 0
      %v9938 = vsel %vm2597, %v9317, 0
      %v9941 = vsel %vm2597, %v9318, 0
      %v9944 = vsel %vm2597, %v9319, 0
      %v9947 = vsel %vm2597, %v9320, 0
      %v9950 = vsel %vm2597, %v9321, 0
      %v9953 = vsel %vm2597, %v9322, 0
      %v9956 = vsel %vm2597, %v9323, 0
      %v9959 = vsel %vm2597, %v9324, 0
      %v9962 = vsel %vm2597, %v9325, 0
      %v9965 = vsel %vm2597, %v9326, 0
      %v9968 = vsel %vm2597, %v9327, 0
      %9970 = vmatpush.bf16.msra.mxu0 %v9896
      %9971 = vmatpush.bf16.msra.mxu0 %v9895
      %9972 = vmatpush.bf16.msra.mxu0 %v9894
      %9973 = vmatpush.bf16.msra.mxu0 %v9893
      %9974 = vmatpush.bf16.msra.mxu0 %v9892
      %9975 = vmatpush.bf16.msra.mxu0 %v9891
      %9976 = vmatpush.bf16.msra.mxu0 %v9890
      %9977 = vmatpush.bf16.msra.mxu0 %v9889
      %9978 = vmatmul.bf16.gmra.mxu0 %v9620
      %v9979 = vpop.f32.mrf.mxu0
      %v9980 = vadd.f32 %v9815, %v9979
      %v9981 = vpop.f32.mrf.mxu0
      %v9982 = vadd.f32 %v9815, %v9981
      %9983 = vmatmul.bf16.gmra.mxu0 %v9623
      %v9984 = vpop.f32.mrf.mxu0
      %v9985 = vadd.f32 %v9815, %v9984
      %v9986 = vpop.f32.mrf.mxu0
      %v9987 = vadd.f32 %v9815, %v9986
      %9988 = vmatmul.bf16.gmra.mxu0 %v9626
      %v9989 = vpop.f32.mrf.mxu0
      %v9990 = vadd.f32 %v9815, %v9989
      %v9991 = vpop.f32.mrf.mxu0
      %v9992 = vadd.f32 %v9815, %v9991
      %9993 = vmatmul.bf16.gmra.mxu0 %v9629
      %v9994 = vpop.f32.mrf.mxu0
      %v9995 = vadd.f32 %v9815, %v9994
      %v9996 = vpop.f32.mrf.mxu0
      %v9997 = vadd.f32 %v9815, %v9996
      %9998 = vmatmul.bf16.gmra.mxu0 %v9632
      %v9999 = vpop.f32.mrf.mxu0
      %v10000 = vadd.f32 %v9815, %v9999
      %v10001 = vpop.f32.mrf.mxu0
      %v10002 = vadd.f32 %v9815, %v10001
      %10003 = vmatmul.bf16.gmra.mxu0 %v9635
      %v10004 = vpop.f32.mrf.mxu0
      %v10005 = vadd.f32 %v9815, %v10004
      %v10006 = vpop.f32.mrf.mxu0
      %v10007 = vadd.f32 %v9815, %v10006
      %10008 = vmatmul.bf16.gmra.mxu0 %v9638
      %v10009 = vpop.f32.mrf.mxu0
      %v10010 = vadd.f32 %v9815, %v10009
      %v10011 = vpop.f32.mrf.mxu0
      %v10012 = vadd.f32 %v9815, %v10011
      %10013 = vmatmul.bf16.gmra.mxu0 %v9641
      %v10014 = vpop.f32.mrf.mxu0
      %v10015 = vadd.f32 %v9815, %v10014
      %v10016 = vpop.f32.mrf.mxu0
      %v10017 = vadd.f32 %v9815, %v10016
      %10018 = vmatmul.bf16.gmra.mxu0 %v9644
      %v10019 = vpop.f32.mrf.mxu0
      %v10020 = vadd.f32 %v9815, %v10019
      %v10021 = vpop.f32.mrf.mxu0
      %v10022 = vadd.f32 %v9815, %v10021
      %10023 = vmatmul.bf16.gmra.mxu0 %v9647
      %v10024 = vpop.f32.mrf.mxu0
      %v10025 = vadd.f32 %v9815, %v10024
      %v10026 = vpop.f32.mrf.mxu0
      %v10027 = vadd.f32 %v9815, %v10026
      %10028 = vmatmul.bf16.gmra.mxu0 %v9650
      %v10029 = vpop.f32.mrf.mxu0
      %v10030 = vadd.f32 %v9815, %v10029
      %v10031 = vpop.f32.mrf.mxu0
      %v10032 = vadd.f32 %v9815, %v10031
      %10033 = vmatmul.bf16.gmra.mxu0 %v9653
      %v10034 = vpop.f32.mrf.mxu0
      %v10035 = vadd.f32 %v9815, %v10034
      %v10036 = vpop.f32.mrf.mxu0
      %v10037 = vadd.f32 %v9815, %v10036
      %10038 = vmatmul.bf16.gmra.mxu0 %v9656
      %v10039 = vpop.f32.mrf.mxu0
      %v10040 = vadd.f32 %v9815, %v10039
      %v10041 = vpop.f32.mrf.mxu0
      %v10042 = vadd.f32 %v9815, %v10041
      %10043 = vmatmul.bf16.gmra.mxu0 %v9659
      %v10044 = vpop.f32.mrf.mxu0
      %v10045 = vadd.f32 %v9815, %v10044
      %v10046 = vpop.f32.mrf.mxu0
      %v10047 = vadd.f32 %v9815, %v10046
      %10048 = vmatmul.bf16.gmra.mxu0 %v9662
      %v10049 = vpop.f32.mrf.mxu0
      %v10050 = vadd.f32 %v9815, %v10049
      %v10051 = vpop.f32.mrf.mxu0
      %v10052 = vadd.f32 %v9815, %v10051
      %10053 = vmatmul.bf16.gmra.mxu0 %v9665
      %v10054 = vpop.f32.mrf.mxu0
      %v10055 = vadd.f32 %v9815, %v10054
      %v10056 = vpop.f32.mrf.mxu0
      %v10057 = vadd.f32 %v9815, %v10056
      %10058 = vdwg.mxu0
      %10059 = vmatpush.bf16.msra.mxu0 %v9904
      %10060 = vmatpush.bf16.msra.mxu0 %v9903
      %10061 = vmatpush.bf16.msra.mxu0 %v9902
      %10062 = vmatpush.bf16.msra.mxu0 %v9901
      %10063 = vmatpush.bf16.msra.mxu0 %v9900
      %10064 = vmatpush.bf16.msra.mxu0 %v9899
      %10065 = vmatpush.bf16.msra.mxu0 %v9898
      %10066 = vmatpush.bf16.msra.mxu0 %v9897
      %10067 = vmatmul.bf16.gmra.mxu0 %v9731
      %v10068 = vpop.f32.mrf.mxu0
      %v10069 = vadd.f32 %v9980, %v10068
      %v10070 = vpop.f32.mrf.mxu0
      %v10071 = vadd.f32 %v9982, %v10070
      %10072 = vmatmul.bf16.gmra.mxu0 %v9734
      %v10073 = vpop.f32.mrf.mxu0
      %v10074 = vadd.f32 %v9985, %v10073
      %v10075 = vpop.f32.mrf.mxu0
      %v10076 = vadd.f32 %v9987, %v10075
      %10077 = vmatmul.bf16.gmra.mxu0 %v9737
      %v10078 = vpop.f32.mrf.mxu0
      %v10079 = vadd.f32 %v9990, %v10078
      %v10080 = vpop.f32.mrf.mxu0
      %v10081 = vadd.f32 %v9992, %v10080
      %10082 = vmatmul.bf16.gmra.mxu0 %v9740
      %v10083 = vpop.f32.mrf.mxu0
      %v10084 = vadd.f32 %v9995, %v10083
      %v10085 = vpop.f32.mrf.mxu0
      %v10086 = vadd.f32 %v9997, %v10085
      %10087 = vmatmul.bf16.gmra.mxu0 %v9743
      %v10088 = vpop.f32.mrf.mxu0
      %v10089 = vadd.f32 %v10000, %v10088
      %v10090 = vpop.f32.mrf.mxu0
      %v10091 = vadd.f32 %v10002, %v10090
      %10092 = vmatmul.bf16.gmra.mxu0 %v9746
      %v10093 = vpop.f32.mrf.mxu0
      %v10094 = vadd.f32 %v10005, %v10093
      %v10095 = vpop.f32.mrf.mxu0
      %v10096 = vadd.f32 %v10007, %v10095
      %10097 = vmatmul.bf16.gmra.mxu0 %v9749
      %v10098 = vpop.f32.mrf.mxu0
      %v10099 = vadd.f32 %v10010, %v10098
      %v10100 = vpop.f32.mrf.mxu0
      %v10101 = vadd.f32 %v10012, %v10100
      %10102 = vmatmul.bf16.gmra.mxu0 %v9752
      %v10103 = vpop.f32.mrf.mxu0
      %v10104 = vadd.f32 %v10015, %v10103
      %v10105 = vpop.f32.mrf.mxu0
      %v10106 = vadd.f32 %v10017, %v10105
      %10107 = vmatmul.bf16.gmra.mxu0 %v9755
      %v10108 = vpop.f32.mrf.mxu0
      %v10109 = vadd.f32 %v10020, %v10108
      %v10110 = vpop.f32.mrf.mxu0
      %v10111 = vadd.f32 %v10022, %v10110
      %10112 = vmatmul.bf16.gmra.mxu0 %v9758
      %v10113 = vpop.f32.mrf.mxu0
      %v10114 = vadd.f32 %v10025, %v10113
      %v10115 = vpop.f32.mrf.mxu0
      %v10116 = vadd.f32 %v10027, %v10115
      %10117 = vmatmul.bf16.gmra.mxu0 %v9761
      %v10118 = vpop.f32.mrf.mxu0
      %v10119 = vadd.f32 %v10030, %v10118
      %v10120 = vpop.f32.mrf.mxu0
      %v10121 = vadd.f32 %v10032, %v10120
      %10122 = vmatmul.bf16.gmra.mxu0 %v9764
      %v10123 = vpop.f32.mrf.mxu0
      %v10124 = vadd.f32 %v10035, %v10123
      %v10125 = vpop.f32.mrf.mxu0
      %v10126 = vadd.f32 %v10037, %v10125
      %10127 = vmatmul.bf16.gmra.mxu0 %v9767
      %v10128 = vpop.f32.mrf.mxu0
      %v10129 = vadd.f32 %v10040, %v10128
      %v10130 = vpop.f32.mrf.mxu0
      %v10131 = vadd.f32 %v10042, %v10130
      %10132 = vmatmul.bf16.gmra.mxu0 %v9770
      %v10133 = vpop.f32.mrf.mxu0
      %v10134 = vadd.f32 %v10045, %v10133
      %v10135 = vpop.f32.mrf.mxu0
      %v10136 = vadd.f32 %v10047, %v10135
      %10137 = vmatmul.bf16.gmra.mxu0 %v9773
      %v10138 = vpop.f32.mrf.mxu0
      %v10139 = vadd.f32 %v10050, %v10138
      %v10140 = vpop.f32.mrf.mxu0
      %v10141 = vadd.f32 %v10052, %v10140
      %10142 = vmatmul.bf16.gmra.mxu0 %v9775
      %v10143 = vpop.f32.mrf.mxu0
      %v10144 = vadd.f32 %v10055, %v10143
      %v10145 = vpop.f32.mrf.mxu0
      %v10146 = vadd.f32 %v10057, %v10145
      %10147 = vdwg.mxu0
      %10148 = vmatpush.bf16.msra.mxu0 0
      %10149 = vmatpush.bf16.msra.mxu0 0
      %10150 = vmatpush.bf16.msra.mxu0 0
      %10151 = vmatpush.bf16.msra.mxu0 0
      %10152 = vmatpush.bf16.msra.mxu0 0
      %10153 = vmatpush.bf16.msra.mxu0 0
      %10154 = vmatpush.bf16.msra.mxu0 %v9906
      %10155 = vmatpush.bf16.msra.mxu0 %v9905
      %10156 = vmatmul.bf16.gmra.mxu0 %v9926
      %v10157 = vpop.f32.mrf.mxu0
      %v10158 = vadd.f32 %v10069, %v10157
      %v10159 = vpop.f32.mrf.mxu0
      %v10160 = vadd.f32 %v10071, %v10159
      %10161 = vmatmul.bf16.gmra.mxu0 %v9929
      %v10162 = vpop.f32.mrf.mxu0
      %v10163 = vadd.f32 %v10074, %v10162
      %v10164 = vpop.f32.mrf.mxu0
      %v10165 = vadd.f32 %v10076, %v10164
      %10166 = vmatmul.bf16.gmra.mxu0 %v9932
      %v10167 = vpop.f32.mrf.mxu0
      %v10168 = vadd.f32 %v10079, %v10167
      %v10169 = vpop.f32.mrf.mxu0
      %v10170 = vadd.f32 %v10081, %v10169
      %10171 = vmatmul.bf16.gmra.mxu0 %v9935
      %v10172 = vpop.f32.mrf.mxu0
      %v10173 = vadd.f32 %v10084, %v10172
      %v10174 = vpop.f32.mrf.mxu0
      %v10175 = vadd.f32 %v10086, %v10174
      %10176 = vmatmul.bf16.gmra.mxu0 %v9938
      %v10177 = vpop.f32.mrf.mxu0
      %v10178 = vadd.f32 %v10089, %v10177
      %v10179 = vpop.f32.mrf.mxu0
      %v10180 = vadd.f32 %v10091, %v10179
      %10181 = vmatmul.bf16.gmra.mxu0 %v9941
      %v10182 = vpop.f32.mrf.mxu0
      %v10183 = vadd.f32 %v10094, %v10182
      %v10184 = vpop.f32.mrf.mxu0
      %v10185 = vadd.f32 %v10096, %v10184
      %10186 = vmatmul.bf16.gmra.mxu0 %v9944
      %v10187 = vpop.f32.mrf.mxu0
      %v10188 = vadd.f32 %v10099, %v10187
      %v10189 = vpop.f32.mrf.mxu0
      %v10190 = vadd.f32 %v10101, %v10189
      %10191 = vmatmul.bf16.gmra.mxu0 %v9947
      %v10192 = vpop.f32.mrf.mxu0
      %v10193 = vadd.f32 %v10104, %v10192
      %v10194 = vpop.f32.mrf.mxu0
      %v10195 = vadd.f32 %v10106, %v10194
      %10196 = vmatmul.bf16.gmra.mxu0 %v9950
      %v10197 = vpop.f32.mrf.mxu0
      %v10198 = vadd.f32 %v10109, %v10197
      %v10199 = vpop.f32.mrf.mxu0
      %v10200 = vadd.f32 %v10111, %v10199
      %10201 = vmatmul.bf16.gmra.mxu0 %v9953
      %v10202 = vpop.f32.mrf.mxu0
      %v10203 = vadd.f32 %v10114, %v10202
      %v10204 = vpop.f32.mrf.mxu0
      %v10205 = vadd.f32 %v10116, %v10204
      %10206 = vmatmul.bf16.gmra.mxu0 %v9956
      %v10207 = vpop.f32.mrf.mxu0
      %v10208 = vadd.f32 %v10119, %v10207
      %v10209 = vpop.f32.mrf.mxu0
      %v10210 = vadd.f32 %v10121, %v10209
      %10211 = vmatmul.bf16.gmra.mxu0 %v9959
      %v10212 = vpop.f32.mrf.mxu0
      %v10213 = vadd.f32 %v10124, %v10212
      %v10214 = vpop.f32.mrf.mxu0
      %v10215 = vadd.f32 %v10126, %v10214
      %10216 = vmatmul.bf16.gmra.mxu0 %v9962
      %v10217 = vpop.f32.mrf.mxu0
      %v10218 = vadd.f32 %v10129, %v10217
      %v10219 = vpop.f32.mrf.mxu0
      %v10220 = vadd.f32 %v10131, %v10219
      %10221 = vmatmul.bf16.gmra.mxu0 %v9965
      %v10222 = vpop.f32.mrf.mxu0
      %v10223 = vadd.f32 %v10134, %v10222
      %v10224 = vpop.f32.mrf.mxu0
      %v10225 = vadd.f32 %v10136, %v10224
      %10226 = vmatmul.bf16.gmra.mxu0 %v9968
      %v10227 = vpop.f32.mrf.mxu0
      %v10228 = vadd.f32 %v10139, %v10227
      %v10229 = vpop.f32.mrf.mxu0
      %v10230 = vadd.f32 %v10141, %v10229
      %10231 = vmatmul.bf16.gmra.mxu0 %v3816
      %v10232 = vpop.f32.mrf.mxu0
      %v10233 = vadd.f32 %v10144, %v10232
      %v10234 = vpop.f32.mrf.mxu0
      %v10235 = vadd.f32 %v10146, %v10234
      %10236 = vdwg.mxu0
      %v10237 = vmax.f32 %v10158, 0.0
      %v10238 = vmax.f32 %v10160, 0.0
      %v10239 = vmax.f32 %v10163, 0.0
      %v10240 = vmax.f32 %v10165, 0.0
      %v10241 = vmax.f32 %v10168, 0.0
      %v10242 = vmax.f32 %v10170, 0.0
      %v10243 = vmax.f32 %v10173, 0.0
      %v10244 = vmax.f32 %v10175, 0.0
      %v10245 = vmax.f32 %v10178, 0.0
      %v10246 = vmax.f32 %v10180, 0.0
      %v10247 = vmax.f32 %v10183, 0.0
      %v10248 = vmax.f32 %v10185, 0.0
      %v10249 = vmax.f32 %v10188, 0.0
      %v10250 = vmax.f32 %v10190, 0.0
      %v10251 = vmax.f32 %v10193, 0.0
      %v10252 = vmax.f32 %v10195, 0.0
      %v10253 = vmax.f32 %v10198, 0.0
      %v10254 = vmax.f32 %v10200, 0.0
      %v10255 = vmax.f32 %v10203, 0.0
      %v10256 = vmax.f32 %v10205, 0.0
      %v10257 = vmax.f32 %v10208, 0.0
      %v10258 = vmax.f32 %v10210, 0.0
      %v10259 = vmax.f32 %v10213, 0.0
      %v10260 = vmax.f32 %v10215, 0.0
      %v10261 = vmax.f32 %v10218, 0.0
      %v10262 = vmax.f32 %v10220, 0.0
      %v10263 = vmax.f32 %v10223, 0.0
      %v10264 = vmax.f32 %v10225, 0.0
      %v10265 = vmax.f32 %v10228, 0.0
      %v10266 = vmax.f32 %v10230, 0.0
      %v10267 = vmax.f32 %v10233, 0.0
      %v10268 = vmax.f32 %v10235, 0.0
      %v10269 = vpack.c.bf16 %v10237, %v10237
      %v10270 = vpack.c.bf16 %v10238, %v10238
      %v10271 = vpack.c.bf16 %v10239, %v10239
      %v10272 = vpack.c.bf16 %v10240, %v10240
      %v10273 = vpack.c.bf16 %v10241, %v10241
      %v10274 = vpack.c.bf16 %v10242, %v10242
      %v10275 = vpack.c.bf16 %v10243, %v10243
      %v10276 = vpack.c.bf16 %v10244, %v10244
      %v10277 = vpack.c.bf16 %v10245, %v10245
      %v10278 = vpack.c.bf16 %v10246, %v10246
      %v10279 = vpack.c.bf16 %v10247, %v10247
      %v10280 = vpack.c.bf16 %v10248, %v10248
      %v10281 = vpack.c.bf16 %v10249, %v10249
      %v10282 = vpack.c.bf16 %v10250, %v10250
      %v10283 = vpack.c.bf16 %v10251, %v10251
      %v10284 = vpack.c.bf16 %v10252, %v10252
      %v10285 = vpack.c.bf16 %v10253, %v10253
      %v10286 = vpack.c.bf16 %v10254, %v10254
      %v10287 = vpack.c.bf16 %v10255, %v10255
      %v10288 = vpack.c.bf16 %v10256, %v10256
      %v10289 = vpack.c.bf16 %v10257, %v10257
      %v10290 = vpack.c.bf16 %v10258, %v10258
      %v10291 = vpack.c.bf16 %v10259, %v10259
      %v10292 = vpack.c.bf16 %v10260, %v10260
      %v10293 = vpack.c.bf16 %v10261, %v10261
      %v10294 = vpack.c.bf16 %v10262, %v10262
      %v10295 = vpack.c.bf16 %v10263, %v10263
      %v10296 = vpack.c.bf16 %v10264, %v10264
      %v10297 = vpack.c.bf16 %v10265, %v10265
      %v10298 = vpack.c.bf16 %v10266, %v10266
      %v10299 = vpack.c.bf16 %v10267, %v10267
      %v10300 = vpack.c.bf16 %v10268, %v10268
      %v10333 = vunpack.c.l.b16 %v10269
      %v10334 = vunpack.c.l.b16 %v10270
      %v10335 = vunpack.c.l.b16 %v10271
      %v10336 = vunpack.c.l.b16 %v10272
      %v10337 = vunpack.c.l.b16 %v10273
      %v10338 = vunpack.c.l.b16 %v10274
      %v10339 = vunpack.c.l.b16 %v10275
      %v10340 = vunpack.c.l.b16 %v10276
      %v10341 = vunpack.c.l.b16 %v10277
      %v10342 = vunpack.c.l.b16 %v10278
      %v10343 = vunpack.c.l.b16 %v10279
      %v10344 = vunpack.c.l.b16 %v10280
      %v10345 = vunpack.c.l.b16 %v10281
      %v10346 = vunpack.c.l.b16 %v10282
      %v10347 = vunpack.c.l.b16 %v10283
      %v10348 = vunpack.c.l.b16 %v10284
      %v10349 = vunpack.c.l.b16 %v10285
      %v10350 = vunpack.c.l.b16 %v10286
      %v10351 = vunpack.c.l.b16 %v10287
      %v10352 = vunpack.c.l.b16 %v10288
      %v10353 = vunpack.c.l.b16 %v10289
      %v10354 = vunpack.c.l.b16 %v10290
      %v10355 = vunpack.c.l.b16 %v10291
      %v10356 = vunpack.c.l.b16 %v10292
      %v10357 = vunpack.c.l.b16 %v10293
      %v10358 = vunpack.c.l.b16 %v10294
      %v10359 = vunpack.c.l.b16 %v10295
      %v10360 = vunpack.c.l.b16 %v10296
      %v10361 = vunpack.c.l.b16 %v10297
      %v10362 = vunpack.c.l.b16 %v10298
      %v10363 = vunpack.c.l.b16 %v10299
      %v10364 = vunpack.c.l.b16 %v10300
      %v10365 = vpack.c.b16 %v10334, %v10333
      %v10366 = vpack.c.b16 %v10336, %v10335
      %v10367 = vpack.c.b16 %v10338, %v10337
      %v10368 = vpack.c.b16 %v10340, %v10339
      %v10369 = vpack.c.b16 %v10342, %v10341
      %v10370 = vpack.c.b16 %v10344, %v10343
      %v10371 = vpack.c.b16 %v10346, %v10345
      %v10372 = vpack.c.b16 %v10348, %v10347
      %v10373 = vpack.c.b16 %v10350, %v10349
      %v10374 = vpack.c.b16 %v10352, %v10351
      %v10375 = vpack.c.b16 %v10354, %v10353
      %v10376 = vpack.c.b16 %v10356, %v10355
      %v10377 = vpack.c.b16 %v10358, %v10357
      %v10378 = vpack.c.b16 %v10360, %v10359
      %v10379 = vpack.c.b16 %v10362, %v10361
      %v10380 = vpack.c.b16 %v10364, %v10363
      %v10382 = vshrl.u32 %v10365, 16
      %v10384 = vrot.slane %v10382, 7
      %v10385 = vshll.u32 %v10365, 16
      %v10387 = vor.u32 %v10384, %v10385
      %v10389 = vshrl.u32 %v10366, 16
      %v10391 = vrot.slane %v10389, 7
      %v10392 = vshll.u32 %v10366, 16
      %v10394 = vor.u32 %v10391, %v10392
      %v10395 = vsel %vm1239, %v10384, %v10394
      %v10397 = vshrl.u32 %v10367, 16
      %v10399 = vrot.slane %v10397, 7
      %v10400 = vshll.u32 %v10367, 16
      %v10402 = vor.u32 %v10399, %v10400
      %v10403 = vsel %vm1239, %v10391, %v10402
      %v10405 = vshrl.u32 %v10368, 16
      %v10407 = vrot.slane %v10405, 7
      %v10408 = vshll.u32 %v10368, 16
      %v10410 = vor.u32 %v10407, %v10408
      %v10411 = vsel %vm1239, %v10399, %v10410
      %v10413 = vshrl.u32 %v10369, 16
      %v10415 = vrot.slane %v10413, 7
      %v10416 = vshll.u32 %v10369, 16
      %v10418 = vor.u32 %v10415, %v10416
      %v10419 = vsel %vm1239, %v10407, %v10418
      %v10421 = vshrl.u32 %v10370, 16
      %v10423 = vrot.slane %v10421, 7
      %v10424 = vshll.u32 %v10370, 16
      %v10426 = vor.u32 %v10423, %v10424
      %v10427 = vsel %vm1239, %v10415, %v10426
      %v10429 = vshrl.u32 %v10371, 16
      %v10431 = vrot.slane %v10429, 7
      %v10432 = vshll.u32 %v10371, 16
      %v10434 = vor.u32 %v10431, %v10432
      %v10435 = vsel %vm1239, %v10423, %v10434
      %v10437 = vshrl.u32 %v10372, 16
      %v10439 = vrot.slane %v10437, 7
      %v10440 = vshll.u32 %v10372, 16
      %v10442 = vor.u32 %v10439, %v10440
      %v10443 = vsel %vm1239, %v10431, %v10442
      %v10445 = vshrl.u32 %v10373, 16
      %v10447 = vrot.slane %v10445, 7
      %v10448 = vshll.u32 %v10373, 16
      %v10450 = vor.u32 %v10447, %v10448
      %v10451 = vsel %vm1239, %v10439, %v10450
      %v10453 = vshrl.u32 %v10374, 16
      %v10455 = vrot.slane %v10453, 7
      %v10456 = vshll.u32 %v10374, 16
      %v10458 = vor.u32 %v10455, %v10456
      %v10459 = vsel %vm1239, %v10447, %v10458
      %v10461 = vshrl.u32 %v10375, 16
      %v10463 = vrot.slane %v10461, 7
      %v10464 = vshll.u32 %v10375, 16
      %v10466 = vor.u32 %v10463, %v10464
      %v10467 = vsel %vm1239, %v10455, %v10466
      %v10469 = vshrl.u32 %v10376, 16
      %v10471 = vrot.slane %v10469, 7
      %v10472 = vshll.u32 %v10376, 16
      %v10474 = vor.u32 %v10471, %v10472
      %v10475 = vsel %vm1239, %v10463, %v10474
      %v10477 = vshrl.u32 %v10377, 16
      %v10479 = vrot.slane %v10477, 7
      %v10480 = vshll.u32 %v10377, 16
      %v10482 = vor.u32 %v10479, %v10480
      %v10483 = vsel %vm1239, %v10471, %v10482
      %v10485 = vshrl.u32 %v10378, 16
      %v10487 = vrot.slane %v10485, 7
      %v10488 = vshll.u32 %v10378, 16
      %v10490 = vor.u32 %v10487, %v10488
      %v10491 = vsel %vm1239, %v10479, %v10490
      %v10493 = vshrl.u32 %v10379, 16
      %v10495 = vrot.slane %v10493, 7
      %v10496 = vshll.u32 %v10379, 16
      %v10498 = vor.u32 %v10495, %v10496
      %v10499 = vsel %vm1239, %v10487, %v10498
      %v10501 = vshrl.u32 %v10380, 16
      %v10503 = vrot.slane %v10501, 7
      %v10504 = vshll.u32 %v10380, 16
      %v10506 = vor.u32 %v10503, %v10504
      %v10507 = vsel %vm1239, %v10495, %v10506
      %v10524 = vsel %vm1384, 0, %v10387
      %v10525 = vsel %vm1568, %v10524, 0
      %v10526 = vsel %vm1575, %v10395, 0
      %v10527 = vsel %vm1582, %v10403, 0
      %v10528 = vsel %vm1589, %v10411, 0
      %v10529 = vsel %vm1596, %v10419, 0
      %v10530 = vsel %vm1603, %v10427, 0
      %v10531 = vsel %vm1610, %v10435, 0
      %v10532 = vsel %vm1617, %v10443, 0
      %v10533 = vsel %vm1624, %v10451, 0
      %v10534 = vsel %vm1631, %v10459, 0
      %v10535 = vsel %vm1638, %v10467, 0
      %v10536 = vsel %vm1645, %v10475, 0
      %v10537 = vsel %vm1652, %v10483, 0
      %v10538 = vsel %vm1659, %v10491, 0
      %v10539 = vsel %vm1666, %v10499, 0
      %v10540 = vsel %vm1673, %v10507, 0
      %v10541 = vrot.slane %v10385, 1
      %v10542 = vor.u32 %v10382, %v10541
      %v10543 = vrot.slane %v10392, 1
      %v10544 = vsel %vm1690, %v10542, %v10543
      %v10545 = vor.u32 %v10389, %v10543
      %v10546 = vrot.slane %v10400, 1
      %v10547 = vsel %vm1690, %v10545, %v10546
      %v10548 = vor.u32 %v10397, %v10546
      %v10549 = vrot.slane %v10408, 1
      %v10550 = vsel %vm1690, %v10548, %v10549
      %v10551 = vor.u32 %v10405, %v10549
      %v10552 = vrot.slane %v10416, 1
      %v10553 = vsel %vm1690, %v10551, %v10552
      %v10554 = vor.u32 %v10413, %v10552
      %v10555 = vrot.slane %v10424, 1
      %v10556 = vsel %vm1690, %v10554, %v10555
      %v10557 = vor.u32 %v10421, %v10555
      %v10558 = vrot.slane %v10432, 1
      %v10559 = vsel %vm1690, %v10557, %v10558
      %v10560 = vor.u32 %v10429, %v10558
      %v10561 = vrot.slane %v10440, 1
      %v10562 = vsel %vm1690, %v10560, %v10561
      %v10563 = vor.u32 %v10437, %v10561
      %v10564 = vrot.slane %v10448, 1
      %v10565 = vsel %vm1690, %v10563, %v10564
      %v10566 = vor.u32 %v10445, %v10564
      %v10567 = vrot.slane %v10456, 1
      %v10568 = vsel %vm1690, %v10566, %v10567
      %v10569 = vor.u32 %v10453, %v10567
      %v10570 = vrot.slane %v10464, 1
      %v10571 = vsel %vm1690, %v10569, %v10570
      %v10572 = vor.u32 %v10461, %v10570
      %v10573 = vrot.slane %v10472, 1
      %v10574 = vsel %vm1690, %v10572, %v10573
      %v10575 = vor.u32 %v10469, %v10573
      %v10576 = vrot.slane %v10480, 1
      %v10577 = vsel %vm1690, %v10575, %v10576
      %v10578 = vor.u32 %v10477, %v10576
      %v10579 = vrot.slane %v10488, 1
      %v10580 = vsel %vm1690, %v10578, %v10579
      %v10581 = vor.u32 %v10485, %v10579
      %v10582 = vrot.slane %v10496, 1
      %v10583 = vsel %vm1690, %v10581, %v10582
      %v10584 = vor.u32 %v10493, %v10582
      %v10585 = vrot.slane %v10504, 1
      %v10586 = vsel %vm1690, %v10584, %v10585
      %v10587 = vor.u32 %v10501, %v10585
      %v10604 = vsel %vm1755, %v10587, 0
      %v10605 = vsel %vm1939, %v10544, 0
      %v10606 = vsel %vm1946, %v10547, 0
      %v10607 = vsel %vm1953, %v10550, 0
      %v10608 = vsel %vm1960, %v10553, 0
      %v10609 = vsel %vm1967, %v10556, 0
      %v10610 = vsel %vm1974, %v10559, 0
      %v10611 = vsel %vm1981, %v10562, 0
      %v10612 = vsel %vm1988, %v10565, 0
      %v10613 = vsel %vm1995, %v10568, 0
      %v10614 = vsel %vm2002, %v10571, 0
      %v10615 = vsel %vm2009, %v10574, 0
      %v10616 = vsel %vm2016, %v10577, 0
      %v10617 = vsel %vm2023, %v10580, 0
      %v10618 = vsel %vm2030, %v10583, 0
      %v10619 = vsel %vm2037, %v10586, 0
      %v10620 = vsel %vm2044, %v10604, 0
      %10621 = vrot.lane.b32.xlu0 %v10365, 32
      %v10622 = vpop.permute.xlu0 %10621
      %10623 = vrot.lane.b32.xlu0 %v10366, 32
      %v10624 = vpop.permute.xlu0 %10623
      %10625 = vrot.lane.b32.xlu0 %v10367, 32
      %v10626 = vpop.permute.xlu0 %10625
      %10627 = vrot.lane.b32.xlu0 %v10368, 32
      %v10628 = vpop.permute.xlu0 %10627
      %10629 = vrot.lane.b32.xlu0 %v10369, 32
      %v10630 = vpop.permute.xlu0 %10629
      %10631 = vrot.lane.b32.xlu0 %v10370, 32
      %v10632 = vpop.permute.xlu0 %10631
      %10633 = vrot.lane.b32.xlu0 %v10371, 32
      %v10634 = vpop.permute.xlu0 %10633
      %10635 = vrot.lane.b32.xlu0 %v10372, 32
      %v10636 = vpop.permute.xlu0 %10635
      %10637 = vrot.lane.b32.xlu0 %v10373, 32
      %v10638 = vpop.permute.xlu0 %10637
      %10639 = vrot.lane.b32.xlu0 %v10374, 32
      %v10640 = vpop.permute.xlu0 %10639
      %10641 = vrot.lane.b32.xlu0 %v10375, 32
      %v10642 = vpop.permute.xlu0 %10641
      %10643 = vrot.lane.b32.xlu0 %v10376, 32
      %v10644 = vpop.permute.xlu0 %10643
      %10645 = vrot.lane.b32.xlu0 %v10377, 32
      %v10646 = vpop.permute.xlu0 %10645
      %10647 = vrot.lane.b32.xlu0 %v10378, 32
      %v10648 = vpop.permute.xlu0 %10647
      %10649 = vrot.lane.b32.xlu0 %v10379, 32
      %v10650 = vpop.permute.xlu0 %10649
      %10666 = vrot.lane.b32.xlu0 %v10605, 64
      %v10667 = vpop.permute.xlu0 %10666
      %10668 = vrot.lane.b32.xlu0 %v10606, 64
      %v10669 = vpop.permute.xlu0 %10668
      %10670 = vrot.lane.b32.xlu0 %v10607, 64
      %v10671 = vpop.permute.xlu0 %10670
      %10672 = vrot.lane.b32.xlu0 %v10608, 64
      %v10673 = vpop.permute.xlu0 %10672
      %10674 = vrot.lane.b32.xlu0 %v10609, 64
      %v10675 = vpop.permute.xlu0 %10674
      %10676 = vrot.lane.b32.xlu0 %v10610, 64
      %v10677 = vpop.permute.xlu0 %10676
      %10678 = vrot.lane.b32.xlu0 %v10611, 64
      %v10679 = vpop.permute.xlu0 %10678
      %10680 = vrot.lane.b32.xlu0 %v10612, 64
      %v10681 = vpop.permute.xlu0 %10680
      %10682 = vrot.lane.b32.xlu0 %v10613, 64
      %v10683 = vpop.permute.xlu0 %10682
      %10684 = vrot.lane.b32.xlu0 %v10614, 64
      %v10685 = vpop.permute.xlu0 %10684
      %10686 = vrot.lane.b32.xlu0 %v10615, 64
      %v10687 = vpop.permute.xlu0 %10686
      %10688 = vrot.lane.b32.xlu0 %v10616, 64
      %v10689 = vpop.permute.xlu0 %10688
      %10690 = vrot.lane.b32.xlu0 %v10617, 64
      %v10691 = vpop.permute.xlu0 %10690
      %10692 = vrot.lane.b32.xlu0 %v10618, 64
      %v10693 = vpop.permute.xlu0 %10692
      %10694 = vrot.lane.b32.xlu0 %v10619, 64
      %v10695 = vpop.permute.xlu0 %10694
      %10712 = vrot.lane.b32.xlu0 %v10525, 96
      %v10713 = vpop.permute.xlu0 %10712
      %10714 = vrot.lane.b32.xlu0 %v10526, 96
      %v10715 = vpop.permute.xlu0 %10714
      %10716 = vrot.lane.b32.xlu0 %v10527, 96
      %v10717 = vpop.permute.xlu0 %10716
      %10718 = vrot.lane.b32.xlu0 %v10528, 96
      %v10719 = vpop.permute.xlu0 %10718
      %10720 = vrot.lane.b32.xlu0 %v10529, 96
      %v10721 = vpop.permute.xlu0 %10720
      %10722 = vrot.lane.b32.xlu0 %v10530, 96
      %v10723 = vpop.permute.xlu0 %10722
      %10724 = vrot.lane.b32.xlu0 %v10531, 96
      %v10725 = vpop.permute.xlu0 %10724
      %10726 = vrot.lane.b32.xlu0 %v10532, 96
      %v10727 = vpop.permute.xlu0 %10726
      %10728 = vrot.lane.b32.xlu0 %v10533, 96
      %v10729 = vpop.permute.xlu0 %10728
      %10730 = vrot.lane.b32.xlu0 %v10534, 96
      %v10731 = vpop.permute.xlu0 %10730
      %10732 = vrot.lane.b32.xlu0 %v10535, 96
      %v10733 = vpop.permute.xlu0 %10732
      %10734 = vrot.lane.b32.xlu0 %v10536, 96
      %v10735 = vpop.permute.xlu0 %10734
      %10736 = vrot.lane.b32.xlu0 %v10537, 96
      %v10737 = vpop.permute.xlu0 %10736
      %10738 = vrot.lane.b32.xlu0 %v10538, 96
      %v10739 = vpop.permute.xlu0 %10738
      %10740 = vrot.lane.b32.xlu0 %v10539, 96
      %v10741 = vpop.permute.xlu0 %10740
      %10742 = vrot.lane.b32.xlu0 %v10540, 96
      %v10743 = vpop.permute.xlu0 %10742
      %10745 = vrot.lane.b32.xlu0 %v10605, 32
      %v10746 = vpop.permute.xlu0 %10745
      %10747 = vrot.lane.b32.xlu0 %v10606, 32
      %v10748 = vpop.permute.xlu0 %10747
      %10749 = vrot.lane.b32.xlu0 %v10607, 32
      %v10750 = vpop.permute.xlu0 %10749
      %10751 = vrot.lane.b32.xlu0 %v10608, 32
      %v10752 = vpop.permute.xlu0 %10751
      %10753 = vrot.lane.b32.xlu0 %v10609, 32
      %v10754 = vpop.permute.xlu0 %10753
      %10755 = vrot.lane.b32.xlu0 %v10610, 32
      %v10756 = vpop.permute.xlu0 %10755
      %10757 = vrot.lane.b32.xlu0 %v10611, 32
      %v10758 = vpop.permute.xlu0 %10757
      %10759 = vrot.lane.b32.xlu0 %v10612, 32
      %v10760 = vpop.permute.xlu0 %10759
      %10761 = vrot.lane.b32.xlu0 %v10613, 32
      %v10762 = vpop.permute.xlu0 %10761
      %10763 = vrot.lane.b32.xlu0 %v10614, 32
      %v10764 = vpop.permute.xlu0 %10763
      %10765 = vrot.lane.b32.xlu0 %v10615, 32
      %v10766 = vpop.permute.xlu0 %10765
      %10767 = vrot.lane.b32.xlu0 %v10616, 32
      %v10768 = vpop.permute.xlu0 %10767
      %10769 = vrot.lane.b32.xlu0 %v10617, 32
      %v10770 = vpop.permute.xlu0 %10769
      %10771 = vrot.lane.b32.xlu0 %v10618, 32
      %v10772 = vpop.permute.xlu0 %10771
      %10773 = vrot.lane.b32.xlu0 %v10619, 32
      %v10774 = vpop.permute.xlu0 %10773
      %10775 = vrot.lane.b32.xlu0 %v10620, 32
      %v10776 = vpop.permute.xlu0 %10775
      %10777 = vrot.lane.b32.xlu0 %v10526, 64
      %v10778 = vpop.permute.xlu0 %10777
      %10779 = vrot.lane.b32.xlu0 %v10527, 64
      %v10780 = vpop.permute.xlu0 %10779
      %10781 = vrot.lane.b32.xlu0 %v10528, 64
      %v10782 = vpop.permute.xlu0 %10781
      %10783 = vrot.lane.b32.xlu0 %v10529, 64
      %v10784 = vpop.permute.xlu0 %10783
      %10785 = vrot.lane.b32.xlu0 %v10530, 64
      %v10786 = vpop.permute.xlu0 %10785
      %10787 = vrot.lane.b32.xlu0 %v10531, 64
      %v10788 = vpop.permute.xlu0 %10787
      %10789 = vrot.lane.b32.xlu0 %v10532, 64
      %v10790 = vpop.permute.xlu0 %10789
      %10791 = vrot.lane.b32.xlu0 %v10533, 64
      %v10792 = vpop.permute.xlu0 %10791
      %10793 = vrot.lane.b32.xlu0 %v10534, 64
      %v10794 = vpop.permute.xlu0 %10793
      %10795 = vrot.lane.b32.xlu0 %v10535, 64
      %v10796 = vpop.permute.xlu0 %10795
      %10797 = vrot.lane.b32.xlu0 %v10536, 64
      %v10798 = vpop.permute.xlu0 %10797
      %10799 = vrot.lane.b32.xlu0 %v10537, 64
      %v10800 = vpop.permute.xlu0 %10799
      %10801 = vrot.lane.b32.xlu0 %v10538, 64
      %v10802 = vpop.permute.xlu0 %10801
      %10803 = vrot.lane.b32.xlu0 %v10539, 64
      %v10804 = vpop.permute.xlu0 %10803
      %10805 = vrot.lane.b32.xlu0 %v10540, 64
      %v10806 = vpop.permute.xlu0 %10805
      %10807 = vrot.lane.b32.xlu0 %v10366, 96
      %v10808 = vpop.permute.xlu0 %10807
      %10809 = vrot.lane.b32.xlu0 %v10367, 96
      %v10810 = vpop.permute.xlu0 %10809
      %10811 = vrot.lane.b32.xlu0 %v10368, 96
      %v10812 = vpop.permute.xlu0 %10811
      %10813 = vrot.lane.b32.xlu0 %v10369, 96
      %v10814 = vpop.permute.xlu0 %10813
      %10815 = vrot.lane.b32.xlu0 %v10370, 96
      %v10816 = vpop.permute.xlu0 %10815
      %10817 = vrot.lane.b32.xlu0 %v10371, 96
      %v10818 = vpop.permute.xlu0 %10817
      %10819 = vrot.lane.b32.xlu0 %v10372, 96
      %v10820 = vpop.permute.xlu0 %10819
      %10821 = vrot.lane.b32.xlu0 %v10373, 96
      %v10822 = vpop.permute.xlu0 %10821
      %10823 = vrot.lane.b32.xlu0 %v10374, 96
      %v10824 = vpop.permute.xlu0 %10823
      %10825 = vrot.lane.b32.xlu0 %v10375, 96
      %v10826 = vpop.permute.xlu0 %10825
      %10827 = vrot.lane.b32.xlu0 %v10376, 96
      %v10828 = vpop.permute.xlu0 %10827
      %10829 = vrot.lane.b32.xlu0 %v10377, 96
      %v10830 = vpop.permute.xlu0 %10829
      %10831 = vrot.lane.b32.xlu0 %v10378, 96
      %v10832 = vpop.permute.xlu0 %10831
      %10833 = vrot.lane.b32.xlu0 %v10379, 96
      %v10834 = vpop.permute.xlu0 %10833
      %10835 = vrot.lane.b32.xlu0 %v10380, 96
      %v10836 = vpop.permute.xlu0 %10835
      %v10839 = vsel %vm2597, %v10525, %v10622
      %v10842 = vsel %vm2597, %v10526, %v10624
      %v10845 = vsel %vm2597, %v10527, %v10626
      %v10848 = vsel %vm2597, %v10528, %v10628
      %v10851 = vsel %vm2597, %v10529, %v10630
      %v10854 = vsel %vm2597, %v10530, %v10632
      %v10857 = vsel %vm2597, %v10531, %v10634
      %v10860 = vsel %vm2597, %v10532, %v10636
      %v10863 = vsel %vm2597, %v10533, %v10638
      %v10866 = vsel %vm2597, %v10534, %v10640
      %v10869 = vsel %vm2597, %v10535, %v10642
      %v10872 = vsel %vm2597, %v10536, %v10644
      %v10875 = vsel %vm2597, %v10537, %v10646
      %v10878 = vsel %vm2597, %v10538, %v10648
      %v10881 = vsel %vm2597, %v10539, %v10650
      %v10883 = vsel %vm3430, %v10839, %v10667
      %v10885 = vsel %vm3430, %v10842, %v10669
      %v10887 = vsel %vm3430, %v10845, %v10671
      %v10889 = vsel %vm3430, %v10848, %v10673
      %v10891 = vsel %vm3430, %v10851, %v10675
      %v10893 = vsel %vm3430, %v10854, %v10677
      %v10895 = vsel %vm3430, %v10857, %v10679
      %v10897 = vsel %vm3430, %v10860, %v10681
      %v10899 = vsel %vm3430, %v10863, %v10683
      %v10901 = vsel %vm3430, %v10866, %v10685
      %v10903 = vsel %vm3430, %v10869, %v10687
      %v10905 = vsel %vm3430, %v10872, %v10689
      %v10907 = vsel %vm3430, %v10875, %v10691
      %v10909 = vsel %vm3430, %v10878, %v10693
      %v10911 = vsel %vm3430, %v10881, %v10695
      %v10913 = vsel %vm3463, %v3432, %v10713
      %v10916 = vsel %vm3463, %v10883, %v10715
      %v10919 = vsel %vm3463, %v10885, %v10717
      %v10922 = vsel %vm3463, %v10887, %v10719
      %v10925 = vsel %vm3463, %v10889, %v10721
      %v10928 = vsel %vm3463, %v10891, %v10723
      %v10931 = vsel %vm3463, %v10893, %v10725
      %v10934 = vsel %vm3463, %v10895, %v10727
      %v10937 = vsel %vm3463, %v10897, %v10729
      %v10940 = vsel %vm3463, %v10899, %v10731
      %v10943 = vsel %vm3463, %v10901, %v10733
      %v10946 = vsel %vm3463, %v10903, %v10735
      %v10949 = vsel %vm3463, %v10905, %v10737
      %v10952 = vsel %vm3463, %v10907, %v10739
      %v10955 = vsel %vm3463, %v10909, %v10741
      %v10958 = vsel %vm3463, %v10911, %v10743
      %v10961 = vsel %vm2597, %v10365, %v10746
      %v10963 = vsel %vm2597, %v10366, %v10748
      %v10965 = vsel %vm2597, %v10367, %v10750
      %v10967 = vsel %vm2597, %v10368, %v10752
      %v10969 = vsel %vm2597, %v10369, %v10754
      %v10971 = vsel %vm2597, %v10370, %v10756
      %v10973 = vsel %vm2597, %v10371, %v10758
      %v10975 = vsel %vm2597, %v10372, %v10760
      %v10977 = vsel %vm2597, %v10373, %v10762
      %v10979 = vsel %vm2597, %v10374, %v10764
      %v10981 = vsel %vm2597, %v10375, %v10766
      %v10983 = vsel %vm2597, %v10376, %v10768
      %v10985 = vsel %vm2597, %v10377, %v10770
      %v10987 = vsel %vm2597, %v10378, %v10772
      %v10989 = vsel %vm2597, %v10379, %v10774
      %v10991 = vsel %vm2597, %v10380, %v10776
      %v10993 = vsel %vm3430, %v10961, %v10778
      %v10995 = vsel %vm3430, %v10963, %v10780
      %v10997 = vsel %vm3430, %v10965, %v10782
      %v10999 = vsel %vm3430, %v10967, %v10784
      %v11001 = vsel %vm3430, %v10969, %v10786
      %v11003 = vsel %vm3430, %v10971, %v10788
      %v11005 = vsel %vm3430, %v10973, %v10790
      %v11007 = vsel %vm3430, %v10975, %v10792
      %v11009 = vsel %vm3430, %v10977, %v10794
      %v11011 = vsel %vm3430, %v10979, %v10796
      %v11013 = vsel %vm3430, %v10981, %v10798
      %v11015 = vsel %vm3430, %v10983, %v10800
      %v11017 = vsel %vm3430, %v10985, %v10802
      %v11019 = vsel %vm3430, %v10987, %v10804
      %v11021 = vsel %vm3430, %v10989, %v10806
      %v11022 = vsel %vm3430, %v10991, %v3210
      %v11024 = vsel %vm3463, %v10993, %v10808
      %v11027 = vsel %vm3463, %v10995, %v10810
      %v11030 = vsel %vm3463, %v10997, %v10812
      %v11033 = vsel %vm3463, %v10999, %v10814
      %v11036 = vsel %vm3463, %v11001, %v10816
      %v11039 = vsel %vm3463, %v11003, %v10818
      %v11042 = vsel %vm3463, %v11005, %v10820
      %v11045 = vsel %vm3463, %v11007, %v10822
      %v11048 = vsel %vm3463, %v11009, %v10824
      %v11051 = vsel %vm3463, %v11011, %v10826
      %v11054 = vsel %vm3463, %v11013, %v10828
      %v11057 = vsel %vm3463, %v11015, %v10830
      %v11060 = vsel %vm3463, %v11017, %v10832
      %v11063 = vsel %vm3463, %v11019, %v10834
      %v11066 = vsel %vm3463, %v11021, %v10836
      %v11068 = vsel %vm3463, %v11022, %v3383
      %v11070 = vld [vmem:[%s15] sm:$0xf]
      %v11071 = vld [vmem:[%s15 + $0x4] sm:$0xf]
      %v11072 = vld [vmem:[%s15 + $0x8] sm:$0xf]
      %v11073 = vld [vmem:[%s15 + $0xc] sm:$0xf]
      %v11074 = vld [vmem:[%s15 + $0x10] sm:$0xf]
      %v11075 = vld [vmem:[%s15 + $0x14] sm:$0xf]
      %v11076 = vld [vmem:[%s15 + $0x18] sm:$0xf]
      %v11077 = vld [vmem:[%s15 + $0x1c] sm:$0xf]
      %v11078 = vld [vmem:[%s15 + $0x20] sm:$0xf]
      %v11079 = vld [vmem:[%s15 + $0x24] sm:$0xf]
      %v11080 = vld [vmem:[%s15 + $0x28] sm:$0xf]
      %v11081 = vld [vmem:[%s15 + $0x2c] sm:$0xf]
      %v11082 = vld [vmem:[%s15 + $0x30] sm:$0xf]
      %v11083 = vld [vmem:[%s15 + $0x34] sm:$0xf]
      %v11084 = vld [vmem:[%s15 + $0x38] sm:$0xf]
      %v11085 = vld [vmem:[%s15 + $0x3c] sm:$0xf]
      %v11086 = vld [vmem:[%s15 + $0x40] sm:$0xf]
      %v11087 = vld [vmem:[%s15 + $0x44] sm:$0xf]
      %v11088 = vld [vmem:[%s15 + $0x48] sm:$0xf]
      %v11089 = vld [vmem:[%s15 + $0x4c] sm:$0xf]
      %v11090 = vld [vmem:[%s15 + $0x50] sm:$0xf]
      %v11091 = vld [vmem:[%s15 + $0x54] sm:$0xf]
      %v11092 = vld [vmem:[%s15 + $0x58] sm:$0xf]
      %v11093 = vld [vmem:[%s15 + $0x5c] sm:$0xf]
      %v11094 = vld [vmem:[%s15 + $0x60] sm:$0xf]
      %v11095 = vld [vmem:[%s15 + $0x64] sm:$0xf]
      %v11096 = vld [vmem:[%s15 + $0x68] sm:$0xf]
      %v11097 = vld [vmem:[%s15 + $0x6c] sm:$0xf]
      %v11098 = vld [vmem:[%s15 + $0x70] sm:$0xf]
      %v11099 = vld [vmem:[%s15 + $0x74] sm:$0xf]
      %v11100 = vld [vmem:[%s15 + $0x78] sm:$0xf]
      %v11101 = vld [vmem:[%s15 + $0x7c] sm:$0xf]
      %v11102 = vld [vmem:[%s15 + $0x80] sm:$0xf]
      %v11103 = vld [vmem:[%s15 + $0x84] sm:$0xf]
      %v11104 = vld [vmem:[%s15 + $0x88] sm:$0xf]
      %v11105 = vld [vmem:[%s15 + $0x8c] sm:$0xf]
      %v11106 = vld [vmem:[%s16] sm:$0x1]
      %v11108 = vperm.slane %v11106, 0
      %v11146 = vunpack.c.l.b16 %v11070
      %v11147 = vunpack.c.l.b16 %v11071
      %v11148 = vunpack.c.l.b16 %v11072
      %v11149 = vunpack.c.l.b16 %v11073
      %v11150 = vunpack.c.l.b16 %v11074
      %v11151 = vunpack.c.l.b16 %v11075
      %v11152 = vunpack.c.l.b16 %v11076
      %v11153 = vunpack.c.l.b16 %v11077
      %v11154 = vunpack.c.l.b16 %v11078
      %v11155 = vunpack.c.l.b16 %v11079
      %v11156 = vunpack.c.l.b16 %v11080
      %v11157 = vunpack.c.l.b16 %v11081
      %v11158 = vunpack.c.l.b16 %v11082
      %v11159 = vunpack.c.l.b16 %v11083
      %v11160 = vunpack.c.l.b16 %v11084
      %v11161 = vunpack.c.l.b16 %v11085
      %v11162 = vunpack.c.l.b16 %v11086
      %v11163 = vunpack.c.l.b16 %v11087
      %v11164 = vunpack.c.l.b16 %v11088
      %v11165 = vunpack.c.l.b16 %v11089
      %v11166 = vunpack.c.l.b16 %v11090
      %v11167 = vunpack.c.l.b16 %v11091
      %v11168 = vunpack.c.l.b16 %v11092
      %v11169 = vunpack.c.l.b16 %v11093
      %v11170 = vunpack.c.l.b16 %v11094
      %v11171 = vunpack.c.l.b16 %v11095
      %v11172 = vunpack.c.l.b16 %v11096
      %v11173 = vunpack.c.l.b16 %v11097
      %v11174 = vunpack.c.l.b16 %v11098
      %v11175 = vunpack.c.l.b16 %v11099
      %v11176 = vunpack.c.l.b16 %v11100
      %v11177 = vunpack.c.l.b16 %v11101
      %v11178 = vunpack.c.l.b16 %v11102
      %v11179 = vunpack.c.l.b16 %v11103
      %v11180 = vunpack.c.l.b16 %v11104
      %v11181 = vunpack.c.l.b16 %v11105
      %v11182 = vpack.c.b16 %v11147, %v11146
      %v11183 = vpack.c.b16 %v11149, %v11148
      %v11184 = vpack.c.b16 %v11151, %v11150
      %v11185 = vpack.c.b16 %v11153, %v11152
      %v11186 = vpack.c.b16 %v11155, %v11154
      %v11187 = vpack.c.b16 %v11157, %v11156
      %v11188 = vpack.c.b16 %v11159, %v11158
      %v11189 = vpack.c.b16 %v11161, %v11160
      %v11190 = vpack.c.b16 %v11163, %v11162
      %v11191 = vpack.c.b16 %v11165, %v11164
      %v11192 = vpack.c.b16 %v11167, %v11166
      %v11193 = vpack.c.b16 %v11169, %v11168
      %v11194 = vpack.c.b16 %v11171, %v11170
      %v11195 = vpack.c.b16 %v11173, %v11172
      %v11196 = vpack.c.b16 %v11175, %v11174
      %v11197 = vpack.c.b16 %v11177, %v11176
      %v11198 = vpack.c.b16 %v11179, %v11178
      %v11199 = vpack.c.b16 %v11181, %v11180
      %v11219 = vsel %vm2597, %v10606, 0
      %v11222 = vsel %vm2597, %v10607, 0
      %v11225 = vsel %vm2597, %v10608, 0
      %v11228 = vsel %vm2597, %v10609, 0
      %v11231 = vsel %vm2597, %v10610, 0
      %v11234 = vsel %vm2597, %v10611, 0
      %v11237 = vsel %vm2597, %v10612, 0
      %v11240 = vsel %vm2597, %v10613, 0
      %v11243 = vsel %vm2597, %v10614, 0
      %v11246 = vsel %vm2597, %v10615, 0
      %v11249 = vsel %vm2597, %v10616, 0
      %v11252 = vsel %vm2597, %v10617, 0
      %v11255 = vsel %vm2597, %v10618, 0
      %v11258 = vsel %vm2597, %v10619, 0
      %v11261 = vsel %vm2597, %v10620, 0
      %11263 = vmatpush.bf16.msra.mxu0 %v11189
      %11264 = vmatpush.bf16.msra.mxu0 %v11188
      %11265 = vmatpush.bf16.msra.mxu0 %v11187
      %11266 = vmatpush.bf16.msra.mxu0 %v11186
      %11267 = vmatpush.bf16.msra.mxu0 %v11185
      %11268 = vmatpush.bf16.msra.mxu0 %v11184
      %11269 = vmatpush.bf16.msra.mxu0 %v11183
      %11270 = vmatpush.bf16.msra.mxu0 %v11182
      %11271 = vmatmul.bf16.gmra.mxu0 %v10913
      %v11272 = vpop.f32.mrf.mxu0
      %v11273 = vadd.f32 %v11108, %v11272
      %v11274 = vpop.f32.mrf.mxu0
      %v11275 = vadd.f32 %v11108, %v11274
      %11276 = vmatmul.bf16.gmra.mxu0 %v10916
      %v11277 = vpop.f32.mrf.mxu0
      %v11278 = vadd.f32 %v11108, %v11277
      %v11279 = vpop.f32.mrf.mxu0
      %v11280 = vadd.f32 %v11108, %v11279
      %11281 = vmatmul.bf16.gmra.mxu0 %v10919
      %v11282 = vpop.f32.mrf.mxu0
      %v11283 = vadd.f32 %v11108, %v11282
      %v11284 = vpop.f32.mrf.mxu0
      %v11285 = vadd.f32 %v11108, %v11284
      %11286 = vmatmul.bf16.gmra.mxu0 %v10922
      %v11287 = vpop.f32.mrf.mxu0
      %v11288 = vadd.f32 %v11108, %v11287
      %v11289 = vpop.f32.mrf.mxu0
      %v11290 = vadd.f32 %v11108, %v11289
      %11291 = vmatmul.bf16.gmra.mxu0 %v10925
      %v11292 = vpop.f32.mrf.mxu0
      %v11293 = vadd.f32 %v11108, %v11292
      %v11294 = vpop.f32.mrf.mxu0
      %v11295 = vadd.f32 %v11108, %v11294
      %11296 = vmatmul.bf16.gmra.mxu0 %v10928
      %v11297 = vpop.f32.mrf.mxu0
      %v11298 = vadd.f32 %v11108, %v11297
      %v11299 = vpop.f32.mrf.mxu0
      %v11300 = vadd.f32 %v11108, %v11299
      %11301 = vmatmul.bf16.gmra.mxu0 %v10931
      %v11302 = vpop.f32.mrf.mxu0
      %v11303 = vadd.f32 %v11108, %v11302
      %v11304 = vpop.f32.mrf.mxu0
      %v11305 = vadd.f32 %v11108, %v11304
      %11306 = vmatmul.bf16.gmra.mxu0 %v10934
      %v11307 = vpop.f32.mrf.mxu0
      %v11308 = vadd.f32 %v11108, %v11307
      %v11309 = vpop.f32.mrf.mxu0
      %v11310 = vadd.f32 %v11108, %v11309
      %11311 = vmatmul.bf16.gmra.mxu0 %v10937
      %v11312 = vpop.f32.mrf.mxu0
      %v11313 = vadd.f32 %v11108, %v11312
      %v11314 = vpop.f32.mrf.mxu0
      %v11315 = vadd.f32 %v11108, %v11314
      %11316 = vmatmul.bf16.gmra.mxu0 %v10940
      %v11317 = vpop.f32.mrf.mxu0
      %v11318 = vadd.f32 %v11108, %v11317
      %v11319 = vpop.f32.mrf.mxu0
      %v11320 = vadd.f32 %v11108, %v11319
      %11321 = vmatmul.bf16.gmra.mxu0 %v10943
      %v11322 = vpop.f32.mrf.mxu0
      %v11323 = vadd.f32 %v11108, %v11322
      %v11324 = vpop.f32.mrf.mxu0
      %v11325 = vadd.f32 %v11108, %v11324
      %11326 = vmatmul.bf16.gmra.mxu0 %v10946
      %v11327 = vpop.f32.mrf.mxu0
      %v11328 = vadd.f32 %v11108, %v11327
      %v11329 = vpop.f32.mrf.mxu0
      %v11330 = vadd.f32 %v11108, %v11329
      %11331 = vmatmul.bf16.gmra.mxu0 %v10949
      %v11332 = vpop.f32.mrf.mxu0
      %v11333 = vadd.f32 %v11108, %v11332
      %v11334 = vpop.f32.mrf.mxu0
      %v11335 = vadd.f32 %v11108, %v11334
      %11336 = vmatmul.bf16.gmra.mxu0 %v10952
      %v11337 = vpop.f32.mrf.mxu0
      %v11338 = vadd.f32 %v11108, %v11337
      %v11339 = vpop.f32.mrf.mxu0
      %v11340 = vadd.f32 %v11108, %v11339
      %11341 = vmatmul.bf16.gmra.mxu0 %v10955
      %v11342 = vpop.f32.mrf.mxu0
      %v11343 = vadd.f32 %v11108, %v11342
      %v11344 = vpop.f32.mrf.mxu0
      %v11345 = vadd.f32 %v11108, %v11344
      %11346 = vmatmul.bf16.gmra.mxu0 %v10958
      %v11347 = vpop.f32.mrf.mxu0
      %v11348 = vadd.f32 %v11108, %v11347
      %v11349 = vpop.f32.mrf.mxu0
      %v11350 = vadd.f32 %v11108, %v11349
      %11351 = vdwg.mxu0
      %11352 = vmatpush.bf16.msra.mxu0 %v11197
      %11353 = vmatpush.bf16.msra.mxu0 %v11196
      %11354 = vmatpush.bf16.msra.mxu0 %v11195
      %11355 = vmatpush.bf16.msra.mxu0 %v11194
      %11356 = vmatpush.bf16.msra.mxu0 %v11193
      %11357 = vmatpush.bf16.msra.mxu0 %v11192
      %11358 = vmatpush.bf16.msra.mxu0 %v11191
      %11359 = vmatpush.bf16.msra.mxu0 %v11190
      %11360 = vmatmul.bf16.gmra.mxu0 %v11024
      %v11361 = vpop.f32.mrf.mxu0
      %v11362 = vadd.f32 %v11273, %v11361
      %v11363 = vpop.f32.mrf.mxu0
      %v11364 = vadd.f32 %v11275, %v11363
      %11365 = vmatmul.bf16.gmra.mxu0 %v11027
      %v11366 = vpop.f32.mrf.mxu0
      %v11367 = vadd.f32 %v11278, %v11366
      %v11368 = vpop.f32.mrf.mxu0
      %v11369 = vadd.f32 %v11280, %v11368
      %11370 = vmatmul.bf16.gmra.mxu0 %v11030
      %v11371 = vpop.f32.mrf.mxu0
      %v11372 = vadd.f32 %v11283, %v11371
      %v11373 = vpop.f32.mrf.mxu0
      %v11374 = vadd.f32 %v11285, %v11373
      %11375 = vmatmul.bf16.gmra.mxu0 %v11033
      %v11376 = vpop.f32.mrf.mxu0
      %v11377 = vadd.f32 %v11288, %v11376
      %v11378 = vpop.f32.mrf.mxu0
      %v11379 = vadd.f32 %v11290, %v11378
      %11380 = vmatmul.bf16.gmra.mxu0 %v11036
      %v11381 = vpop.f32.mrf.mxu0
      %v11382 = vadd.f32 %v11293, %v11381
      %v11383 = vpop.f32.mrf.mxu0
      %v11384 = vadd.f32 %v11295, %v11383
      %11385 = vmatmul.bf16.gmra.mxu0 %v11039
      %v11386 = vpop.f32.mrf.mxu0
      %v11387 = vadd.f32 %v11298, %v11386
      %v11388 = vpop.f32.mrf.mxu0
      %v11389 = vadd.f32 %v11300, %v11388
      %11390 = vmatmul.bf16.gmra.mxu0 %v11042
      %v11391 = vpop.f32.mrf.mxu0
      %v11392 = vadd.f32 %v11303, %v11391
      %v11393 = vpop.f32.mrf.mxu0
      %v11394 = vadd.f32 %v11305, %v11393
      %11395 = vmatmul.bf16.gmra.mxu0 %v11045
      %v11396 = vpop.f32.mrf.mxu0
      %v11397 = vadd.f32 %v11308, %v11396
      %v11398 = vpop.f32.mrf.mxu0
      %v11399 = vadd.f32 %v11310, %v11398
      %11400 = vmatmul.bf16.gmra.mxu0 %v11048
      %v11401 = vpop.f32.mrf.mxu0
      %v11402 = vadd.f32 %v11313, %v11401
      %v11403 = vpop.f32.mrf.mxu0
      %v11404 = vadd.f32 %v11315, %v11403
      %11405 = vmatmul.bf16.gmra.mxu0 %v11051
      %v11406 = vpop.f32.mrf.mxu0
      %v11407 = vadd.f32 %v11318, %v11406
      %v11408 = vpop.f32.mrf.mxu0
      %v11409 = vadd.f32 %v11320, %v11408
      %11410 = vmatmul.bf16.gmra.mxu0 %v11054
      %v11411 = vpop.f32.mrf.mxu0
      %v11412 = vadd.f32 %v11323, %v11411
      %v11413 = vpop.f32.mrf.mxu0
      %v11414 = vadd.f32 %v11325, %v11413
      %11415 = vmatmul.bf16.gmra.mxu0 %v11057
      %v11416 = vpop.f32.mrf.mxu0
      %v11417 = vadd.f32 %v11328, %v11416
      %v11418 = vpop.f32.mrf.mxu0
      %v11419 = vadd.f32 %v11330, %v11418
      %11420 = vmatmul.bf16.gmra.mxu0 %v11060
      %v11421 = vpop.f32.mrf.mxu0
      %v11422 = vadd.f32 %v11333, %v11421
      %v11423 = vpop.f32.mrf.mxu0
      %v11424 = vadd.f32 %v11335, %v11423
      %11425 = vmatmul.bf16.gmra.mxu0 %v11063
      %v11426 = vpop.f32.mrf.mxu0
      %v11427 = vadd.f32 %v11338, %v11426
      %v11428 = vpop.f32.mrf.mxu0
      %v11429 = vadd.f32 %v11340, %v11428
      %11430 = vmatmul.bf16.gmra.mxu0 %v11066
      %v11431 = vpop.f32.mrf.mxu0
      %v11432 = vadd.f32 %v11343, %v11431
      %v11433 = vpop.f32.mrf.mxu0
      %v11434 = vadd.f32 %v11345, %v11433
      %11435 = vmatmul.bf16.gmra.mxu0 %v11068
      %v11436 = vpop.f32.mrf.mxu0
      %v11437 = vadd.f32 %v11348, %v11436
      %v11438 = vpop.f32.mrf.mxu0
      %v11439 = vadd.f32 %v11350, %v11438
      %11440 = vdwg.mxu0
      %11441 = vmatpush.bf16.msra.mxu0 0
      %11442 = vmatpush.bf16.msra.mxu0 0
      %11443 = vmatpush.bf16.msra.mxu0 0
      %11444 = vmatpush.bf16.msra.mxu0 0
      %11445 = vmatpush.bf16.msra.mxu0 0
      %11446 = vmatpush.bf16.msra.mxu0 0
      %11447 = vmatpush.bf16.msra.mxu0 %v11199
      %11448 = vmatpush.bf16.msra.mxu0 %v11198
      %11449 = vmatmul.bf16.gmra.mxu0 %v11219
      %v11450 = vpop.f32.mrf.mxu0
      %v11451 = vadd.f32 %v11362, %v11450
      %v11452 = vpop.f32.mrf.mxu0
      %v11453 = vadd.f32 %v11364, %v11452
      %11454 = vmatmul.bf16.gmra.mxu0 %v11222
      %v11455 = vpop.f32.mrf.mxu0
      %v11456 = vadd.f32 %v11367, %v11455
      %v11457 = vpop.f32.mrf.mxu0
      %v11458 = vadd.f32 %v11369, %v11457
      %11459 = vmatmul.bf16.gmra.mxu0 %v11225
      %v11460 = vpop.f32.mrf.mxu0
      %v11461 = vadd.f32 %v11372, %v11460
      %v11462 = vpop.f32.mrf.mxu0
      %v11463 = vadd.f32 %v11374, %v11462
      %11464 = vmatmul.bf16.gmra.mxu0 %v11228
      %v11465 = vpop.f32.mrf.mxu0
      %v11466 = vadd.f32 %v11377, %v11465
      %v11467 = vpop.f32.mrf.mxu0
      %v11468 = vadd.f32 %v11379, %v11467
      %11469 = vmatmul.bf16.gmra.mxu0 %v11231
      %v11470 = vpop.f32.mrf.mxu0
      %v11471 = vadd.f32 %v11382, %v11470
      %v11472 = vpop.f32.mrf.mxu0
      %v11473 = vadd.f32 %v11384, %v11472
      %11474 = vmatmul.bf16.gmra.mxu0 %v11234
      %v11475 = vpop.f32.mrf.mxu0
      %v11476 = vadd.f32 %v11387, %v11475
      %v11477 = vpop.f32.mrf.mxu0
      %v11478 = vadd.f32 %v11389, %v11477
      %11479 = vmatmul.bf16.gmra.mxu0 %v11237
      %v11480 = vpop.f32.mrf.mxu0
      %v11481 = vadd.f32 %v11392, %v11480
      %v11482 = vpop.f32.mrf.mxu0
      %v11483 = vadd.f32 %v11394, %v11482
      %11484 = vmatmul.bf16.gmra.mxu0 %v11240
      %v11485 = vpop.f32.mrf.mxu0
      %v11486 = vadd.f32 %v11397, %v11485
      %v11487 = vpop.f32.mrf.mxu0
      %v11488 = vadd.f32 %v11399, %v11487
      %11489 = vmatmul.bf16.gmra.mxu0 %v11243
      %v11490 = vpop.f32.mrf.mxu0
      %v11491 = vadd.f32 %v11402, %v11490
      %v11492 = vpop.f32.mrf.mxu0
      %v11493 = vadd.f32 %v11404, %v11492
      %11494 = vmatmul.bf16.gmra.mxu0 %v11246
      %v11495 = vpop.f32.mrf.mxu0
      %v11496 = vadd.f32 %v11407, %v11495
      %v11497 = vpop.f32.mrf.mxu0
      %v11498 = vadd.f32 %v11409, %v11497
      %11499 = vmatmul.bf16.gmra.mxu0 %v11249
      %v11500 = vpop.f32.mrf.mxu0
      %v11501 = vadd.f32 %v11412, %v11500
      %v11502 = vpop.f32.mrf.mxu0
      %v11503 = vadd.f32 %v11414, %v11502
      %11504 = vmatmul.bf16.gmra.mxu0 %v11252
      %v11505 = vpop.f32.mrf.mxu0
      %v11506 = vadd.f32 %v11417, %v11505
      %v11507 = vpop.f32.mrf.mxu0
      %v11508 = vadd.f32 %v11419, %v11507
      %11509 = vmatmul.bf16.gmra.mxu0 %v11255
      %v11510 = vpop.f32.mrf.mxu0
      %v11511 = vadd.f32 %v11422, %v11510
      %v11512 = vpop.f32.mrf.mxu0
      %v11513 = vadd.f32 %v11424, %v11512
      %11514 = vmatmul.bf16.gmra.mxu0 %v11258
      %v11515 = vpop.f32.mrf.mxu0
      %v11516 = vadd.f32 %v11427, %v11515
      %v11517 = vpop.f32.mrf.mxu0
      %v11518 = vadd.f32 %v11429, %v11517
      %11519 = vmatmul.bf16.gmra.mxu0 %v11261
      %v11520 = vpop.f32.mrf.mxu0
      %v11521 = vadd.f32 %v11432, %v11520
      %v11522 = vpop.f32.mrf.mxu0
      %v11523 = vadd.f32 %v11434, %v11522
      %11524 = vmatmul.bf16.gmra.mxu0 %v3816
      %v11525 = vpop.f32.mrf.mxu0
      %v11526 = vadd.f32 %v11437, %v11525
      %v11527 = vpop.f32.mrf.mxu0
      %v11528 = vadd.f32 %v11439, %v11527
      %11529 = vdwg.mxu0
      %v11530 = vmax.f32 %v11451, 0.0
      %v11531 = vmax.f32 %v11453, 0.0
      %v11532 = vmax.f32 %v11456, 0.0
      %v11533 = vmax.f32 %v11458, 0.0
      %v11534 = vmax.f32 %v11461, 0.0
      %v11535 = vmax.f32 %v11463, 0.0
      %v11536 = vmax.f32 %v11466, 0.0
      %v11537 = vmax.f32 %v11468, 0.0
      %v11538 = vmax.f32 %v11471, 0.0
      %v11539 = vmax.f32 %v11473, 0.0
      %v11540 = vmax.f32 %v11476, 0.0
      %v11541 = vmax.f32 %v11478, 0.0
      %v11542 = vmax.f32 %v11481, 0.0
      %v11543 = vmax.f32 %v11483, 0.0
      %v11544 = vmax.f32 %v11486, 0.0
      %v11545 = vmax.f32 %v11488, 0.0
      %v11546 = vmax.f32 %v11491, 0.0
      %v11547 = vmax.f32 %v11493, 0.0
      %v11548 = vmax.f32 %v11496, 0.0
      %v11549 = vmax.f32 %v11498, 0.0
      %v11550 = vmax.f32 %v11501, 0.0
      %v11551 = vmax.f32 %v11503, 0.0
      %v11552 = vmax.f32 %v11506, 0.0
      %v11553 = vmax.f32 %v11508, 0.0
      %v11554 = vmax.f32 %v11511, 0.0
      %v11555 = vmax.f32 %v11513, 0.0
      %v11556 = vmax.f32 %v11516, 0.0
      %v11557 = vmax.f32 %v11518, 0.0
      %v11558 = vmax.f32 %v11521, 0.0
      %v11559 = vmax.f32 %v11523, 0.0
      %v11560 = vmax.f32 %v11526, 0.0
      %v11561 = vmax.f32 %v11528, 0.0
      %v11562 = vpack.c.bf16 %v11530, %v11530
      %v11563 = vpack.c.bf16 %v11531, %v11531
      %v11564 = vpack.c.bf16 %v11532, %v11532
      %v11565 = vpack.c.bf16 %v11533, %v11533
      %v11566 = vpack.c.bf16 %v11534, %v11534
      %v11567 = vpack.c.bf16 %v11535, %v11535
      %v11568 = vpack.c.bf16 %v11536, %v11536
      %v11569 = vpack.c.bf16 %v11537, %v11537
      %v11570 = vpack.c.bf16 %v11538, %v11538
      %v11571 = vpack.c.bf16 %v11539, %v11539
      %v11572 = vpack.c.bf16 %v11540, %v11540
      %v11573 = vpack.c.bf16 %v11541, %v11541
      %v11574 = vpack.c.bf16 %v11542, %v11542
      %v11575 = vpack.c.bf16 %v11543, %v11543
      %v11576 = vpack.c.bf16 %v11544, %v11544
      %v11577 = vpack.c.bf16 %v11545, %v11545
      %v11578 = vpack.c.bf16 %v11546, %v11546
      %v11579 = vpack.c.bf16 %v11547, %v11547
      %v11580 = vpack.c.bf16 %v11548, %v11548
      %v11581 = vpack.c.bf16 %v11549, %v11549
      %v11582 = vpack.c.bf16 %v11550, %v11550
      %v11583 = vpack.c.bf16 %v11551, %v11551
      %v11584 = vpack.c.bf16 %v11552, %v11552
      %v11585 = vpack.c.bf16 %v11553, %v11553
      %v11586 = vpack.c.bf16 %v11554, %v11554
      %v11587 = vpack.c.bf16 %v11555, %v11555
      %v11588 = vpack.c.bf16 %v11556, %v11556
      %v11589 = vpack.c.bf16 %v11557, %v11557
      %v11590 = vpack.c.bf16 %v11558, %v11558
      %v11591 = vpack.c.bf16 %v11559, %v11559
      %v11592 = vpack.c.bf16 %v11560, %v11560
      %v11593 = vpack.c.bf16 %v11561, %v11561
      %v11626 = vunpack.c.l.b16 %v11562
      %v11627 = vunpack.c.l.b16 %v11563
      %v11628 = vunpack.c.l.b16 %v11564
      %v11629 = vunpack.c.l.b16 %v11565
      %v11630 = vunpack.c.l.b16 %v11566
      %v11631 = vunpack.c.l.b16 %v11567
      %v11632 = vunpack.c.l.b16 %v11568
      %v11633 = vunpack.c.l.b16 %v11569
      %v11634 = vunpack.c.l.b16 %v11570
      %v11635 = vunpack.c.l.b16 %v11571
      %v11636 = vunpack.c.l.b16 %v11572
      %v11637 = vunpack.c.l.b16 %v11573
      %v11638 = vunpack.c.l.b16 %v11574
      %v11639 = vunpack.c.l.b16 %v11575
      %v11640 = vunpack.c.l.b16 %v11576
      %v11641 = vunpack.c.l.b16 %v11577
      %v11642 = vunpack.c.l.b16 %v11578
      %v11643 = vunpack.c.l.b16 %v11579
      %v11644 = vunpack.c.l.b16 %v11580
      %v11645 = vunpack.c.l.b16 %v11581
      %v11646 = vunpack.c.l.b16 %v11582
      %v11647 = vunpack.c.l.b16 %v11583
      %v11648 = vunpack.c.l.b16 %v11584
      %v11649 = vunpack.c.l.b16 %v11585
      %v11650 = vunpack.c.l.b16 %v11586
      %v11651 = vunpack.c.l.b16 %v11587
      %v11652 = vunpack.c.l.b16 %v11588
      %v11653 = vunpack.c.l.b16 %v11589
      %v11654 = vunpack.c.l.b16 %v11590
      %v11655 = vunpack.c.l.b16 %v11591
      %v11656 = vunpack.c.l.b16 %v11592
      %v11657 = vunpack.c.l.b16 %v11593
      %v11658 = vpack.c.b16 %v11627, %v11626
      %v11659 = vpack.c.b16 %v11629, %v11628
      %v11660 = vpack.c.b16 %v11631, %v11630
      %v11661 = vpack.c.b16 %v11633, %v11632
      %v11662 = vpack.c.b16 %v11635, %v11634
      %v11663 = vpack.c.b16 %v11637, %v11636
      %v11664 = vpack.c.b16 %v11639, %v11638
      %v11665 = vpack.c.b16 %v11641, %v11640
      %v11666 = vpack.c.b16 %v11643, %v11642
      %v11667 = vpack.c.b16 %v11645, %v11644
      %v11668 = vpack.c.b16 %v11647, %v11646
      %v11669 = vpack.c.b16 %v11649, %v11648
      %v11670 = vpack.c.b16 %v11651, %v11650
      %v11671 = vpack.c.b16 %v11653, %v11652
      %v11672 = vpack.c.b16 %v11655, %v11654
      %v11673 = vpack.c.b16 %v11657, %v11656
      %v11675 = vshrl.u32 %v11658, 16
      %v11677 = vrot.slane %v11675, 7
      %v11678 = vshll.u32 %v11658, 16
      %v11680 = vor.u32 %v11677, %v11678
      %v11682 = vshrl.u32 %v11659, 16
      %v11684 = vrot.slane %v11682, 7
      %v11685 = vshll.u32 %v11659, 16
      %v11687 = vor.u32 %v11684, %v11685
      %v11688 = vsel %vm1239, %v11677, %v11687
      %v11690 = vshrl.u32 %v11660, 16
      %v11692 = vrot.slane %v11690, 7
      %v11693 = vshll.u32 %v11660, 16
      %v11695 = vor.u32 %v11692, %v11693
      %v11696 = vsel %vm1239, %v11684, %v11695
      %v11698 = vshrl.u32 %v11661, 16
      %v11700 = vrot.slane %v11698, 7
      %v11701 = vshll.u32 %v11661, 16
      %v11703 = vor.u32 %v11700, %v11701
      %v11704 = vsel %vm1239, %v11692, %v11703
      %v11706 = vshrl.u32 %v11662, 16
      %v11708 = vrot.slane %v11706, 7
      %v11709 = vshll.u32 %v11662, 16
      %v11711 = vor.u32 %v11708, %v11709
      %v11712 = vsel %vm1239, %v11700, %v11711
      %v11714 = vshrl.u32 %v11663, 16
      %v11716 = vrot.slane %v11714, 7
      %v11717 = vshll.u32 %v11663, 16
      %v11719 = vor.u32 %v11716, %v11717
      %v11720 = vsel %vm1239, %v11708, %v11719
      %v11722 = vshrl.u32 %v11664, 16
      %v11724 = vrot.slane %v11722, 7
      %v11725 = vshll.u32 %v11664, 16
      %v11727 = vor.u32 %v11724, %v11725
      %v11728 = vsel %vm1239, %v11716, %v11727
      %v11730 = vshrl.u32 %v11665, 16
      %v11732 = vrot.slane %v11730, 7
      %v11733 = vshll.u32 %v11665, 16
      %v11735 = vor.u32 %v11732, %v11733
      %v11736 = vsel %vm1239, %v11724, %v11735
      %v11738 = vshrl.u32 %v11666, 16
      %v11740 = vrot.slane %v11738, 7
      %v11741 = vshll.u32 %v11666, 16
      %v11743 = vor.u32 %v11740, %v11741
      %v11744 = vsel %vm1239, %v11732, %v11743
      %v11746 = vshrl.u32 %v11667, 16
      %v11748 = vrot.slane %v11746, 7
      %v11749 = vshll.u32 %v11667, 16
      %v11751 = vor.u32 %v11748, %v11749
      %v11752 = vsel %vm1239, %v11740, %v11751
      %v11754 = vshrl.u32 %v11668, 16
      %v11756 = vrot.slane %v11754, 7
      %v11757 = vshll.u32 %v11668, 16
      %v11759 = vor.u32 %v11756, %v11757
      %v11760 = vsel %vm1239, %v11748, %v11759
      %v11762 = vshrl.u32 %v11669, 16
      %v11764 = vrot.slane %v11762, 7
      %v11765 = vshll.u32 %v11669, 16
      %v11767 = vor.u32 %v11764, %v11765
      %v11768 = vsel %vm1239, %v11756, %v11767
      %v11770 = vshrl.u32 %v11670, 16
      %v11772 = vrot.slane %v11770, 7
      %v11773 = vshll.u32 %v11670, 16
      %v11775 = vor.u32 %v11772, %v11773
      %v11776 = vsel %vm1239, %v11764, %v11775
      %v11778 = vshrl.u32 %v11671, 16
      %v11780 = vrot.slane %v11778, 7
      %v11781 = vshll.u32 %v11671, 16
      %v11783 = vor.u32 %v11780, %v11781
      %v11784 = vsel %vm1239, %v11772, %v11783
      %v11786 = vshrl.u32 %v11672, 16
      %v11788 = vrot.slane %v11786, 7
      %v11789 = vshll.u32 %v11672, 16
      %v11791 = vor.u32 %v11788, %v11789
      %v11792 = vsel %vm1239, %v11780, %v11791
      %v11794 = vshrl.u32 %v11673, 16
      %v11796 = vrot.slane %v11794, 7
      %v11797 = vshll.u32 %v11673, 16
      %v11799 = vor.u32 %v11796, %v11797
      %v11800 = vsel %vm1239, %v11788, %v11799
      %v11817 = vsel %vm1384, 0, %v11680
      %v11818 = vsel %vm1568, %v11817, 0
      %v11819 = vsel %vm1575, %v11688, 0
      %v11820 = vsel %vm1582, %v11696, 0
      %v11821 = vsel %vm1589, %v11704, 0
      %v11822 = vsel %vm1596, %v11712, 0
      %v11823 = vsel %vm1603, %v11720, 0
      %v11824 = vsel %vm1610, %v11728, 0
      %v11825 = vsel %vm1617, %v11736, 0
      %v11826 = vsel %vm1624, %v11744, 0
      %v11827 = vsel %vm1631, %v11752, 0
      %v11828 = vsel %vm1638, %v11760, 0
      %v11829 = vsel %vm1645, %v11768, 0
      %v11830 = vsel %vm1652, %v11776, 0
      %v11831 = vsel %vm1659, %v11784, 0
      %v11832 = vsel %vm1666, %v11792, 0
      %v11833 = vsel %vm1673, %v11800, 0
      %v11834 = vrot.slane %v11678, 1
      %v11835 = vor.u32 %v11675, %v11834
      %v11836 = vrot.slane %v11685, 1
      %v11837 = vsel %vm1690, %v11835, %v11836
      %v11838 = vor.u32 %v11682, %v11836
      %v11839 = vrot.slane %v11693, 1
      %v11840 = vsel %vm1690, %v11838, %v11839
      %v11841 = vor.u32 %v11690, %v11839
      %v11842 = vrot.slane %v11701, 1
      %v11843 = vsel %vm1690, %v11841, %v11842
      %v11844 = vor.u32 %v11698, %v11842
      %v11845 = vrot.slane %v11709, 1
      %v11846 = vsel %vm1690, %v11844, %v11845
      %v11847 = vor.u32 %v11706, %v11845
      %v11848 = vrot.slane %v11717, 1
      %v11849 = vsel %vm1690, %v11847, %v11848
      %v11850 = vor.u32 %v11714, %v11848
      %v11851 = vrot.slane %v11725, 1
      %v11852 = vsel %vm1690, %v11850, %v11851
      %v11853 = vor.u32 %v11722, %v11851
      %v11854 = vrot.slane %v11733, 1
      %v11855 = vsel %vm1690, %v11853, %v11854
      %v11856 = vor.u32 %v11730, %v11854
      %v11857 = vrot.slane %v11741, 1
      %v11858 = vsel %vm1690, %v11856, %v11857
      %v11859 = vor.u32 %v11738, %v11857
      %v11860 = vrot.slane %v11749, 1
      %v11861 = vsel %vm1690, %v11859, %v11860
      %v11862 = vor.u32 %v11746, %v11860
      %v11863 = vrot.slane %v11757, 1
      %v11864 = vsel %vm1690, %v11862, %v11863
      %v11865 = vor.u32 %v11754, %v11863
      %v11866 = vrot.slane %v11765, 1
      %v11867 = vsel %vm1690, %v11865, %v11866
      %v11868 = vor.u32 %v11762, %v11866
      %v11869 = vrot.slane %v11773, 1
      %v11870 = vsel %vm1690, %v11868, %v11869
      %v11871 = vor.u32 %v11770, %v11869
      %v11872 = vrot.slane %v11781, 1
      %v11873 = vsel %vm1690, %v11871, %v11872
      %v11874 = vor.u32 %v11778, %v11872
      %v11875 = vrot.slane %v11789, 1
      %v11876 = vsel %vm1690, %v11874, %v11875
      %v11877 = vor.u32 %v11786, %v11875
      %v11878 = vrot.slane %v11797, 1
      %v11879 = vsel %vm1690, %v11877, %v11878
      %v11880 = vor.u32 %v11794, %v11878
      %v11897 = vsel %vm1755, %v11880, 0
      %v11898 = vsel %vm1939, %v11837, 0
      %v11899 = vsel %vm1946, %v11840, 0
      %v11900 = vsel %vm1953, %v11843, 0
      %v11901 = vsel %vm1960, %v11846, 0
      %v11902 = vsel %vm1967, %v11849, 0
      %v11903 = vsel %vm1974, %v11852, 0
      %v11904 = vsel %vm1981, %v11855, 0
      %v11905 = vsel %vm1988, %v11858, 0
      %v11906 = vsel %vm1995, %v11861, 0
      %v11907 = vsel %vm2002, %v11864, 0
      %v11908 = vsel %vm2009, %v11867, 0
      %v11909 = vsel %vm2016, %v11870, 0
      %v11910 = vsel %vm2023, %v11873, 0
      %v11911 = vsel %vm2030, %v11876, 0
      %v11912 = vsel %vm2037, %v11879, 0
      %v11913 = vsel %vm2044, %v11897, 0
      %11914 = vrot.lane.b32.xlu0 %v11658, 32
      %v11915 = vpop.permute.xlu0 %11914
      %11916 = vrot.lane.b32.xlu0 %v11659, 32
      %v11917 = vpop.permute.xlu0 %11916
      %11918 = vrot.lane.b32.xlu0 %v11660, 32
      %v11919 = vpop.permute.xlu0 %11918
      %11920 = vrot.lane.b32.xlu0 %v11661, 32
      %v11921 = vpop.permute.xlu0 %11920
      %11922 = vrot.lane.b32.xlu0 %v11662, 32
      %v11923 = vpop.permute.xlu0 %11922
      %11924 = vrot.lane.b32.xlu0 %v11663, 32
      %v11925 = vpop.permute.xlu0 %11924
      %11926 = vrot.lane.b32.xlu0 %v11664, 32
      %v11927 = vpop.permute.xlu0 %11926
      %11928 = vrot.lane.b32.xlu0 %v11665, 32
      %v11929 = vpop.permute.xlu0 %11928
      %11930 = vrot.lane.b32.xlu0 %v11666, 32
      %v11931 = vpop.permute.xlu0 %11930
      %11932 = vrot.lane.b32.xlu0 %v11667, 32
      %v11933 = vpop.permute.xlu0 %11932
      %11934 = vrot.lane.b32.xlu0 %v11668, 32
      %v11935 = vpop.permute.xlu0 %11934
      %11936 = vrot.lane.b32.xlu0 %v11669, 32
      %v11937 = vpop.permute.xlu0 %11936
      %11938 = vrot.lane.b32.xlu0 %v11670, 32
      %v11939 = vpop.permute.xlu0 %11938
      %11940 = vrot.lane.b32.xlu0 %v11671, 32
      %v11941 = vpop.permute.xlu0 %11940
      %11942 = vrot.lane.b32.xlu0 %v11672, 32
      %v11943 = vpop.permute.xlu0 %11942
      %11959 = vrot.lane.b32.xlu0 %v11898, 64
      %v11960 = vpop.permute.xlu0 %11959
      %11961 = vrot.lane.b32.xlu0 %v11899, 64
      %v11962 = vpop.permute.xlu0 %11961
      %11963 = vrot.lane.b32.xlu0 %v11900, 64
      %v11964 = vpop.permute.xlu0 %11963
      %11965 = vrot.lane.b32.xlu0 %v11901, 64
      %v11966 = vpop.permute.xlu0 %11965
      %11967 = vrot.lane.b32.xlu0 %v11902, 64
      %v11968 = vpop.permute.xlu0 %11967
      %11969 = vrot.lane.b32.xlu0 %v11903, 64
      %v11970 = vpop.permute.xlu0 %11969
      %11971 = vrot.lane.b32.xlu0 %v11904, 64
      %v11972 = vpop.permute.xlu0 %11971
      %11973 = vrot.lane.b32.xlu0 %v11905, 64
      %v11974 = vpop.permute.xlu0 %11973
      %11975 = vrot.lane.b32.xlu0 %v11906, 64
      %v11976 = vpop.permute.xlu0 %11975
      %11977 = vrot.lane.b32.xlu0 %v11907, 64
      %v11978 = vpop.permute.xlu0 %11977
      %11979 = vrot.lane.b32.xlu0 %v11908, 64
      %v11980 = vpop.permute.xlu0 %11979
      %11981 = vrot.lane.b32.xlu0 %v11909, 64
      %v11982 = vpop.permute.xlu0 %11981
      %11983 = vrot.lane.b32.xlu0 %v11910, 64
      %v11984 = vpop.permute.xlu0 %11983
      %11985 = vrot.lane.b32.xlu0 %v11911, 64
      %v11986 = vpop.permute.xlu0 %11985
      %11987 = vrot.lane.b32.xlu0 %v11912, 64
      %v11988 = vpop.permute.xlu0 %11987
      %12005 = vrot.lane.b32.xlu0 %v11818, 96
      %v12006 = vpop.permute.xlu0 %12005
      %12007 = vrot.lane.b32.xlu0 %v11819, 96
      %v12008 = vpop.permute.xlu0 %12007
      %12009 = vrot.lane.b32.xlu0 %v11820, 96
      %v12010 = vpop.permute.xlu0 %12009
      %12011 = vrot.lane.b32.xlu0 %v11821, 96
      %v12012 = vpop.permute.xlu0 %12011
      %12013 = vrot.lane.b32.xlu0 %v11822, 96
      %v12014 = vpop.permute.xlu0 %12013
      %12015 = vrot.lane.b32.xlu0 %v11823, 96
      %v12016 = vpop.permute.xlu0 %12015
      %12017 = vrot.lane.b32.xlu0 %v11824, 96
      %v12018 = vpop.permute.xlu0 %12017
      %12019 = vrot.lane.b32.xlu0 %v11825, 96
      %v12020 = vpop.permute.xlu0 %12019
      %12021 = vrot.lane.b32.xlu0 %v11826, 96
      %v12022 = vpop.permute.xlu0 %12021
      %12023 = vrot.lane.b32.xlu0 %v11827, 96
      %v12024 = vpop.permute.xlu0 %12023
      %12025 = vrot.lane.b32.xlu0 %v11828, 96
      %v12026 = vpop.permute.xlu0 %12025
      %12027 = vrot.lane.b32.xlu0 %v11829, 96
      %v12028 = vpop.permute.xlu0 %12027
      %12029 = vrot.lane.b32.xlu0 %v11830, 96
      %v12030 = vpop.permute.xlu0 %12029
      %12031 = vrot.lane.b32.xlu0 %v11831, 96
      %v12032 = vpop.permute.xlu0 %12031
      %12033 = vrot.lane.b32.xlu0 %v11832, 96
      %v12034 = vpop.permute.xlu0 %12033
      %12035 = vrot.lane.b32.xlu0 %v11833, 96
      %v12036 = vpop.permute.xlu0 %12035
      %12038 = vrot.lane.b32.xlu0 %v11898, 32
      %v12039 = vpop.permute.xlu0 %12038
      %12040 = vrot.lane.b32.xlu0 %v11899, 32
      %v12041 = vpop.permute.xlu0 %12040
      %12042 = vrot.lane.b32.xlu0 %v11900, 32
      %v12043 = vpop.permute.xlu0 %12042
      %12044 = vrot.lane.b32.xlu0 %v11901, 32
      %v12045 = vpop.permute.xlu0 %12044
      %12046 = vrot.lane.b32.xlu0 %v11902, 32
      %v12047 = vpop.permute.xlu0 %12046
      %12048 = vrot.lane.b32.xlu0 %v11903, 32
      %v12049 = vpop.permute.xlu0 %12048
      %12050 = vrot.lane.b32.xlu0 %v11904, 32
      %v12051 = vpop.permute.xlu0 %12050
      %12052 = vrot.lane.b32.xlu0 %v11905, 32
      %v12053 = vpop.permute.xlu0 %12052
      %12054 = vrot.lane.b32.xlu0 %v11906, 32
      %v12055 = vpop.permute.xlu0 %12054
      %12056 = vrot.lane.b32.xlu0 %v11907, 32
      %v12057 = vpop.permute.xlu0 %12056
      %12058 = vrot.lane.b32.xlu0 %v11908, 32
      %v12059 = vpop.permute.xlu0 %12058
      %12060 = vrot.lane.b32.xlu0 %v11909, 32
      %v12061 = vpop.permute.xlu0 %12060
      %12062 = vrot.lane.b32.xlu0 %v11910, 32
      %v12063 = vpop.permute.xlu0 %12062
      %12064 = vrot.lane.b32.xlu0 %v11911, 32
      %v12065 = vpop.permute.xlu0 %12064
      %12066 = vrot.lane.b32.xlu0 %v11912, 32
      %v12067 = vpop.permute.xlu0 %12066
      %12068 = vrot.lane.b32.xlu0 %v11913, 32
      %v12069 = vpop.permute.xlu0 %12068
      %12070 = vrot.lane.b32.xlu0 %v11819, 64
      %v12071 = vpop.permute.xlu0 %12070
      %12072 = vrot.lane.b32.xlu0 %v11820, 64
      %v12073 = vpop.permute.xlu0 %12072
      %12074 = vrot.lane.b32.xlu0 %v11821, 64
      %v12075 = vpop.permute.xlu0 %12074
      %12076 = vrot.lane.b32.xlu0 %v11822, 64
      %v12077 = vpop.permute.xlu0 %12076
      %12078 = vrot.lane.b32.xlu0 %v11823, 64
      %v12079 = vpop.permute.xlu0 %12078
      %12080 = vrot.lane.b32.xlu0 %v11824, 64
      %v12081 = vpop.permute.xlu0 %12080
      %12082 = vrot.lane.b32.xlu0 %v11825, 64
      %v12083 = vpop.permute.xlu0 %12082
      %12084 = vrot.lane.b32.xlu0 %v11826, 64
      %v12085 = vpop.permute.xlu0 %12084
      %12086 = vrot.lane.b32.xlu0 %v11827, 64
      %v12087 = vpop.permute.xlu0 %12086
      %12088 = vrot.lane.b32.xlu0 %v11828, 64
      %v12089 = vpop.permute.xlu0 %12088
      %12090 = vrot.lane.b32.xlu0 %v11829, 64
      %v12091 = vpop.permute.xlu0 %12090
      %12092 = vrot.lane.b32.xlu0 %v11830, 64
      %v12093 = vpop.permute.xlu0 %12092
      %12094 = vrot.lane.b32.xlu0 %v11831, 64
      %v12095 = vpop.permute.xlu0 %12094
      %12096 = vrot.lane.b32.xlu0 %v11832, 64
      %v12097 = vpop.permute.xlu0 %12096
      %12098 = vrot.lane.b32.xlu0 %v11833, 64
      %v12099 = vpop.permute.xlu0 %12098
      %12100 = vrot.lane.b32.xlu0 %v11659, 96
      %v12101 = vpop.permute.xlu0 %12100
      %12102 = vrot.lane.b32.xlu0 %v11660, 96
      %v12103 = vpop.permute.xlu0 %12102
      %12104 = vrot.lane.b32.xlu0 %v11661, 96
      %v12105 = vpop.permute.xlu0 %12104
      %12106 = vrot.lane.b32.xlu0 %v11662, 96
      %v12107 = vpop.permute.xlu0 %12106
      %12108 = vrot.lane.b32.xlu0 %v11663, 96
      %v12109 = vpop.permute.xlu0 %12108
      %12110 = vrot.lane.b32.xlu0 %v11664, 96
      %v12111 = vpop.permute.xlu0 %12110
      %12112 = vrot.lane.b32.xlu0 %v11665, 96
      %v12113 = vpop.permute.xlu0 %12112
      %12114 = vrot.lane.b32.xlu0 %v11666, 96
      %v12115 = vpop.permute.xlu0 %12114
      %12116 = vrot.lane.b32.xlu0 %v11667, 96
      %v12117 = vpop.permute.xlu0 %12116
      %12118 = vrot.lane.b32.xlu0 %v11668, 96
      %v12119 = vpop.permute.xlu0 %12118
      %12120 = vrot.lane.b32.xlu0 %v11669, 96
      %v12121 = vpop.permute.xlu0 %12120
      %12122 = vrot.lane.b32.xlu0 %v11670, 96
      %v12123 = vpop.permute.xlu0 %12122
      %12124 = vrot.lane.b32.xlu0 %v11671, 96
      %v12125 = vpop.permute.xlu0 %12124
      %12126 = vrot.lane.b32.xlu0 %v11672, 96
      %v12127 = vpop.permute.xlu0 %12126
      %12128 = vrot.lane.b32.xlu0 %v11673, 96
      %v12129 = vpop.permute.xlu0 %12128
      %v12132 = vsel %vm2597, %v11818, %v11915
      %v12135 = vsel %vm2597, %v11819, %v11917
      %v12138 = vsel %vm2597, %v11820, %v11919
      %v12141 = vsel %vm2597, %v11821, %v11921
      %v12144 = vsel %vm2597, %v11822, %v11923
      %v12147 = vsel %vm2597, %v11823, %v11925
      %v12150 = vsel %vm2597, %v11824, %v11927
      %v12153 = vsel %vm2597, %v11825, %v11929
      %v12156 = vsel %vm2597, %v11826, %v11931
      %v12159 = vsel %vm2597, %v11827, %v11933
      %v12162 = vsel %vm2597, %v11828, %v11935
      %v12165 = vsel %vm2597, %v11829, %v11937
      %v12168 = vsel %vm2597, %v11830, %v11939
      %v12171 = vsel %vm2597, %v11831, %v11941
      %v12174 = vsel %vm2597, %v11832, %v11943
      %v12176 = vsel %vm3430, %v12132, %v11960
      %v12178 = vsel %vm3430, %v12135, %v11962
      %v12180 = vsel %vm3430, %v12138, %v11964
      %v12182 = vsel %vm3430, %v12141, %v11966
      %v12184 = vsel %vm3430, %v12144, %v11968
      %v12186 = vsel %vm3430, %v12147, %v11970
      %v12188 = vsel %vm3430, %v12150, %v11972
      %v12190 = vsel %vm3430, %v12153, %v11974
      %v12192 = vsel %vm3430, %v12156, %v11976
      %v12194 = vsel %vm3430, %v12159, %v11978
      %v12196 = vsel %vm3430, %v12162, %v11980
      %v12198 = vsel %vm3430, %v12165, %v11982
      %v12200 = vsel %vm3430, %v12168, %v11984
      %v12202 = vsel %vm3430, %v12171, %v11986
      %v12204 = vsel %vm3430, %v12174, %v11988
      %v12206 = vsel %vm3463, %v3432, %v12006
      %v12209 = vsel %vm3463, %v12176, %v12008
      %v12212 = vsel %vm3463, %v12178, %v12010
      %v12215 = vsel %vm3463, %v12180, %v12012
      %v12218 = vsel %vm3463, %v12182, %v12014
      %v12221 = vsel %vm3463, %v12184, %v12016
      %v12224 = vsel %vm3463, %v12186, %v12018
      %v12227 = vsel %vm3463, %v12188, %v12020
      %v12230 = vsel %vm3463, %v12190, %v12022
      %v12233 = vsel %vm3463, %v12192, %v12024
      %v12236 = vsel %vm3463, %v12194, %v12026
      %v12239 = vsel %vm3463, %v12196, %v12028
      %v12242 = vsel %vm3463, %v12198, %v12030
      %v12245 = vsel %vm3463, %v12200, %v12032
      %v12248 = vsel %vm3463, %v12202, %v12034
      %v12251 = vsel %vm3463, %v12204, %v12036
      %v12254 = vsel %vm2597, %v11658, %v12039
      %v12256 = vsel %vm2597, %v11659, %v12041
      %v12258 = vsel %vm2597, %v11660, %v12043
      %v12260 = vsel %vm2597, %v11661, %v12045
      %v12262 = vsel %vm2597, %v11662, %v12047
      %v12264 = vsel %vm2597, %v11663, %v12049
      %v12266 = vsel %vm2597, %v11664, %v12051
      %v12268 = vsel %vm2597, %v11665, %v12053
      %v12270 = vsel %vm2597, %v11666, %v12055
      %v12272 = vsel %vm2597, %v11667, %v12057
      %v12274 = vsel %vm2597, %v11668, %v12059
      %v12276 = vsel %vm2597, %v11669, %v12061
      %v12278 = vsel %vm2597, %v11670, %v12063
      %v12280 = vsel %vm2597, %v11671, %v12065
      %v12282 = vsel %vm2597, %v11672, %v12067
      %v12284 = vsel %vm2597, %v11673, %v12069
      %v12286 = vsel %vm3430, %v12254, %v12071
      %v12288 = vsel %vm3430, %v12256, %v12073
      %v12290 = vsel %vm3430, %v12258, %v12075
      %v12292 = vsel %vm3430, %v12260, %v12077
      %v12294 = vsel %vm3430, %v12262, %v12079
      %v12296 = vsel %vm3430, %v12264, %v12081
      %v12298 = vsel %vm3430, %v12266, %v12083
      %v12300 = vsel %vm3430, %v12268, %v12085
      %v12302 = vsel %vm3430, %v12270, %v12087
      %v12304 = vsel %vm3430, %v12272, %v12089
      %v12306 = vsel %vm3430, %v12274, %v12091
      %v12308 = vsel %vm3430, %v12276, %v12093
      %v12310 = vsel %vm3430, %v12278, %v12095
      %v12312 = vsel %vm3430, %v12280, %v12097
      %v12314 = vsel %vm3430, %v12282, %v12099
      %v12315 = vsel %vm3430, %v12284, %v3210
      %v12317 = vsel %vm3463, %v12286, %v12101
      %v12320 = vsel %vm3463, %v12288, %v12103
      %v12323 = vsel %vm3463, %v12290, %v12105
      %v12326 = vsel %vm3463, %v12292, %v12107
      %v12329 = vsel %vm3463, %v12294, %v12109
      %v12332 = vsel %vm3463, %v12296, %v12111
      %v12335 = vsel %vm3463, %v12298, %v12113
      %v12338 = vsel %vm3463, %v12300, %v12115
      %v12341 = vsel %vm3463, %v12302, %v12117
      %v12344 = vsel %vm3463, %v12304, %v12119
      %v12347 = vsel %vm3463, %v12306, %v12121
      %v12350 = vsel %vm3463, %v12308, %v12123
      %v12353 = vsel %vm3463, %v12310, %v12125
      %v12356 = vsel %vm3463, %v12312, %v12127
      %v12359 = vsel %vm3463, %v12314, %v12129
      %v12361 = vsel %vm3463, %v12315, %v3383
      %v12363 = vld [vmem:[%s17] sm:$0xf]
      %v12364 = vld [vmem:[%s17 + $0x4] sm:$0xf]
      %v12365 = vld [vmem:[%s17 + $0x8] sm:$0xf]
      %v12366 = vld [vmem:[%s17 + $0xc] sm:$0xf]
      %v12367 = vld [vmem:[%s17 + $0x10] sm:$0xf]
      %v12368 = vld [vmem:[%s17 + $0x14] sm:$0xf]
      %v12369 = vld [vmem:[%s17 + $0x18] sm:$0xf]
      %v12370 = vld [vmem:[%s17 + $0x1c] sm:$0xf]
      %v12371 = vld [vmem:[%s17 + $0x20] sm:$0xf]
      %v12372 = vld [vmem:[%s17 + $0x24] sm:$0xf]
      %v12373 = vld [vmem:[%s17 + $0x28] sm:$0xf]
      %v12374 = vld [vmem:[%s17 + $0x2c] sm:$0xf]
      %v12375 = vld [vmem:[%s17 + $0x30] sm:$0xf]
      %v12376 = vld [vmem:[%s17 + $0x34] sm:$0xf]
      %v12377 = vld [vmem:[%s17 + $0x38] sm:$0xf]
      %v12378 = vld [vmem:[%s17 + $0x3c] sm:$0xf]
      %v12379 = vld [vmem:[%s17 + $0x40] sm:$0xf]
      %v12380 = vld [vmem:[%s17 + $0x44] sm:$0xf]
      %v12381 = vld [vmem:[%s17 + $0x48] sm:$0xf]
      %v12382 = vld [vmem:[%s17 + $0x4c] sm:$0xf]
      %v12383 = vld [vmem:[%s17 + $0x50] sm:$0xf]
      %v12384 = vld [vmem:[%s17 + $0x54] sm:$0xf]
      %v12385 = vld [vmem:[%s17 + $0x58] sm:$0xf]
      %v12386 = vld [vmem:[%s17 + $0x5c] sm:$0xf]
      %v12387 = vld [vmem:[%s17 + $0x60] sm:$0xf]
      %v12388 = vld [vmem:[%s17 + $0x64] sm:$0xf]
      %v12389 = vld [vmem:[%s17 + $0x68] sm:$0xf]
      %v12390 = vld [vmem:[%s17 + $0x6c] sm:$0xf]
      %v12391 = vld [vmem:[%s17 + $0x70] sm:$0xf]
      %v12392 = vld [vmem:[%s17 + $0x74] sm:$0xf]
      %v12393 = vld [vmem:[%s17 + $0x78] sm:$0xf]
      %v12394 = vld [vmem:[%s17 + $0x7c] sm:$0xf]
      %v12395 = vld [vmem:[%s17 + $0x80] sm:$0xf]
      %v12396 = vld [vmem:[%s17 + $0x84] sm:$0xf]
      %v12397 = vld [vmem:[%s17 + $0x88] sm:$0xf]
      %v12398 = vld [vmem:[%s17 + $0x8c] sm:$0xf]
      %v12399 = vld [vmem:[%s18] sm:$0x1]
      %v12401 = vperm.slane %v12399, 0
      %v12439 = vunpack.c.l.b16 %v12363
      %v12440 = vunpack.c.l.b16 %v12364
      %v12441 = vunpack.c.l.b16 %v12365
      %v12442 = vunpack.c.l.b16 %v12366
      %v12443 = vunpack.c.l.b16 %v12367
      %v12444 = vunpack.c.l.b16 %v12368
      %v12445 = vunpack.c.l.b16 %v12369
      %v12446 = vunpack.c.l.b16 %v12370
      %v12447 = vunpack.c.l.b16 %v12371
      %v12448 = vunpack.c.l.b16 %v12372
      %v12449 = vunpack.c.l.b16 %v12373
      %v12450 = vunpack.c.l.b16 %v12374
      %v12451 = vunpack.c.l.b16 %v12375
      %v12452 = vunpack.c.l.b16 %v12376
      %v12453 = vunpack.c.l.b16 %v12377
      %v12454 = vunpack.c.l.b16 %v12378
      %v12455 = vunpack.c.l.b16 %v12379
      %v12456 = vunpack.c.l.b16 %v12380
      %v12457 = vunpack.c.l.b16 %v12381
      %v12458 = vunpack.c.l.b16 %v12382
      %v12459 = vunpack.c.l.b16 %v12383
      %v12460 = vunpack.c.l.b16 %v12384
      %v12461 = vunpack.c.l.b16 %v12385
      %v12462 = vunpack.c.l.b16 %v12386
      %v12463 = vunpack.c.l.b16 %v12387
      %v12464 = vunpack.c.l.b16 %v12388
      %v12465 = vunpack.c.l.b16 %v12389
      %v12466 = vunpack.c.l.b16 %v12390
      %v12467 = vunpack.c.l.b16 %v12391
      %v12468 = vunpack.c.l.b16 %v12392
      %v12469 = vunpack.c.l.b16 %v12393
      %v12470 = vunpack.c.l.b16 %v12394
      %v12471 = vunpack.c.l.b16 %v12395
      %v12472 = vunpack.c.l.b16 %v12396
      %v12473 = vunpack.c.l.b16 %v12397
      %v12474 = vunpack.c.l.b16 %v12398
      %v12475 = vpack.c.b16 %v12440, %v12439
      %v12476 = vpack.c.b16 %v12442, %v12441
      %v12477 = vpack.c.b16 %v12444, %v12443
      %v12478 = vpack.c.b16 %v12446, %v12445
      %v12479 = vpack.c.b16 %v12448, %v12447
      %v12480 = vpack.c.b16 %v12450, %v12449
      %v12481 = vpack.c.b16 %v12452, %v12451
      %v12482 = vpack.c.b16 %v12454, %v12453
      %v12483 = vpack.c.b16 %v12456, %v12455
      %v12484 = vpack.c.b16 %v12458, %v12457
      %v12485 = vpack.c.b16 %v12460, %v12459
      %v12486 = vpack.c.b16 %v12462, %v12461
      %v12487 = vpack.c.b16 %v12464, %v12463
      %v12488 = vpack.c.b16 %v12466, %v12465
      %v12489 = vpack.c.b16 %v12468, %v12467
      %v12490 = vpack.c.b16 %v12470, %v12469
      %v12491 = vpack.c.b16 %v12472, %v12471
      %v12492 = vpack.c.b16 %v12474, %v12473
      %v12512 = vsel %vm2597, %v11899, 0
      %v12515 = vsel %vm2597, %v11900, 0
      %v12518 = vsel %vm2597, %v11901, 0
      %v12521 = vsel %vm2597, %v11902, 0
      %v12524 = vsel %vm2597, %v11903, 0
      %v12527 = vsel %vm2597, %v11904, 0
      %v12530 = vsel %vm2597, %v11905, 0
      %v12533 = vsel %vm2597, %v11906, 0
      %v12536 = vsel %vm2597, %v11907, 0
      %v12539 = vsel %vm2597, %v11908, 0
      %v12542 = vsel %vm2597, %v11909, 0
      %v12545 = vsel %vm2597, %v11910, 0
      %v12548 = vsel %vm2597, %v11911, 0
      %v12551 = vsel %vm2597, %v11912, 0
      %v12554 = vsel %vm2597, %v11913, 0
      %12556 = vmatpush.bf16.msra.mxu0 %v12482
      %12557 = vmatpush.bf16.msra.mxu0 %v12481
      %12558 = vmatpush.bf16.msra.mxu0 %v12480
      %12559 = vmatpush.bf16.msra.mxu0 %v12479
      %12560 = vmatpush.bf16.msra.mxu0 %v12478
      %12561 = vmatpush.bf16.msra.mxu0 %v12477
      %12562 = vmatpush.bf16.msra.mxu0 %v12476
      %12563 = vmatpush.bf16.msra.mxu0 %v12475
      %12564 = vmatmul.bf16.gmra.mxu0 %v12206
      %v12565 = vpop.f32.mrf.mxu0
      %v12566 = vadd.f32 %v12401, %v12565
      %v12567 = vpop.f32.mrf.mxu0
      %v12568 = vadd.f32 %v12401, %v12567
      %12569 = vmatmul.bf16.gmra.mxu0 %v12209
      %v12570 = vpop.f32.mrf.mxu0
      %v12571 = vadd.f32 %v12401, %v12570
      %v12572 = vpop.f32.mrf.mxu0
      %v12573 = vadd.f32 %v12401, %v12572
      %12574 = vmatmul.bf16.gmra.mxu0 %v12212
      %v12575 = vpop.f32.mrf.mxu0
      %v12576 = vadd.f32 %v12401, %v12575
      %v12577 = vpop.f32.mrf.mxu0
      %v12578 = vadd.f32 %v12401, %v12577
      %12579 = vmatmul.bf16.gmra.mxu0 %v12215
      %v12580 = vpop.f32.mrf.mxu0
      %v12581 = vadd.f32 %v12401, %v12580
      %v12582 = vpop.f32.mrf.mxu0
      %v12583 = vadd.f32 %v12401, %v12582
      %12584 = vmatmul.bf16.gmra.mxu0 %v12218
      %v12585 = vpop.f32.mrf.mxu0
      %v12586 = vadd.f32 %v12401, %v12585
      %v12587 = vpop.f32.mrf.mxu0
      %v12588 = vadd.f32 %v12401, %v12587
      %12589 = vmatmul.bf16.gmra.mxu0 %v12221
      %v12590 = vpop.f32.mrf.mxu0
      %v12591 = vadd.f32 %v12401, %v12590
      %v12592 = vpop.f32.mrf.mxu0
      %v12593 = vadd.f32 %v12401, %v12592
      %12594 = vmatmul.bf16.gmra.mxu0 %v12224
      %v12595 = vpop.f32.mrf.mxu0
      %v12596 = vadd.f32 %v12401, %v12595
      %v12597 = vpop.f32.mrf.mxu0
      %v12598 = vadd.f32 %v12401, %v12597
      %12599 = vmatmul.bf16.gmra.mxu0 %v12227
      %v12600 = vpop.f32.mrf.mxu0
      %v12601 = vadd.f32 %v12401, %v12600
      %v12602 = vpop.f32.mrf.mxu0
      %v12603 = vadd.f32 %v12401, %v12602
      %12604 = vmatmul.bf16.gmra.mxu0 %v12230
      %v12605 = vpop.f32.mrf.mxu0
      %v12606 = vadd.f32 %v12401, %v12605
      %v12607 = vpop.f32.mrf.mxu0
      %v12608 = vadd.f32 %v12401, %v12607
      %12609 = vmatmul.bf16.gmra.mxu0 %v12233
      %v12610 = vpop.f32.mrf.mxu0
      %v12611 = vadd.f32 %v12401, %v12610
      %v12612 = vpop.f32.mrf.mxu0
      %v12613 = vadd.f32 %v12401, %v12612
      %12614 = vmatmul.bf16.gmra.mxu0 %v12236
      %v12615 = vpop.f32.mrf.mxu0
      %v12616 = vadd.f32 %v12401, %v12615
      %v12617 = vpop.f32.mrf.mxu0
      %v12618 = vadd.f32 %v12401, %v12617
      %12619 = vmatmul.bf16.gmra.mxu0 %v12239
      %v12620 = vpop.f32.mrf.mxu0
      %v12621 = vadd.f32 %v12401, %v12620
      %v12622 = vpop.f32.mrf.mxu0
      %v12623 = vadd.f32 %v12401, %v12622
      %12624 = vmatmul.bf16.gmra.mxu0 %v12242
      %v12625 = vpop.f32.mrf.mxu0
      %v12626 = vadd.f32 %v12401, %v12625
      %v12627 = vpop.f32.mrf.mxu0
      %v12628 = vadd.f32 %v12401, %v12627
      %12629 = vmatmul.bf16.gmra.mxu0 %v12245
      %v12630 = vpop.f32.mrf.mxu0
      %v12631 = vadd.f32 %v12401, %v12630
      %v12632 = vpop.f32.mrf.mxu0
      %v12633 = vadd.f32 %v12401, %v12632
      %12634 = vmatmul.bf16.gmra.mxu0 %v12248
      %v12635 = vpop.f32.mrf.mxu0
      %v12636 = vadd.f32 %v12401, %v12635
      %v12637 = vpop.f32.mrf.mxu0
      %v12638 = vadd.f32 %v12401, %v12637
      %12639 = vmatmul.bf16.gmra.mxu0 %v12251
      %v12640 = vpop.f32.mrf.mxu0
      %v12641 = vadd.f32 %v12401, %v12640
      %v12642 = vpop.f32.mrf.mxu0
      %v12643 = vadd.f32 %v12401, %v12642
      %12644 = vdwg.mxu0
      %12645 = vmatpush.bf16.msra.mxu0 %v12490
      %12646 = vmatpush.bf16.msra.mxu0 %v12489
      %12647 = vmatpush.bf16.msra.mxu0 %v12488
      %12648 = vmatpush.bf16.msra.mxu0 %v12487
      %12649 = vmatpush.bf16.msra.mxu0 %v12486
      %12650 = vmatpush.bf16.msra.mxu0 %v12485
      %12651 = vmatpush.bf16.msra.mxu0 %v12484
      %12652 = vmatpush.bf16.msra.mxu0 %v12483
      %12653 = vmatmul.bf16.gmra.mxu0 %v12317
      %v12654 = vpop.f32.mrf.mxu0
      %v12655 = vadd.f32 %v12566, %v12654
      %v12656 = vpop.f32.mrf.mxu0
      %v12657 = vadd.f32 %v12568, %v12656
      %12658 = vmatmul.bf16.gmra.mxu0 %v12320
      %v12659 = vpop.f32.mrf.mxu0
      %v12660 = vadd.f32 %v12571, %v12659
      %v12661 = vpop.f32.mrf.mxu0
      %v12662 = vadd.f32 %v12573, %v12661
      %12663 = vmatmul.bf16.gmra.mxu0 %v12323
      %v12664 = vpop.f32.mrf.mxu0
      %v12665 = vadd.f32 %v12576, %v12664
      %v12666 = vpop.f32.mrf.mxu0
      %v12667 = vadd.f32 %v12578, %v12666
      %12668 = vmatmul.bf16.gmra.mxu0 %v12326
      %v12669 = vpop.f32.mrf.mxu0
      %v12670 = vadd.f32 %v12581, %v12669
      %v12671 = vpop.f32.mrf.mxu0
      %v12672 = vadd.f32 %v12583, %v12671
      %12673 = vmatmul.bf16.gmra.mxu0 %v12329
      %v12674 = vpop.f32.mrf.mxu0
      %v12675 = vadd.f32 %v12586, %v12674
      %v12676 = vpop.f32.mrf.mxu0
      %v12677 = vadd.f32 %v12588, %v12676
      %12678 = vmatmul.bf16.gmra.mxu0 %v12332
      %v12679 = vpop.f32.mrf.mxu0
      %v12680 = vadd.f32 %v12591, %v12679
      %v12681 = vpop.f32.mrf.mxu0
      %v12682 = vadd.f32 %v12593, %v12681
      %12683 = vmatmul.bf16.gmra.mxu0 %v12335
      %v12684 = vpop.f32.mrf.mxu0
      %v12685 = vadd.f32 %v12596, %v12684
      %v12686 = vpop.f32.mrf.mxu0
      %v12687 = vadd.f32 %v12598, %v12686
      %12688 = vmatmul.bf16.gmra.mxu0 %v12338
      %v12689 = vpop.f32.mrf.mxu0
      %v12690 = vadd.f32 %v12601, %v12689
      %v12691 = vpop.f32.mrf.mxu0
      %v12692 = vadd.f32 %v12603, %v12691
      %12693 = vmatmul.bf16.gmra.mxu0 %v12341
      %v12694 = vpop.f32.mrf.mxu0
      %v12695 = vadd.f32 %v12606, %v12694
      %v12696 = vpop.f32.mrf.mxu0
      %v12697 = vadd.f32 %v12608, %v12696
      %12698 = vmatmul.bf16.gmra.mxu0 %v12344
      %v12699 = vpop.f32.mrf.mxu0
      %v12700 = vadd.f32 %v12611, %v12699
      %v12701 = vpop.f32.mrf.mxu0
      %v12702 = vadd.f32 %v12613, %v12701
      %12703 = vmatmul.bf16.gmra.mxu0 %v12347
      %v12704 = vpop.f32.mrf.mxu0
      %v12705 = vadd.f32 %v12616, %v12704
      %v12706 = vpop.f32.mrf.mxu0
      %v12707 = vadd.f32 %v12618, %v12706
      %12708 = vmatmul.bf16.gmra.mxu0 %v12350
      %v12709 = vpop.f32.mrf.mxu0
      %v12710 = vadd.f32 %v12621, %v12709
      %v12711 = vpop.f32.mrf.mxu0
      %v12712 = vadd.f32 %v12623, %v12711
      %12713 = vmatmul.bf16.gmra.mxu0 %v12353
      %v12714 = vpop.f32.mrf.mxu0
      %v12715 = vadd.f32 %v12626, %v12714
      %v12716 = vpop.f32.mrf.mxu0
      %v12717 = vadd.f32 %v12628, %v12716
      %12718 = vmatmul.bf16.gmra.mxu0 %v12356
      %v12719 = vpop.f32.mrf.mxu0
      %v12720 = vadd.f32 %v12631, %v12719
      %v12721 = vpop.f32.mrf.mxu0
      %v12722 = vadd.f32 %v12633, %v12721
      %12723 = vmatmul.bf16.gmra.mxu0 %v12359
      %v12724 = vpop.f32.mrf.mxu0
      %v12725 = vadd.f32 %v12636, %v12724
      %v12726 = vpop.f32.mrf.mxu0
      %v12727 = vadd.f32 %v12638, %v12726
      %12728 = vmatmul.bf16.gmra.mxu0 %v12361
      %v12729 = vpop.f32.mrf.mxu0
      %v12730 = vadd.f32 %v12641, %v12729
      %v12731 = vpop.f32.mrf.mxu0
      %v12732 = vadd.f32 %v12643, %v12731
      %12733 = vdwg.mxu0
      %12734 = vmatpush.bf16.msra.mxu0 0
      %12735 = vmatpush.bf16.msra.mxu0 0
      %12736 = vmatpush.bf16.msra.mxu0 0
      %12737 = vmatpush.bf16.msra.mxu0 0
      %12738 = vmatpush.bf16.msra.mxu0 0
      %12739 = vmatpush.bf16.msra.mxu0 0
      %12740 = vmatpush.bf16.msra.mxu0 %v12492
      %12741 = vmatpush.bf16.msra.mxu0 %v12491
      %12742 = vmatmul.bf16.gmra.mxu0 %v12512
      %v12743 = vpop.f32.mrf.mxu0
      %v12744 = vadd.f32 %v12655, %v12743
      %v12745 = vpop.f32.mrf.mxu0
      %v12746 = vadd.f32 %v12657, %v12745
      %12747 = vmatmul.bf16.gmra.mxu0 %v12515
      %v12748 = vpop.f32.mrf.mxu0
      %v12749 = vadd.f32 %v12660, %v12748
      %v12750 = vpop.f32.mrf.mxu0
      %v12751 = vadd.f32 %v12662, %v12750
      %12752 = vmatmul.bf16.gmra.mxu0 %v12518
      %v12753 = vpop.f32.mrf.mxu0
      %v12754 = vadd.f32 %v12665, %v12753
      %v12755 = vpop.f32.mrf.mxu0
      %v12756 = vadd.f32 %v12667, %v12755
      %12757 = vmatmul.bf16.gmra.mxu0 %v12521
      %v12758 = vpop.f32.mrf.mxu0
      %v12759 = vadd.f32 %v12670, %v12758
      %v12760 = vpop.f32.mrf.mxu0
      %v12761 = vadd.f32 %v12672, %v12760
      %12762 = vmatmul.bf16.gmra.mxu0 %v12524
      %v12763 = vpop.f32.mrf.mxu0
      %v12764 = vadd.f32 %v12675, %v12763
      %v12765 = vpop.f32.mrf.mxu0
      %v12766 = vadd.f32 %v12677, %v12765
      %12767 = vmatmul.bf16.gmra.mxu0 %v12527
      %v12768 = vpop.f32.mrf.mxu0
      %v12769 = vadd.f32 %v12680, %v12768
      %v12770 = vpop.f32.mrf.mxu0
      %v12771 = vadd.f32 %v12682, %v12770
      %12772 = vmatmul.bf16.gmra.mxu0 %v12530
      %v12773 = vpop.f32.mrf.mxu0
      %v12774 = vadd.f32 %v12685, %v12773
      %v12775 = vpop.f32.mrf.mxu0
      %v12776 = vadd.f32 %v12687, %v12775
      %12777 = vmatmul.bf16.gmra.mxu0 %v12533
      %v12778 = vpop.f32.mrf.mxu0
      %v12779 = vadd.f32 %v12690, %v12778
      %v12780 = vpop.f32.mrf.mxu0
      %v12781 = vadd.f32 %v12692, %v12780
      %12782 = vmatmul.bf16.gmra.mxu0 %v12536
      %v12783 = vpop.f32.mrf.mxu0
      %v12784 = vadd.f32 %v12695, %v12783
      %v12785 = vpop.f32.mrf.mxu0
      %v12786 = vadd.f32 %v12697, %v12785
      %12787 = vmatmul.bf16.gmra.mxu0 %v12539
      %v12788 = vpop.f32.mrf.mxu0
      %v12789 = vadd.f32 %v12700, %v12788
      %v12790 = vpop.f32.mrf.mxu0
      %v12791 = vadd.f32 %v12702, %v12790
      %12792 = vmatmul.bf16.gmra.mxu0 %v12542
      %v12793 = vpop.f32.mrf.mxu0
      %v12794 = vadd.f32 %v12705, %v12793
      %v12795 = vpop.f32.mrf.mxu0
      %v12796 = vadd.f32 %v12707, %v12795
      %12797 = vmatmul.bf16.gmra.mxu0 %v12545
      %v12798 = vpop.f32.mrf.mxu0
      %v12799 = vadd.f32 %v12710, %v12798
      %v12800 = vpop.f32.mrf.mxu0
      %v12801 = vadd.f32 %v12712, %v12800
      %12802 = vmatmul.bf16.gmra.mxu0 %v12548
      %v12803 = vpop.f32.mrf.mxu0
      %v12804 = vadd.f32 %v12715, %v12803
      %v12805 = vpop.f32.mrf.mxu0
      %v12806 = vadd.f32 %v12717, %v12805
      %12807 = vmatmul.bf16.gmra.mxu0 %v12551
      %v12808 = vpop.f32.mrf.mxu0
      %v12809 = vadd.f32 %v12720, %v12808
      %v12810 = vpop.f32.mrf.mxu0
      %v12811 = vadd.f32 %v12722, %v12810
      %12812 = vmatmul.bf16.gmra.mxu0 %v12554
      %v12813 = vpop.f32.mrf.mxu0
      %v12814 = vadd.f32 %v12725, %v12813
      %v12815 = vpop.f32.mrf.mxu0
      %v12816 = vadd.f32 %v12727, %v12815
      %12817 = vmatmul.bf16.gmra.mxu0 %v3816
      %v12818 = vpop.f32.mrf.mxu0
      %v12819 = vadd.f32 %v12730, %v12818
      %v12820 = vpop.f32.mrf.mxu0
      %v12821 = vadd.f32 %v12732, %v12820
      %12822 = vdwg.mxu0
      %12823 = vst [vmem:[%s642] sm:$0xff] %v12744
      %12824 = vst [vmem:[%s642 + $0x8] sm:$0xff] %v12746
      %12825 = vst [vmem:[%s642 + $0x10] sm:$0xff] %v12749
      %12826 = vst [vmem:[%s642 + $0x18] sm:$0xff] %v12751
      %12827 = vst [vmem:[%s642 + $0x20] sm:$0xff] %v12754
      %12828 = vst [vmem:[%s642 + $0x28] sm:$0xff] %v12756
      %12829 = vst [vmem:[%s642 + $0x30] sm:$0xff] %v12759
      %12830 = vst [vmem:[%s642 + $0x38] sm:$0xff] %v12761
      %12831 = vst [vmem:[%s642 + $0x40] sm:$0xff] %v12764
      %12832 = vst [vmem:[%s642 + $0x48] sm:$0xff] %v12766
      %12833 = vst [vmem:[%s642 + $0x50] sm:$0xff] %v12769
      %12834 = vst [vmem:[%s642 + $0x58] sm:$0xff] %v12771
      %12835 = vst [vmem:[%s642 + $0x60] sm:$0xff] %v12774
      %12836 = vst [vmem:[%s642 + $0x68] sm:$0xff] %v12776
      %12837 = vst [vmem:[%s642 + $0x70] sm:$0xff] %v12779
      %12838 = vst [vmem:[%s642 + $0x78] sm:$0xff] %v12781
      %12839 = vst [vmem:[%s642 + $0x80] sm:$0xff] %v12784
      %12840 = vst [vmem:[%s642 + $0x88] sm:$0xff] %v12786
      %12841 = vst [vmem:[%s642 + $0x90] sm:$0xff] %v12789
      %12842 = vst [vmem:[%s642 + $0x98] sm:$0xff] %v12791
      %12843 = vst [vmem:[%s642 + $0xa0] sm:$0xff] %v12794
      %12844 = vst [vmem:[%s642 + $0xa8] sm:$0xff] %v12796
      %12845 = vst [vmem:[%s642 + $0xb0] sm:$0xff] %v12799
      %12846 = vst [vmem:[%s642 + $0xb8] sm:$0xff] %v12801
      %12847 = vst [vmem:[%s642 + $0xc0] sm:$0xff] %v12804
      %12848 = vst [vmem:[%s642 + $0xc8] sm:$0xff] %v12806
      %12849 = vst [vmem:[%s642 + $0xd0] sm:$0xff] %v12809
      %12850 = vst [vmem:[%s642 + $0xd8] sm:$0xff] %v12811
      %12851 = vst [vmem:[%s642 + $0xe0] sm:$0xff] %v12814
      %12852 = vst [vmem:[%s642 + $0xe8] sm:$0xff] %v12816
      %12853 = vst [vmem:[%s642 + $0xf0] sm:$0xff] %v12819
      %12854 = vst [vmem:[%s642 + $0xf8] sm:$0xff] %v12821
      %p12855 = scmp.lt.s32.totalorder %s32, 1
      %s12856 = scalar_select %p12855, %s32, 1
      %s12857 = smul.addr %s12856, 32
      %s12858 = smul.addr %s12857, 8
      %s12859 = scalar_lea.vmem %s19, %s12858
      %p12860 = scmp.lt.s32.totalorder %s32, 1
      %s12861 = scalar_select %p12860, %s32, 1
      %s12862 = smul.addr %s12861, 32
      %s12863 = smul.addr %s12862, 8
      %s12864 = scalar_lea.vmem %s20, %s12863
      // Predicated region
      $region97: #{head_model_forward.1} parent=95 // pred_check
        %p12865 = pneg %p454
      $region98: #{head_model_forward.1} parent=95 // pred_check_branch
        %12867 = sbr.rel (%p12865) target = $region100
      $region99: #{head_model_forward.1} parent=95 // pred_region
        _
      $region100: #{head_model_forward.1} parent=95 // pred_fallthru
        _
      // Predicated region
      $region101: #{head_model_forward.1} parent=95 // pred_check
        %p12868 = pneg %p480
      $region102: #{head_model_forward.1} parent=95 // pred_check_branch
        %12870 = sbr.rel (%p12868) target = $region104
      $region103: #{head_model_forward.1} parent=95 // pred_region
        _
      $region104: #{head_model_forward.1} parent=95 // pred_fallthru
        _
    $region96: #{head_model_forward.1} parent=5 // pred_fallthru
      _
    %p12871 = scmp.le.s32.totalorder 2, %s27
    // Predicated region
    $region105: #{head_model_forward.1} parent=5 // pred_check
      %p12872 = pneg %p12871
    $region106: #{head_model_forward.1} parent=5 // pred_check_branch
      %12874 = sbr.rel (%p12872) target = $region108
    $region107: #{head_model_forward.1} parent=5 // pred_region
      %s12875 = ssub.s32 %s27, 2
      // Predicated region
      $region109: #{head_model_forward.1} parent=107 // pred_check
        %p12876 = pneg %p460
      $region110: #{head_model_forward.1} parent=107 // pred_check_branch
        %12878 = sbr.rel (%p12876) target = $region112
      $region111: #{head_model_forward.1} parent=107 // pred_region
        %p12879 = scmp.lt.s32.totalorder %s33, 1
        %s12880 = scalar_select %p12879, %s33, 1
        %s12881 = smul.addr %s12880, 32
        %s12882 = smul.addr %s12881, 8
        %s12883 = scalar_lea.vmem %s19, %s12882
      $region112: #{head_model_forward.1} parent=107 // pred_fallthru
        _
      // Predicated region
      $region113: #{head_model_forward.1} parent=107 // pred_check
        %p12884 = pneg %p486
      $region114: #{head_model_forward.1} parent=107 // pred_check_branch
        %12886 = sbr.rel (%p12884) target = $region116
      $region115: #{head_model_forward.1} parent=107 // pred_region
        %p12887 = scmp.lt.s32.totalorder %s33, 1
        %s12888 = scalar_select %p12887, %s33, 1
        %s12889 = smul.addr %s12888, 32
        %s12890 = smul.addr %s12889, 8
        %s12891 = scalar_lea.vmem %s20, %s12890
      $region116: #{head_model_forward.1} parent=107 // pred_fallthru
        _
    $region108: #{head_model_forward.1} parent=5 // pred_fallthru
      _
  $region6: #{head_model_forward.1} parent=0 // loop_footer
    %s31 = sadd.s32 1, %s27
  $region7: #{head_model_forward.1} parent=0 // loop_footer_branch
    %26 = sbr.rel target = $region3
  $region8: #{head_model_forward.1} parent=0 // loop_exit
    _

</llo_original>
